<compile_context>
chip_gen: v7x
topology: tpu7x:2x2x1
jax: 0.10.0
libtpu: 0.0.40
codegen_flags: <defaults>
</compile_context>

<pallas_src>
import jax
import jax.numpy as jnp
from jax import lax
from jax.experimental import pallas as pl
from jax.experimental.pallas import tpu as pltpu


def pos_update_kernel(
    # ---- per-edge tiles --------------------------------------------------
    eidx_col_ref,   # [tE, 2]  int32   col 0 = left, col 1 = right (pad = 2N)
    eidx_row_ref,   # [2, tE]  int32   row 0 = left (scatter layout)
    edge_h_ref,     # [tE, De] mdtype
    geo_ref,        # [tE, 8]  f32     rel 0:3 | dist 3 | time 4 | pad 5:8
    # ---- resident node features & packed weights --------------------------
    node_h_ref,     # [N, Dn]  f32
    nw1_ref,        # [Dn, 2H]      mdtype  concat(left_w1, right_w1)
    nw2_ref,        # [2H, 2De]     mdtype  blockdiag(left_w2, right_w2)
    nvec_ref,       # [4, Kn]       f32     rows: b1 | gamma | beta | b2 (L|R halves)
    wbig_ref,       # [2De, 2Dn+Gh] mdtype  [[wb, 0, gw1_hi], [0, wn, gw1_lo]]
    iw1_ref,        # [Dn, Dn]      mdtype  inter_module first layer
    whead_ref,      # [Dn+Gh, 2]    mdtype  blockdiag(iw2, gw2)
    evec_ref,       # [8, Ke]       f32     gb1|gg|gbe|g_time|ib1|ig|ibe|[ib2,gb2]
    # ---- output ------------------------------------------------------------
    out_ref,        # [N, 3] f32  per-core partial accumulator (core dim squeezed)
    # ---- scratch -----------------------------------------------------------
    feat_ref,       # [2N, 2De] mdtype  blockdiag(left_feat, right_feat)
    iota_g_ref,     # [tE, 2N]  int32   cached gather iota
    iota_s_ref,     # [N, tE]   int32   cached scatter iota
):
    step = pl.program_id(1)                       # inner ("arbitrary") edge-tile axis
    f32 = jnp.float32
    mdtype = edge_h_ref.dtype
    tE, De = edge_h_ref.shape
    N, Dn = node_h_ref.shape
    H2 = nw1_ref.shape[1]                         # 2 * hidden_dim
    H = H2 // 2
    De2 = nw2_ref.shape[1]                        # 2 * edge_dim
    Gh = wbig_ref.shape[1] - 2 * Dn               # gate hidden (32)

    # full-precision passes only when operands are f32 (exactness path);
    # bf16 operands already accumulate exactly in f32 with the default pass.
    prec = lax.Precision.HIGHEST if mdtype == jnp.float32 else None

    def mdot(a, b):
        return jnp.dot(a, b, precision=prec, preferred_element_type=f32)

    # ---- once per core, at the first edge tile ---------------------------
    @pl.when(step == 0)
    def _init():
        # Hoisted node MLPs (left & right fused along the feature axis).
        nh = node_h_ref[...].astype(mdtype)
        h = mdot(nh, nw1_ref[...]) + nvec_ref[0:1, :H2]              # [N, 2H]

        def ln(x):
            mu = jnp.mean(x, axis=-1, keepdims=True)
            var = jnp.mean((x - mu) ** 2, axis=-1, keepdims=True)
            return (x - mu) * lax.rsqrt(var + 1e-5)

        h = jnp.concatenate([ln(h[:, :H]), ln(h[:, H:])], axis=-1)    # per-half LN
        h = jnp.maximum(h * nvec_ref[1:2, :H2] + nvec_ref[2:3, :H2], 0.0)
        feats = mdot(h.astype(mdtype), nw2_ref[...]) + nvec_ref[3:4, :De2]  # [N, 2De]

        # Block-diagonal feature matrix: rows 0:N -> [lfeat | 0], N:2N -> [0 | rfeat].
        z_nd = jnp.zeros((N, De), f32)
        top = jnp.concatenate([feats[:, :De], z_nd], axis=-1)
        bot = jnp.concatenate([z_nd, feats[:, De:]], axis=-1)
        feat_ref[...] = jnp.concatenate([top, bot], axis=0).astype(mdtype)

        # Cached iota constants for one-hot construction.
        iota_g_ref[...] = lax.broadcasted_iota(jnp.int32, (tE, 2 * N), 1)
        iota_s_ref[...] = lax.broadcasted_iota(jnp.int32, (N, tE), 0)

        out_ref[...] = jnp.zeros_like(out_ref)

    # ---- fused gather: one [tE, 2N] one-hot picks (left_feat | right_feat) ----
    left_col = eidx_col_ref[:, 0:1]                                   # [tE, 1]
    right_col = eidx_col_ref[:, 1:2]
    iota_g = iota_g_ref[...]
    oh = jnp.logical_or(iota_g == left_col, iota_g == right_col + N).astype(mdtype)
    lr = mdot(oh, feat_ref[...])                                      # [tE, 2De]
    left_feat, right_feat = lr[:, :De], lr[:, De:]
    pair = left_feat * right_feat                                     # [tE, De] f32

    # ---- fused first layer: concat(edge_h, pair) @ [[wb,0,gw1_hi],[0,wn,gw1_lo]]
    x = jnp.concatenate([edge_h_ref[...], pair.astype(mdtype)], axis=-1)
    y = mdot(x, wbig_ref[...])                                        # [tE, 2Dn+Gh]
    bond_feat = y[:, :Dn]
    node_feat = y[:, Dn:2 * Dn]
    t = geo_ref[:, 4:5]                                               # edge time
    gate_pre = y[:, 2 * Dn:] + t * evec_ref[3:4, :Gh] + evec_ref[0:1, :Gh]

    # ---- inter_module hidden (MLP on bond_feat * node_feat) ----------------
    ih = mdot((bond_feat * node_feat).astype(mdtype), iw1_ref[...]) + evec_ref[4:5, :Dn]
    mu = jnp.mean(ih, axis=-1, keepdims=True)
    var = jnp.mean((ih - mu) ** 2, axis=-1, keepdims=True)
    ih = (ih - mu) * lax.rsqrt(var + 1e-5) * evec_ref[5:6, :Dn] + evec_ref[6:7, :Dn]
    ih = jnp.maximum(ih, 0.0)

    # ---- gate hidden (LN + ReLU on fused pre-activation) -------------------
    mu = jnp.mean(gate_pre, axis=-1, keepdims=True)
    var = jnp.mean((gate_pre - mu) ** 2, axis=-1, keepdims=True)
    gh = (gate_pre - mu) * lax.rsqrt(var + 1e-5) * evec_ref[1:2, :Gh] + evec_ref[2:3, :Gh]
    gh = jnp.maximum(gh, 0.0)

    # ---- fused 1-wide heads: [tE, Dn+Gh] @ blockdiag(iw2, gw2) -> [tE, 2] ----
    heads = mdot(jnp.concatenate([ih, gh], axis=-1).astype(mdtype), whead_ref[...])
    heads = heads + evec_ref[7:8, :2]
    weight_edge = heads[:, 0:1] * jax.nn.sigmoid(heads[:, 1:2])       # [tE, 1]

    # ---- force & scatter-add (f32: the one-hot matmul is exact, force isn't) --
    rel = geo_ref[:, 0:3]
    dist = geo_ref[:, 3:4]
    inv = pl.reciprocal(dist * (dist + 1.0), approx=False)
    force = weight_edge * rel * inv                                   # [tE, 3] f32

    sc = (iota_s_ref[...] == eidx_row_ref[0:1, :]).astype(f32)        # [N, tE]
    out_ref[...] += jnp.dot(sc, force, precision=lax.Precision.HIGHEST,
                            preferred_element_type=f32)


def pack_params(p, compute_dtype):
    """Pack the raw per-layer parameters into 7 lane-dense slabs."""
    f32 = jnp.float32
    md = compute_dtype
    Dn, H = p['lw1'].shape
    De = p['lw2'].shape[1]
    Gh = p['gw1'].shape[1]

    def row(v, K):
        v = jnp.asarray(v, f32).reshape(1, -1)
        return jnp.pad(v, ((0, 0), (0, K - v.shape[1])))

    # node MLPs: left/right fused along features; second layer block-diagonal.
    nw1 = jnp.concatenate([p['lw1'], p['rw1']], axis=1).astype(md)          # [Dn, 2H]
    z_hd = jnp.zeros((H, De), f32)
    nw2 = jnp.concatenate(
        [jnp.concatenate([p['lw2'], z_hd], axis=1),
         jnp.concatenate([z_hd, p['rw2']], axis=1)], axis=0).astype(md)     # [2H, 2De]
    Kn = max(2 * H, 2 * De)
    nvec = jnp.concatenate(
        [row(jnp.concatenate([p['lb1'], p['rb1']]), Kn),
         row(jnp.concatenate([p['lg'], p['rg']]), Kn),
         row(jnp.concatenate([p['lbe'], p['rbe']]), Kn),
         row(jnp.concatenate([p['lb2'], p['rb2']]), Kn)], axis=0)           # [4, Kn]

    # fused first layer [[wb, 0, gw1_edge], [0, wn, gw1_pair]].
    z_dd = jnp.zeros((De, Dn), f32)
    w_big = jnp.concatenate(
        [jnp.concatenate([p['wb'], z_dd, p['gw1'][:De]], axis=1),
         jnp.concatenate([z_dd, p['wn'], p['gw1'][De:2 * De]], axis=1)],
        axis=0).astype(md)                                                  # [2De, 2Dn+Gh]
    iw1 = p['iw1'].astype(md)
    w_head = jnp.concatenate(
        [jnp.concatenate([p['iw2'], jnp.zeros((Dn, 1), f32)], axis=1),
         jnp.concatenate([jnp.zeros((Gh, 1), f32), p['gw2']], axis=1)],
        axis=0).astype(md)                                                  # [Dn+Gh, 2]

    Ke = max(Dn, Gh, 2)
    evec = jnp.concatenate(
        [row(p['gb1'], Ke), row(p['gg'], Ke), row(p['gbe'], Ke),
         row(p['gw1'][2 * De], Ke),                                         # time weight row
         row(p['ib1'], Ke), row(p['ig'], Ke), row(p['ibe'], Ke),
         row(jnp.concatenate([p['ib2'], p['gb2']]), Ke)], axis=0)           # [8, Ke]
    return (nw1, nw2, nvec, w_big, iw1, w_head, evec)


def pos_update(node_h, edge_h, edge_index, relative_vec, distance, edge_time,
               params, *, edge_tile=512, num_cores=2, compute_dtype=jnp.bfloat16,
               vmem_limit_bytes=None):
    """PosUpdate.forward as a Pallas TPU kernel (edge axis tiled over the grid)."""
    N, Dn = node_h.shape
    E, De = edge_h.shape
    f32 = jnp.float32
    md = compute_dtype

    # tE is the lane dim of the [2, tE] scatter-layout index block -> multiple of 128.
    tE = ((max(128, int(edge_tile)) + 127) // 128) * 128
    num_cores = max(1, int(num_cores))
    steps_per_core = pl.cdiv(E, num_cores * tE)
    E_pad = num_cores * steps_per_core * tE
    pad = E_pad - E

    # Padded edges: index 2N never matches the gather ([0,2N)) or scatter ([0,N))
    # one-hots; rel = 0, dist = 1, time = 0, edge_h = 0 -> exact zero contribution.
    PAD_IDX = 2 * N
    eidx_row = jnp.pad(edge_index.astype(jnp.int32), ((0, 0), (0, pad)),
                       constant_values=PAD_IDX)
    eidx_col = eidx_row.T
    edge_h_p = jnp.pad(edge_h.astype(md), ((0, pad), (0, 0)))
    rel_p = jnp.pad(relative_vec.astype(f32), ((0, pad), (0, 0)))
    dist_p = jnp.pad(distance.reshape(-1, 1).astype(f32), ((0, pad), (0, 0)),
                     constant_values=1.0)
    time_p = jnp.pad(edge_time.reshape(-1, 1).astype(f32), ((0, pad), (0, 0)))
    geo = jnp.concatenate([rel_p, dist_p, time_p, jnp.zeros((E_pad, 3), f32)], axis=1)

    weights = pack_params(params, md)

    if vmem_limit_bytes is None:
        m_item = jnp.dtype(md).itemsize
        w_bytes = sum(int(w.size) * w.dtype.itemsize for w in weights)
        resident = 4 * N * Dn + w_bytes + 4 * N * 3
        scratch = (2 * N) * (2 * De) * m_item + tE * (2 * N) * 4 + N * tE * 4
        edge_tiles = 2 * (tE * De * m_item + tE * 8 * 4 + tE * 2 * 4 + 2 * tE * 4)
        onehot_tmp = 6 * tE * (2 * N) * 4
        vmem_limit_bytes = int(min(max(resident + scratch + edge_tiles + onehot_tmp
                                       + (8 << 20), 32 << 20), 100 << 20))
        # TODO(synk): on v7x (64 MiB physical VMEM) size edge_tile so this stays <= ~48 MiB.

    const = lambda c, j: (0, 0)
    edge_block = lambda c, j: (c * steps_per_core + j, 0)
    edge_block_t = lambda c, j: (0, c * steps_per_core + j)

    grid_spec = pltpu.PrefetchScalarGridSpec(
        num_scalar_prefetch=0,
        grid=(num_cores, steps_per_core),
        in_specs=[
            pl.BlockSpec((tE, 2), edge_block),          # edge indices (gather layout)
            pl.BlockSpec((2, tE), edge_block_t),        # edge indices (scatter layout)
            pl.BlockSpec((tE, De), edge_block),         # edge_h
            pl.BlockSpec((tE, 8), edge_block),          # packed rel/dist/time
            pl.BlockSpec((N, Dn), const),               # node_h (resident)
        ] + [pl.BlockSpec(w.shape, const) for w in weights],
        out_specs=pl.BlockSpec((None, N, 3), lambda c, j: (c, 0, 0)),
        scratch_shapes=[
            pltpu.VMEM((2 * N, 2 * De), md),            # blockdiag(lfeat, rfeat)
            pltpu.VMEM((tE, 2 * N), jnp.int32),         # cached gather iota
            pltpu.VMEM((N, tE), jnp.int32),             # cached scatter iota
        ],
    )

    out = pl.pallas_call(
        pos_update_kernel,
        out_shape=jax.ShapeDtypeStruct((num_cores, N, 3), f32),
        grid_spec=grid_spec,
        compiler_params=pltpu.CompilerParams(
            dimension_semantics=("parallel", "arbitrary"),
            vmem_limit_bytes=vmem_limit_bytes,
        ),
    )(eidx_col, eidx_row, edge_h_p, geo, node_h.astype(f32), *weights)
    return out.sum(axis=0)                              # reduce per-core partials


def init_params(key, node_dim, edge_dim, hidden_dim, gate_hidden=32):
    ks = iter(jax.random.split(key, 40))
    f32 = jnp.float32

    def w(i, o):
        return jax.random.normal(next(ks), (i, o), f32) / jnp.sqrt(jnp.float32(i))

    def b(o):
        return 0.1 * jax.random.normal(next(ks), (o,), f32)

    def mlp(i, o, h, pfx):
        return {pfx + 'w1': w(i, h), pfx + 'b1': b(h),
                pfx + 'g': 1.0 + 0.05 * jax.random.normal(next(ks), (h,), f32),
                pfx + 'be': b(h),
                pfx + 'w2': w(h, o), pfx + 'b2': b(o)}

    p = {}
    p.update(mlp(node_dim, edge_dim, hidden_dim, 'l'))        # left_lin_edge
    p.update(mlp(node_dim, edge_dim, hidden_dim, 'r'))        # right_lin_edge
    p['wb'] = w(edge_dim, node_dim)                           # bond_linear (no bias)
    p['wn'] = w(edge_dim, node_dim)                           # node_linear (no bias)
    p.update(mlp(node_dim, 1, node_dim, 'i'))                 # inter_module
    p.update(mlp(2 * edge_dim + 1, 1, gate_hidden, 'g'))      # gate
    return p


def ref_forward(node_h, edge_h, edge_index, relative_vec, distance, edge_time, p):
    def mlp(x, pfx):
        h = x @ p[pfx + 'w1'] + p[pfx + 'b1']
        mu = h.mean(-1, keepdims=True)
        var = ((h - mu) ** 2).mean(-1, keepdims=True)
        h = (h - mu) / jnp.sqrt(var + 1e-5) * p[pfx + 'g'] + p[pfx + 'be']
        h = jnp.maximum(h, 0.0)
        return h @ p[pfx + 'w2'] + p[pfx + 'b2']

    left, right = edge_index[0], edge_index[1]
    lf = mlp(node_h[left], 'l')
    rf = mlp(node_h[right], 'r')
    pair = lf * rf
    inter = mlp((edge_h @ p['wb']) * (pair @ p['wn']), 'i')
    gate = mlp(jnp.concatenate([edge_h, pair, edge_time], axis=-1), 'g')
    weight_edge = inter * jax.nn.sigmoid(gate)
    d = distance.reshape(-1, 1)
    force = weight_edge * relative_vec / d / (d + 1.0)
    return jnp.zeros((node_h.shape[0], 3), jnp.float32).at[left].add(force)


if __name__ == "__main__":
    # Accurate f32 reference (avoid XLA's default bf16-pass f32 matmuls).
    jax.config.update("jax_default_matmul_precision", "highest")

    key = jax.random.PRNGKey(0)
    node_dim = edge_dim = hidden_dim = 32
    N, E = 16, 200
    k = jax.random.split(key, 8)

    node_h = jax.random.normal(k[0], (N, node_dim), jnp.float32)
    edge_h = jax.random.normal(k[1], (E, edge_dim), jnp.float32)
    edge_index = jax.random.randint(k[2], (2, E), 0, N, dtype=jnp.int32)
    pos = jax.random.normal(k[3], (N, 3), jnp.float32)
    relative_vec = pos[edge_index[0]] - pos[edge_index[1]]
    distance = jnp.linalg.norm(relative_vec, axis=-1) + 1e-2   # strictly positive
    edge_time = jax.random.uniform(k[4], (E, 1), jnp.float32)
    params = init_params(k[5], node_dim, edge_dim, hidden_dim)

    ref = ref_forward(node_h, edge_h, edge_index, relative_vec, distance, edge_time, params)

    # 1) Exactness of the fused/packed structure: f32 matmul path, multi-step
    #    "arbitrary" accumulation (E=200 > tE=128).
    out_f32 = pos_update(node_h, edge_h, edge_index, relative_vec, distance, edge_time,
                         params, compute_dtype=jnp.float32, edge_tile=128, num_cores=1)
    out_f32 = jax.block_until_ready(out_f32)
    assert out_f32.shape == (N, 3)
    err = float(jnp.max(jnp.abs(out_f32 - ref)))
    assert jnp.allclose(out_f32, ref, atol=3e-3, rtol=3e-3), err

    # 2) Default fast path: bf16 MXU operands (f32 accumulation), 512-wide edge
    #    tiles, two-core "parallel" split of the edge axis.
    out = pos_update(node_h, edge_h, edge_index, relative_vec, distance, edge_time, params)
    out = jax.block_until_ready(out)
    assert out.shape == (N, 3)
    err = float(jnp.max(jnp.abs(out - ref)))
    assert jnp.allclose(out, ref, atol=5e-2, rtol=5e-2), err

    print("KERNEL_OK")
</pallas_src>

<mosaic_0001>
module attributes {stable_mosaic.version = 11 : i64} {
  func.func @pos_update_kernel(%arg0: i32, %arg1: i32, %arg2: memref<128x2xi32, #tpu.memory_space<vmem>>, %arg3: memref<2x128xi32, #tpu.memory_space<vmem>>, %arg4: memref<128x32xf32, #tpu.memory_space<vmem>>, %arg5: memref<128x8xf32, #tpu.memory_space<vmem>>, %arg6: memref<16x32xf32, #tpu.memory_space<vmem>>, %arg7: memref<32x64xf32, #tpu.memory_space<vmem>>, %arg8: memref<64x64xf32, #tpu.memory_space<vmem>>, %arg9: memref<4x64xf32, #tpu.memory_space<vmem>>, %arg10: memref<64x96xf32, #tpu.memory_space<vmem>>, %arg11: memref<32x32xf32, #tpu.memory_space<vmem>>, %arg12: memref<64x2xf32, #tpu.memory_space<vmem>>, %arg13: memref<8x32xf32, #tpu.memory_space<vmem>>, %arg14: memref<1x16x3xf32, #tpu.memory_space<vmem>>, %arg15: memref<32x64xf32, #tpu.memory_space<vmem>>, %arg16: memref<128x32xi32, #tpu.memory_space<vmem>>, %arg17: memref<16x128xi32, #tpu.memory_space<vmem>>) attributes {dimension_semantics = [#tpu.dimension_semantics<parallel>, #tpu.dimension_semantics<arbitrary>], iteration_bounds = array<i64: 1, 2>, scalar_prefetch = 0 : i64, scratch_operands = 3 : i64, tpu.core_type = #tpu.core_type<tc>, window_params = [{transform_indices = @transform_0, window_bounds = array<i64: 128, 2>}, {transform_indices = @transform_1, window_bounds = array<i64: 2, 128>}, {transform_indices = @transform_2, window_bounds = array<i64: 128, 32>}, {transform_indices = @transform_3, window_bounds = array<i64: 128, 8>}, {pipeline_mode = #tpu.pipeline_mode<synchronous>, transform_indices = @transform_4, window_bounds = array<i64: 16, 32>}, {pipeline_mode = #tpu.pipeline_mode<synchronous>, transform_indices = @transform_5, window_bounds = array<i64: 32, 64>}, {pipeline_mode = #tpu.pipeline_mode<synchronous>, transform_indices = @transform_6, window_bounds = array<i64: 64, 64>}, {pipeline_mode = #tpu.pipeline_mode<synchronous>, transform_indices = @transform_7, window_bounds = array<i64: 4, 64>}, {pipeline_mode = #tpu.pipeline_mode<synchronous>, transform_indices = @transform_8, window_bounds = array<i64: 64, 96>}, {pipeline_mode = #tpu.pipeline_mode<synchronous>, transform_indices = @transform_9, window_bounds = array<i64: 32, 32>}, {pipeline_mode = #tpu.pipeline_mode<synchronous>, transform_indices = @transform_10, window_bounds = array<i64: 64, 2>}, {pipeline_mode = #tpu.pipeline_mode<synchronous>, transform_indices = @transform_11, window_bounds = array<i64: 8, 32>}, {transform_indices = @transform_12, window_bounds = array<i64: 1, 16, 3>}]} {
    %c0_i32 = arith.constant 0 : i32
    %0 = arith.cmpi eq, %arg1, %c0_i32 : i32
    %1 = arith.extui %0 : i1 to i32
    %c0_i32_0 = arith.constant 0 : i32
    %2 = arith.cmpi ne, %1, %c0_i32_0 : i32
    scf.if %2 {
      %c0_59 = arith.constant 0 : index
      %c0_60 = arith.constant 0 : index
      %131 = vector.load %arg6[%c0_59, %c0_60] : memref<16x32xf32, #tpu.memory_space<vmem>>, vector<16x32xf32>
      %c0_61 = arith.constant 0 : index
      %c0_62 = arith.constant 0 : index
      %132 = vector.load %arg7[%c0_61, %c0_62] : memref<32x64xf32, #tpu.memory_space<vmem>>, vector<32x64xf32>
      %cst_63 = arith.constant dense<0.000000e+00> : vector<16x64xf32>
      %133 = tpu.matmul %131, %132, %cst_63 {dimension_numbers = #tpu.dot_dimension_numbers<[1], [0], [0], [1], [0, 0, 1, 1], [], []>, precision = #tpu.contract_precision<fp32>} : vector<16x32xf32>, vector<32x64xf32>, vector<16x64xf32> -> vector<16x64xf32>
      %c0_64 = arith.constant 0 : index
      %c0_65 = arith.constant 0 : index
      %134 = vector.load %arg9[%c0_64, %c0_65] : memref<4x64xf32, #tpu.memory_space<vmem>>, vector<1x64xf32>
      %135 = vector.broadcast %134 : vector<1x64xf32> to vector<16x64xf32>
      %136 = arith.addf %133, %135 : vector<16x64xf32>
      %137 = vector.extract_strided_slice %136 {offsets = [0, 0], sizes = [16, 32], strides = [1, 1]} : vector<16x64xf32> to vector<16x32xf32>
      %cst_66 = arith.constant dense<0.000000e+00> : vector<16xf32>
      %138 = vector.multi_reduction <add>, %137, %cst_66 [1] : vector<16x32xf32> to vector<16xf32>
      %139 = vector.shape_cast %138 : vector<16xf32> to vector<16x1xf32>
      %cst_67 = arith.constant 3.200000e+01 : f32
      %140 = vector.broadcast %cst_67 : f32 to vector<16x1xf32>
      %141 = arith.divf %139, %140 : vector<16x1xf32>
      %142 = vector.broadcast %141 : vector<16x1xf32> to vector<16x32xf32>
      %143 = arith.subf %137, %142 : vector<16x32xf32>
      %144 = arith.mulf %143, %143 : vector<16x32xf32>
      %cst_68 = arith.constant dense<0.000000e+00> : vector<16xf32>
      %145 = vector.multi_reduction <add>, %144, %cst_68 [1] : vector<16x32xf32> to vector<16xf32>
      %146 = vector.shape_cast %145 : vector<16xf32> to vector<16x1xf32>
      %cst_69 = arith.constant 3.200000e+01 : f32
      %147 = vector.broadcast %cst_69 : f32 to vector<16x1xf32>
      %148 = arith.divf %146, %147 : vector<16x1xf32>
      %149 = vector.broadcast %141 : vector<16x1xf32> to vector<16x32xf32>
      %150 = arith.subf %137, %149 : vector<16x32xf32>
      %cst_70 = arith.constant 9.99999974E-6 : f32
      %151 = vector.broadcast %cst_70 : f32 to vector<16x1xf32>
      %152 = arith.addf %148, %151 : vector<16x1xf32>
      %153 = math.rsqrt %152 : vector<16x1xf32>
      %154 = vector.broadcast %153 : vector<16x1xf32> to vector<16x32xf32>
      %155 = arith.mulf %150, %154 : vector<16x32xf32>
      %156 = vector.extract_strided_slice %136 {offsets = [0, 32], sizes = [16, 32], strides = [1, 1]} : vector<16x64xf32> to vector<16x32xf32>
      %cst_71 = arith.constant dense<0.000000e+00> : vector<16xf32>
      %157 = vector.multi_reduction <add>, %156, %cst_71 [1] : vector<16x32xf32> to vector<16xf32>
      %158 = vector.shape_cast %157 : vector<16xf32> to vector<16x1xf32>
      %cst_72 = arith.constant 3.200000e+01 : f32
      %159 = vector.broadcast %cst_72 : f32 to vector<16x1xf32>
      %160 = arith.divf %158, %159 : vector<16x1xf32>
      %161 = vector.broadcast %160 : vector<16x1xf32> to vector<16x32xf32>
      %162 = arith.subf %156, %161 : vector<16x32xf32>
      %163 = arith.mulf %162, %162 : vector<16x32xf32>
      %cst_73 = arith.constant dense<0.000000e+00> : vector<16xf32>
      %164 = vector.multi_reduction <add>, %163, %cst_73 [1] : vector<16x32xf32> to vector<16xf32>
      %165 = vector.shape_cast %164 : vector<16xf32> to vector<16x1xf32>
      %cst_74 = arith.constant 3.200000e+01 : f32
      %166 = vector.broadcast %cst_74 : f32 to vector<16x1xf32>
      %167 = arith.divf %165, %166 : vector<16x1xf32>
      %168 = vector.broadcast %160 : vector<16x1xf32> to vector<16x32xf32>
      %169 = arith.subf %156, %168 : vector<16x32xf32>
      %cst_75 = arith.constant 9.99999974E-6 : f32
      %170 = vector.broadcast %cst_75 : f32 to vector<16x1xf32>
      %171 = arith.addf %167, %170 : vector<16x1xf32>
      %172 = math.rsqrt %171 : vector<16x1xf32>
      %173 = vector.broadcast %172 : vector<16x1xf32> to vector<16x32xf32>
      %174 = arith.mulf %169, %173 : vector<16x32xf32>
      %175 = tpu.concatenate %155, %174 in 1 : vector<16x32xf32>, vector<16x32xf32> -> vector<16x64xf32>
      %c1_76 = arith.constant 1 : index
      %c0_77 = arith.constant 0 : index
      %176 = vector.load %arg9[%c1_76, %c0_77] : memref<4x64xf32, #tpu.memory_space<vmem>>, vector<1x64xf32>
      %177 = vector.broadcast %176 : vector<1x64xf32> to vector<16x64xf32>
      %178 = arith.mulf %175, %177 : vector<16x64xf32>
      %c2_78 = arith.constant 2 : index
      %c0_79 = arith.constant 0 : index
      %179 = vector.load %arg9[%c2_78, %c0_79] : memref<4x64xf32, #tpu.memory_space<vmem>>, vector<1x64xf32>
      %180 = vector.broadcast %179 : vector<1x64xf32> to vector<16x64xf32>
      %181 = arith.addf %178, %180 : vector<16x64xf32>
      %cst_80 = arith.constant 0.000000e+00 : f32
      %182 = vector.broadcast %cst_80 : f32 to vector<16x64xf32>
      %183 = arith.maximumf %181, %182 : vector<16x64xf32>
      %c0_81 = arith.constant 0 : index
      %c0_82 = arith.constant 0 : index
      %184 = vector.load %arg8[%c0_81, %c0_82] : memref<64x64xf32, #tpu.memory_space<vmem>>, vector<64x64xf32>
      %cst_83 = arith.constant dense<0.000000e+00> : vector<16x64xf32>
      %185 = tpu.matmul %183, %184, %cst_83 {dimension_numbers = #tpu.dot_dimension_numbers<[1], [0], [0], [1], [0, 0, 1, 1], [], []>, precision = #tpu.contract_precision<fp32>} : vector<16x64xf32>, vector<64x64xf32>, vector<16x64xf32> -> vector<16x64xf32>
      %c3_84 = arith.constant 3 : index
      %c0_85 = arith.constant 0 : index
      %186 = vector.load %arg9[%c3_84, %c0_85] : memref<4x64xf32, #tpu.memory_space<vmem>>, vector<1x64xf32>
      %187 = vector.broadcast %186 : vector<1x64xf32> to vector<16x64xf32>
      %188 = arith.addf %185, %187 : vector<16x64xf32>
      %cst_86 = arith.constant 0.000000e+00 : f32
      %189 = vector.broadcast %cst_86 : f32 to vector<16x32xf32>
      %190 = vector.extract_strided_slice %188 {offsets = [0, 0], sizes = [16, 32], strides = [1, 1]} : vector<16x64xf32> to vector<16x32xf32>
      %191 = tpu.concatenate %190, %189 in 1 : vector<16x32xf32>, vector<16x32xf32> -> vector<16x64xf32>
      %192 = vector.extract_strided_slice %188 {offsets = [0, 32], sizes = [16, 32], strides = [1, 1]} : vector<16x64xf32> to vector<16x32xf32>
      %193 = tpu.concatenate %189, %192 in 1 : vector<16x32xf32>, vector<16x32xf32> -> vector<16x64xf32>
      %194 = tpu.concatenate %191, %193 in 0 : vector<16x64xf32>, vector<16x64xf32> -> vector<32x64xf32>
      %c0_87 = arith.constant 0 : index
      %c0_88 = arith.constant 0 : index
      %195 = vector.load %arg15[%c0_87, %c0_88] : memref<32x64xf32, #tpu.memory_space<vmem>>, vector<32x64xf32>
      tpu.vector_store %arg15[%c0_87, %c0_88], %194 {strides = array<i32>} : memref<32x64xf32, #tpu.memory_space<vmem>>, vector<32x64xf32>,
      %196 = tpu.iota {dimensions = array<i32: 1>} : vector<128x32xi32>
      %c0_89 = arith.constant 0 : index
      %c0_90 = arith.constant 0 : index
      %197 = vector.load %arg16[%c0_89, %c0_90] : memref<128x32xi32, #tpu.memory_space<vmem>>, vector<128x32xi32>
      tpu.vector_store %arg16[%c0_89, %c0_90], %196 {strides = array<i32>} : memref<128x32xi32, #tpu.memory_space<vmem>>, vector<128x32xi32>,
      %198 = tpu.iota {dimensions = array<i32: 0>} : vector<16x128xi32>
      %c0_91 = arith.constant 0 : index
      %c0_92 = arith.constant 0 : index
      %199 = vector.load %arg17[%c0_91, %c0_92] : memref<16x128xi32, #tpu.memory_space<vmem>>, vector<16x128xi32>
      tpu.vector_store %arg17[%c0_91, %c0_92], %198 {strides = array<i32>} : memref<16x128xi32, #tpu.memory_space<vmem>>, vector<16x128xi32>,
      %cst_93 = arith.constant 0.000000e+00 : f32
      %200 = vector.broadcast %cst_93 : f32 to vector<16x3xf32>
      %c0_94 = arith.constant 0 : index
      %c0_95 = arith.constant 0 : index
      %c0_96 = arith.constant 0 : index
      %201 = vector.load %arg14[%c0_94, %c0_95, %c0_96] : memref<1x16x3xf32, #tpu.memory_space<vmem>>, vector<1x16x3xf32>
      %202 = vector.shape_cast %201 : vector<1x16x3xf32> to vector<16x3xf32>
      %203 = vector.shape_cast %200 : vector<16x3xf32> to vector<1x16x3xf32>
      tpu.vector_store %arg14[%c0_94, %c0_95, %c0_96], %203 {strides = array<i32>} : memref<1x16x3xf32, #tpu.memory_space<vmem>>, vector<1x16x3xf32>,
    } else {
    }
    %c0 = arith.constant 0 : index
    %c0_1 = arith.constant 0 : index
    %3 = vector.load %arg2[%c0, %c0_1] : memref<128x2xi32, #tpu.memory_space<vmem>>, vector<128x1xi32>
    %c0_2 = arith.constant 0 : index
    %c1 = arith.constant 1 : index
    %4 = vector.load %arg2[%c0_2, %c1] : memref<128x2xi32, #tpu.memory_space<vmem>>, vector<128x1xi32>
    %c0_3 = arith.constant 0 : index
    %c0_4 = arith.constant 0 : index
    %5 = vector.load %arg16[%c0_3, %c0_4] : memref<128x32xi32, #tpu.memory_space<vmem>>, vector<128x32xi32>
    %6 = vector.broadcast %3 : vector<128x1xi32> to vector<128x32xi32>
    %7 = arith.cmpi eq, %5, %6 : vector<128x32xi32>
    %c16_i32 = arith.constant 16 : i32
    %8 = vector.broadcast %c16_i32 : i32 to vector<128x1xi32>
    %9 = arith.addi %4, %8 : vector<128x1xi32>
    %10 = vector.broadcast %9 : vector<128x1xi32> to vector<128x32xi32>
    %11 = arith.cmpi eq, %5, %10 : vector<128x32xi32>
    %12 = arith.ori %7, %11 : vector<128x32xi1>
    %13 = arith.extui %12 : vector<128x32xi1> to vector<128x32xi32>
    %14 = arith.sitofp %13 : vector<128x32xi32> to vector<128x32xf32>
    %c0_5 = arith.constant 0 : index
    %c0_6 = arith.constant 0 : index
    %15 = vector.load %arg15[%c0_5, %c0_6] : memref<32x64xf32, #tpu.memory_space<vmem>>, vector<32x64xf32>
    %cst = arith.constant dense<0.000000e+00> : vector<128x64xf32>
    %16 = tpu.matmul %14, %15, %cst {dimension_numbers = #tpu.dot_dimension_numbers<[1], [0], [0], [1], [0, 0, 1, 1], [], []>, precision = #tpu.contract_precision<fp32>} : vector<128x32xf32>, vector<32x64xf32>, vector<128x64xf32> -> vector<128x64xf32>
    %17 = vector.extract_strided_slice %16 {offsets = [0, 0], sizes = [128, 32], strides = [1, 1]} : vector<128x64xf32> to vector<128x32xf32>
    %18 = vector.extract_strided_slice %16 {offsets = [0, 32], sizes = [128, 32], strides = [1, 1]} : vector<128x64xf32> to vector<128x32xf32>
    %19 = arith.mulf %17, %18 : vector<128x32xf32>
    %c0_7 = arith.constant 0 : index
    %c0_8 = arith.constant 0 : index
    %20 = vector.load %arg4[%c0_7, %c0_8] : memref<128x32xf32, #tpu.memory_space<vmem>>, vector<128x32xf32>
    %21 = tpu.concatenate %20, %19 in 1 : vector<128x32xf32>, vector<128x32xf32> -> vector<128x64xf32>
    %c0_9 = arith.constant 0 : index
    %c0_10 = arith.constant 0 : index
    %22 = vector.load %arg10[%c0_9, %c0_10] : memref<64x96xf32, #tpu.memory_space<vmem>>, vector<64x96xf32>
    %cst_11 = arith.constant dense<0.000000e+00> : vector<128x96xf32>
    %23 = tpu.matmul %21, %22, %cst_11 {dimension_numbers = #tpu.dot_dimension_numbers<[1], [0], [0], [1], [0, 0, 1, 1], [], []>, precision = #tpu.contract_precision<fp32>} : vector<128x64xf32>, vector<64x96xf32>, vector<128x96xf32> -> vector<128x96xf32>
    %24 = vector.extract_strided_slice %23 {offsets = [0, 0], sizes = [128, 32], strides = [1, 1]} : vector<128x96xf32> to vector<128x32xf32>
    %25 = vector.extract_strided_slice %23 {offsets = [0, 32], sizes = [128, 32], strides = [1, 1]} : vector<128x96xf32> to vector<128x32xf32>
    %c0_12 = arith.constant 0 : index
    %c4 = arith.constant 4 : index
    %26 = vector.load %arg5[%c0_12, %c4] : memref<128x8xf32, #tpu.memory_space<vmem>>, vector<128x1xf32>
    %27 = vector.extract_strided_slice %23 {offsets = [0, 64], sizes = [128, 32], strides = [1, 1]} : vector<128x96xf32> to vector<128x32xf32>
    %c3 = arith.constant 3 : index
    %c0_13 = arith.constant 0 : index
    %28 = vector.load %arg13[%c3, %c0_13] : memref<8x32xf32, #tpu.memory_space<vmem>>, vector<1x32xf32>
    %29 = vector.broadcast %26 : vector<128x1xf32> to vector<128x32xf32>
    %30 = vector.broadcast %28 : vector<1x32xf32> to vector<128x32xf32>
    %31 = arith.mulf %29, %30 : vector<128x32xf32>
    %32 = arith.addf %27, %31 : vector<128x32xf32>
    %c0_14 = arith.constant 0 : index
    %c0_15 = arith.constant 0 : index
    %33 = vector.load %arg13[%c0_14, %c0_15] : memref<8x32xf32, #tpu.memory_space<vmem>>, vector<1x32xf32>
    %34 = vector.broadcast %33 : vector<1x32xf32> to vector<128x32xf32>
    %35 = arith.addf %32, %34 : vector<128x32xf32>
    %36 = arith.mulf %24, %25 : vector<128x32xf32>
    %c0_16 = arith.constant 0 : index
    %c0_17 = arith.constant 0 : index
    %37 = vector.load %arg11[%c0_16, %c0_17] : memref<32x32xf32, #tpu.memory_space<vmem>>, vector<32x32xf32>
    %cst_18 = arith.constant dense<0.000000e+00> : vector<128x32xf32>
    %38 = tpu.matmul %36, %37, %cst_18 {dimension_numbers = #tpu.dot_dimension_numbers<[1], [0], [0], [1], [0, 0, 1, 1], [], []>, precision = #tpu.contract_precision<fp32>} : vector<128x32xf32>, vector<32x32xf32>, vector<128x32xf32> -> vector<128x32xf32>
    %c4_19 = arith.constant 4 : index
    %c0_20 = arith.constant 0 : index
    %39 = vector.load %arg13[%c4_19, %c0_20] : memref<8x32xf32, #tpu.memory_space<vmem>>, vector<1x32xf32>
    %40 = vector.broadcast %39 : vector<1x32xf32> to vector<128x32xf32>
    %41 = arith.addf %38, %40 : vector<128x32xf32>
    %cst_21 = arith.constant dense<0.000000e+00> : vector<128xf32>
    %42 = vector.multi_reduction <add>, %41, %cst_21 [1] : vector<128x32xf32> to vector<128xf32>
    %43 = vector.shape_cast %42 : vector<128xf32> to vector<128x1xf32>
    %cst_22 = arith.constant 3.200000e+01 : f32
    %44 = vector.broadcast %cst_22 : f32 to vector<128x1xf32>
    %45 = arith.divf %43, %44 : vector<128x1xf32>
    %46 = vector.broadcast %45 : vector<128x1xf32> to vector<128x32xf32>
    %47 = arith.subf %41, %46 : vector<128x32xf32>
    %48 = arith.mulf %47, %47 : vector<128x32xf32>
    %cst_23 = arith.constant dense<0.000000e+00> : vector<128xf32>
    %49 = vector.multi_reduction <add>, %48, %cst_23 [1] : vector<128x32xf32> to vector<128xf32>
    %50 = vector.shape_cast %49 : vector<128xf32> to vector<128x1xf32>
    %cst_24 = arith.constant 3.200000e+01 : f32
    %51 = vector.broadcast %cst_24 : f32 to vector<128x1xf32>
    %52 = arith.divf %50, %51 : vector<128x1xf32>
    %53 = vector.broadcast %45 : vector<128x1xf32> to vector<128x32xf32>
    %54 = arith.subf %41, %53 : vector<128x32xf32>
    %cst_25 = arith.constant 9.99999974E-6 : f32
    %55 = vector.broadcast %cst_25 : f32 to vector<128x1xf32>
    %56 = arith.addf %52, %55 : vector<128x1xf32>
    %57 = math.rsqrt %56 : vector<128x1xf32>
    %58 = vector.broadcast %57 : vector<128x1xf32> to vector<128x32xf32>
    %59 = arith.mulf %54, %58 : vector<128x32xf32>
    %c5 = arith.constant 5 : index
    %c0_26 = arith.constant 0 : index
    %60 = vector.load %arg13[%c5, %c0_26] : memref<8x32xf32, #tpu.memory_space<vmem>>, vector<1x32xf32>
    %61 = vector.broadcast %60 : vector<1x32xf32> to vector<128x32xf32>
    %62 = arith.mulf %59, %61 : vector<128x32xf32>
    %c6 = arith.constant 6 : index
    %c0_27 = arith.constant 0 : index
    %63 = vector.load %arg13[%c6, %c0_27] : memref<8x32xf32, #tpu.memory_space<vmem>>, vector<1x32xf32>
    %64 = vector.broadcast %63 : vector<1x32xf32> to vector<128x32xf32>
    %65 = arith.addf %62, %64 : vector<128x32xf32>
    %cst_28 = arith.constant 0.000000e+00 : f32
    %66 = vector.broadcast %cst_28 : f32 to vector<128x32xf32>
    %67 = arith.maximumf %65, %66 : vector<128x32xf32>
    %cst_29 = arith.constant dense<0.000000e+00> : vector<128xf32>
    %68 = vector.multi_reduction <add>, %35, %cst_29 [1] : vector<128x32xf32> to vector<128xf32>
    %69 = vector.shape_cast %68 : vector<128xf32> to vector<128x1xf32>
    %cst_30 = arith.constant 3.200000e+01 : f32
    %70 = vector.broadcast %cst_30 : f32 to vector<128x1xf32>
    %71 = arith.divf %69, %70 : vector<128x1xf32>
    %72 = vector.broadcast %71 : vector<128x1xf32> to vector<128x32xf32>
    %73 = arith.subf %35, %72 : vector<128x32xf32>
    %74 = arith.mulf %73, %73 : vector<128x32xf32>
    %cst_31 = arith.constant dense<0.000000e+00> : vector<128xf32>
    %75 = vector.multi_reduction <add>, %74, %cst_31 [1] : vector<128x32xf32> to vector<128xf32>
    %76 = vector.shape_cast %75 : vector<128xf32> to vector<128x1xf32>
    %cst_32 = arith.constant 3.200000e+01 : f32
    %77 = vector.broadcast %cst_32 : f32 to vector<128x1xf32>
    %78 = arith.divf %76, %77 : vector<128x1xf32>
    %79 = vector.broadcast %71 : vector<128x1xf32> to vector<128x32xf32>
    %80 = arith.subf %35, %79 : vector<128x32xf32>
    %cst_33 = arith.constant 9.99999974E-6 : f32
    %81 = vector.broadcast %cst_33 : f32 to vector<128x1xf32>
    %82 = arith.addf %78, %81 : vector<128x1xf32>
    %83 = math.rsqrt %82 : vector<128x1xf32>
    %84 = vector.broadcast %83 : vector<128x1xf32> to vector<128x32xf32>
    %85 = arith.mulf %80, %84 : vector<128x32xf32>
    %c1_34 = arith.constant 1 : index
    %c0_35 = arith.constant 0 : index
    %86 = vector.load %arg13[%c1_34, %c0_35] : memref<8x32xf32, #tpu.memory_space<vmem>>, vector<1x32xf32>
    %87 = vector.broadcast %86 : vector<1x32xf32> to vector<128x32xf32>
    %88 = arith.mulf %85, %87 : vector<128x32xf32>
    %c2 = arith.constant 2 : index
    %c0_36 = arith.constant 0 : index
    %89 = vector.load %arg13[%c2, %c0_36] : memref<8x32xf32, #tpu.memory_space<vmem>>, vector<1x32xf32>
    %90 = vector.broadcast %89 : vector<1x32xf32> to vector<128x32xf32>
    %91 = arith.addf %88, %90 : vector<128x32xf32>
    %cst_37 = arith.constant 0.000000e+00 : f32
    %92 = vector.broadcast %cst_37 : f32 to vector<128x32xf32>
    %93 = arith.maximumf %91, %92 : vector<128x32xf32>
    %94 = tpu.concatenate %67, %93 in 1 : vector<128x32xf32>, vector<128x32xf32> -> vector<128x64xf32>
    %c0_38 = arith.constant 0 : index
    %c0_39 = arith.constant 0 : index
    %95 = vector.load %arg12[%c0_38, %c0_39] : memref<64x2xf32, #tpu.memory_space<vmem>>, vector<64x2xf32>
    %cst_40 = arith.constant dense<0.000000e+00> : vector<128x2xf32>
    %96 = tpu.matmul %94, %95, %cst_40 {dimension_numbers = #tpu.dot_dimension_numbers<[1], [0], [0], [1], [0, 0, 1, 1], [], []>, precision = #tpu.contract_precision<fp32>} : vector<128x64xf32>, vector<64x2xf32>, vector<128x2xf32> -> vector<128x2xf32>
    %c7 = arith.constant 7 : index
    %c0_41 = arith.constant 0 : index
    %97 = vector.load %arg13[%c7, %c0_41] : memref<8x32xf32, #tpu.memory_space<vmem>>, vector<1x2xf32>
    %98 = vector.broadcast %97 : vector<1x2xf32> to vector<128x2xf32>
    %99 = arith.addf %96, %98 : vector<128x2xf32>
    %100 = vector.extract_strided_slice %99 {offsets = [0, 0], sizes = [128, 1], strides = [1, 1]} : vector<128x2xf32> to vector<128x1xf32>
    %101 = vector.extract_strided_slice %99 {offsets = [0, 1], sizes = [128, 1], strides = [1, 1]} : vector<128x2xf32> to vector<128x1xf32>
    %102 = arith.negf %101 : vector<128x1xf32>
    %103 = math.exp %102 : vector<128x1xf32>
    %cst_42 = arith.constant 1.000000e+00 : f32
    %104 = vector.broadcast %cst_42 : f32 to vector<128x1xf32>
    %105 = arith.addf %104, %103 : vector<128x1xf32>
    %106 = arith.divf %104, %105 : vector<128x1xf32>
    %107 = arith.mulf %100, %106 : vector<128x1xf32>
    %c0_43 = arith.constant 0 : index
    %c0_44 = arith.constant 0 : index
    %108 = vector.load %arg5[%c0_43, %c0_44] : memref<128x8xf32, #tpu.memory_space<vmem>>, vector<128x3xf32>
    %c0_45 = arith.constant 0 : index
    %c3_46 = arith.constant 3 : index
    %109 = vector.load %arg5[%c0_45, %c3_46] : memref<128x8xf32, #tpu.memory_space<vmem>>, vector<128x1xf32>
    %cst_47 = arith.constant 1.000000e+00 : f32
    %110 = vector.broadcast %cst_47 : f32 to vector<128x1xf32>
    %111 = arith.addf %109, %110 : vector<128x1xf32>
    %112 = arith.mulf %109, %111 : vector<128x1xf32>
    %113 = tpu.reciprocal %112 : vector<128x1xf32> -> vector<128x1xf32>
    %114 = vector.broadcast %107 : vector<128x1xf32> to vector<128x3xf32>
    %115 = arith.mulf %114, %108 : vector<128x3xf32>
    %116 = vector.broadcast %113 : vector<128x1xf32> to vector<128x3xf32>
    %117 = arith.mulf %115, %116 : vector<128x3xf32>
    %c0_48 = arith.constant 0 : index
    %c0_49 = arith.constant 0 : index
    %118 = vector.load %arg17[%c0_48, %c0_49] : memref<16x128xi32, #tpu.memory_space<vmem>>, vector<16x128xi32>
    %c0_50 = arith.constant 0 : index
    %c0_51 = arith.constant 0 : index
    %119 = vector.load %arg3[%c0_50, %c0_51] : memref<2x128xi32, #tpu.memory_space<vmem>>, vector<1x128xi32>
    %120 = vector.broadcast %119 : vector<1x128xi32> to vector<16x128xi32>
    %121 = arith.cmpi eq, %118, %120 : vector<16x128xi32>
    %122 = arith.extui %121 : vector<16x128xi1> to vector<16x128xi32>
    %123 = arith.sitofp %122 : vector<16x128xi32> to vector<16x128xf32>
    %c0_52 = arith.constant 0 : index
    %c0_53 = arith.constant 0 : index
    %c0_54 = arith.constant 0 : index
    %124 = vector.load %arg14[%c0_52, %c0_53, %c0_54] : memref<1x16x3xf32, #tpu.memory_space<vmem>>, vector<1x16x3xf32>
    %125 = vector.shape_cast %124 : vector<1x16x3xf32> to vector<16x3xf32>
    %cst_55 = arith.constant dense<0.000000e+00> : vector<16x3xf32>
    %126 = tpu.matmul %123, %117, %cst_55 {dimension_numbers = #tpu.dot_dimension_numbers<[1], [0], [0], [1], [0, 0, 1, 1], [], []>, precision = #tpu.contract_precision<fp32>} : vector<16x128xf32>, vector<128x3xf32>, vector<16x3xf32> -> vector<16x3xf32>
    %127 = arith.addf %125, %126 : vector<16x3xf32>
    %c0_56 = arith.constant 0 : index
    %c0_57 = arith.constant 0 : index
    %c0_58 = arith.constant 0 : index
    %128 = vector.load %arg14[%c0_56, %c0_57, %c0_58] : memref<1x16x3xf32, #tpu.memory_space<vmem>>, vector<1x16x3xf32>
    %129 = vector.shape_cast %128 : vector<1x16x3xf32> to vector<16x3xf32>
    %130 = vector.shape_cast %127 : vector<16x3xf32> to vector<1x16x3xf32>
    tpu.vector_store %arg14[%c0_56, %c0_57, %c0_58], %130 {strides = array<i32>} : memref<1x16x3xf32, #tpu.memory_space<vmem>>, vector<1x16x3xf32>,
    return
  }
  func.func @transform_0(%arg0: i32, %arg1: i32) -> (i32, i32) {
    %c2_i32 = arith.constant 2 : i32
    %0 = arith.muli %arg0, %c2_i32 : i32
    %1 = arith.addi %0, %arg1 : i32
    %c0_i32 = arith.constant 0 : i32
    %c0_i32_0 = arith.constant 0 : i32
    return %1, %c0_i32 : i32, i32
  }
  func.func @transform_1(%arg0: i32, %arg1: i32) -> (i32, i32) {
    %c2_i32 = arith.constant 2 : i32
    %0 = arith.muli %arg0, %c2_i32 : i32
    %1 = arith.addi %0, %arg1 : i32
    %c0_i32 = arith.constant 0 : i32
    %c0_i32_0 = arith.constant 0 : i32
    return %c0_i32, %1 : i32, i32
  }
  func.func @transform_2(%arg0: i32, %arg1: i32) -> (i32, i32) {
    %c2_i32 = arith.constant 2 : i32
    %0 = arith.muli %arg0, %c2_i32 : i32
    %1 = arith.addi %0, %arg1 : i32
    %c0_i32 = arith.constant 0 : i32
    %c0_i32_0 = arith.constant 0 : i32
    return %1, %c0_i32 : i32, i32
  }
  func.func @transform_3(%arg0: i32, %arg1: i32) -> (i32, i32) {
    %c2_i32 = arith.constant 2 : i32
    %0 = arith.muli %arg0, %c2_i32 : i32
    %1 = arith.addi %0, %arg1 : i32
    %c0_i32 = arith.constant 0 : i32
    %c0_i32_0 = arith.constant 0 : i32
    return %1, %c0_i32 : i32, i32
  }
  func.func @transform_4(%arg0: i32, %arg1: i32) -> (i32, i32) {
    %c0_i32 = arith.constant 0 : i32
    %c0_i32_0 = arith.constant 0 : i32
    %c0_i32_1 = arith.constant 0 : i32
    return %c0_i32, %c0_i32_0 : i32, i32
  }
  func.func @transform_5(%arg0: i32, %arg1: i32) -> (i32, i32) {
    %c0_i32 = arith.constant 0 : i32
    %c0_i32_0 = arith.constant 0 : i32
    %c0_i32_1 = arith.constant 0 : i32
    return %c0_i32, %c0_i32_0 : i32, i32
  }
  func.func @transform_6(%arg0: i32, %arg1: i32) -> (i32, i32) {
    %c0_i32 = arith.constant 0 : i32
    %c0_i32_0 = arith.constant 0 : i32
    %c0_i32_1 = arith.constant 0 : i32
    return %c0_i32, %c0_i32_0 : i32, i32
  }
  func.func @transform_7(%arg0: i32, %arg1: i32) -> (i32, i32) {
    %c0_i32 = arith.constant 0 : i32
    %c0_i32_0 = arith.constant 0 : i32
    %c0_i32_1 = arith.constant 0 : i32
    return %c0_i32, %c0_i32_0 : i32, i32
  }
  func.func @transform_8(%arg0: i32, %arg1: i32) -> (i32, i32) {
    %c0_i32 = arith.constant 0 : i32
    %c0_i32_0 = arith.constant 0 : i32
    %c0_i32_1 = arith.constant 0 : i32
    return %c0_i32, %c0_i32_0 : i32, i32
  }
  func.func @transform_9(%arg0: i32, %arg1: i32) -> (i32, i32) {
    %c0_i32 = arith.constant 0 : i32
    %c0_i32_0 = arith.constant 0 : i32
    %c0_i32_1 = arith.constant 0 : i32
    return %c0_i32, %c0_i32_0 : i32, i32
  }
  func.func @transform_10(%arg0: i32, %arg1: i32) -> (i32, i32) {
    %c0_i32 = arith.constant 0 : i32
    %c0_i32_0 = arith.constant 0 : i32
    %c0_i32_1 = arith.constant 0 : i32
    return %c0_i32, %c0_i32_0 : i32, i32
  }
  func.func @transform_11(%arg0: i32, %arg1: i32) -> (i32, i32) {
    %c0_i32 = arith.constant 0 : i32
    %c0_i32_0 = arith.constant 0 : i32
    %c0_i32_1 = arith.constant 0 : i32
    return %c0_i32, %c0_i32_0 : i32, i32
  }
  func.func @transform_12(%arg0: i32, %arg1: i32) -> (i32, i32, i32) {
    %c0_i32 = arith.constant 0 : i32
    %c0_i32_0 = arith.constant 0 : i32
    %c0_i32_1 = arith.constant 0 : i32
    return %arg0, %c0_i32, %c0_i32_0 : i32, i32, i32
  }
}

</mosaic_0001>

<llo_original>
// kernel: tpu_custom_call.1
$region0: #{tpu_custom_call.1}
  #allocation0 [shape = 'u32[]', space=smem, size = 0x4, offset = 0x4, fixed_abs, tag = 'smem constant byte address 0x4 - core index']
  #allocation1 [shape = 'u32[144,128]{1,0:T(1,128)}', space=vmem, size = 0x12000, scoped, tag = 'internal scratch']
  #allocation2 [shape = 'f32[32,64]{1,0:T(8,128)}', space=vmem, size = 0x4000, scoped, tag = 'scratch operand']
  #allocation3 [shape = 's32[128,32]{1,0:T(8,128)}', space=vmem, size = 0x10000, scoped, tag = 'scratch operand']
  #allocation4 [shape = 's32[16,128]{1,0:T(8,128)}', space=vmem, size = 0x2000, scoped, tag = 'scratch operand']
  %s0 = inlined_call_operand.vmem [shape: s32[256,2], index: 0, kind: input, shape index: {}]
  %s1 = inlined_call_operand.vmem [shape: s32[2,256], index: 1, kind: input, shape index: {}]
  %s2 = inlined_call_operand.vmem [shape: f32[256,32], index: 2, kind: input, shape index: {}]
  %s3 = inlined_call_operand.vmem [shape: f32[256,8], index: 3, kind: input, shape index: {}]
  %s4 = inlined_call_operand.vmem [shape: f32[16,32], index: 4, kind: input, shape index: {}]
  %s5 = inlined_call_operand.vmem [shape: f32[32,64], index: 5, kind: input, shape index: {}]
  %s6 = inlined_call_operand.vmem [shape: f32[64,64], index: 6, kind: input, shape index: {}]
  %s7 = inlined_call_operand.vmem [shape: f32[4,64], index: 7, kind: input, shape index: {}]
  %s8 = inlined_call_operand.vmem [shape: f32[64,96], index: 8, kind: input, shape index: {}]
  %s9 = inlined_call_operand.vmem [shape: f32[32,32], index: 9, kind: input, shape index: {}]
  %s10 = inlined_call_operand.vmem [shape: f32[64,2], index: 10, kind: input, shape index: {}]
  %s11 = inlined_call_operand.vmem [shape: f32[8,32], index: 11, kind: input, shape index: {}]
  %s12 = inlined_call_operand.vmem [shape: f32[1,16,3], index: 12, kind: output, shape index: {}]
  %s13 = sld [smem:[#allocation0]]
  $region85: #{tpu_custom_call.1} parent=0
    _
  %s15 = ssub.s32 1, %s13
  %s16 = scalar_select 0, %s15, %s13
  loop: start=0, step=1, limit=4
  $region2: #{tpu_custom_call.1} parent=0 // loop_pre_header
    _
  $region3: #{tpu_custom_call.1} parent=0 // loop_header
    %s18 = sphi 0, %s22
    %p19 = scmp.ge.s32.totalorder %s18, 4
    %s25 = sphi 0, %s37
    %s26 = sphi 0, %s33
    %s27 = sphi 0, %s25
    %s28 = sphi 0, %s26
    %s29 = sphi 0, %s27
    %s30 = sphi 0, %s28
    %s44 = sphi 0, %s46
    %s47 = sphi 0, %s44
    %s48 = sphi 0, %s47
    %s64 = sphi 0, %s48
    %s74 = sphi 0, %s76
    %s77 = sphi 0, %s74
    %s78 = sphi 0, %s77
    %s94 = sphi 0, %s78
    %s104 = sphi 0, %s106
    %s107 = sphi 0, %s104
    %s108 = sphi 0, %s107
    %s124 = sphi 0, %s108
    %s134 = sphi 0, %s136
    %s137 = sphi 0, %s134
    %s138 = sphi 0, %s137
    %s154 = sphi 0, %s138
    %s158 = sphi 0, %s158
    %s160 = sphi 0, %s158
    %s161 = sphi 0, %s160
    %s175 = sphi 0, %s161
    %s179 = sphi 0, %s179
    %s181 = sphi 0, %s179
    %s182 = sphi 0, %s181
    %s196 = sphi 0, %s182
    %s200 = sphi 0, %s200
    %s202 = sphi 0, %s200
    %s203 = sphi 0, %s202
    %s217 = sphi 0, %s203
    %s221 = sphi 0, %s221
    %s223 = sphi 0, %s221
    %s224 = sphi 0, %s223
    %s238 = sphi 0, %s224
    %s242 = sphi 0, %s242
    %s244 = sphi 0, %s242
    %s245 = sphi 0, %s244
    %s259 = sphi 0, %s245
    %s263 = sphi 0, %s263
    %s265 = sphi 0, %s263
    %s266 = sphi 0, %s265
    %s280 = sphi 0, %s266
    %s284 = sphi 0, %s284
    %s286 = sphi 0, %s284
    %s287 = sphi 0, %s286
    %s301 = sphi 0, %s287
    %s305 = sphi 0, %s305
    %s307 = sphi 0, %s305
    %s308 = sphi 0, %s307
    %s322 = sphi 0, %s308
    %s328 = sphi 0, %s330
    %s331 = sphi 0, %s328
    %s332 = sphi 0, %s331
    %s348 = sphi 0, %s332
  $region4: #{tpu_custom_call.1} parent=0 // loop_header_branch
    %21 = sbr.rel (%p19) target = $region8
  $region5: #{tpu_custom_call.1} parent=0 // loop_body
    %s23 = ssub.s32 %s18, 1
    %s24 = ssub.s32 %s18, 2
    %s31 = sadd.s32 1, %s26
    %p32 = scmp.ge.s32.totalorder %s31, 2
    %s33 = scalar_select %p32, 0, %s31
    %s34 = sadd.s32 1, %s25
    %s35 = scalar_select %p32, %s34, %s25
    %p36 = scmp.ge.s32.totalorder %s35, 1
    %s37 = scalar_select %p36, 0, %s35
    %s38 = smul.u32 %s25, 2
    %s39 = sadd.s32 %s38, %s26
    %s40 = smul.u32 %s37, 2
    %s41 = sadd.s32 %s40, %s33
    %s42 = ssub.s32 %s39, %s41
    %p43 = scmp.eq.s32.totalorder %s42, 0
    %s45 = sadd.s32 %s44, 1
    %s46 = scalar_select %p43, %s44, %s45
    %p49 = pneg %p43
    %p50 = scmp.eq.s32.totalorder %s18, 1
    %p51 = por %p49, %p50
    %p52 = scmp.ne.s32.totalorder %s44, %s47
    %p53 = scmp.eq.s32.totalorder %s18, 0
    %p54 = por %p52, %p53
    %p55 = scmp.ne.s32.totalorder %s44, %s47
    %p56 = scmp.eq.s32.totalorder %s23, 1
    %p57 = por %p55, %p56
    %p58 = scmp.ne.s32.totalorder %s47, %s48
    %p59 = scmp.eq.s32.totalorder %s23, 0
    %p60 = por %p58, %p59
    %p61 = scmp.ne.s32.totalorder %s47, %s48
    %p62 = scmp.eq.s32.totalorder %s24, 1
    %p63 = por %p61, %p62
    %p65 = scmp.ne.s32.totalorder %s48, %s64
    %p66 = scmp.eq.s32.totalorder %s24, 0
    %p67 = por %p65, %p66
    %s68 = smul.u32 %s25, 2
    %s69 = sadd.s32 %s68, %s26
    %s70 = smul.u32 %s37, 2
    %s71 = sadd.s32 %s70, %s33
    %s72 = ssub.s32 %s69, %s71
    %p73 = scmp.eq.s32.totalorder %s72, 0
    %s75 = sadd.s32 %s74, 1
    %s76 = scalar_select %p73, %s74, %s75
    %p79 = pneg %p73
    %p80 = scmp.eq.s32.totalorder %s18, 1
    %p81 = por %p79, %p80
    %p82 = scmp.ne.s32.totalorder %s74, %s77
    %p83 = scmp.eq.s32.totalorder %s18, 0
    %p84 = por %p82, %p83
    %p85 = scmp.ne.s32.totalorder %s74, %s77
    %p86 = scmp.eq.s32.totalorder %s23, 1
    %p87 = por %p85, %p86
    %p88 = scmp.ne.s32.totalorder %s77, %s78
    %p89 = scmp.eq.s32.totalorder %s23, 0
    %p90 = por %p88, %p89
    %p91 = scmp.ne.s32.totalorder %s77, %s78
    %p92 = scmp.eq.s32.totalorder %s24, 1
    %p93 = por %p91, %p92
    %p95 = scmp.ne.s32.totalorder %s78, %s94
    %p96 = scmp.eq.s32.totalorder %s24, 0
    %p97 = por %p95, %p96
    %s98 = smul.u32 %s25, 2
    %s99 = sadd.s32 %s98, %s26
    %s100 = smul.u32 %s37, 2
    %s101 = sadd.s32 %s100, %s33
    %s102 = ssub.s32 %s99, %s101
    %p103 = scmp.eq.s32.totalorder %s102, 0
    %s105 = sadd.s32 %s104, 1
    %s106 = scalar_select %p103, %s104, %s105
    %p109 = pneg %p103
    %p110 = scmp.eq.s32.totalorder %s18, 1
    %p111 = por %p109, %p110
    %p112 = scmp.ne.s32.totalorder %s104, %s107
    %p113 = scmp.eq.s32.totalorder %s18, 0
    %p114 = por %p112, %p113
    %p115 = scmp.ne.s32.totalorder %s104, %s107
    %p116 = scmp.eq.s32.totalorder %s23, 1
    %p117 = por %p115, %p116
    %p118 = scmp.ne.s32.totalorder %s107, %s108
    %p119 = scmp.eq.s32.totalorder %s23, 0
    %p120 = por %p118, %p119
    %p121 = scmp.ne.s32.totalorder %s107, %s108
    %p122 = scmp.eq.s32.totalorder %s24, 1
    %p123 = por %p121, %p122
    %p125 = scmp.ne.s32.totalorder %s108, %s124
    %p126 = scmp.eq.s32.totalorder %s24, 0
    %p127 = por %p125, %p126
    %s128 = smul.u32 %s25, 2
    %s129 = sadd.s32 %s128, %s26
    %s130 = smul.u32 %s37, 2
    %s131 = sadd.s32 %s130, %s33
    %s132 = ssub.s32 %s129, %s131
    %p133 = scmp.eq.s32.totalorder %s132, 0
    %s135 = sadd.s32 %s134, 1
    %s136 = scalar_select %p133, %s134, %s135
    %p139 = pneg %p133
    %p140 = scmp.eq.s32.totalorder %s18, 1
    %p141 = por %p139, %p140
    %p142 = scmp.ne.s32.totalorder %s134, %s137
    %p143 = scmp.eq.s32.totalorder %s18, 0
    %p144 = por %p142, %p143
    %p145 = scmp.ne.s32.totalorder %s134, %s137
    %p146 = scmp.eq.s32.totalorder %s23, 1
    %p147 = por %p145, %p146
    %p148 = scmp.ne.s32.totalorder %s137, %s138
    %p149 = scmp.eq.s32.totalorder %s23, 0
    %p150 = por %p148, %p149
    %p151 = scmp.ne.s32.totalorder %s137, %s138
    %p152 = scmp.eq.s32.totalorder %s24, 1
    %p153 = por %p151, %p152
    %p155 = scmp.ne.s32.totalorder %s138, %s154
    %p156 = scmp.eq.s32.totalorder %s24, 0
    %p157 = por %p155, %p156
    %s159 = sadd.s32 %s158, 1
    %p162 = scmp.eq.s32.totalorder %s18, 1
    %p163 = scmp.ne.s32.totalorder %s158, %s160
    %p164 = scmp.eq.s32.totalorder %s18, 0
    %p165 = por %p163, %p164
    %p166 = scmp.ne.s32.totalorder %s158, %s160
    %p167 = scmp.eq.s32.totalorder %s23, 1
    %p168 = por %p166, %p167
    %p169 = scmp.ne.s32.totalorder %s160, %s161
    %p170 = scmp.eq.s32.totalorder %s23, 0
    %p171 = por %p169, %p170
    %p172 = scmp.ne.s32.totalorder %s160, %s161
    %p173 = scmp.eq.s32.totalorder %s24, 1
    %p174 = por %p172, %p173
    %p176 = scmp.ne.s32.totalorder %s161, %s175
    %p177 = scmp.eq.s32.totalorder %s24, 0
    %p178 = por %p176, %p177
    %s180 = sadd.s32 %s179, 1
    %p183 = scmp.eq.s32.totalorder %s18, 1
    %p184 = scmp.ne.s32.totalorder %s179, %s181
    %p185 = scmp.eq.s32.totalorder %s18, 0
    %p186 = por %p184, %p185
    %p187 = scmp.ne.s32.totalorder %s179, %s181
    %p188 = scmp.eq.s32.totalorder %s23, 1
    %p189 = por %p187, %p188
    %p190 = scmp.ne.s32.totalorder %s181, %s182
    %p191 = scmp.eq.s32.totalorder %s23, 0
    %p192 = por %p190, %p191
    %p193 = scmp.ne.s32.totalorder %s181, %s182
    %p194 = scmp.eq.s32.totalorder %s24, 1
    %p195 = por %p193, %p194
    %p197 = scmp.ne.s32.totalorder %s182, %s196
    %p198 = scmp.eq.s32.totalorder %s24, 0
    %p199 = por %p197, %p198
    %s201 = sadd.s32 %s200, 1
    %p204 = scmp.eq.s32.totalorder %s18, 1
    %p205 = scmp.ne.s32.totalorder %s200, %s202
    %p206 = scmp.eq.s32.totalorder %s18, 0
    %p207 = por %p205, %p206
    %p208 = scmp.ne.s32.totalorder %s200, %s202
    %p209 = scmp.eq.s32.totalorder %s23, 1
    %p210 = por %p208, %p209
    %p211 = scmp.ne.s32.totalorder %s202, %s203
    %p212 = scmp.eq.s32.totalorder %s23, 0
    %p213 = por %p211, %p212
    %p214 = scmp.ne.s32.totalorder %s202, %s203
    %p215 = scmp.eq.s32.totalorder %s24, 1
    %p216 = por %p214, %p215
    %p218 = scmp.ne.s32.totalorder %s203, %s217
    %p219 = scmp.eq.s32.totalorder %s24, 0
    %p220 = por %p218, %p219
    %s222 = sadd.s32 %s221, 1
    %p225 = scmp.eq.s32.totalorder %s18, 1
    %p226 = scmp.ne.s32.totalorder %s221, %s223
    %p227 = scmp.eq.s32.totalorder %s18, 0
    %p228 = por %p226, %p227
    %p229 = scmp.ne.s32.totalorder %s221, %s223
    %p230 = scmp.eq.s32.totalorder %s23, 1
    %p231 = por %p229, %p230
    %p232 = scmp.ne.s32.totalorder %s223, %s224
    %p233 = scmp.eq.s32.totalorder %s23, 0
    %p234 = por %p232, %p233
    %p235 = scmp.ne.s32.totalorder %s223, %s224
    %p236 = scmp.eq.s32.totalorder %s24, 1
    %p237 = por %p235, %p236
    %p239 = scmp.ne.s32.totalorder %s224, %s238
    %p240 = scmp.eq.s32.totalorder %s24, 0
    %p241 = por %p239, %p240
    %s243 = sadd.s32 %s242, 1
    %p246 = scmp.eq.s32.totalorder %s18, 1
    %p247 = scmp.ne.s32.totalorder %s242, %s244
    %p248 = scmp.eq.s32.totalorder %s18, 0
    %p249 = por %p247, %p248
    %p250 = scmp.ne.s32.totalorder %s242, %s244
    %p251 = scmp.eq.s32.totalorder %s23, 1
    %p252 = por %p250, %p251
    %p253 = scmp.ne.s32.totalorder %s244, %s245
    %p254 = scmp.eq.s32.totalorder %s23, 0
    %p255 = por %p253, %p254
    %p256 = scmp.ne.s32.totalorder %s244, %s245
    %p257 = scmp.eq.s32.totalorder %s24, 1
    %p258 = por %p256, %p257
    %p260 = scmp.ne.s32.totalorder %s245, %s259
    %p261 = scmp.eq.s32.totalorder %s24, 0
    %p262 = por %p260, %p261
    %s264 = sadd.s32 %s263, 1
    %p267 = scmp.eq.s32.totalorder %s18, 1
    %p268 = scmp.ne.s32.totalorder %s263, %s265
    %p269 = scmp.eq.s32.totalorder %s18, 0
    %p270 = por %p268, %p269
    %p271 = scmp.ne.s32.totalorder %s263, %s265
    %p272 = scmp.eq.s32.totalorder %s23, 1
    %p273 = por %p271, %p272
    %p274 = scmp.ne.s32.totalorder %s265, %s266
    %p275 = scmp.eq.s32.totalorder %s23, 0
    %p276 = por %p274, %p275
    %p277 = scmp.ne.s32.totalorder %s265, %s266
    %p278 = scmp.eq.s32.totalorder %s24, 1
    %p279 = por %p277, %p278
    %p281 = scmp.ne.s32.totalorder %s266, %s280
    %p282 = scmp.eq.s32.totalorder %s24, 0
    %p283 = por %p281, %p282
    %s285 = sadd.s32 %s284, 1
    %p288 = scmp.eq.s32.totalorder %s18, 1
    %p289 = scmp.ne.s32.totalorder %s284, %s286
    %p290 = scmp.eq.s32.totalorder %s18, 0
    %p291 = por %p289, %p290
    %p292 = scmp.ne.s32.totalorder %s284, %s286
    %p293 = scmp.eq.s32.totalorder %s23, 1
    %p294 = por %p292, %p293
    %p295 = scmp.ne.s32.totalorder %s286, %s287
    %p296 = scmp.eq.s32.totalorder %s23, 0
    %p297 = por %p295, %p296
    %p298 = scmp.ne.s32.totalorder %s286, %s287
    %p299 = scmp.eq.s32.totalorder %s24, 1
    %p300 = por %p298, %p299
    %p302 = scmp.ne.s32.totalorder %s287, %s301
    %p303 = scmp.eq.s32.totalorder %s24, 0
    %p304 = por %p302, %p303
    %s306 = sadd.s32 %s305, 1
    %p309 = scmp.eq.s32.totalorder %s18, 1
    %p310 = scmp.ne.s32.totalorder %s305, %s307
    %p311 = scmp.eq.s32.totalorder %s18, 0
    %p312 = por %p310, %p311
    %p313 = scmp.ne.s32.totalorder %s305, %s307
    %p314 = scmp.eq.s32.totalorder %s23, 1
    %p315 = por %p313, %p314
    %p316 = scmp.ne.s32.totalorder %s307, %s308
    %p317 = scmp.eq.s32.totalorder %s23, 0
    %p318 = por %p316, %p317
    %p319 = scmp.ne.s32.totalorder %s307, %s308
    %p320 = scmp.eq.s32.totalorder %s24, 1
    %p321 = por %p319, %p320
    %p323 = scmp.ne.s32.totalorder %s308, %s322
    %p324 = scmp.eq.s32.totalorder %s24, 0
    %p325 = por %p323, %p324
    %s326 = ssub.s32 %s25, %s37
    %p327 = scmp.eq.s32.totalorder %s326, 0
    %s329 = sadd.s32 %s328, 1
    %s330 = scalar_select %p327, %s328, %s329
    %p333 = pneg %p327
    %p334 = scmp.eq.s32.totalorder %s18, 1
    %p335 = por %p333, %p334
    %p336 = scmp.ne.s32.totalorder %s328, %s331
    %p337 = scmp.eq.s32.totalorder %s18, 0
    %p338 = por %p336, %p337
    %p339 = scmp.ne.s32.totalorder %s328, %s331
    %p340 = scmp.eq.s32.totalorder %s23, 1
    %p341 = por %p339, %p340
    %p342 = scmp.ne.s32.totalorder %s331, %s332
    %p343 = scmp.eq.s32.totalorder %s23, 0
    %p344 = por %p342, %p343
    %p345 = scmp.ne.s32.totalorder %s331, %s332
    %p346 = scmp.eq.s32.totalorder %s24, 1
    %p347 = por %p345, %p346
    %p349 = scmp.ne.s32.totalorder %s332, %s348
    %p350 = scmp.eq.s32.totalorder %s24, 0
    %p351 = por %p349, %p350
    %p352 = scmp.le.s32.totalorder 1, %s18
    %p353 = scmp.lt.s32.totalorder %s18, 3
    %p354 = pnand %p352, %p353
    %p355 = pneg %p354
    // Predicated region
    $region9: #{tpu_custom_call.1} parent=5 // pred_check
      _
    $region10: #{tpu_custom_call.1} parent=5 // pred_check_branch
      %357 = sbr.rel (%p354) target = $region12
    $region11: #{tpu_custom_call.1} parent=5 // pred_region
      %s358 = ssub.s32 %s18, 1
      // Predicated region
      $region13: #{tpu_custom_call.1} parent=11 // pred_check
        %p359 = pneg %p171
      $region14: #{tpu_custom_call.1} parent=11 // pred_check_branch
        %361 = sbr.rel (%p359) target = $region16
      $region15: #{tpu_custom_call.1} parent=11 // pred_region
        _
      $region16: #{tpu_custom_call.1} parent=11 // pred_fallthru
        _
      // Predicated region
      $region17: #{tpu_custom_call.1} parent=11 // pred_check
        %p362 = pneg %p192
      $region18: #{tpu_custom_call.1} parent=11 // pred_check_branch
        %364 = sbr.rel (%p362) target = $region20
      $region19: #{tpu_custom_call.1} parent=11 // pred_region
        _
      $region20: #{tpu_custom_call.1} parent=11 // pred_fallthru
        _
      // Predicated region
      $region21: #{tpu_custom_call.1} parent=11 // pred_check
        %p365 = pneg %p213
      $region22: #{tpu_custom_call.1} parent=11 // pred_check_branch
        %367 = sbr.rel (%p365) target = $region24
      $region23: #{tpu_custom_call.1} parent=11 // pred_region
        _
      $region24: #{tpu_custom_call.1} parent=11 // pred_fallthru
        _
      // Predicated region
      $region25: #{tpu_custom_call.1} parent=11 // pred_check
        %p368 = pneg %p234
      $region26: #{tpu_custom_call.1} parent=11 // pred_check_branch
        %370 = sbr.rel (%p368) target = $region28
      $region27: #{tpu_custom_call.1} parent=11 // pred_region
        _
      $region28: #{tpu_custom_call.1} parent=11 // pred_fallthru
        _
      // Predicated region
      $region29: #{tpu_custom_call.1} parent=11 // pred_check
        %p371 = pneg %p255
      $region30: #{tpu_custom_call.1} parent=11 // pred_check_branch
        %373 = sbr.rel (%p371) target = $region32
      $region31: #{tpu_custom_call.1} parent=11 // pred_region
        _
      $region32: #{tpu_custom_call.1} parent=11 // pred_fallthru
        _
      // Predicated region
      $region33: #{tpu_custom_call.1} parent=11 // pred_check
        %p374 = pneg %p276
      $region34: #{tpu_custom_call.1} parent=11 // pred_check_branch
        %376 = sbr.rel (%p374) target = $region36
      $region35: #{tpu_custom_call.1} parent=11 // pred_region
        _
      $region36: #{tpu_custom_call.1} parent=11 // pred_fallthru
        _
      // Predicated region
      $region37: #{tpu_custom_call.1} parent=11 // pred_check
        %p377 = pneg %p297
      $region38: #{tpu_custom_call.1} parent=11 // pred_check_branch
        %379 = sbr.rel (%p377) target = $region40
      $region39: #{tpu_custom_call.1} parent=11 // pred_region
        _
      $region40: #{tpu_custom_call.1} parent=11 // pred_fallthru
        _
      // Predicated region
      $region41: #{tpu_custom_call.1} parent=11 // pred_check
        %p380 = pneg %p318
      $region42: #{tpu_custom_call.1} parent=11 // pred_check_branch
        %382 = sbr.rel (%p380) target = $region44
      $region43: #{tpu_custom_call.1} parent=11 // pred_region
        _
      $region44: #{tpu_custom_call.1} parent=11 // pred_fallthru
        _
    $region12: #{tpu_custom_call.1} parent=5 // pred_fallthru
      _
    %p383 = scmp.lt.s32.totalorder %s18, 2
    // Predicated region
    $region45: #{tpu_custom_call.1} parent=5 // pred_check
      %p384 = pneg %p383
    $region46: #{tpu_custom_call.1} parent=5 // pred_check_branch
      %386 = sbr.rel (%p384) target = $region48
    $region47: #{tpu_custom_call.1} parent=5 // pred_region
      // Predicated region
      $region49: #{tpu_custom_call.1} parent=47 // pred_check
        %p387 = pneg %p54
      $region50: #{tpu_custom_call.1} parent=47 // pred_check_branch
        %389 = sbr.rel (%p387) target = $region52
      $region51: #{tpu_custom_call.1} parent=47 // pred_region
        %s390 = smul.u32 %s25, 2
        %s391 = sadd.s32 %s390, %s26
        %s392 = smul.u32 16, %s391
        %p393 = scmp.lt.s32.totalorder %s392, 31
        %s394 = scalar_select %p393, %s392, 31
        %s395 = smul.addr %s394, 8
        %s396 = scalar_lea.vmem %s0, %s395
        %s397 = smul.u32 %s25, 2
        %s398 = sadd.s32 %s397, %s26
        %s399 = smul.u32 16, %s398
      $region52: #{tpu_custom_call.1} parent=47 // pred_fallthru
        _
      // Predicated region
      $region53: #{tpu_custom_call.1} parent=47 // pred_check
        %p400 = pneg %p84
      $region54: #{tpu_custom_call.1} parent=47 // pred_check_branch
        %402 = sbr.rel (%p400) target = $region56
      $region55: #{tpu_custom_call.1} parent=47 // pred_region
        %s403 = smul.u32 %s25, 2
        %s404 = sadd.s32 %s403, %s26
        %p405 = scmp.lt.s32.totalorder %s404, 1
        %s406 = scalar_select %p405, %s404, 1
        %s407 = smul.addr %s406, 2
        %s408 = scalar_lea.vmem %s1, %s407
        %s409 = smul.u32 %s25, 2
        %s410 = sadd.s32 %s409, %s26
      $region56: #{tpu_custom_call.1} parent=47 // pred_fallthru
        _
      // Predicated region
      $region57: #{tpu_custom_call.1} parent=47 // pred_check
        %p411 = pneg %p114
      $region58: #{tpu_custom_call.1} parent=47 // pred_check_branch
        %413 = sbr.rel (%p411) target = $region60
      $region59: #{tpu_custom_call.1} parent=47 // pred_region
        %s414 = smul.u32 %s25, 2
        %s415 = sadd.s32 %s414, %s26
        %s416 = smul.u32 16, %s415
        %p417 = scmp.lt.s32.totalorder %s416, 31
        %s418 = scalar_select %p417, %s416, 31
        %s419 = smul.addr %s418, 8
        %s420 = scalar_lea.vmem %s2, %s419
        %s421 = smul.u32 %s25, 2
        %s422 = sadd.s32 %s421, %s26
        %s423 = smul.u32 16, %s422
      $region60: #{tpu_custom_call.1} parent=47 // pred_fallthru
        _
      // Predicated region
      $region61: #{tpu_custom_call.1} parent=47 // pred_check
        %p424 = pneg %p144
      $region62: #{tpu_custom_call.1} parent=47 // pred_check_branch
        %426 = sbr.rel (%p424) target = $region64
      $region63: #{tpu_custom_call.1} parent=47 // pred_region
        %s427 = smul.u32 %s25, 2
        %s428 = sadd.s32 %s427, %s26
        %s429 = smul.u32 16, %s428
        %p430 = scmp.lt.s32.totalorder %s429, 31
        %s431 = scalar_select %p430, %s429, 31
        %s432 = smul.addr %s431, 8
        %s433 = scalar_lea.vmem %s3, %s432
        %s434 = smul.u32 %s25, 2
        %s435 = sadd.s32 %s434, %s26
        %s436 = smul.u32 16, %s435
      $region64: #{tpu_custom_call.1} parent=47 // pred_fallthru
        _
    $region48: #{tpu_custom_call.1} parent=5 // pred_fallthru
      _
    %p437 = scmp.le.s32.totalorder 1, %s18
    %p438 = scmp.lt.s32.totalorder %s18, 3
    %p439 = pnand %p437, %p438
    %p440 = pneg %p439
    // Predicated region
    $region65: #{tpu_custom_call.1} parent=5 // pred_check
      _
    $region66: #{tpu_custom_call.1} parent=5 // pred_check_branch
      %442 = sbr.rel (%p439) target = $region68
    $region67: #{tpu_custom_call.1} parent=5 // pred_region
      %s443 = ssub.s32 %s18, 1
      %s444 = smul.u32 %s27, 2
      %s445 = sadd.s32 %s444, %s28
      %s446 = smul.u32 16, %s445
      %p447 = scmp.lt.s32.totalorder %s446, 31
      %s448 = scalar_select %p447, %s446, 31
      %s449 = smul.addr %s448, 8
      %s450 = scalar_lea.vmem %s0, %s449
      %p451 = pneg %p60
      %p452 = pneg %p57
      %s453 = smul.u32 %s27, 2
      %s454 = sadd.s32 %s453, %s28
      %p455 = scmp.lt.s32.totalorder %s454, 1
      %s456 = scalar_select %p455, %s454, 1
      %s457 = smul.addr %s456, 2
      %s458 = scalar_lea.vmem %s1, %s457
      %p459 = pneg %p90
      %p460 = pneg %p87
      %s461 = smul.u32 %s27, 2
      %s462 = sadd.s32 %s461, %s28
      %s463 = smul.u32 16, %s462
      %p464 = scmp.lt.s32.totalorder %s463, 31
      %s465 = scalar_select %p464, %s463, 31
      %s466 = smul.addr %s465, 8
      %s467 = scalar_lea.vmem %s2, %s466
      %p468 = pneg %p120
      %p469 = pneg %p117
      %s470 = smul.u32 %s27, 2
      %s471 = sadd.s32 %s470, %s28
      %s472 = smul.u32 16, %s471
      %p473 = scmp.lt.s32.totalorder %s472, 31
      %s474 = scalar_select %p473, %s472, 31
      %s475 = smul.addr %s474, 8
      %s476 = scalar_lea.vmem %s3, %s475
      %p477 = pneg %p150
      %p478 = pneg %p147
      %p479 = pneg %p171
      %p480 = pneg %p168
      %p481 = pneg %p192
      %p482 = pneg %p189
      %p483 = pneg %p213
      %p484 = pneg %p210
      %p485 = pneg %p234
      %p486 = pneg %p231
      %p487 = pneg %p255
      %p488 = pneg %p252
      %p489 = pneg %p276
      %p490 = pneg %p273
      %p491 = pneg %p297
      %p492 = pneg %p294
      %p493 = pneg %p318
      %p494 = pneg %p315
      %p495 = pneg %p344
      %p496 = pneg %p341
      %p497 = scmp.lt.s32.totalorder %s27, 0
      %s498 = scalar_select %p497, %s27, 0
      %s499 = smul.addr %s498, 2
      %s500 = smul.addr %s499, 8
      %s501 = scalar_lea.vmem %s12, %s500
      %s502 = smul.u32 %s27, 2
      %s503 = sadd.s32 %s502, %s28
      %s504 = smul.u32 16, %s503
      %p505 = scmp.lt.s32.totalorder %s504, 31
      %s506 = scalar_select %p505, %s504, 31
      %s507 = smul.addr %s506, 8
      %s508 = scalar_lea.vmem %s0, %s507
      %s509 = smul.u32 %s27, 2
      %s510 = sadd.s32 %s509, %s28
      %s511 = smul.u32 16, %s510
      %s512 = smul.u32 %s27, 2
      %s513 = sadd.s32 %s512, %s28
      %p514 = scmp.lt.s32.totalorder %s513, 1
      %s515 = scalar_select %p514, %s513, 1
      %s516 = smul.addr %s515, 2
      %s517 = scalar_lea.vmem %s1, %s516
      %s518 = smul.u32 %s27, 2
      %s519 = sadd.s32 %s518, %s28
      %s520 = smul.u32 %s27, 2
      %s521 = sadd.s32 %s520, %s28
      %s522 = smul.u32 16, %s521
      %p523 = scmp.lt.s32.totalorder %s522, 31
      %s524 = scalar_select %p523, %s522, 31
      %s525 = smul.addr %s524, 8
      %s526 = scalar_lea.vmem %s2, %s525
      %s527 = smul.u32 %s27, 2
      %s528 = sadd.s32 %s527, %s28
      %s529 = smul.u32 16, %s528
      %s530 = smul.u32 %s27, 2
      %s531 = sadd.s32 %s530, %s28
      %s532 = smul.u32 16, %s531
      %p533 = scmp.lt.s32.totalorder %s532, 31
      %s534 = scalar_select %p533, %s532, 31
      %s535 = smul.addr %s534, 8
      %s536 = scalar_lea.vmem %s3, %s535
      %s537 = smul.u32 %s27, 2
      %s538 = sadd.s32 %s537, %s28
      %s539 = smul.u32 16, %s538
      %p540 = scmp.lt.s32.totalorder %s27, 0
      %s541 = scalar_select %p540, %s27, 0
      %s542 = smul.addr %s541, 2
      %s543 = smul.addr %s542, 8
      %s544 = scalar_lea.vmem %s12, %s543
      %p545 = scmp.eq.s32.totalorder %s28, 0
      // Predicated region
      $region69: #{tpu_custom_call.1} parent=67 // pred_check
        %p546 = pneg %p545
      $region70: #{tpu_custom_call.1} parent=67 // pred_check_branch
        %548 = sbr.rel (%p546) target = $region72
      $region71: #{tpu_custom_call.1} parent=67 // pred_region
        %v549 = vld [vmem:[%s4] sm:$0xff]
        %v550 = vld [vmem:[%s4 + $0x8] sm:$0xff]
        %v551 = vld [vmem:[%s5] sm:$0xff]
        %v552 = vld [vmem:[%s5 + $0x8] sm:$0xff]
        %v553 = vld [vmem:[%s5 + $0x10] sm:$0xff]
        %v554 = vld [vmem:[%s5 + $0x18] sm:$0xff]
        %v555 = vld [vmem:[%s7] sm:$0x1]
        %v556 = vlaneseq
        %v557 = vshrl.u32 %v556, 7
        %v558 = vsub.s32 0, %v557
        %v559 = vrot.slane %v555, %v558
        %vm560 = vcmask 261120
        %v562 = vsel %vm560, %v549, 0
        %v565 = vsel %vm560, %v550, 0
        %567 = vmatprep.subr.mxu0 0.0
        %v568 = vand.u32 %v551, 4294901760
        %569 = vmatpush1.msra.mxu0 %v568
        %570 = vmatprep.subr.mxu0 0.0
        %v571 = vand.u32 %v552, 4294901760
        %572 = vmatpush1.msra.mxu0 %v571
        %573 = vmatprep.subr.mxu0 0.0
        %v574 = vand.u32 %v553, 4294901760
        %575 = vmatpush1.msra.mxu0 %v574
        %576 = vmatprep.subr.mxu0 0.0
        %v577 = vand.u32 %v554, 4294901760
        %578 = vmatpush1.msra.mxu0 %v577
        %579 = vmatprep.subr.mxu0 0.0
        %580 = vmatpush1.msra.mxu0 0.0
        %581 = vmatprep.subr.mxu0 0.0
        %582 = vmatpush1.msra.mxu0 0.0
        %583 = vmatprep.subr.mxu0 0.0
        %584 = vmatpush1.msra.mxu0 0.0
        %585 = vmatprep.subr.mxu0 0.0
        %586 = vmatpush1.msra.mxu0 0.0
        %587 = vmatprep.subr.mxu0 0.0
        %588 = vmatpush1.msra.mxu0 0.0
        %589 = vmatprep.subr.mxu0 0.0
        %590 = vmatpush1.msra.mxu0 0.0
        %591 = vmatprep.subr.mxu0 0.0
        %592 = vmatpush1.msra.mxu0 0.0
        %593 = vmatprep.subr.mxu0 0.0
        %594 = vmatpush1.msra.mxu0 0.0
        %595 = vmatprep.subr.mxu0 0.0
        %596 = vmatpush1.msra.mxu0 0.0
        %597 = vmatprep.subr.mxu0 0.0
        %598 = vmatpush1.msra.mxu0 0.0
        %599 = vmatprep.subr.mxu0 0.0
        %600 = vmatpush1.msra.mxu0 0.0
        %601 = vmatprep.subr.mxu0 0.0
        %602 = vmatpush1.msra.mxu0 0.0
        %603 = vmatprep.subr.mxu0 0.0
        %604 = vmatpush1.msra.mxu0 0.0
        %605 = vmatprep.subr.mxu0 0.0
        %606 = vmatpush1.msra.mxu0 0.0
        %607 = vmatprep.subr.mxu0 0.0
        %608 = vmatpush1.msra.mxu0 0.0
        %609 = vmatprep.subr.mxu0 0.0
        %610 = vmatpush1.msra.mxu0 0.0
        %611 = vmatprep.subr.mxu0 0.0
        %612 = vmatpush1.msra.mxu0 0.0
        %613 = vmatprep.subr.mxu0 0.0
        %614 = vmatpush1.msra.mxu0 0.0
        %615 = vmatprep.subr.mxu0 0.0
        %616 = vmatpush1.msra.mxu0 0.0
        %617 = vmatprep.subr.mxu0 0.0
        %618 = vmatpush1.msra.mxu0 0.0
        %619 = vmatprep.subr.mxu0 0.0
        %620 = vmatpush1.msra.mxu0 0.0
        %621 = vmatprep.subr.mxu0 0.0
        %622 = vmatpush1.msra.mxu0 0.0
        %623 = vmatprep.subr.mxu0 0.0
        %624 = vmatpush1.msra.mxu0 0.0
        %625 = vmatprep.subr.mxu0 0.0
        %626 = vmatpush1.msra.mxu0 0.0
        %627 = vmatprep.subr.mxu0 0.0
        %628 = vmatpush1.msra.mxu0 0.0
        %629 = vmatprep.subr.mxu0 0.0
        %630 = vmatpush1.msra.mxu0 0.0
        %631 = vmatprep.subr.mxu0 0.0
        %632 = vmatpush1.msra.mxu0 0.0
        %633 = vmatprep.subr.mxu0 0.0
        %634 = vmatpush1.msra.mxu0 0.0
        %635 = vmatprep.mubr.f32.mxu0 0.0
        %v636 = vand.u32 %v562, 4294901760
        %v637 = vsub.f32 %v562, %v636
        %v638 = vand.u32 %v637, 4294901760
        %v639 = vsub.f32 %v637, %v638
        %v640 = vand.u32 %v639, 4294901760
        %641 = vmatmul.mubr.f32.gmra.mrb[0].mxu0 %v640
        %v642 = vpop.f32.mrb[0].mxu0
        %v643 = vadd.f32 %v559, %v642
        %v644 = vpop.f32.mrb[0].mxu0
        %645 = vmatprep.mubr.f32.mxu0 0.0
        %v646 = vand.u32 %v565, 4294901760
        %v647 = vsub.f32 %v565, %v646
        %v648 = vand.u32 %v647, 4294901760
        %v649 = vsub.f32 %v647, %v648
        %v650 = vand.u32 %v649, 4294901760
        %651 = vmatmul.mubr.f32.gmra.mrb[0].mxu0 %v650
        %v652 = vpop.f32.mrb[0].mxu0
        %v653 = vadd.f32 %v559, %v652
        %v654 = vpop.f32.mrb[0].mxu0
        %655 = vdwg.mxu0
        %656 = vmatprep.subr.mxu0 0.0
        %v657 = vand.u32 %v551, 4294901760
        %v658 = vsub.f32 %v551, %v657
        %v659 = vand.u32 %v658, 4294901760
        %v660 = vsub.f32 %v658, %v659
        %v661 = vand.u32 %v660, 4294901760
        %662 = vmatpush1.msra.mxu0 %v661
        %663 = vmatprep.subr.mxu0 0.0
        %v664 = vand.u32 %v552, 4294901760
        %v665 = vsub.f32 %v552, %v664
        %v666 = vand.u32 %v665, 4294901760
        %v667 = vsub.f32 %v665, %v666
        %v668 = vand.u32 %v667, 4294901760
        %669 = vmatpush1.msra.mxu0 %v668
        %670 = vmatprep.subr.mxu0 0.0
        %v671 = vand.u32 %v553, 4294901760
        %v672 = vsub.f32 %v553, %v671
        %v673 = vand.u32 %v672, 4294901760
        %v674 = vsub.f32 %v672, %v673
        %v675 = vand.u32 %v674, 4294901760
        %676 = vmatpush1.msra.mxu0 %v675
        %677 = vmatprep.subr.mxu0 0.0
        %v678 = vand.u32 %v554, 4294901760
        %v679 = vsub.f32 %v554, %v678
        %v680 = vand.u32 %v679, 4294901760
        %v681 = vsub.f32 %v679, %v680
        %v682 = vand.u32 %v681, 4294901760
        %683 = vmatpush1.msra.mxu0 %v682
        %684 = vmatprep.subr.mxu0 0.0
        %685 = vmatpush1.msra.mxu0 0.0
        %686 = vmatprep.subr.mxu0 0.0
        %687 = vmatpush1.msra.mxu0 0.0
        %688 = vmatprep.subr.mxu0 0.0
        %689 = vmatpush1.msra.mxu0 0.0
        %690 = vmatprep.subr.mxu0 0.0
        %691 = vmatpush1.msra.mxu0 0.0
        %692 = vmatprep.subr.mxu0 0.0
        %693 = vmatpush1.msra.mxu0 0.0
        %694 = vmatprep.subr.mxu0 0.0
        %695 = vmatpush1.msra.mxu0 0.0
        %696 = vmatprep.subr.mxu0 0.0
        %697 = vmatpush1.msra.mxu0 0.0
        %698 = vmatprep.subr.mxu0 0.0
        %699 = vmatpush1.msra.mxu0 0.0
        %700 = vmatprep.subr.mxu0 0.0
        %701 = vmatpush1.msra.mxu0 0.0
        %702 = vmatprep.subr.mxu0 0.0
        %703 = vmatpush1.msra.mxu0 0.0
        %704 = vmatprep.subr.mxu0 0.0
        %705 = vmatpush1.msra.mxu0 0.0
        %706 = vmatprep.subr.mxu0 0.0
        %707 = vmatpush1.msra.mxu0 0.0
        %708 = vmatprep.subr.mxu0 0.0
        %709 = vmatpush1.msra.mxu0 0.0
        %710 = vmatprep.subr.mxu0 0.0
        %711 = vmatpush1.msra.mxu0 0.0
        %712 = vmatprep.subr.mxu0 0.0
        %713 = vmatpush1.msra.mxu0 0.0
        %714 = vmatprep.subr.mxu0 0.0
        %715 = vmatpush1.msra.mxu0 0.0
        %716 = vmatprep.subr.mxu0 0.0
        %717 = vmatpush1.msra.mxu0 0.0
        %718 = vmatprep.subr.mxu0 0.0
        %719 = vmatpush1.msra.mxu0 0.0
        %720 = vmatprep.subr.mxu0 0.0
        %721 = vmatpush1.msra.mxu0 0.0
        %722 = vmatprep.subr.mxu0 0.0
        %723 = vmatpush1.msra.mxu0 0.0
        %724 = vmatprep.subr.mxu0 0.0
        %725 = vmatpush1.msra.mxu0 0.0
        %726 = vmatprep.subr.mxu0 0.0
        %727 = vmatpush1.msra.mxu0 0.0
        %728 = vmatprep.subr.mxu0 0.0
        %729 = vmatpush1.msra.mxu0 0.0
        %730 = vmatprep.subr.mxu0 0.0
        %731 = vmatpush1.msra.mxu0 0.0
        %732 = vmatprep.subr.mxu0 0.0
        %733 = vmatpush1.msra.mxu0 0.0
        %734 = vmatprep.subr.mxu0 0.0
        %735 = vmatpush1.msra.mxu0 0.0
        %736 = vmatprep.subr.mxu0 0.0
        %737 = vmatpush1.msra.mxu0 0.0
        %738 = vmatprep.subr.mxu0 0.0
        %739 = vmatpush1.msra.mxu0 0.0
        %740 = vmatprep.mubr.f32.mxu0 0.0
        %v741 = vand.u32 %v562, 4294901760
        %742 = vmatmul.mubr.f32.gmra.mrb[0].mxu0 %v741
        %v743 = vpop.f32.mrb[0].mxu0
        %v744 = vadd.f32 %v643, %v743
        %v745 = vpop.f32.mrb[0].mxu0
        %746 = vmatprep.mubr.f32.mxu0 0.0
        %v747 = vand.u32 %v565, 4294901760
        %748 = vmatmul.mubr.f32.gmra.mrb[0].mxu0 %v747
        %v749 = vpop.f32.mrb[0].mxu0
        %v750 = vadd.f32 %v653, %v749
        %v751 = vpop.f32.mrb[0].mxu0
        %752 = vdwg.mxu0
        %753 = vmatprep.subr.mxu0 0.0
        %v754 = vand.u32 %v551, 4294901760
        %v755 = vsub.f32 %v551, %v754
        %756 = vmatpush1.msra.mxu0 %v755
        %757 = vmatprep.subr.mxu0 0.0
        %v758 = vand.u32 %v552, 4294901760
        %v759 = vsub.f32 %v552, %v758
        %760 = vmatpush1.msra.mxu0 %v759
        %761 = vmatprep.subr.mxu0 0.0
        %v762 = vand.u32 %v553, 4294901760
        %v763 = vsub.f32 %v553, %v762
        %764 = vmatpush1.msra.mxu0 %v763
        %765 = vmatprep.subr.mxu0 0.0
        %v766 = vand.u32 %v554, 4294901760
        %v767 = vsub.f32 %v554, %v766
        %768 = vmatpush1.msra.mxu0 %v767
        %769 = vmatprep.subr.mxu0 0.0
        %770 = vmatpush1.msra.mxu0 0.0
        %771 = vmatprep.subr.mxu0 0.0
        %772 = vmatpush1.msra.mxu0 0.0
        %773 = vmatprep.subr.mxu0 0.0
        %774 = vmatpush1.msra.mxu0 0.0
        %775 = vmatprep.subr.mxu0 0.0
        %776 = vmatpush1.msra.mxu0 0.0
        %777 = vmatprep.subr.mxu0 0.0
        %778 = vmatpush1.msra.mxu0 0.0
        %779 = vmatprep.subr.mxu0 0.0
        %780 = vmatpush1.msra.mxu0 0.0
        %781 = vmatprep.subr.mxu0 0.0
        %782 = vmatpush1.msra.mxu0 0.0
        %783 = vmatprep.subr.mxu0 0.0
        %784 = vmatpush1.msra.mxu0 0.0
        %785 = vmatprep.subr.mxu0 0.0
        %786 = vmatpush1.msra.mxu0 0.0
        %787 = vmatprep.subr.mxu0 0.0
        %788 = vmatpush1.msra.mxu0 0.0
        %789 = vmatprep.subr.mxu0 0.0
        %790 = vmatpush1.msra.mxu0 0.0
        %791 = vmatprep.subr.mxu0 0.0
        %792 = vmatpush1.msra.mxu0 0.0
        %793 = vmatprep.subr.mxu0 0.0
        %794 = vmatpush1.msra.mxu0 0.0
        %795 = vmatprep.subr.mxu0 0.0
        %796 = vmatpush1.msra.mxu0 0.0
        %797 = vmatprep.subr.mxu0 0.0
        %798 = vmatpush1.msra.mxu0 0.0
        %799 = vmatprep.subr.mxu0 0.0
        %800 = vmatpush1.msra.mxu0 0.0
        %801 = vmatprep.subr.mxu0 0.0
        %802 = vmatpush1.msra.mxu0 0.0
        %803 = vmatprep.subr.mxu0 0.0
        %804 = vmatpush1.msra.mxu0 0.0
        %805 = vmatprep.subr.mxu0 0.0
        %806 = vmatpush1.msra.mxu0 0.0
        %807 = vmatprep.subr.mxu0 0.0
        %808 = vmatpush1.msra.mxu0 0.0
        %809 = vmatprep.subr.mxu0 0.0
        %810 = vmatpush1.msra.mxu0 0.0
        %811 = vmatprep.subr.mxu0 0.0
        %812 = vmatpush1.msra.mxu0 0.0
        %813 = vmatprep.subr.mxu0 0.0
        %814 = vmatpush1.msra.mxu0 0.0
        %815 = vmatprep.subr.mxu0 0.0
        %816 = vmatpush1.msra.mxu0 0.0
        %817 = vmatprep.subr.mxu0 0.0
        %818 = vmatpush1.msra.mxu0 0.0
        %819 = vmatprep.subr.mxu0 0.0
        %820 = vmatpush1.msra.mxu0 0.0
        %821 = vmatprep.subr.mxu0 0.0
        %822 = vmatpush1.msra.mxu0 0.0
        %823 = vmatprep.subr.mxu0 0.0
        %824 = vmatpush1.msra.mxu0 0.0
        %825 = vmatprep.mubr.f32.mxu0 0.0
        %v826 = vand.u32 %v562, 4294901760
        %v827 = vsub.f32 %v562, %v826
        %828 = vmatmul.mubr.f32.gmra.mrb[0].mxu0 %v827
        %v829 = vpop.f32.mrb[0].mxu0
        %v830 = vadd.f32 %v744, %v829
        %v831 = vpop.f32.mrb[0].mxu0
        %832 = vmatprep.mubr.f32.mxu0 0.0
        %v833 = vand.u32 %v565, 4294901760
        %v834 = vsub.f32 %v565, %v833
        %835 = vmatmul.mubr.f32.gmra.mrb[0].mxu0 %v834
        %v836 = vpop.f32.mrb[0].mxu0
        %v837 = vadd.f32 %v750, %v836
        %v838 = vpop.f32.mrb[0].mxu0
        %839 = vdwg.mxu0
        %840 = vmatprep.subr.mxu0 0.0
        %v841 = vand.u32 %v551, 4294901760
        %842 = vmatpush1.msra.mxu0 %v841
        %843 = vmatprep.subr.mxu0 0.0
        %v844 = vand.u32 %v552, 4294901760
        %845 = vmatpush1.msra.mxu0 %v844
        %846 = vmatprep.subr.mxu0 0.0
        %v847 = vand.u32 %v553, 4294901760
        %848 = vmatpush1.msra.mxu0 %v847
        %849 = vmatprep.subr.mxu0 0.0
        %v850 = vand.u32 %v554, 4294901760
        %851 = vmatpush1.msra.mxu0 %v850
        %852 = vmatprep.subr.mxu0 0.0
        %853 = vmatpush1.msra.mxu0 0.0
        %854 = vmatprep.subr.mxu0 0.0
        %855 = vmatpush1.msra.mxu0 0.0
        %856 = vmatprep.subr.mxu0 0.0
        %857 = vmatpush1.msra.mxu0 0.0
        %858 = vmatprep.subr.mxu0 0.0
        %859 = vmatpush1.msra.mxu0 0.0
        %860 = vmatprep.subr.mxu0 0.0
        %861 = vmatpush1.msra.mxu0 0.0
        %862 = vmatprep.subr.mxu0 0.0
        %863 = vmatpush1.msra.mxu0 0.0
        %864 = vmatprep.subr.mxu0 0.0
        %865 = vmatpush1.msra.mxu0 0.0
        %866 = vmatprep.subr.mxu0 0.0
        %867 = vmatpush1.msra.mxu0 0.0
        %868 = vmatprep.subr.mxu0 0.0
        %869 = vmatpush1.msra.mxu0 0.0
        %870 = vmatprep.subr.mxu0 0.0
        %871 = vmatpush1.msra.mxu0 0.0
        %872 = vmatprep.subr.mxu0 0.0
        %873 = vmatpush1.msra.mxu0 0.0
        %874 = vmatprep.subr.mxu0 0.0
        %875 = vmatpush1.msra.mxu0 0.0
        %876 = vmatprep.subr.mxu0 0.0
        %877 = vmatpush1.msra.mxu0 0.0
        %878 = vmatprep.subr.mxu0 0.0
        %879 = vmatpush1.msra.mxu0 0.0
        %880 = vmatprep.subr.mxu0 0.0
        %881 = vmatpush1.msra.mxu0 0.0
        %882 = vmatprep.subr.mxu0 0.0
        %883 = vmatpush1.msra.mxu0 0.0
        %884 = vmatprep.subr.mxu0 0.0
        %885 = vmatpush1.msra.mxu0 0.0
        %886 = vmatprep.subr.mxu0 0.0
        %887 = vmatpush1.msra.mxu0 0.0
        %888 = vmatprep.subr.mxu0 0.0
        %889 = vmatpush1.msra.mxu0 0.0
        %890 = vmatprep.subr.mxu0 0.0
        %891 = vmatpush1.msra.mxu0 0.0
        %892 = vmatprep.subr.mxu0 0.0
        %893 = vmatpush1.msra.mxu0 0.0
        %894 = vmatprep.subr.mxu0 0.0
        %895 = vmatpush1.msra.mxu0 0.0
        %896 = vmatprep.subr.mxu0 0.0
        %897 = vmatpush1.msra.mxu0 0.0
        %898 = vmatprep.subr.mxu0 0.0
        %899 = vmatpush1.msra.mxu0 0.0
        %900 = vmatprep.subr.mxu0 0.0
        %901 = vmatpush1.msra.mxu0 0.0
        %902 = vmatprep.subr.mxu0 0.0
        %903 = vmatpush1.msra.mxu0 0.0
        %904 = vmatprep.subr.mxu0 0.0
        %905 = vmatpush1.msra.mxu0 0.0
        %906 = vmatprep.subr.mxu0 0.0
        %907 = vmatpush1.msra.mxu0 0.0
        %908 = vmatprep.mubr.f32.mxu0 0.0
        %v909 = vand.u32 %v562, 4294901760
        %v910 = vsub.f32 %v562, %v909
        %v911 = vand.u32 %v910, 4294901760
        %912 = vmatmul.mubr.f32.gmra.mrb[0].mxu0 %v911
        %v913 = vpop.f32.mrb[0].mxu0
        %v914 = vadd.f32 %v830, %v913
        %v915 = vpop.f32.mrb[0].mxu0
        %916 = vmatprep.mubr.f32.mxu0 0.0
        %v917 = vand.u32 %v565, 4294901760
        %v918 = vsub.f32 %v565, %v917
        %v919 = vand.u32 %v918, 4294901760
        %920 = vmatmul.mubr.f32.gmra.mrb[0].mxu0 %v919
        %v921 = vpop.f32.mrb[0].mxu0
        %v922 = vadd.f32 %v837, %v921
        %v923 = vpop.f32.mrb[0].mxu0
        %924 = vdwg.mxu0
        %925 = vmatprep.subr.mxu0 0.0
        %v926 = vand.u32 %v551, 4294901760
        %v927 = vsub.f32 %v551, %v926
        %v928 = vand.u32 %v927, 4294901760
        %929 = vmatpush1.msra.mxu0 %v928
        %930 = vmatprep.subr.mxu0 0.0
        %v931 = vand.u32 %v552, 4294901760
        %v932 = vsub.f32 %v552, %v931
        %v933 = vand.u32 %v932, 4294901760
        %934 = vmatpush1.msra.mxu0 %v933
        %935 = vmatprep.subr.mxu0 0.0
        %v936 = vand.u32 %v553, 4294901760
        %v937 = vsub.f32 %v553, %v936
        %v938 = vand.u32 %v937, 4294901760
        %939 = vmatpush1.msra.mxu0 %v938
        %940 = vmatprep.subr.mxu0 0.0
        %v941 = vand.u32 %v554, 4294901760
        %v942 = vsub.f32 %v554, %v941
        %v943 = vand.u32 %v942, 4294901760
        %944 = vmatpush1.msra.mxu0 %v943
        %945 = vmatprep.subr.mxu0 0.0
        %946 = vmatpush1.msra.mxu0 0.0
        %947 = vmatprep.subr.mxu0 0.0
        %948 = vmatpush1.msra.mxu0 0.0
        %949 = vmatprep.subr.mxu0 0.0
        %950 = vmatpush1.msra.mxu0 0.0
        %951 = vmatprep.subr.mxu0 0.0
        %952 = vmatpush1.msra.mxu0 0.0
        %953 = vmatprep.subr.mxu0 0.0
        %954 = vmatpush1.msra.mxu0 0.0
        %955 = vmatprep.subr.mxu0 0.0
        %956 = vmatpush1.msra.mxu0 0.0
        %957 = vmatprep.subr.mxu0 0.0
        %958 = vmatpush1.msra.mxu0 0.0
        %959 = vmatprep.subr.mxu0 0.0
        %960 = vmatpush1.msra.mxu0 0.0
        %961 = vmatprep.subr.mxu0 0.0
        %962 = vmatpush1.msra.mxu0 0.0
        %963 = vmatprep.subr.mxu0 0.0
        %964 = vmatpush1.msra.mxu0 0.0
        %965 = vmatprep.subr.mxu0 0.0
        %966 = vmatpush1.msra.mxu0 0.0
        %967 = vmatprep.subr.mxu0 0.0
        %968 = vmatpush1.msra.mxu0 0.0
        %969 = vmatprep.subr.mxu0 0.0
        %970 = vmatpush1.msra.mxu0 0.0
        %971 = vmatprep.subr.mxu0 0.0
        %972 = vmatpush1.msra.mxu0 0.0
        %973 = vmatprep.subr.mxu0 0.0
        %974 = vmatpush1.msra.mxu0 0.0
        %975 = vmatprep.subr.mxu0 0.0
        %976 = vmatpush1.msra.mxu0 0.0
        %977 = vmatprep.subr.mxu0 0.0
        %978 = vmatpush1.msra.mxu0 0.0
        %979 = vmatprep.subr.mxu0 0.0
        %980 = vmatpush1.msra.mxu0 0.0
        %981 = vmatprep.subr.mxu0 0.0
        %982 = vmatpush1.msra.mxu0 0.0
        %983 = vmatprep.subr.mxu0 0.0
        %984 = vmatpush1.msra.mxu0 0.0
        %985 = vmatprep.subr.mxu0 0.0
        %986 = vmatpush1.msra.mxu0 0.0
        %987 = vmatprep.subr.mxu0 0.0
        %988 = vmatpush1.msra.mxu0 0.0
        %989 = vmatprep.subr.mxu0 0.0
        %990 = vmatpush1.msra.mxu0 0.0
        %991 = vmatprep.subr.mxu0 0.0
        %992 = vmatpush1.msra.mxu0 0.0
        %993 = vmatprep.subr.mxu0 0.0
        %994 = vmatpush1.msra.mxu0 0.0
        %995 = vmatprep.subr.mxu0 0.0
        %996 = vmatpush1.msra.mxu0 0.0
        %997 = vmatprep.subr.mxu0 0.0
        %998 = vmatpush1.msra.mxu0 0.0
        %999 = vmatprep.subr.mxu0 0.0
        %1000 = vmatpush1.msra.mxu0 0.0
        %1001 = vmatprep.mubr.f32.mxu0 0.0
        %v1002 = vand.u32 %v562, 4294901760
        %1003 = vmatmul.mubr.f32.gmra.mrb[0].mxu0 %v1002
        %v1004 = vpop.f32.mrb[0].mxu0
        %v1005 = vadd.f32 %v914, %v1004
        %v1006 = vpop.f32.mrb[0].mxu0
        %1007 = vmatprep.mubr.f32.mxu0 0.0
        %v1008 = vand.u32 %v565, 4294901760
        %1009 = vmatmul.mubr.f32.gmra.mrb[0].mxu0 %v1008
        %v1010 = vpop.f32.mrb[0].mxu0
        %v1011 = vadd.f32 %v922, %v1010
        %v1012 = vpop.f32.mrb[0].mxu0
        %1013 = vdwg.mxu0
        %1014 = vmatprep.subr.mxu0 0.0
        %v1015 = vand.u32 %v551, 4294901760
        %1016 = vmatpush1.msra.mxu0 %v1015
        %1017 = vmatprep.subr.mxu0 0.0
        %v1018 = vand.u32 %v552, 4294901760
        %1019 = vmatpush1.msra.mxu0 %v1018
        %1020 = vmatprep.subr.mxu0 0.0
        %v1021 = vand.u32 %v553, 4294901760
        %1022 = vmatpush1.msra.mxu0 %v1021
        %1023 = vmatprep.subr.mxu0 0.0
        %v1024 = vand.u32 %v554, 4294901760
        %1025 = vmatpush1.msra.mxu0 %v1024
        %1026 = vmatprep.subr.mxu0 0.0
        %1027 = vmatpush1.msra.mxu0 0.0
        %1028 = vmatprep.subr.mxu0 0.0
        %1029 = vmatpush1.msra.mxu0 0.0
        %1030 = vmatprep.subr.mxu0 0.0
        %1031 = vmatpush1.msra.mxu0 0.0
        %1032 = vmatprep.subr.mxu0 0.0
        %1033 = vmatpush1.msra.mxu0 0.0
        %1034 = vmatprep.subr.mxu0 0.0
        %1035 = vmatpush1.msra.mxu0 0.0
        %1036 = vmatprep.subr.mxu0 0.0
        %1037 = vmatpush1.msra.mxu0 0.0
        %1038 = vmatprep.subr.mxu0 0.0
        %1039 = vmatpush1.msra.mxu0 0.0
        %1040 = vmatprep.subr.mxu0 0.0
        %1041 = vmatpush1.msra.mxu0 0.0
        %1042 = vmatprep.subr.mxu0 0.0
        %1043 = vmatpush1.msra.mxu0 0.0
        %1044 = vmatprep.subr.mxu0 0.0
        %1045 = vmatpush1.msra.mxu0 0.0
        %1046 = vmatprep.subr.mxu0 0.0
        %1047 = vmatpush1.msra.mxu0 0.0
        %1048 = vmatprep.subr.mxu0 0.0
        %1049 = vmatpush1.msra.mxu0 0.0
        %1050 = vmatprep.subr.mxu0 0.0
        %1051 = vmatpush1.msra.mxu0 0.0
        %1052 = vmatprep.subr.mxu0 0.0
        %1053 = vmatpush1.msra.mxu0 0.0
        %1054 = vmatprep.subr.mxu0 0.0
        %1055 = vmatpush1.msra.mxu0 0.0
        %1056 = vmatprep.subr.mxu0 0.0
        %1057 = vmatpush1.msra.mxu0 0.0
        %1058 = vmatprep.subr.mxu0 0.0
        %1059 = vmatpush1.msra.mxu0 0.0
        %1060 = vmatprep.subr.mxu0 0.0
        %1061 = vmatpush1.msra.mxu0 0.0
        %1062 = vmatprep.subr.mxu0 0.0
        %1063 = vmatpush1.msra.mxu0 0.0
        %1064 = vmatprep.subr.mxu0 0.0
        %1065 = vmatpush1.msra.mxu0 0.0
        %1066 = vmatprep.subr.mxu0 0.0
        %1067 = vmatpush1.msra.mxu0 0.0
        %1068 = vmatprep.subr.mxu0 0.0
        %1069 = vmatpush1.msra.mxu0 0.0
        %1070 = vmatprep.subr.mxu0 0.0
        %1071 = vmatpush1.msra.mxu0 0.0
        %1072 = vmatprep.subr.mxu0 0.0
        %1073 = vmatpush1.msra.mxu0 0.0
        %1074 = vmatprep.subr.mxu0 0.0
        %1075 = vmatpush1.msra.mxu0 0.0
        %1076 = vmatprep.subr.mxu0 0.0
        %1077 = vmatpush1.msra.mxu0 0.0
        %1078 = vmatprep.subr.mxu0 0.0
        %1079 = vmatpush1.msra.mxu0 0.0
        %1080 = vmatprep.subr.mxu0 0.0
        %1081 = vmatpush1.msra.mxu0 0.0
        %1082 = vmatprep.mubr.f32.mxu0 0.0
        %v1083 = vand.u32 %v562, 4294901760
        %1084 = vmatmul.mubr.f32.gmra.mrb[0].mxu0 %v1083
        %v1085 = vpop.f32.mrb[0].mxu0
        %v1086 = vadd.f32 %v1005, %v1085
        %v1087 = vpop.f32.mrb[0].mxu0
        %1088 = vmatprep.mubr.f32.mxu0 0.0
        %v1089 = vand.u32 %v565, 4294901760
        %1090 = vmatmul.mubr.f32.gmra.mrb[0].mxu0 %v1089
        %v1091 = vpop.f32.mrb[0].mxu0
        %v1092 = vadd.f32 %v1011, %v1091
        %v1093 = vpop.f32.mrb[0].mxu0
        %1094 = vdwg.mxu0
        %v1095 = vsel %vm560, %v1086, 0.0
        %1096 = vadd.xlane.f32.xlu0 %v1095
        %v1097 = vpop.xlane.xlu0 %1096
        %v1098 = vsel %vm560, %v1092, 0.0
        %1099 = vadd.xlane.f32.xlu0 %v1098
        %v1100 = vpop.xlane.xlu0 %1099
        %v1101 = vrcp.pop 32.0
        %v1102 = vmul.f32 %v1097, %v1101
        %v1103 = vmul.f32 %v1100, %v1101
        %v1104 = vsub.f32 %v1086, %v1102
        %v1105 = vsub.f32 %v1092, %v1103
        %v1106 = vmul.f32 %v1104, %v1104
        %v1107 = vmul.f32 %v1105, %v1105
        %v1108 = vsel %vm560, %v1106, 0.0
        %1109 = vadd.xlane.f32.xlu0 %v1108
        %v1110 = vpop.xlane.xlu0 %1109
        %v1111 = vsel %vm560, %v1107, 0.0
        %1112 = vadd.xlane.f32.xlu0 %v1111
        %v1113 = vpop.xlane.xlu0 %1112
        %v1114 = vmul.f32 %v1110, %v1101
        %v1115 = vmul.f32 %v1113, %v1101
        %v1116 = vadd.f32 %v1114, 1e-05
        %v1117 = vadd.f32 %v1115, 1e-05
        %v1118 = vrsqrt.pop %v1116
        %v1119 = vrsqrt.pop %v1117
        %v1120 = vmul.f32 %v1104, %v1118
        %v1121 = vmul.f32 %v1105, %v1119
        %1124 = vrot.lane.b32.xlu0 %v1086, 96
        %v1125 = vpop.permute.xlu0 %1124
        %1126 = vrot.lane.b32.xlu0 %v1092, 96
        %v1127 = vpop.permute.xlu0 %1126
        %v1130 = vsel %vm560, %v1125, 0.0
        %1131 = vadd.xlane.f32.xlu0 %v1130
        %v1132 = vpop.xlane.xlu0 %1131
        %v1133 = vsel %vm560, %v1127, 0.0
        %1134 = vadd.xlane.f32.xlu0 %v1133
        %v1135 = vpop.xlane.xlu0 %1134
        %v1136 = vmul.f32 %v1132, %v1101
        %v1137 = vmul.f32 %v1135, %v1101
        %v1138 = vsub.f32 %v1086, %v1136
        %v1139 = vsub.f32 %v1092, %v1137
        %v1140 = vmul.f32 %v1138, %v1138
        %v1141 = vmul.f32 %v1139, %v1139
        %1144 = vrot.lane.b32.xlu0 %v1140, 96
        %v1145 = vpop.permute.xlu0 %1144
        %1146 = vrot.lane.b32.xlu0 %v1141, 96
        %v1147 = vpop.permute.xlu0 %1146
        %v1150 = vsel %vm560, %v1145, 0.0
        %1151 = vadd.xlane.f32.xlu0 %v1150
        %v1152 = vpop.xlane.xlu0 %1151
        %v1153 = vsel %vm560, %v1147, 0.0
        %1154 = vadd.xlane.f32.xlu0 %v1153
        %v1155 = vpop.xlane.xlu0 %1154
        %v1156 = vmul.f32 %v1152, %v1101
        %v1157 = vmul.f32 %v1155, %v1101
        %v1158 = vadd.f32 %v1156, 1e-05
        %v1159 = vadd.f32 %v1157, 1e-05
        %v1160 = vrsqrt.pop %v1158
        %v1161 = vrsqrt.pop %v1159
        %v1162 = vmul.f32 %v1138, %v1160
        %v1163 = vmul.f32 %v1139, %v1161
        %v1164 = vsel %vm560, %v1120, %v1162
        %v1165 = vsel %vm560, %v1121, %v1163
        %v1166 = vld [vmem:[%s7 + $0x1] sm:$0x1]
        %v1167 = vlaneseq
        %v1168 = vshrl.u32 %v1167, 7
        %v1169 = vsub.s32 0, %v1168
        %v1170 = vrot.slane %v1166, %v1169
        %v1171 = vmul.f32 %v1164, %v1170
        %v1172 = vmul.f32 %v1165, %v1170
        %v1173 = vld [vmem:[%s7 + $0x2] sm:$0x1]
        %v1174 = vlaneseq
        %v1175 = vshrl.u32 %v1174, 7
        %v1176 = vsub.s32 0, %v1175
        %v1177 = vrot.slane %v1173, %v1176
        %v1178 = vadd.f32 %v1171, %v1177
        %v1179 = vadd.f32 %v1172, %v1177
        %v1180 = vmax.f32 %v1178, 0.0
        %v1181 = vmax.f32 %v1179, 0.0
        %v1182 = vld [vmem:[%s6] sm:$0xff]
        %v1183 = vld [vmem:[%s6 + $0x8] sm:$0xff]
        %v1184 = vld [vmem:[%s6 + $0x10] sm:$0xff]
        %v1185 = vld [vmem:[%s6 + $0x18] sm:$0xff]
        %v1186 = vld [vmem:[%s6 + $0x20] sm:$0xff]
        %v1187 = vld [vmem:[%s6 + $0x28] sm:$0xff]
        %v1188 = vld [vmem:[%s6 + $0x30] sm:$0xff]
        %v1189 = vld [vmem:[%s6 + $0x38] sm:$0xff]
        %v1190 = vld [vmem:[%s7 + $0x3] sm:$0x1]
        %v1191 = vlaneseq
        %v1192 = vshrl.u32 %v1191, 7
        %v1193 = vsub.s32 0, %v1192
        %v1194 = vrot.slane %v1190, %v1193
        %vm1195 = vcmask 523264
        %v1197 = vsel %vm1195, %v1180, 0
        %v1200 = vsel %vm1195, %v1181, 0
        %1202 = vmatprep.subr.mxu0 0.0
        %v1203 = vand.u32 %v1182, 4294901760
        %1204 = vmatpush1.msra.mxu0 %v1203
        %1205 = vmatprep.subr.mxu0 0.0
        %v1206 = vand.u32 %v1183, 4294901760
        %1207 = vmatpush1.msra.mxu0 %v1206
        %1208 = vmatprep.subr.mxu0 0.0
        %v1209 = vand.u32 %v1184, 4294901760
        %1210 = vmatpush1.msra.mxu0 %v1209
        %1211 = vmatprep.subr.mxu0 0.0
        %v1212 = vand.u32 %v1185, 4294901760
        %1213 = vmatpush1.msra.mxu0 %v1212
        %1214 = vmatprep.subr.mxu0 0.0
        %v1215 = vand.u32 %v1186, 4294901760
        %1216 = vmatpush1.msra.mxu0 %v1215
        %1217 = vmatprep.subr.mxu0 0.0
        %v1218 = vand.u32 %v1187, 4294901760
        %1219 = vmatpush1.msra.mxu0 %v1218
        %1220 = vmatprep.subr.mxu0 0.0
        %v1221 = vand.u32 %v1188, 4294901760
        %1222 = vmatpush1.msra.mxu0 %v1221
        %1223 = vmatprep.subr.mxu0 0.0
        %v1224 = vand.u32 %v1189, 4294901760
        %1225 = vmatpush1.msra.mxu0 %v1224
        %1226 = vmatprep.subr.mxu0 0.0
        %1227 = vmatpush1.msra.mxu0 0.0
        %1228 = vmatprep.subr.mxu0 0.0
        %1229 = vmatpush1.msra.mxu0 0.0
        %1230 = vmatprep.subr.mxu0 0.0
        %1231 = vmatpush1.msra.mxu0 0.0
        %1232 = vmatprep.subr.mxu0 0.0
        %1233 = vmatpush1.msra.mxu0 0.0
        %1234 = vmatprep.subr.mxu0 0.0
        %1235 = vmatpush1.msra.mxu0 0.0
        %1236 = vmatprep.subr.mxu0 0.0
        %1237 = vmatpush1.msra.mxu0 0.0
        %1238 = vmatprep.subr.mxu0 0.0
        %1239 = vmatpush1.msra.mxu0 0.0
        %1240 = vmatprep.subr.mxu0 0.0
        %1241 = vmatpush1.msra.mxu0 0.0
        %1242 = vmatprep.subr.mxu0 0.0
        %1243 = vmatpush1.msra.mxu0 0.0
        %1244 = vmatprep.subr.mxu0 0.0
        %1245 = vmatpush1.msra.mxu0 0.0
        %1246 = vmatprep.subr.mxu0 0.0
        %1247 = vmatpush1.msra.mxu0 0.0
        %1248 = vmatprep.subr.mxu0 0.0
        %1249 = vmatpush1.msra.mxu0 0.0
        %1250 = vmatprep.subr.mxu0 0.0
        %1251 = vmatpush1.msra.mxu0 0.0
        %1252 = vmatprep.subr.mxu0 0.0
        %1253 = vmatpush1.msra.mxu0 0.0
        %1254 = vmatprep.subr.mxu0 0.0
        %1255 = vmatpush1.msra.mxu0 0.0
        %1256 = vmatprep.subr.mxu0 0.0
        %1257 = vmatpush1.msra.mxu0 0.0
        %1258 = vmatprep.subr.mxu0 0.0
        %1259 = vmatpush1.msra.mxu0 0.0
        %1260 = vmatprep.subr.mxu0 0.0
        %1261 = vmatpush1.msra.mxu0 0.0
        %1262 = vmatprep.subr.mxu0 0.0
        %1263 = vmatpush1.msra.mxu0 0.0
        %1264 = vmatprep.subr.mxu0 0.0
        %1265 = vmatpush1.msra.mxu0 0.0
        %1266 = vmatprep.subr.mxu0 0.0
        %1267 = vmatpush1.msra.mxu0 0.0
        %1268 = vmatprep.subr.mxu0 0.0
        %1269 = vmatpush1.msra.mxu0 0.0
        %1270 = vmatprep.subr.mxu0 0.0
        %1271 = vmatpush1.msra.mxu0 0.0
        %1272 = vmatprep.subr.mxu0 0.0
        %1273 = vmatpush1.msra.mxu0 0.0
        %1274 = vmatprep.mubr.f32.mxu0 0.0
        %v1275 = vand.u32 %v1197, 4294901760
        %v1276 = vsub.f32 %v1197, %v1275
        %v1277 = vand.u32 %v1276, 4294901760
        %v1278 = vsub.f32 %v1276, %v1277
        %v1279 = vand.u32 %v1278, 4294901760
        %1280 = vmatmul.mubr.f32.gmra.mrb[0].mxu0 %v1279
        %v1281 = vpop.f32.mrb[0].mxu0
        %v1282 = vadd.f32 %v1194, %v1281
        %v1283 = vpop.f32.mrb[0].mxu0
        %1284 = vmatprep.mubr.f32.mxu0 0.0
        %v1285 = vand.u32 %v1200, 4294901760
        %v1286 = vsub.f32 %v1200, %v1285
        %v1287 = vand.u32 %v1286, 4294901760
        %v1288 = vsub.f32 %v1286, %v1287
        %v1289 = vand.u32 %v1288, 4294901760
        %1290 = vmatmul.mubr.f32.gmra.mrb[0].mxu0 %v1289
        %v1291 = vpop.f32.mrb[0].mxu0
        %v1292 = vadd.f32 %v1194, %v1291
        %v1293 = vpop.f32.mrb[0].mxu0
        %1294 = vdwg.mxu0
        %1295 = vmatprep.subr.mxu0 0.0
        %v1296 = vand.u32 %v1182, 4294901760
        %v1297 = vsub.f32 %v1182, %v1296
        %v1298 = vand.u32 %v1297, 4294901760
        %v1299 = vsub.f32 %v1297, %v1298
        %v1300 = vand.u32 %v1299, 4294901760
        %1301 = vmatpush1.msra.mxu0 %v1300
        %1302 = vmatprep.subr.mxu0 0.0
        %v1303 = vand.u32 %v1183, 4294901760
        %v1304 = vsub.f32 %v1183, %v1303
        %v1305 = vand.u32 %v1304, 4294901760
        %v1306 = vsub.f32 %v1304, %v1305
        %v1307 = vand.u32 %v1306, 4294901760
        %1308 = vmatpush1.msra.mxu0 %v1307
        %1309 = vmatprep.subr.mxu0 0.0
        %v1310 = vand.u32 %v1184, 4294901760
        %v1311 = vsub.f32 %v1184, %v1310
        %v1312 = vand.u32 %v1311, 4294901760
        %v1313 = vsub.f32 %v1311, %v1312
        %v1314 = vand.u32 %v1313, 4294901760
        %1315 = vmatpush1.msra.mxu0 %v1314
        %1316 = vmatprep.subr.mxu0 0.0
        %v1317 = vand.u32 %v1185, 4294901760
        %v1318 = vsub.f32 %v1185, %v1317
        %v1319 = vand.u32 %v1318, 4294901760
        %v1320 = vsub.f32 %v1318, %v1319
        %v1321 = vand.u32 %v1320, 4294901760
        %1322 = vmatpush1.msra.mxu0 %v1321
        %1323 = vmatprep.subr.mxu0 0.0
        %v1324 = vand.u32 %v1186, 4294901760
        %v1325 = vsub.f32 %v1186, %v1324
        %v1326 = vand.u32 %v1325, 4294901760
        %v1327 = vsub.f32 %v1325, %v1326
        %v1328 = vand.u32 %v1327, 4294901760
        %1329 = vmatpush1.msra.mxu0 %v1328
        %1330 = vmatprep.subr.mxu0 0.0
        %v1331 = vand.u32 %v1187, 4294901760
        %v1332 = vsub.f32 %v1187, %v1331
        %v1333 = vand.u32 %v1332, 4294901760
        %v1334 = vsub.f32 %v1332, %v1333
        %v1335 = vand.u32 %v1334, 4294901760
        %1336 = vmatpush1.msra.mxu0 %v1335
        %1337 = vmatprep.subr.mxu0 0.0
        %v1338 = vand.u32 %v1188, 4294901760
        %v1339 = vsub.f32 %v1188, %v1338
        %v1340 = vand.u32 %v1339, 4294901760
        %v1341 = vsub.f32 %v1339, %v1340
        %v1342 = vand.u32 %v1341, 4294901760
        %1343 = vmatpush1.msra.mxu0 %v1342
        %1344 = vmatprep.subr.mxu0 0.0
        %v1345 = vand.u32 %v1189, 4294901760
        %v1346 = vsub.f32 %v1189, %v1345
        %v1347 = vand.u32 %v1346, 4294901760
        %v1348 = vsub.f32 %v1346, %v1347
        %v1349 = vand.u32 %v1348, 4294901760
        %1350 = vmatpush1.msra.mxu0 %v1349
        %1351 = vmatprep.subr.mxu0 0.0
        %1352 = vmatpush1.msra.mxu0 0.0
        %1353 = vmatprep.subr.mxu0 0.0
        %1354 = vmatpush1.msra.mxu0 0.0
        %1355 = vmatprep.subr.mxu0 0.0
        %1356 = vmatpush1.msra.mxu0 0.0
        %1357 = vmatprep.subr.mxu0 0.0
        %1358 = vmatpush1.msra.mxu0 0.0
        %1359 = vmatprep.subr.mxu0 0.0
        %1360 = vmatpush1.msra.mxu0 0.0
        %1361 = vmatprep.subr.mxu0 0.0
        %1362 = vmatpush1.msra.mxu0 0.0
        %1363 = vmatprep.subr.mxu0 0.0
        %1364 = vmatpush1.msra.mxu0 0.0
        %1365 = vmatprep.subr.mxu0 0.0
        %1366 = vmatpush1.msra.mxu0 0.0
        %1367 = vmatprep.subr.mxu0 0.0
        %1368 = vmatpush1.msra.mxu0 0.0
        %1369 = vmatprep.subr.mxu0 0.0
        %1370 = vmatpush1.msra.mxu0 0.0
        %1371 = vmatprep.subr.mxu0 0.0
        %1372 = vmatpush1.msra.mxu0 0.0
        %1373 = vmatprep.subr.mxu0 0.0
        %1374 = vmatpush1.msra.mxu0 0.0
        %1375 = vmatprep.subr.mxu0 0.0
        %1376 = vmatpush1.msra.mxu0 0.0
        %1377 = vmatprep.subr.mxu0 0.0
        %1378 = vmatpush1.msra.mxu0 0.0
        %1379 = vmatprep.subr.mxu0 0.0
        %1380 = vmatpush1.msra.mxu0 0.0
        %1381 = vmatprep.subr.mxu0 0.0
        %1382 = vmatpush1.msra.mxu0 0.0
        %1383 = vmatprep.subr.mxu0 0.0
        %1384 = vmatpush1.msra.mxu0 0.0
        %1385 = vmatprep.subr.mxu0 0.0
        %1386 = vmatpush1.msra.mxu0 0.0
        %1387 = vmatprep.subr.mxu0 0.0
        %1388 = vmatpush1.msra.mxu0 0.0
        %1389 = vmatprep.subr.mxu0 0.0
        %1390 = vmatpush1.msra.mxu0 0.0
        %1391 = vmatprep.subr.mxu0 0.0
        %1392 = vmatpush1.msra.mxu0 0.0
        %1393 = vmatprep.subr.mxu0 0.0
        %1394 = vmatpush1.msra.mxu0 0.0
        %1395 = vmatprep.subr.mxu0 0.0
        %1396 = vmatpush1.msra.mxu0 0.0
        %1397 = vmatprep.subr.mxu0 0.0
        %1398 = vmatpush1.msra.mxu0 0.0
        %1399 = vmatprep.mubr.f32.mxu0 0.0
        %v1400 = vand.u32 %v1197, 4294901760
        %1401 = vmatmul.mubr.f32.gmra.mrb[0].mxu0 %v1400
        %v1402 = vpop.f32.mrb[0].mxu0
        %v1403 = vadd.f32 %v1282, %v1402
        %v1404 = vpop.f32.mrb[0].mxu0
        %1405 = vmatprep.mubr.f32.mxu0 0.0
        %v1406 = vand.u32 %v1200, 4294901760
        %1407 = vmatmul.mubr.f32.gmra.mrb[0].mxu0 %v1406
        %v1408 = vpop.f32.mrb[0].mxu0
        %v1409 = vadd.f32 %v1292, %v1408
        %v1410 = vpop.f32.mrb[0].mxu0
        %1411 = vdwg.mxu0
        %1412 = vmatprep.subr.mxu0 0.0
        %v1413 = vand.u32 %v1182, 4294901760
        %v1414 = vsub.f32 %v1182, %v1413
        %1415 = vmatpush1.msra.mxu0 %v1414
        %1416 = vmatprep.subr.mxu0 0.0
        %v1417 = vand.u32 %v1183, 4294901760
        %v1418 = vsub.f32 %v1183, %v1417
        %1419 = vmatpush1.msra.mxu0 %v1418
        %1420 = vmatprep.subr.mxu0 0.0
        %v1421 = vand.u32 %v1184, 4294901760
        %v1422 = vsub.f32 %v1184, %v1421
        %1423 = vmatpush1.msra.mxu0 %v1422
        %1424 = vmatprep.subr.mxu0 0.0
        %v1425 = vand.u32 %v1185, 4294901760
        %v1426 = vsub.f32 %v1185, %v1425
        %1427 = vmatpush1.msra.mxu0 %v1426
        %1428 = vmatprep.subr.mxu0 0.0
        %v1429 = vand.u32 %v1186, 4294901760
        %v1430 = vsub.f32 %v1186, %v1429
        %1431 = vmatpush1.msra.mxu0 %v1430
        %1432 = vmatprep.subr.mxu0 0.0
        %v1433 = vand.u32 %v1187, 4294901760
        %v1434 = vsub.f32 %v1187, %v1433
        %1435 = vmatpush1.msra.mxu0 %v1434
        %1436 = vmatprep.subr.mxu0 0.0
        %v1437 = vand.u32 %v1188, 4294901760
        %v1438 = vsub.f32 %v1188, %v1437
        %1439 = vmatpush1.msra.mxu0 %v1438
        %1440 = vmatprep.subr.mxu0 0.0
        %v1441 = vand.u32 %v1189, 4294901760
        %v1442 = vsub.f32 %v1189, %v1441
        %1443 = vmatpush1.msra.mxu0 %v1442
        %1444 = vmatprep.subr.mxu0 0.0
        %1445 = vmatpush1.msra.mxu0 0.0
        %1446 = vmatprep.subr.mxu0 0.0
        %1447 = vmatpush1.msra.mxu0 0.0
        %1448 = vmatprep.subr.mxu0 0.0
        %1449 = vmatpush1.msra.mxu0 0.0
        %1450 = vmatprep.subr.mxu0 0.0
        %1451 = vmatpush1.msra.mxu0 0.0
        %1452 = vmatprep.subr.mxu0 0.0
        %1453 = vmatpush1.msra.mxu0 0.0
        %1454 = vmatprep.subr.mxu0 0.0
        %1455 = vmatpush1.msra.mxu0 0.0
        %1456 = vmatprep.subr.mxu0 0.0
        %1457 = vmatpush1.msra.mxu0 0.0
        %1458 = vmatprep.subr.mxu0 0.0
        %1459 = vmatpush1.msra.mxu0 0.0
        %1460 = vmatprep.subr.mxu0 0.0
        %1461 = vmatpush1.msra.mxu0 0.0
        %1462 = vmatprep.subr.mxu0 0.0
        %1463 = vmatpush1.msra.mxu0 0.0
        %1464 = vmatprep.subr.mxu0 0.0
        %1465 = vmatpush1.msra.mxu0 0.0
        %1466 = vmatprep.subr.mxu0 0.0
        %1467 = vmatpush1.msra.mxu0 0.0
        %1468 = vmatprep.subr.mxu0 0.0
        %1469 = vmatpush1.msra.mxu0 0.0
        %1470 = vmatprep.subr.mxu0 0.0
        %1471 = vmatpush1.msra.mxu0 0.0
        %1472 = vmatprep.subr.mxu0 0.0
        %1473 = vmatpush1.msra.mxu0 0.0
        %1474 = vmatprep.subr.mxu0 0.0
        %1475 = vmatpush1.msra.mxu0 0.0
        %1476 = vmatprep.subr.mxu0 0.0
        %1477 = vmatpush1.msra.mxu0 0.0
        %1478 = vmatprep.subr.mxu0 0.0
        %1479 = vmatpush1.msra.mxu0 0.0
        %1480 = vmatprep.subr.mxu0 0.0
        %1481 = vmatpush1.msra.mxu0 0.0
        %1482 = vmatprep.subr.mxu0 0.0
        %1483 = vmatpush1.msra.mxu0 0.0
        %1484 = vmatprep.subr.mxu0 0.0
        %1485 = vmatpush1.msra.mxu0 0.0
        %1486 = vmatprep.subr.mxu0 0.0
        %1487 = vmatpush1.msra.mxu0 0.0
        %1488 = vmatprep.subr.mxu0 0.0
        %1489 = vmatpush1.msra.mxu0 0.0
        %1490 = vmatprep.subr.mxu0 0.0
        %1491 = vmatpush1.msra.mxu0 0.0
        %1492 = vmatprep.mubr.f32.mxu0 0.0
        %v1493 = vand.u32 %v1197, 4294901760
        %v1494 = vsub.f32 %v1197, %v1493
        %1495 = vmatmul.mubr.f32.gmra.mrb[0].mxu0 %v1494
        %v1496 = vpop.f32.mrb[0].mxu0
        %v1497 = vadd.f32 %v1403, %v1496
        %v1498 = vpop.f32.mrb[0].mxu0
        %1499 = vmatprep.mubr.f32.mxu0 0.0
        %v1500 = vand.u32 %v1200, 4294901760
        %v1501 = vsub.f32 %v1200, %v1500
        %1502 = vmatmul.mubr.f32.gmra.mrb[0].mxu0 %v1501
        %v1503 = vpop.f32.mrb[0].mxu0
        %v1504 = vadd.f32 %v1409, %v1503
        %v1505 = vpop.f32.mrb[0].mxu0
        %1506 = vdwg.mxu0
        %1507 = vmatprep.subr.mxu0 0.0
        %v1508 = vand.u32 %v1182, 4294901760
        %1509 = vmatpush1.msra.mxu0 %v1508
        %1510 = vmatprep.subr.mxu0 0.0
        %v1511 = vand.u32 %v1183, 4294901760
        %1512 = vmatpush1.msra.mxu0 %v1511
        %1513 = vmatprep.subr.mxu0 0.0
        %v1514 = vand.u32 %v1184, 4294901760
        %1515 = vmatpush1.msra.mxu0 %v1514
        %1516 = vmatprep.subr.mxu0 0.0
        %v1517 = vand.u32 %v1185, 4294901760
        %1518 = vmatpush1.msra.mxu0 %v1517
        %1519 = vmatprep.subr.mxu0 0.0
        %v1520 = vand.u32 %v1186, 4294901760
        %1521 = vmatpush1.msra.mxu0 %v1520
        %1522 = vmatprep.subr.mxu0 0.0
        %v1523 = vand.u32 %v1187, 4294901760
        %1524 = vmatpush1.msra.mxu0 %v1523
        %1525 = vmatprep.subr.mxu0 0.0
        %v1526 = vand.u32 %v1188, 4294901760
        %1527 = vmatpush1.msra.mxu0 %v1526
        %1528 = vmatprep.subr.mxu0 0.0
        %v1529 = vand.u32 %v1189, 4294901760
        %1530 = vmatpush1.msra.mxu0 %v1529
        %1531 = vmatprep.subr.mxu0 0.0
        %1532 = vmatpush1.msra.mxu0 0.0
        %1533 = vmatprep.subr.mxu0 0.0
        %1534 = vmatpush1.msra.mxu0 0.0
        %1535 = vmatprep.subr.mxu0 0.0
        %1536 = vmatpush1.msra.mxu0 0.0
        %1537 = vmatprep.subr.mxu0 0.0
        %1538 = vmatpush1.msra.mxu0 0.0
        %1539 = vmatprep.subr.mxu0 0.0
        %1540 = vmatpush1.msra.mxu0 0.0
        %1541 = vmatprep.subr.mxu0 0.0
        %1542 = vmatpush1.msra.mxu0 0.0
        %1543 = vmatprep.subr.mxu0 0.0
        %1544 = vmatpush1.msra.mxu0 0.0
        %1545 = vmatprep.subr.mxu0 0.0
        %1546 = vmatpush1.msra.mxu0 0.0
        %1547 = vmatprep.subr.mxu0 0.0
        %1548 = vmatpush1.msra.mxu0 0.0
        %1549 = vmatprep.subr.mxu0 0.0
        %1550 = vmatpush1.msra.mxu0 0.0
        %1551 = vmatprep.subr.mxu0 0.0
        %1552 = vmatpush1.msra.mxu0 0.0
        %1553 = vmatprep.subr.mxu0 0.0
        %1554 = vmatpush1.msra.mxu0 0.0
        %1555 = vmatprep.subr.mxu0 0.0
        %1556 = vmatpush1.msra.mxu0 0.0
        %1557 = vmatprep.subr.mxu0 0.0
        %1558 = vmatpush1.msra.mxu0 0.0
        %1559 = vmatprep.subr.mxu0 0.0
        %1560 = vmatpush1.msra.mxu0 0.0
        %1561 = vmatprep.subr.mxu0 0.0
        %1562 = vmatpush1.msra.mxu0 0.0
        %1563 = vmatprep.subr.mxu0 0.0
        %1564 = vmatpush1.msra.mxu0 0.0
        %1565 = vmatprep.subr.mxu0 0.0
        %1566 = vmatpush1.msra.mxu0 0.0
        %1567 = vmatprep.subr.mxu0 0.0
        %1568 = vmatpush1.msra.mxu0 0.0
        %1569 = vmatprep.subr.mxu0 0.0
        %1570 = vmatpush1.msra.mxu0 0.0
        %1571 = vmatprep.subr.mxu0 0.0
        %1572 = vmatpush1.msra.mxu0 0.0
        %1573 = vmatprep.subr.mxu0 0.0
        %1574 = vmatpush1.msra.mxu0 0.0
        %1575 = vmatprep.subr.mxu0 0.0
        %1576 = vmatpush1.msra.mxu0 0.0
        %1577 = vmatprep.subr.mxu0 0.0
        %1578 = vmatpush1.msra.mxu0 0.0
        %1579 = vmatprep.mubr.f32.mxu0 0.0
        %v1580 = vand.u32 %v1197, 4294901760
        %v1581 = vsub.f32 %v1197, %v1580
        %v1582 = vand.u32 %v1581, 4294901760
        %1583 = vmatmul.mubr.f32.gmra.mrb[0].mxu0 %v1582
        %v1584 = vpop.f32.mrb[0].mxu0
        %v1585 = vadd.f32 %v1497, %v1584
        %v1586 = vpop.f32.mrb[0].mxu0
        %1587 = vmatprep.mubr.f32.mxu0 0.0
        %v1588 = vand.u32 %v1200, 4294901760
        %v1589 = vsub.f32 %v1200, %v1588
        %v1590 = vand.u32 %v1589, 4294901760
        %1591 = vmatmul.mubr.f32.gmra.mrb[0].mxu0 %v1590
        %v1592 = vpop.f32.mrb[0].mxu0
        %v1593 = vadd.f32 %v1504, %v1592
        %v1594 = vpop.f32.mrb[0].mxu0
        %1595 = vdwg.mxu0
        %1596 = vmatprep.subr.mxu0 0.0
        %v1597 = vand.u32 %v1182, 4294901760
        %v1598 = vsub.f32 %v1182, %v1597
        %v1599 = vand.u32 %v1598, 4294901760
        %1600 = vmatpush1.msra.mxu0 %v1599
        %1601 = vmatprep.subr.mxu0 0.0
        %v1602 = vand.u32 %v1183, 4294901760
        %v1603 = vsub.f32 %v1183, %v1602
        %v1604 = vand.u32 %v1603, 4294901760
        %1605 = vmatpush1.msra.mxu0 %v1604
        %1606 = vmatprep.subr.mxu0 0.0
        %v1607 = vand.u32 %v1184, 4294901760
        %v1608 = vsub.f32 %v1184, %v1607
        %v1609 = vand.u32 %v1608, 4294901760
        %1610 = vmatpush1.msra.mxu0 %v1609
        %1611 = vmatprep.subr.mxu0 0.0
        %v1612 = vand.u32 %v1185, 4294901760
        %v1613 = vsub.f32 %v1185, %v1612
        %v1614 = vand.u32 %v1613, 4294901760
        %1615 = vmatpush1.msra.mxu0 %v1614
        %1616 = vmatprep.subr.mxu0 0.0
        %v1617 = vand.u32 %v1186, 4294901760
        %v1618 = vsub.f32 %v1186, %v1617
        %v1619 = vand.u32 %v1618, 4294901760
        %1620 = vmatpush1.msra.mxu0 %v1619
        %1621 = vmatprep.subr.mxu0 0.0
        %v1622 = vand.u32 %v1187, 4294901760
        %v1623 = vsub.f32 %v1187, %v1622
        %v1624 = vand.u32 %v1623, 4294901760
        %1625 = vmatpush1.msra.mxu0 %v1624
        %1626 = vmatprep.subr.mxu0 0.0
        %v1627 = vand.u32 %v1188, 4294901760
        %v1628 = vsub.f32 %v1188, %v1627
        %v1629 = vand.u32 %v1628, 4294901760
        %1630 = vmatpush1.msra.mxu0 %v1629
        %1631 = vmatprep.subr.mxu0 0.0
        %v1632 = vand.u32 %v1189, 4294901760
        %v1633 = vsub.f32 %v1189, %v1632
        %v1634 = vand.u32 %v1633, 4294901760
        %1635 = vmatpush1.msra.mxu0 %v1634
        %1636 = vmatprep.subr.mxu0 0.0
        %1637 = vmatpush1.msra.mxu0 0.0
        %1638 = vmatprep.subr.mxu0 0.0
        %1639 = vmatpush1.msra.mxu0 0.0
        %1640 = vmatprep.subr.mxu0 0.0
        %1641 = vmatpush1.msra.mxu0 0.0
        %1642 = vmatprep.subr.mxu0 0.0
        %1643 = vmatpush1.msra.mxu0 0.0
        %1644 = vmatprep.subr.mxu0 0.0
        %1645 = vmatpush1.msra.mxu0 0.0
        %1646 = vmatprep.subr.mxu0 0.0
        %1647 = vmatpush1.msra.mxu0 0.0
        %1648 = vmatprep.subr.mxu0 0.0
        %1649 = vmatpush1.msra.mxu0 0.0
        %1650 = vmatprep.subr.mxu0 0.0
        %1651 = vmatpush1.msra.mxu0 0.0
        %1652 = vmatprep.subr.mxu0 0.0
        %1653 = vmatpush1.msra.mxu0 0.0
        %1654 = vmatprep.subr.mxu0 0.0
        %1655 = vmatpush1.msra.mxu0 0.0
        %1656 = vmatprep.subr.mxu0 0.0
        %1657 = vmatpush1.msra.mxu0 0.0
        %1658 = vmatprep.subr.mxu0 0.0
        %1659 = vmatpush1.msra.mxu0 0.0
        %1660 = vmatprep.subr.mxu0 0.0
        %1661 = vmatpush1.msra.mxu0 0.0
        %1662 = vmatprep.subr.mxu0 0.0
        %1663 = vmatpush1.msra.mxu0 0.0
        %1664 = vmatprep.subr.mxu0 0.0
        %1665 = vmatpush1.msra.mxu0 0.0
        %1666 = vmatprep.subr.mxu0 0.0
        %1667 = vmatpush1.msra.mxu0 0.0
        %1668 = vmatprep.subr.mxu0 0.0
        %1669 = vmatpush1.msra.mxu0 0.0
        %1670 = vmatprep.subr.mxu0 0.0
        %1671 = vmatpush1.msra.mxu0 0.0
        %1672 = vmatprep.subr.mxu0 0.0
        %1673 = vmatpush1.msra.mxu0 0.0
        %1674 = vmatprep.subr.mxu0 0.0
        %1675 = vmatpush1.msra.mxu0 0.0
        %1676 = vmatprep.subr.mxu0 0.0
        %1677 = vmatpush1.msra.mxu0 0.0
        %1678 = vmatprep.subr.mxu0 0.0
        %1679 = vmatpush1.msra.mxu0 0.0
        %1680 = vmatprep.subr.mxu0 0.0
        %1681 = vmatpush1.msra.mxu0 0.0
        %1682 = vmatprep.subr.mxu0 0.0
        %1683 = vmatpush1.msra.mxu0 0.0
        %1684 = vmatprep.mubr.f32.mxu0 0.0
        %v1685 = vand.u32 %v1197, 4294901760
        %1686 = vmatmul.mubr.f32.gmra.mrb[0].mxu0 %v1685
        %v1687 = vpop.f32.mrb[0].mxu0
        %v1688 = vadd.f32 %v1585, %v1687
        %v1689 = vpop.f32.mrb[0].mxu0
        %1690 = vmatprep.mubr.f32.mxu0 0.0
        %v1691 = vand.u32 %v1200, 4294901760
        %1692 = vmatmul.mubr.f32.gmra.mrb[0].mxu0 %v1691
        %v1693 = vpop.f32.mrb[0].mxu0
        %v1694 = vadd.f32 %v1593, %v1693
        %v1695 = vpop.f32.mrb[0].mxu0
        %1696 = vdwg.mxu0
        %1697 = vmatprep.subr.mxu0 0.0
        %v1698 = vand.u32 %v1182, 4294901760
        %1699 = vmatpush1.msra.mxu0 %v1698
        %1700 = vmatprep.subr.mxu0 0.0
        %v1701 = vand.u32 %v1183, 4294901760
        %1702 = vmatpush1.msra.mxu0 %v1701
        %1703 = vmatprep.subr.mxu0 0.0
        %v1704 = vand.u32 %v1184, 4294901760
        %1705 = vmatpush1.msra.mxu0 %v1704
        %1706 = vmatprep.subr.mxu0 0.0
        %v1707 = vand.u32 %v1185, 4294901760
        %1708 = vmatpush1.msra.mxu0 %v1707
        %1709 = vmatprep.subr.mxu0 0.0
        %v1710 = vand.u32 %v1186, 4294901760
        %1711 = vmatpush1.msra.mxu0 %v1710
        %1712 = vmatprep.subr.mxu0 0.0
        %v1713 = vand.u32 %v1187, 4294901760
        %1714 = vmatpush1.msra.mxu0 %v1713
        %1715 = vmatprep.subr.mxu0 0.0
        %v1716 = vand.u32 %v1188, 4294901760
        %1717 = vmatpush1.msra.mxu0 %v1716
        %1718 = vmatprep.subr.mxu0 0.0
        %v1719 = vand.u32 %v1189, 4294901760
        %1720 = vmatpush1.msra.mxu0 %v1719
        %1721 = vmatprep.subr.mxu0 0.0
        %1722 = vmatpush1.msra.mxu0 0.0
        %1723 = vmatprep.subr.mxu0 0.0
        %1724 = vmatpush1.msra.mxu0 0.0
        %1725 = vmatprep.subr.mxu0 0.0
        %1726 = vmatpush1.msra.mxu0 0.0
        %1727 = vmatprep.subr.mxu0 0.0
        %1728 = vmatpush1.msra.mxu0 0.0
        %1729 = vmatprep.subr.mxu0 0.0
        %1730 = vmatpush1.msra.mxu0 0.0
        %1731 = vmatprep.subr.mxu0 0.0
        %1732 = vmatpush1.msra.mxu0 0.0
        %1733 = vmatprep.subr.mxu0 0.0
        %1734 = vmatpush1.msra.mxu0 0.0
        %1735 = vmatprep.subr.mxu0 0.0
        %1736 = vmatpush1.msra.mxu0 0.0
        %1737 = vmatprep.subr.mxu0 0.0
        %1738 = vmatpush1.msra.mxu0 0.0
        %1739 = vmatprep.subr.mxu0 0.0
        %1740 = vmatpush1.msra.mxu0 0.0
        %1741 = vmatprep.subr.mxu0 0.0
        %1742 = vmatpush1.msra.mxu0 0.0
        %1743 = vmatprep.subr.mxu0 0.0
        %1744 = vmatpush1.msra.mxu0 0.0
        %1745 = vmatprep.subr.mxu0 0.0
        %1746 = vmatpush1.msra.mxu0 0.0
        %1747 = vmatprep.subr.mxu0 0.0
        %1748 = vmatpush1.msra.mxu0 0.0
        %1749 = vmatprep.subr.mxu0 0.0
        %1750 = vmatpush1.msra.mxu0 0.0
        %1751 = vmatprep.subr.mxu0 0.0
        %1752 = vmatpush1.msra.mxu0 0.0
        %1753 = vmatprep.subr.mxu0 0.0
        %1754 = vmatpush1.msra.mxu0 0.0
        %1755 = vmatprep.subr.mxu0 0.0
        %1756 = vmatpush1.msra.mxu0 0.0
        %1757 = vmatprep.subr.mxu0 0.0
        %1758 = vmatpush1.msra.mxu0 0.0
        %1759 = vmatprep.subr.mxu0 0.0
        %1760 = vmatpush1.msra.mxu0 0.0
        %1761 = vmatprep.subr.mxu0 0.0
        %1762 = vmatpush1.msra.mxu0 0.0
        %1763 = vmatprep.subr.mxu0 0.0
        %1764 = vmatpush1.msra.mxu0 0.0
        %1765 = vmatprep.subr.mxu0 0.0
        %1766 = vmatpush1.msra.mxu0 0.0
        %1767 = vmatprep.subr.mxu0 0.0
        %1768 = vmatpush1.msra.mxu0 0.0
        %1769 = vmatprep.mubr.f32.mxu0 0.0
        %v1770 = vand.u32 %v1197, 4294901760
        %1771 = vmatmul.mubr.f32.gmra.mrb[0].mxu0 %v1770
        %v1772 = vpop.f32.mrb[0].mxu0
        %v1773 = vadd.f32 %v1688, %v1772
        %v1774 = vpop.f32.mrb[0].mxu0
        %1775 = vmatprep.mubr.f32.mxu0 0.0
        %v1776 = vand.u32 %v1200, 4294901760
        %1777 = vmatmul.mubr.f32.gmra.mrb[0].mxu0 %v1776
        %v1778 = vpop.f32.mrb[0].mxu0
        %v1779 = vadd.f32 %v1694, %v1778
        %v1780 = vpop.f32.mrb[0].mxu0
        %1781 = vdwg.mxu0
        %v1782 = vsel %vm560, %v1773, 0.0
        %v1783 = vsel %vm560, %v1779, 0.0
        %v1784 = vsel %vm560, 0.0, %v1773
        %v1785 = vsel %vm560, 0.0, %v1779
        %1786 = vst.msk [vmem:[#allocation2] sm:$0xff] %vm1195, %v1782
        %1787 = vst.msk [vmem:[#allocation2 + $0x8] sm:$0xff] %vm1195, %v1783
        %1788 = vst.msk [vmem:[#allocation2 + $0x10] sm:$0xff] %vm1195, %v1784
        %1789 = vst.msk [vmem:[#allocation2 + $0x18] sm:$0xff] %vm1195, %v1785
        %v1790 = vlaneseq
        %v1791 = vand.u32 %v1790, 127
        %1792 = vst.msk [vmem:[#allocation3] sm:$0xff] %vm560, %v1791
        %1793 = vst.msk [vmem:[#allocation3 + $0x8] sm:$0xff] %vm560, %v1791
        %1794 = vst.msk [vmem:[#allocation3 + $0x10] sm:$0xff] %vm560, %v1791
        %1795 = vst.msk [vmem:[#allocation3 + $0x18] sm:$0xff] %vm560, %v1791
        %1796 = vst.msk [vmem:[#allocation3 + $0x20] sm:$0xff] %vm560, %v1791
        %1797 = vst.msk [vmem:[#allocation3 + $0x28] sm:$0xff] %vm560, %v1791
        %1798 = vst.msk [vmem:[#allocation3 + $0x30] sm:$0xff] %vm560, %v1791
        %1799 = vst.msk [vmem:[#allocation3 + $0x38] sm:$0xff] %vm560, %v1791
        %1800 = vst.msk [vmem:[#allocation3 + $0x40] sm:$0xff] %vm560, %v1791
        %1801 = vst.msk [vmem:[#allocation3 + $0x48] sm:$0xff] %vm560, %v1791
        %1802 = vst.msk [vmem:[#allocation3 + $0x50] sm:$0xff] %vm560, %v1791
        %1803 = vst.msk [vmem:[#allocation3 + $0x58] sm:$0xff] %vm560, %v1791
        %1804 = vst.msk [vmem:[#allocation3 + $0x60] sm:$0xff] %vm560, %v1791
        %1805 = vst.msk [vmem:[#allocation3 + $0x68] sm:$0xff] %vm560, %v1791
        %1806 = vst.msk [vmem:[#allocation3 + $0x70] sm:$0xff] %vm560, %v1791
        %1807 = vst.msk [vmem:[#allocation3 + $0x78] sm:$0xff] %vm560, %v1791
        %v1808 = vlaneseq
        %v1809 = vshrl.u32 %v1808, 7
        %v1810 = vadd.s32 %v1809, 8
        %1811 = vst [vmem:[#allocation4] sm:$0xff] %v1809
        %1812 = vst [vmem:[#allocation4 + $0x8] sm:$0xff] %v1810
        %vm1813 = vcmask 23552
        %1814 = vst.msk [vmem:[%s544] sm:$0xff] %vm1813, 0.0
        %1815 = vst.msk [vmem:[%s544 + $0x8] sm:$0xff] %vm1813, 0.0
      $region72: #{tpu_custom_call.1} parent=67 // pred_fallthru
        _
      %v1816 = vld [vmem:[%s508] sm:$0xff]
      %v1817 = vld [vmem:[%s508 + $0x8] sm:$0xff]
      %v1818 = vld [vmem:[%s508 + $0x10] sm:$0xff]
      %v1819 = vld [vmem:[%s508 + $0x18] sm:$0xff]
      %v1820 = vld [vmem:[%s508 + $0x20] sm:$0xff]
      %v1821 = vld [vmem:[%s508 + $0x28] sm:$0xff]
      %v1822 = vld [vmem:[%s508 + $0x30] sm:$0xff]
      %v1823 = vld [vmem:[%s508 + $0x38] sm:$0xff]
      %v1824 = vld [vmem:[%s508 + $0x40] sm:$0xff]
      %v1825 = vld [vmem:[%s508 + $0x48] sm:$0xff]
      %v1826 = vld [vmem:[%s508 + $0x50] sm:$0xff]
      %v1827 = vld [vmem:[%s508 + $0x58] sm:$0xff]
      %v1828 = vld [vmem:[%s508 + $0x60] sm:$0xff]
      %v1829 = vld [vmem:[%s508 + $0x68] sm:$0xff]
      %v1830 = vld [vmem:[%s508 + $0x70] sm:$0xff]
      %v1831 = vld [vmem:[%s508 + $0x78] sm:$0xff]
      %v1832 = vld [vmem:[#allocation3] sm:$0xff]
      %v1833 = vld [vmem:[#allocation3 + $0x8] sm:$0xff]
      %v1834 = vld [vmem:[#allocation3 + $0x10] sm:$0xff]
      %v1835 = vld [vmem:[#allocation3 + $0x18] sm:$0xff]
      %v1836 = vld [vmem:[#allocation3 + $0x20] sm:$0xff]
      %v1837 = vld [vmem:[#allocation3 + $0x28] sm:$0xff]
      %v1838 = vld [vmem:[#allocation3 + $0x30] sm:$0xff]
      %v1839 = vld [vmem:[#allocation3 + $0x38] sm:$0xff]
      %v1840 = vld [vmem:[#allocation3 + $0x40] sm:$0xff]
      %v1841 = vld [vmem:[#allocation3 + $0x48] sm:$0xff]
      %v1842 = vld [vmem:[#allocation3 + $0x50] sm:$0xff]
      %v1843 = vld [vmem:[#allocation3 + $0x58] sm:$0xff]
      %v1844 = vld [vmem:[#allocation3 + $0x60] sm:$0xff]
      %v1845 = vld [vmem:[#allocation3 + $0x68] sm:$0xff]
      %v1846 = vld [vmem:[#allocation3 + $0x70] sm:$0xff]
      %v1847 = vld [vmem:[#allocation3 + $0x78] sm:$0xff]
      %1848 = vset.pattern.permute.xlu0 0
      %1849 = vperm.xlu0 %1848, %v1816
      %v1850 = vpop.permute.xlu0 %1849
      %1851 = vset.pattern.permute.xlu0 0
      %1852 = vperm.xlu0 %1851, %v1817
      %v1853 = vpop.permute.xlu0 %1852
      %1854 = vset.pattern.permute.xlu0 0
      %1855 = vperm.xlu0 %1854, %v1818
      %v1856 = vpop.permute.xlu0 %1855
      %1857 = vset.pattern.permute.xlu0 0
      %1858 = vperm.xlu0 %1857, %v1819
      %v1859 = vpop.permute.xlu0 %1858
      %1860 = vset.pattern.permute.xlu0 0
      %1861 = vperm.xlu0 %1860, %v1820
      %v1862 = vpop.permute.xlu0 %1861
      %1863 = vset.pattern.permute.xlu0 0
      %1864 = vperm.xlu0 %1863, %v1821
      %v1865 = vpop.permute.xlu0 %1864
      %1866 = vset.pattern.permute.xlu0 0
      %1867 = vperm.xlu0 %1866, %v1822
      %v1868 = vpop.permute.xlu0 %1867
      %1869 = vset.pattern.permute.xlu0 0
      %1870 = vperm.xlu0 %1869, %v1823
      %v1871 = vpop.permute.xlu0 %1870
      %1872 = vset.pattern.permute.xlu0 0
      %1873 = vperm.xlu0 %1872, %v1824
      %v1874 = vpop.permute.xlu0 %1873
      %1875 = vset.pattern.permute.xlu0 0
      %1876 = vperm.xlu0 %1875, %v1825
      %v1877 = vpop.permute.xlu0 %1876
      %1878 = vset.pattern.permute.xlu0 0
      %1879 = vperm.xlu0 %1878, %v1826
      %v1880 = vpop.permute.xlu0 %1879
      %1881 = vset.pattern.permute.xlu0 0
      %1882 = vperm.xlu0 %1881, %v1827
      %v1883 = vpop.permute.xlu0 %1882
      %1884 = vset.pattern.permute.xlu0 0
      %1885 = vperm.xlu0 %1884, %v1828
      %v1886 = vpop.permute.xlu0 %1885
      %1887 = vset.pattern.permute.xlu0 0
      %1888 = vperm.xlu0 %1887, %v1829
      %v1889 = vpop.permute.xlu0 %1888
      %1890 = vset.pattern.permute.xlu0 0
      %1891 = vperm.xlu0 %1890, %v1830
      %v1892 = vpop.permute.xlu0 %1891
      %1893 = vset.pattern.permute.xlu0 0
      %1894 = vperm.xlu0 %1893, %v1831
      %v1895 = vpop.permute.xlu0 %1894
      %vm1896 = vcmp.eq.s32.totalorder %v1832, %v1850
      %vm1897 = vcmp.eq.s32.totalorder %v1833, %v1853
      %vm1898 = vcmp.eq.s32.totalorder %v1834, %v1856
      %vm1899 = vcmp.eq.s32.totalorder %v1835, %v1859
      %vm1900 = vcmp.eq.s32.totalorder %v1836, %v1862
      %vm1901 = vcmp.eq.s32.totalorder %v1837, %v1865
      %vm1902 = vcmp.eq.s32.totalorder %v1838, %v1868
      %vm1903 = vcmp.eq.s32.totalorder %v1839, %v1871
      %vm1904 = vcmp.eq.s32.totalorder %v1840, %v1874
      %vm1905 = vcmp.eq.s32.totalorder %v1841, %v1877
      %vm1906 = vcmp.eq.s32.totalorder %v1842, %v1880
      %vm1907 = vcmp.eq.s32.totalorder %v1843, %v1883
      %vm1908 = vcmp.eq.s32.totalorder %v1844, %v1886
      %vm1909 = vcmp.eq.s32.totalorder %v1845, %v1889
      %vm1910 = vcmp.eq.s32.totalorder %v1846, %v1892
      %vm1911 = vcmp.eq.s32.totalorder %v1847, %v1895
      %v1912 = vadd.s32 %v1816, 16
      %v1913 = vadd.s32 %v1817, 16
      %v1914 = vadd.s32 %v1818, 16
      %v1915 = vadd.s32 %v1819, 16
      %v1916 = vadd.s32 %v1820, 16
      %v1917 = vadd.s32 %v1821, 16
      %v1918 = vadd.s32 %v1822, 16
      %v1919 = vadd.s32 %v1823, 16
      %v1920 = vadd.s32 %v1824, 16
      %v1921 = vadd.s32 %v1825, 16
      %v1922 = vadd.s32 %v1826, 16
      %v1923 = vadd.s32 %v1827, 16
      %v1924 = vadd.s32 %v1828, 16
      %v1925 = vadd.s32 %v1829, 16
      %v1926 = vadd.s32 %v1830, 16
      %v1927 = vadd.s32 %v1831, 16
      %1928 = vset.pattern.permute.xlu0 1
      %1929 = vperm.xlu0 %1928, %v1912
      %v1930 = vpop.permute.xlu0 %1929
      %1931 = vset.pattern.permute.xlu0 1
      %1932 = vperm.xlu0 %1931, %v1913
      %v1933 = vpop.permute.xlu0 %1932
      %1934 = vset.pattern.permute.xlu0 1
      %1935 = vperm.xlu0 %1934, %v1914
      %v1936 = vpop.permute.xlu0 %1935
      %1937 = vset.pattern.permute.xlu0 1
      %1938 = vperm.xlu0 %1937, %v1915
      %v1939 = vpop.permute.xlu0 %1938
      %1940 = vset.pattern.permute.xlu0 1
      %1941 = vperm.xlu0 %1940, %v1916
      %v1942 = vpop.permute.xlu0 %1941
      %1943 = vset.pattern.permute.xlu0 1
      %1944 = vperm.xlu0 %1943, %v1917
      %v1945 = vpop.permute.xlu0 %1944
      %1946 = vset.pattern.permute.xlu0 1
      %1947 = vperm.xlu0 %1946, %v1918
      %v1948 = vpop.permute.xlu0 %1947
      %1949 = vset.pattern.permute.xlu0 1
      %1950 = vperm.xlu0 %1949, %v1919
      %v1951 = vpop.permute.xlu0 %1950
      %1952 = vset.pattern.permute.xlu0 1
      %1953 = vperm.xlu0 %1952, %v1920
      %v1954 = vpop.permute.xlu0 %1953
      %1955 = vset.pattern.permute.xlu0 1
      %1956 = vperm.xlu0 %1955, %v1921
      %v1957 = vpop.permute.xlu0 %1956
      %1958 = vset.pattern.permute.xlu0 1
      %1959 = vperm.xlu0 %1958, %v1922
      %v1960 = vpop.permute.xlu0 %1959
      %1961 = vset.pattern.permute.xlu0 1
      %1962 = vperm.xlu0 %1961, %v1923
      %v1963 = vpop.permute.xlu0 %1962
      %1964 = vset.pattern.permute.xlu0 1
      %1965 = vperm.xlu0 %1964, %v1924
      %v1966 = vpop.permute.xlu0 %1965
      %1967 = vset.pattern.permute.xlu0 1
      %1968 = vperm.xlu0 %1967, %v1925
      %v1969 = vpop.permute.xlu0 %1968
      %1970 = vset.pattern.permute.xlu0 1
      %1971 = vperm.xlu0 %1970, %v1926
      %v1972 = vpop.permute.xlu0 %1971
      %1973 = vset.pattern.permute.xlu0 1
      %1974 = vperm.xlu0 %1973, %v1927
      %v1975 = vpop.permute.xlu0 %1974
      %vm1976 = vcmp.eq.s32.totalorder %v1832, %v1930
      %vm1977 = vcmp.eq.s32.totalorder %v1833, %v1933
      %vm1978 = vcmp.eq.s32.totalorder %v1834, %v1936
      %vm1979 = vcmp.eq.s32.totalorder %v1835, %v1939
      %vm1980 = vcmp.eq.s32.totalorder %v1836, %v1942
      %vm1981 = vcmp.eq.s32.totalorder %v1837, %v1945
      %vm1982 = vcmp.eq.s32.totalorder %v1838, %v1948
      %vm1983 = vcmp.eq.s32.totalorder %v1839, %v1951
      %vm1984 = vcmp.eq.s32.totalorder %v1840, %v1954
      %vm1985 = vcmp.eq.s32.totalorder %v1841, %v1957
      %vm1986 = vcmp.eq.s32.totalorder %v1842, %v1960
      %vm1987 = vcmp.eq.s32.totalorder %v1843, %v1963
      %vm1988 = vcmp.eq.s32.totalorder %v1844, %v1966
      %vm1989 = vcmp.eq.s32.totalorder %v1845, %v1969
      %vm1990 = vcmp.eq.s32.totalorder %v1846, %v1972
      %vm1991 = vcmp.eq.s32.totalorder %v1847, %v1975
      %vm1992 = vmor %vm1896, %vm1976
      %vm1993 = vmor %vm1897, %vm1977
      %vm1994 = vmor %vm1898, %vm1978
      %vm1995 = vmor %vm1899, %vm1979
      %vm1996 = vmor %vm1900, %vm1980
      %vm1997 = vmor %vm1901, %vm1981
      %vm1998 = vmor %vm1902, %vm1982
      %vm1999 = vmor %vm1903, %vm1983
      %vm2000 = vmor %vm1904, %vm1984
      %vm2001 = vmor %vm1905, %vm1985
      %vm2002 = vmor %vm1906, %vm1986
      %vm2003 = vmor %vm1907, %vm1987
      %vm2004 = vmor %vm1908, %vm1988
      %vm2005 = vmor %vm1909, %vm1989
      %vm2006 = vmor %vm1910, %vm1990
      %vm2007 = vmor %vm1911, %vm1991
      %v2008 = vsel %vm1992, 1, 0
      %v2009 = vsel %vm1993, 1, 0
      %v2010 = vsel %vm1994, 1, 0
      %v2011 = vsel %vm1995, 1, 0
      %v2012 = vsel %vm1996, 1, 0
      %v2013 = vsel %vm1997, 1, 0
      %v2014 = vsel %vm1998, 1, 0
      %v2015 = vsel %vm1999, 1, 0
      %v2016 = vsel %vm2000, 1, 0
      %v2017 = vsel %vm2001, 1, 0
      %v2018 = vsel %vm2002, 1, 0
      %v2019 = vsel %vm2003, 1, 0
      %v2020 = vsel %vm2004, 1, 0
      %v2021 = vsel %vm2005, 1, 0
      %v2022 = vsel %vm2006, 1, 0
      %v2023 = vsel %vm2007, 1, 0
      %v2024 = vcvt.s32.f32 %v2008
      %v2025 = vcvt.s32.f32 %v2009
      %v2026 = vcvt.s32.f32 %v2010
      %v2027 = vcvt.s32.f32 %v2011
      %v2028 = vcvt.s32.f32 %v2012
      %v2029 = vcvt.s32.f32 %v2013
      %v2030 = vcvt.s32.f32 %v2014
      %v2031 = vcvt.s32.f32 %v2015
      %v2032 = vcvt.s32.f32 %v2016
      %v2033 = vcvt.s32.f32 %v2017
      %v2034 = vcvt.s32.f32 %v2018
      %v2035 = vcvt.s32.f32 %v2019
      %v2036 = vcvt.s32.f32 %v2020
      %v2037 = vcvt.s32.f32 %v2021
      %v2038 = vcvt.s32.f32 %v2022
      %v2039 = vcvt.s32.f32 %v2023
      %v2040 = vld [vmem:[#allocation2] sm:$0xff]
      %v2041 = vld [vmem:[#allocation2 + $0x8] sm:$0xff]
      %v2042 = vld [vmem:[#allocation2 + $0x10] sm:$0xff]
      %v2043 = vld [vmem:[#allocation2 + $0x18] sm:$0xff]
      %vm2044 = vcmask 261120
      %v2046 = vsel %vm2044, %v2024, 0
      %v2049 = vsel %vm2044, %v2025, 0
      %v2052 = vsel %vm2044, %v2026, 0
      %v2055 = vsel %vm2044, %v2027, 0
      %v2058 = vsel %vm2044, %v2028, 0
      %v2061 = vsel %vm2044, %v2029, 0
      %v2064 = vsel %vm2044, %v2030, 0
      %v2067 = vsel %vm2044, %v2031, 0
      %v2070 = vsel %vm2044, %v2032, 0
      %v2073 = vsel %vm2044, %v2033, 0
      %v2076 = vsel %vm2044, %v2034, 0
      %v2079 = vsel %vm2044, %v2035, 0
      %v2082 = vsel %vm2044, %v2036, 0
      %v2085 = vsel %vm2044, %v2037, 0
      %v2088 = vsel %vm2044, %v2038, 0
      %v2091 = vsel %vm2044, %v2039, 0
      %2093 = vmatprep.subr.mxu0 0.0
      %v2094 = vand.u32 %v2040, 4294901760
      %2095 = vmatpush1.msra.mxu0 %v2094
      %2096 = vmatprep.subr.mxu0 0.0
      %v2097 = vand.u32 %v2041, 4294901760
      %2098 = vmatpush1.msra.mxu0 %v2097
      %2099 = vmatprep.subr.mxu0 0.0
      %v2100 = vand.u32 %v2042, 4294901760
      %2101 = vmatpush1.msra.mxu0 %v2100
      %2102 = vmatprep.subr.mxu0 0.0
      %v2103 = vand.u32 %v2043, 4294901760
      %2104 = vmatpush1.msra.mxu0 %v2103
      %2105 = vmatprep.subr.mxu0 0.0
      %2106 = vmatpush1.msra.mxu0 0.0
      %2107 = vmatprep.subr.mxu0 0.0
      %2108 = vmatpush1.msra.mxu0 0.0
      %2109 = vmatprep.subr.mxu0 0.0
      %2110 = vmatpush1.msra.mxu0 0.0
      %2111 = vmatprep.subr.mxu0 0.0
      %2112 = vmatpush1.msra.mxu0 0.0
      %2113 = vmatprep.subr.mxu0 0.0
      %2114 = vmatpush1.msra.mxu0 0.0
      %2115 = vmatprep.subr.mxu0 0.0
      %2116 = vmatpush1.msra.mxu0 0.0
      %2117 = vmatprep.subr.mxu0 0.0
      %2118 = vmatpush1.msra.mxu0 0.0
      %2119 = vmatprep.subr.mxu0 0.0
      %2120 = vmatpush1.msra.mxu0 0.0
      %2121 = vmatprep.subr.mxu0 0.0
      %2122 = vmatpush1.msra.mxu0 0.0
      %2123 = vmatprep.subr.mxu0 0.0
      %2124 = vmatpush1.msra.mxu0 0.0
      %2125 = vmatprep.subr.mxu0 0.0
      %2126 = vmatpush1.msra.mxu0 0.0
      %2127 = vmatprep.subr.mxu0 0.0
      %2128 = vmatpush1.msra.mxu0 0.0
      %2129 = vmatprep.subr.mxu0 0.0
      %2130 = vmatpush1.msra.mxu0 0.0
      %2131 = vmatprep.subr.mxu0 0.0
      %2132 = vmatpush1.msra.mxu0 0.0
      %2133 = vmatprep.subr.mxu0 0.0
      %2134 = vmatpush1.msra.mxu0 0.0
      %2135 = vmatprep.subr.mxu0 0.0
      %2136 = vmatpush1.msra.mxu0 0.0
      %2137 = vmatprep.subr.mxu0 0.0
      %2138 = vmatpush1.msra.mxu0 0.0
      %2139 = vmatprep.subr.mxu0 0.0
      %2140 = vmatpush1.msra.mxu0 0.0
      %2141 = vmatprep.subr.mxu0 0.0
      %2142 = vmatpush1.msra.mxu0 0.0
      %2143 = vmatprep.subr.mxu0 0.0
      %2144 = vmatpush1.msra.mxu0 0.0
      %2145 = vmatprep.subr.mxu0 0.0
      %2146 = vmatpush1.msra.mxu0 0.0
      %2147 = vmatprep.subr.mxu0 0.0
      %2148 = vmatpush1.msra.mxu0 0.0
      %2149 = vmatprep.subr.mxu0 0.0
      %2150 = vmatpush1.msra.mxu0 0.0
      %2151 = vmatprep.subr.mxu0 0.0
      %2152 = vmatpush1.msra.mxu0 0.0
      %2153 = vmatprep.subr.mxu0 0.0
      %2154 = vmatpush1.msra.mxu0 0.0
      %2155 = vmatprep.subr.mxu0 0.0
      %2156 = vmatpush1.msra.mxu0 0.0
      %2157 = vmatprep.subr.mxu0 0.0
      %2158 = vmatpush1.msra.mxu0 0.0
      %2159 = vmatprep.subr.mxu0 0.0
      %2160 = vmatpush1.msra.mxu0 0.0
      %2161 = vmatprep.mubr.f32.mxu0 0.0
      %v2162 = vand.u32 %v2046, 4294901760
      %v2163 = vsub.f32 %v2046, %v2162
      %v2164 = vand.u32 %v2163, 4294901760
      %v2165 = vsub.f32 %v2163, %v2164
      %v2166 = vand.u32 %v2165, 4294901760
      %2167 = vmatmul.mubr.f32.gmra.mrb[0].mxu0 %v2166
      %v2168 = vpop.f32.mrb[0].mxu0
      %v2169 = vadd.f32 0.0, %v2168
      %v2170 = vpop.f32.mrb[0].mxu0
      %2171 = vmatprep.mubr.f32.mxu0 0.0
      %v2172 = vand.u32 %v2049, 4294901760
      %v2173 = vsub.f32 %v2049, %v2172
      %v2174 = vand.u32 %v2173, 4294901760
      %v2175 = vsub.f32 %v2173, %v2174
      %v2176 = vand.u32 %v2175, 4294901760
      %2177 = vmatmul.mubr.f32.gmra.mrb[0].mxu0 %v2176
      %v2178 = vpop.f32.mrb[0].mxu0
      %v2179 = vadd.f32 0.0, %v2178
      %v2180 = vpop.f32.mrb[0].mxu0
      %2181 = vmatprep.mubr.f32.mxu0 0.0
      %v2182 = vand.u32 %v2052, 4294901760
      %v2183 = vsub.f32 %v2052, %v2182
      %v2184 = vand.u32 %v2183, 4294901760
      %v2185 = vsub.f32 %v2183, %v2184
      %v2186 = vand.u32 %v2185, 4294901760
      %2187 = vmatmul.mubr.f32.gmra.mrb[0].mxu0 %v2186
      %v2188 = vpop.f32.mrb[0].mxu0
      %v2189 = vadd.f32 0.0, %v2188
      %v2190 = vpop.f32.mrb[0].mxu0
      %2191 = vmatprep.mubr.f32.mxu0 0.0
      %v2192 = vand.u32 %v2055, 4294901760
      %v2193 = vsub.f32 %v2055, %v2192
      %v2194 = vand.u32 %v2193, 4294901760
      %v2195 = vsub.f32 %v2193, %v2194
      %v2196 = vand.u32 %v2195, 4294901760
      %2197 = vmatmul.mubr.f32.gmra.mrb[0].mxu0 %v2196
      %v2198 = vpop.f32.mrb[0].mxu0
      %v2199 = vadd.f32 0.0, %v2198
      %v2200 = vpop.f32.mrb[0].mxu0
      %2201 = vmatprep.mubr.f32.mxu0 0.0
      %v2202 = vand.u32 %v2058, 4294901760
      %v2203 = vsub.f32 %v2058, %v2202
      %v2204 = vand.u32 %v2203, 4294901760
      %v2205 = vsub.f32 %v2203, %v2204
      %v2206 = vand.u32 %v2205, 4294901760
      %2207 = vmatmul.mubr.f32.gmra.mrb[0].mxu0 %v2206
      %v2208 = vpop.f32.mrb[0].mxu0
      %v2209 = vadd.f32 0.0, %v2208
      %v2210 = vpop.f32.mrb[0].mxu0
      %2211 = vmatprep.mubr.f32.mxu0 0.0
      %v2212 = vand.u32 %v2061, 4294901760
      %v2213 = vsub.f32 %v2061, %v2212
      %v2214 = vand.u32 %v2213, 4294901760
      %v2215 = vsub.f32 %v2213, %v2214
      %v2216 = vand.u32 %v2215, 4294901760
      %2217 = vmatmul.mubr.f32.gmra.mrb[0].mxu0 %v2216
      %v2218 = vpop.f32.mrb[0].mxu0
      %v2219 = vadd.f32 0.0, %v2218
      %v2220 = vpop.f32.mrb[0].mxu0
      %2221 = vmatprep.mubr.f32.mxu0 0.0
      %v2222 = vand.u32 %v2064, 4294901760
      %v2223 = vsub.f32 %v2064, %v2222
      %v2224 = vand.u32 %v2223, 4294901760
      %v2225 = vsub.f32 %v2223, %v2224
      %v2226 = vand.u32 %v2225, 4294901760
      %2227 = vmatmul.mubr.f32.gmra.mrb[0].mxu0 %v2226
      %v2228 = vpop.f32.mrb[0].mxu0
      %v2229 = vadd.f32 0.0, %v2228
      %v2230 = vpop.f32.mrb[0].mxu0
      %2231 = vmatprep.mubr.f32.mxu0 0.0
      %v2232 = vand.u32 %v2067, 4294901760
      %v2233 = vsub.f32 %v2067, %v2232
      %v2234 = vand.u32 %v2233, 4294901760
      %v2235 = vsub.f32 %v2233, %v2234
      %v2236 = vand.u32 %v2235, 4294901760
      %2237 = vmatmul.mubr.f32.gmra.mrb[0].mxu0 %v2236
      %v2238 = vpop.f32.mrb[0].mxu0
      %v2239 = vadd.f32 0.0, %v2238
      %v2240 = vpop.f32.mrb[0].mxu0
      %2241 = vmatprep.mubr.f32.mxu0 0.0
      %v2242 = vand.u32 %v2070, 4294901760
      %v2243 = vsub.f32 %v2070, %v2242
      %v2244 = vand.u32 %v2243, 4294901760
      %v2245 = vsub.f32 %v2243, %v2244
      %v2246 = vand.u32 %v2245, 4294901760
      %2247 = vmatmul.mubr.f32.gmra.mrb[0].mxu0 %v2246
      %v2248 = vpop.f32.mrb[0].mxu0
      %v2249 = vadd.f32 0.0, %v2248
      %v2250 = vpop.f32.mrb[0].mxu0
      %2251 = vmatprep.mubr.f32.mxu0 0.0
      %v2252 = vand.u32 %v2073, 4294901760
      %v2253 = vsub.f32 %v2073, %v2252
      %v2254 = vand.u32 %v2253, 4294901760
      %v2255 = vsub.f32 %v2253, %v2254
      %v2256 = vand.u32 %v2255, 4294901760
      %2257 = vmatmul.mubr.f32.gmra.mrb[0].mxu0 %v2256
      %v2258 = vpop.f32.mrb[0].mxu0
      %v2259 = vadd.f32 0.0, %v2258
      %v2260 = vpop.f32.mrb[0].mxu0
      %2261 = vmatprep.mubr.f32.mxu0 0.0
      %v2262 = vand.u32 %v2076, 4294901760
      %v2263 = vsub.f32 %v2076, %v2262
      %v2264 = vand.u32 %v2263, 4294901760
      %v2265 = vsub.f32 %v2263, %v2264
      %v2266 = vand.u32 %v2265, 4294901760
      %2267 = vmatmul.mubr.f32.gmra.mrb[0].mxu0 %v2266
      %v2268 = vpop.f32.mrb[0].mxu0
      %v2269 = vadd.f32 0.0, %v2268
      %v2270 = vpop.f32.mrb[0].mxu0
      %2271 = vmatprep.mubr.f32.mxu0 0.0
      %v2272 = vand.u32 %v2079, 4294901760
      %v2273 = vsub.f32 %v2079, %v2272
      %v2274 = vand.u32 %v2273, 4294901760
      %v2275 = vsub.f32 %v2273, %v2274
      %v2276 = vand.u32 %v2275, 4294901760
      %2277 = vmatmul.mubr.f32.gmra.mrb[0].mxu0 %v2276
      %v2278 = vpop.f32.mrb[0].mxu0
      %v2279 = vadd.f32 0.0, %v2278
      %v2280 = vpop.f32.mrb[0].mxu0
      %2281 = vmatprep.mubr.f32.mxu0 0.0
      %v2282 = vand.u32 %v2082, 4294901760
      %v2283 = vsub.f32 %v2082, %v2282
      %v2284 = vand.u32 %v2283, 4294901760
      %v2285 = vsub.f32 %v2283, %v2284
      %v2286 = vand.u32 %v2285, 4294901760
      %2287 = vmatmul.mubr.f32.gmra.mrb[0].mxu0 %v2286
      %v2288 = vpop.f32.mrb[0].mxu0
      %v2289 = vadd.f32 0.0, %v2288
      %v2290 = vpop.f32.mrb[0].mxu0
      %2291 = vmatprep.mubr.f32.mxu0 0.0
      %v2292 = vand.u32 %v2085, 4294901760
      %v2293 = vsub.f32 %v2085, %v2292
      %v2294 = vand.u32 %v2293, 4294901760
      %v2295 = vsub.f32 %v2293, %v2294
      %v2296 = vand.u32 %v2295, 4294901760
      %2297 = vmatmul.mubr.f32.gmra.mrb[0].mxu0 %v2296
      %v2298 = vpop.f32.mrb[0].mxu0
      %v2299 = vadd.f32 0.0, %v2298
      %v2300 = vpop.f32.mrb[0].mxu0
      %2301 = vmatprep.mubr.f32.mxu0 0.0
      %v2302 = vand.u32 %v2088, 4294901760
      %v2303 = vsub.f32 %v2088, %v2302
      %v2304 = vand.u32 %v2303, 4294901760
      %v2305 = vsub.f32 %v2303, %v2304
      %v2306 = vand.u32 %v2305, 4294901760
      %2307 = vmatmul.mubr.f32.gmra.mrb[0].mxu0 %v2306
      %v2308 = vpop.f32.mrb[0].mxu0
      %v2309 = vadd.f32 0.0, %v2308
      %v2310 = vpop.f32.mrb[0].mxu0
      %2311 = vmatprep.mubr.f32.mxu0 0.0
      %v2312 = vand.u32 %v2091, 4294901760
      %v2313 = vsub.f32 %v2091, %v2312
      %v2314 = vand.u32 %v2313, 4294901760
      %v2315 = vsub.f32 %v2313, %v2314
      %v2316 = vand.u32 %v2315, 4294901760
      %2317 = vmatmul.mubr.f32.gmra.mrb[0].mxu0 %v2316
      %v2318 = vpop.f32.mrb[0].mxu0
      %v2319 = vadd.f32 0.0, %v2318
      %v2320 = vpop.f32.mrb[0].mxu0
      %2321 = vdwg.mxu0
      %2322 = vmatprep.subr.mxu0 0.0
      %v2323 = vand.u32 %v2040, 4294901760
      %v2324 = vsub.f32 %v2040, %v2323
      %v2325 = vand.u32 %v2324, 4294901760
      %v2326 = vsub.f32 %v2324, %v2325
      %v2327 = vand.u32 %v2326, 4294901760
      %2328 = vmatpush1.msra.mxu0 %v2327
      %2329 = vmatprep.subr.mxu0 0.0
      %v2330 = vand.u32 %v2041, 4294901760
      %v2331 = vsub.f32 %v2041, %v2330
      %v2332 = vand.u32 %v2331, 4294901760
      %v2333 = vsub.f32 %v2331, %v2332
      %v2334 = vand.u32 %v2333, 4294901760
      %2335 = vmatpush1.msra.mxu0 %v2334
      %2336 = vmatprep.subr.mxu0 0.0
      %v2337 = vand.u32 %v2042, 4294901760
      %v2338 = vsub.f32 %v2042, %v2337
      %v2339 = vand.u32 %v2338, 4294901760
      %v2340 = vsub.f32 %v2338, %v2339
      %v2341 = vand.u32 %v2340, 4294901760
      %2342 = vmatpush1.msra.mxu0 %v2341
      %2343 = vmatprep.subr.mxu0 0.0
      %v2344 = vand.u32 %v2043, 4294901760
      %v2345 = vsub.f32 %v2043, %v2344
      %v2346 = vand.u32 %v2345, 4294901760
      %v2347 = vsub.f32 %v2345, %v2346
      %v2348 = vand.u32 %v2347, 4294901760
      %2349 = vmatpush1.msra.mxu0 %v2348
      %2350 = vmatprep.subr.mxu0 0.0
      %2351 = vmatpush1.msra.mxu0 0.0
      %2352 = vmatprep.subr.mxu0 0.0
      %2353 = vmatpush1.msra.mxu0 0.0
      %2354 = vmatprep.subr.mxu0 0.0
      %2355 = vmatpush1.msra.mxu0 0.0
      %2356 = vmatprep.subr.mxu0 0.0
      %2357 = vmatpush1.msra.mxu0 0.0
      %2358 = vmatprep.subr.mxu0 0.0
      %2359 = vmatpush1.msra.mxu0 0.0
      %2360 = vmatprep.subr.mxu0 0.0
      %2361 = vmatpush1.msra.mxu0 0.0
      %2362 = vmatprep.subr.mxu0 0.0
      %2363 = vmatpush1.msra.mxu0 0.0
      %2364 = vmatprep.subr.mxu0 0.0
      %2365 = vmatpush1.msra.mxu0 0.0
      %2366 = vmatprep.subr.mxu0 0.0
      %2367 = vmatpush1.msra.mxu0 0.0
      %2368 = vmatprep.subr.mxu0 0.0
      %2369 = vmatpush1.msra.mxu0 0.0
      %2370 = vmatprep.subr.mxu0 0.0
      %2371 = vmatpush1.msra.mxu0 0.0
      %2372 = vmatprep.subr.mxu0 0.0
      %2373 = vmatpush1.msra.mxu0 0.0
      %2374 = vmatprep.subr.mxu0 0.0
      %2375 = vmatpush1.msra.mxu0 0.0
      %2376 = vmatprep.subr.mxu0 0.0
      %2377 = vmatpush1.msra.mxu0 0.0
      %2378 = vmatprep.subr.mxu0 0.0
      %2379 = vmatpush1.msra.mxu0 0.0
      %2380 = vmatprep.subr.mxu0 0.0
      %2381 = vmatpush1.msra.mxu0 0.0
      %2382 = vmatprep.subr.mxu0 0.0
      %2383 = vmatpush1.msra.mxu0 0.0
      %2384 = vmatprep.subr.mxu0 0.0
      %2385 = vmatpush1.msra.mxu0 0.0
      %2386 = vmatprep.subr.mxu0 0.0
      %2387 = vmatpush1.msra.mxu0 0.0
      %2388 = vmatprep.subr.mxu0 0.0
      %2389 = vmatpush1.msra.mxu0 0.0
      %2390 = vmatprep.subr.mxu0 0.0
      %2391 = vmatpush1.msra.mxu0 0.0
      %2392 = vmatprep.subr.mxu0 0.0
      %2393 = vmatpush1.msra.mxu0 0.0
      %2394 = vmatprep.subr.mxu0 0.0
      %2395 = vmatpush1.msra.mxu0 0.0
      %2396 = vmatprep.subr.mxu0 0.0
      %2397 = vmatpush1.msra.mxu0 0.0
      %2398 = vmatprep.subr.mxu0 0.0
      %2399 = vmatpush1.msra.mxu0 0.0
      %2400 = vmatprep.subr.mxu0 0.0
      %2401 = vmatpush1.msra.mxu0 0.0
      %2402 = vmatprep.subr.mxu0 0.0
      %2403 = vmatpush1.msra.mxu0 0.0
      %2404 = vmatprep.subr.mxu0 0.0
      %2405 = vmatpush1.msra.mxu0 0.0
      %2406 = vmatprep.mubr.f32.mxu0 0.0
      %v2407 = vand.u32 %v2046, 4294901760
      %2408 = vmatmul.mubr.f32.gmra.mrb[0].mxu0 %v2407
      %v2409 = vpop.f32.mrb[0].mxu0
      %v2410 = vadd.f32 %v2169, %v2409
      %v2411 = vpop.f32.mrb[0].mxu0
      %2412 = vmatprep.mubr.f32.mxu0 0.0
      %v2413 = vand.u32 %v2049, 4294901760
      %2414 = vmatmul.mubr.f32.gmra.mrb[0].mxu0 %v2413
      %v2415 = vpop.f32.mrb[0].mxu0
      %v2416 = vadd.f32 %v2179, %v2415
      %v2417 = vpop.f32.mrb[0].mxu0
      %2418 = vmatprep.mubr.f32.mxu0 0.0
      %v2419 = vand.u32 %v2052, 4294901760
      %2420 = vmatmul.mubr.f32.gmra.mrb[0].mxu0 %v2419
      %v2421 = vpop.f32.mrb[0].mxu0
      %v2422 = vadd.f32 %v2189, %v2421
      %v2423 = vpop.f32.mrb[0].mxu0
      %2424 = vmatprep.mubr.f32.mxu0 0.0
      %v2425 = vand.u32 %v2055, 4294901760
      %2426 = vmatmul.mubr.f32.gmra.mrb[0].mxu0 %v2425
      %v2427 = vpop.f32.mrb[0].mxu0
      %v2428 = vadd.f32 %v2199, %v2427
      %v2429 = vpop.f32.mrb[0].mxu0
      %2430 = vmatprep.mubr.f32.mxu0 0.0
      %v2431 = vand.u32 %v2058, 4294901760
      %2432 = vmatmul.mubr.f32.gmra.mrb[0].mxu0 %v2431
      %v2433 = vpop.f32.mrb[0].mxu0
      %v2434 = vadd.f32 %v2209, %v2433
      %v2435 = vpop.f32.mrb[0].mxu0
      %2436 = vmatprep.mubr.f32.mxu0 0.0
      %v2437 = vand.u32 %v2061, 4294901760
      %2438 = vmatmul.mubr.f32.gmra.mrb[0].mxu0 %v2437
      %v2439 = vpop.f32.mrb[0].mxu0
      %v2440 = vadd.f32 %v2219, %v2439
      %v2441 = vpop.f32.mrb[0].mxu0
      %2442 = vmatprep.mubr.f32.mxu0 0.0
      %v2443 = vand.u32 %v2064, 4294901760
      %2444 = vmatmul.mubr.f32.gmra.mrb[0].mxu0 %v2443
      %v2445 = vpop.f32.mrb[0].mxu0
      %v2446 = vadd.f32 %v2229, %v2445
      %v2447 = vpop.f32.mrb[0].mxu0
      %2448 = vmatprep.mubr.f32.mxu0 0.0
      %v2449 = vand.u32 %v2067, 4294901760
      %2450 = vmatmul.mubr.f32.gmra.mrb[0].mxu0 %v2449
      %v2451 = vpop.f32.mrb[0].mxu0
      %v2452 = vadd.f32 %v2239, %v2451
      %v2453 = vpop.f32.mrb[0].mxu0
      %2454 = vmatprep.mubr.f32.mxu0 0.0
      %v2455 = vand.u32 %v2070, 4294901760
      %2456 = vmatmul.mubr.f32.gmra.mrb[0].mxu0 %v2455
      %v2457 = vpop.f32.mrb[0].mxu0
      %v2458 = vadd.f32 %v2249, %v2457
      %v2459 = vpop.f32.mrb[0].mxu0
      %2460 = vmatprep.mubr.f32.mxu0 0.0
      %v2461 = vand.u32 %v2073, 4294901760
      %2462 = vmatmul.mubr.f32.gmra.mrb[0].mxu0 %v2461
      %v2463 = vpop.f32.mrb[0].mxu0
      %v2464 = vadd.f32 %v2259, %v2463
      %v2465 = vpop.f32.mrb[0].mxu0
      %2466 = vmatprep.mubr.f32.mxu0 0.0
      %v2467 = vand.u32 %v2076, 4294901760
      %2468 = vmatmul.mubr.f32.gmra.mrb[0].mxu0 %v2467
      %v2469 = vpop.f32.mrb[0].mxu0
      %v2470 = vadd.f32 %v2269, %v2469
      %v2471 = vpop.f32.mrb[0].mxu0
      %2472 = vmatprep.mubr.f32.mxu0 0.0
      %v2473 = vand.u32 %v2079, 4294901760
      %2474 = vmatmul.mubr.f32.gmra.mrb[0].mxu0 %v2473
      %v2475 = vpop.f32.mrb[0].mxu0
      %v2476 = vadd.f32 %v2279, %v2475
      %v2477 = vpop.f32.mrb[0].mxu0
      %2478 = vmatprep.mubr.f32.mxu0 0.0
      %v2479 = vand.u32 %v2082, 4294901760
      %2480 = vmatmul.mubr.f32.gmra.mrb[0].mxu0 %v2479
      %v2481 = vpop.f32.mrb[0].mxu0
      %v2482 = vadd.f32 %v2289, %v2481
      %v2483 = vpop.f32.mrb[0].mxu0
      %2484 = vmatprep.mubr.f32.mxu0 0.0
      %v2485 = vand.u32 %v2085, 4294901760
      %2486 = vmatmul.mubr.f32.gmra.mrb[0].mxu0 %v2485
      %v2487 = vpop.f32.mrb[0].mxu0
      %v2488 = vadd.f32 %v2299, %v2487
      %v2489 = vpop.f32.mrb[0].mxu0
      %2490 = vmatprep.mubr.f32.mxu0 0.0
      %v2491 = vand.u32 %v2088, 4294901760
      %2492 = vmatmul.mubr.f32.gmra.mrb[0].mxu0 %v2491
      %v2493 = vpop.f32.mrb[0].mxu0
      %v2494 = vadd.f32 %v2309, %v2493
      %v2495 = vpop.f32.mrb[0].mxu0
      %2496 = vmatprep.mubr.f32.mxu0 0.0
      %v2497 = vand.u32 %v2091, 4294901760
      %2498 = vmatmul.mubr.f32.gmra.mrb[0].mxu0 %v2497
      %v2499 = vpop.f32.mrb[0].mxu0
      %v2500 = vadd.f32 %v2319, %v2499
      %v2501 = vpop.f32.mrb[0].mxu0
      %2502 = vdwg.mxu0
      %2503 = vmatprep.subr.mxu0 0.0
      %v2504 = vand.u32 %v2040, 4294901760
      %v2505 = vsub.f32 %v2040, %v2504
      %2506 = vmatpush1.msra.mxu0 %v2505
      %2507 = vmatprep.subr.mxu0 0.0
      %v2508 = vand.u32 %v2041, 4294901760
      %v2509 = vsub.f32 %v2041, %v2508
      %2510 = vmatpush1.msra.mxu0 %v2509
      %2511 = vmatprep.subr.mxu0 0.0
      %v2512 = vand.u32 %v2042, 4294901760
      %v2513 = vsub.f32 %v2042, %v2512
      %2514 = vmatpush1.msra.mxu0 %v2513
      %2515 = vmatprep.subr.mxu0 0.0
      %v2516 = vand.u32 %v2043, 4294901760
      %v2517 = vsub.f32 %v2043, %v2516
      %2518 = vmatpush1.msra.mxu0 %v2517
      %2519 = vmatprep.subr.mxu0 0.0
      %2520 = vmatpush1.msra.mxu0 0.0
      %2521 = vmatprep.subr.mxu0 0.0
      %2522 = vmatpush1.msra.mxu0 0.0
      %2523 = vmatprep.subr.mxu0 0.0
      %2524 = vmatpush1.msra.mxu0 0.0
      %2525 = vmatprep.subr.mxu0 0.0
      %2526 = vmatpush1.msra.mxu0 0.0
      %2527 = vmatprep.subr.mxu0 0.0
      %2528 = vmatpush1.msra.mxu0 0.0
      %2529 = vmatprep.subr.mxu0 0.0
      %2530 = vmatpush1.msra.mxu0 0.0
      %2531 = vmatprep.subr.mxu0 0.0
      %2532 = vmatpush1.msra.mxu0 0.0
      %2533 = vmatprep.subr.mxu0 0.0
      %2534 = vmatpush1.msra.mxu0 0.0
      %2535 = vmatprep.subr.mxu0 0.0
      %2536 = vmatpush1.msra.mxu0 0.0
      %2537 = vmatprep.subr.mxu0 0.0
      %2538 = vmatpush1.msra.mxu0 0.0
      %2539 = vmatprep.subr.mxu0 0.0
      %2540 = vmatpush1.msra.mxu0 0.0
      %2541 = vmatprep.subr.mxu0 0.0
      %2542 = vmatpush1.msra.mxu0 0.0
      %2543 = vmatprep.subr.mxu0 0.0
      %2544 = vmatpush1.msra.mxu0 0.0
      %2545 = vmatprep.subr.mxu0 0.0
      %2546 = vmatpush1.msra.mxu0 0.0
      %2547 = vmatprep.subr.mxu0 0.0
      %2548 = vmatpush1.msra.mxu0 0.0
      %2549 = vmatprep.subr.mxu0 0.0
      %2550 = vmatpush1.msra.mxu0 0.0
      %2551 = vmatprep.subr.mxu0 0.0
      %2552 = vmatpush1.msra.mxu0 0.0
      %2553 = vmatprep.subr.mxu0 0.0
      %2554 = vmatpush1.msra.mxu0 0.0
      %2555 = vmatprep.subr.mxu0 0.0
      %2556 = vmatpush1.msra.mxu0 0.0
      %2557 = vmatprep.subr.mxu0 0.0
      %2558 = vmatpush1.msra.mxu0 0.0
      %2559 = vmatprep.subr.mxu0 0.0
      %2560 = vmatpush1.msra.mxu0 0.0
      %2561 = vmatprep.subr.mxu0 0.0
      %2562 = vmatpush1.msra.mxu0 0.0
      %2563 = vmatprep.subr.mxu0 0.0
      %2564 = vmatpush1.msra.mxu0 0.0
      %2565 = vmatprep.subr.mxu0 0.0
      %2566 = vmatpush1.msra.mxu0 0.0
      %2567 = vmatprep.subr.mxu0 0.0
      %2568 = vmatpush1.msra.mxu0 0.0
      %2569 = vmatprep.subr.mxu0 0.0
      %2570 = vmatpush1.msra.mxu0 0.0
      %2571 = vmatprep.subr.mxu0 0.0
      %2572 = vmatpush1.msra.mxu0 0.0
      %2573 = vmatprep.subr.mxu0 0.0
      %2574 = vmatpush1.msra.mxu0 0.0
      %2575 = vmatprep.mubr.f32.mxu0 0.0
      %v2576 = vand.u32 %v2046, 4294901760
      %v2577 = vsub.f32 %v2046, %v2576
      %2578 = vmatmul.mubr.f32.gmra.mrb[0].mxu0 %v2577
      %v2579 = vpop.f32.mrb[0].mxu0
      %v2580 = vadd.f32 %v2410, %v2579
      %v2581 = vpop.f32.mrb[0].mxu0
      %2582 = vmatprep.mubr.f32.mxu0 0.0
      %v2583 = vand.u32 %v2049, 4294901760
      %v2584 = vsub.f32 %v2049, %v2583
      %2585 = vmatmul.mubr.f32.gmra.mrb[0].mxu0 %v2584
      %v2586 = vpop.f32.mrb[0].mxu0
      %v2587 = vadd.f32 %v2416, %v2586
      %v2588 = vpop.f32.mrb[0].mxu0
      %2589 = vmatprep.mubr.f32.mxu0 0.0
      %v2590 = vand.u32 %v2052, 4294901760
      %v2591 = vsub.f32 %v2052, %v2590
      %2592 = vmatmul.mubr.f32.gmra.mrb[0].mxu0 %v2591
      %v2593 = vpop.f32.mrb[0].mxu0
      %v2594 = vadd.f32 %v2422, %v2593
      %v2595 = vpop.f32.mrb[0].mxu0
      %2596 = vmatprep.mubr.f32.mxu0 0.0
      %v2597 = vand.u32 %v2055, 4294901760
      %v2598 = vsub.f32 %v2055, %v2597
      %2599 = vmatmul.mubr.f32.gmra.mrb[0].mxu0 %v2598
      %v2600 = vpop.f32.mrb[0].mxu0
      %v2601 = vadd.f32 %v2428, %v2600
      %v2602 = vpop.f32.mrb[0].mxu0
      %2603 = vmatprep.mubr.f32.mxu0 0.0
      %v2604 = vand.u32 %v2058, 4294901760
      %v2605 = vsub.f32 %v2058, %v2604
      %2606 = vmatmul.mubr.f32.gmra.mrb[0].mxu0 %v2605
      %v2607 = vpop.f32.mrb[0].mxu0
      %v2608 = vadd.f32 %v2434, %v2607
      %v2609 = vpop.f32.mrb[0].mxu0
      %2610 = vmatprep.mubr.f32.mxu0 0.0
      %v2611 = vand.u32 %v2061, 4294901760
      %v2612 = vsub.f32 %v2061, %v2611
      %2613 = vmatmul.mubr.f32.gmra.mrb[0].mxu0 %v2612
      %v2614 = vpop.f32.mrb[0].mxu0
      %v2615 = vadd.f32 %v2440, %v2614
      %v2616 = vpop.f32.mrb[0].mxu0
      %2617 = vmatprep.mubr.f32.mxu0 0.0
      %v2618 = vand.u32 %v2064, 4294901760
      %v2619 = vsub.f32 %v2064, %v2618
      %2620 = vmatmul.mubr.f32.gmra.mrb[0].mxu0 %v2619
      %v2621 = vpop.f32.mrb[0].mxu0
      %v2622 = vadd.f32 %v2446, %v2621
      %v2623 = vpop.f32.mrb[0].mxu0
      %2624 = vmatprep.mubr.f32.mxu0 0.0
      %v2625 = vand.u32 %v2067, 4294901760
      %v2626 = vsub.f32 %v2067, %v2625
      %2627 = vmatmul.mubr.f32.gmra.mrb[0].mxu0 %v2626
      %v2628 = vpop.f32.mrb[0].mxu0
      %v2629 = vadd.f32 %v2452, %v2628
      %v2630 = vpop.f32.mrb[0].mxu0
      %2631 = vmatprep.mubr.f32.mxu0 0.0
      %v2632 = vand.u32 %v2070, 4294901760
      %v2633 = vsub.f32 %v2070, %v2632
      %2634 = vmatmul.mubr.f32.gmra.mrb[0].mxu0 %v2633
      %v2635 = vpop.f32.mrb[0].mxu0
      %v2636 = vadd.f32 %v2458, %v2635
      %v2637 = vpop.f32.mrb[0].mxu0
      %2638 = vmatprep.mubr.f32.mxu0 0.0
      %v2639 = vand.u32 %v2073, 4294901760
      %v2640 = vsub.f32 %v2073, %v2639
      %2641 = vmatmul.mubr.f32.gmra.mrb[0].mxu0 %v2640
      %v2642 = vpop.f32.mrb[0].mxu0
      %v2643 = vadd.f32 %v2464, %v2642
      %v2644 = vpop.f32.mrb[0].mxu0
      %2645 = vmatprep.mubr.f32.mxu0 0.0
      %v2646 = vand.u32 %v2076, 4294901760
      %v2647 = vsub.f32 %v2076, %v2646
      %2648 = vmatmul.mubr.f32.gmra.mrb[0].mxu0 %v2647
      %v2649 = vpop.f32.mrb[0].mxu0
      %v2650 = vadd.f32 %v2470, %v2649
      %v2651 = vpop.f32.mrb[0].mxu0
      %2652 = vmatprep.mubr.f32.mxu0 0.0
      %v2653 = vand.u32 %v2079, 4294901760
      %v2654 = vsub.f32 %v2079, %v2653
      %2655 = vmatmul.mubr.f32.gmra.mrb[0].mxu0 %v2654
      %v2656 = vpop.f32.mrb[0].mxu0
      %v2657 = vadd.f32 %v2476, %v2656
      %v2658 = vpop.f32.mrb[0].mxu0
      %2659 = vmatprep.mubr.f32.mxu0 0.0
      %v2660 = vand.u32 %v2082, 4294901760
      %v2661 = vsub.f32 %v2082, %v2660
      %2662 = vmatmul.mubr.f32.gmra.mrb[0].mxu0 %v2661
      %v2663 = vpop.f32.mrb[0].mxu0
      %v2664 = vadd.f32 %v2482, %v2663
      %v2665 = vpop.f32.mrb[0].mxu0
      %2666 = vmatprep.mubr.f32.mxu0 0.0
      %v2667 = vand.u32 %v2085, 4294901760
      %v2668 = vsub.f32 %v2085, %v2667
      %2669 = vmatmul.mubr.f32.gmra.mrb[0].mxu0 %v2668
      %v2670 = vpop.f32.mrb[0].mxu0
      %v2671 = vadd.f32 %v2488, %v2670
      %v2672 = vpop.f32.mrb[0].mxu0
      %2673 = vmatprep.mubr.f32.mxu0 0.0
      %v2674 = vand.u32 %v2088, 4294901760
      %v2675 = vsub.f32 %v2088, %v2674
      %2676 = vmatmul.mubr.f32.gmra.mrb[0].mxu0 %v2675
      %v2677 = vpop.f32.mrb[0].mxu0
      %v2678 = vadd.f32 %v2494, %v2677
      %v2679 = vpop.f32.mrb[0].mxu0
      %2680 = vmatprep.mubr.f32.mxu0 0.0
      %v2681 = vand.u32 %v2091, 4294901760
      %v2682 = vsub.f32 %v2091, %v2681
      %2683 = vmatmul.mubr.f32.gmra.mrb[0].mxu0 %v2682
      %v2684 = vpop.f32.mrb[0].mxu0
      %v2685 = vadd.f32 %v2500, %v2684
      %v2686 = vpop.f32.mrb[0].mxu0
      %2687 = vdwg.mxu0
      %2688 = vmatprep.subr.mxu0 0.0
      %v2689 = vand.u32 %v2040, 4294901760
      %2690 = vmatpush1.msra.mxu0 %v2689
      %2691 = vmatprep.subr.mxu0 0.0
      %v2692 = vand.u32 %v2041, 4294901760
      %2693 = vmatpush1.msra.mxu0 %v2692
      %2694 = vmatprep.subr.mxu0 0.0
      %v2695 = vand.u32 %v2042, 4294901760
      %2696 = vmatpush1.msra.mxu0 %v2695
      %2697 = vmatprep.subr.mxu0 0.0
      %v2698 = vand.u32 %v2043, 4294901760
      %2699 = vmatpush1.msra.mxu0 %v2698
      %2700 = vmatprep.subr.mxu0 0.0
      %2701 = vmatpush1.msra.mxu0 0.0
      %2702 = vmatprep.subr.mxu0 0.0
      %2703 = vmatpush1.msra.mxu0 0.0
      %2704 = vmatprep.subr.mxu0 0.0
      %2705 = vmatpush1.msra.mxu0 0.0
      %2706 = vmatprep.subr.mxu0 0.0
      %2707 = vmatpush1.msra.mxu0 0.0
      %2708 = vmatprep.subr.mxu0 0.0
      %2709 = vmatpush1.msra.mxu0 0.0
      %2710 = vmatprep.subr.mxu0 0.0
      %2711 = vmatpush1.msra.mxu0 0.0
      %2712 = vmatprep.subr.mxu0 0.0
      %2713 = vmatpush1.msra.mxu0 0.0
      %2714 = vmatprep.subr.mxu0 0.0
      %2715 = vmatpush1.msra.mxu0 0.0
      %2716 = vmatprep.subr.mxu0 0.0
      %2717 = vmatpush1.msra.mxu0 0.0
      %2718 = vmatprep.subr.mxu0 0.0
      %2719 = vmatpush1.msra.mxu0 0.0
      %2720 = vmatprep.subr.mxu0 0.0
      %2721 = vmatpush1.msra.mxu0 0.0
      %2722 = vmatprep.subr.mxu0 0.0
      %2723 = vmatpush1.msra.mxu0 0.0
      %2724 = vmatprep.subr.mxu0 0.0
      %2725 = vmatpush1.msra.mxu0 0.0
      %2726 = vmatprep.subr.mxu0 0.0
      %2727 = vmatpush1.msra.mxu0 0.0
      %2728 = vmatprep.subr.mxu0 0.0
      %2729 = vmatpush1.msra.mxu0 0.0
      %2730 = vmatprep.subr.mxu0 0.0
      %2731 = vmatpush1.msra.mxu0 0.0
      %2732 = vmatprep.subr.mxu0 0.0
      %2733 = vmatpush1.msra.mxu0 0.0
      %2734 = vmatprep.subr.mxu0 0.0
      %2735 = vmatpush1.msra.mxu0 0.0
      %2736 = vmatprep.subr.mxu0 0.0
      %2737 = vmatpush1.msra.mxu0 0.0
      %2738 = vmatprep.subr.mxu0 0.0
      %2739 = vmatpush1.msra.mxu0 0.0
      %2740 = vmatprep.subr.mxu0 0.0
      %2741 = vmatpush1.msra.mxu0 0.0
      %2742 = vmatprep.subr.mxu0 0.0
      %2743 = vmatpush1.msra.mxu0 0.0
      %2744 = vmatprep.subr.mxu0 0.0
      %2745 = vmatpush1.msra.mxu0 0.0
      %2746 = vmatprep.subr.mxu0 0.0
      %2747 = vmatpush1.msra.mxu0 0.0
      %2748 = vmatprep.subr.mxu0 0.0
      %2749 = vmatpush1.msra.mxu0 0.0
      %2750 = vmatprep.subr.mxu0 0.0
      %2751 = vmatpush1.msra.mxu0 0.0
      %2752 = vmatprep.subr.mxu0 0.0
      %2753 = vmatpush1.msra.mxu0 0.0
      %2754 = vmatprep.subr.mxu0 0.0
      %2755 = vmatpush1.msra.mxu0 0.0
      %2756 = vmatprep.mubr.f32.mxu0 0.0
      %v2757 = vand.u32 %v2046, 4294901760
      %v2758 = vsub.f32 %v2046, %v2757
      %v2759 = vand.u32 %v2758, 4294901760
      %2760 = vmatmul.mubr.f32.gmra.mrb[0].mxu0 %v2759
      %v2761 = vpop.f32.mrb[0].mxu0
      %v2762 = vadd.f32 %v2580, %v2761
      %v2763 = vpop.f32.mrb[0].mxu0
      %2764 = vmatprep.mubr.f32.mxu0 0.0
      %v2765 = vand.u32 %v2049, 4294901760
      %v2766 = vsub.f32 %v2049, %v2765
      %v2767 = vand.u32 %v2766, 4294901760
      %2768 = vmatmul.mubr.f32.gmra.mrb[0].mxu0 %v2767
      %v2769 = vpop.f32.mrb[0].mxu0
      %v2770 = vadd.f32 %v2587, %v2769
      %v2771 = vpop.f32.mrb[0].mxu0
      %2772 = vmatprep.mubr.f32.mxu0 0.0
      %v2773 = vand.u32 %v2052, 4294901760
      %v2774 = vsub.f32 %v2052, %v2773
      %v2775 = vand.u32 %v2774, 4294901760
      %2776 = vmatmul.mubr.f32.gmra.mrb[0].mxu0 %v2775
      %v2777 = vpop.f32.mrb[0].mxu0
      %v2778 = vadd.f32 %v2594, %v2777
      %v2779 = vpop.f32.mrb[0].mxu0
      %2780 = vmatprep.mubr.f32.mxu0 0.0
      %v2781 = vand.u32 %v2055, 4294901760
      %v2782 = vsub.f32 %v2055, %v2781
      %v2783 = vand.u32 %v2782, 4294901760
      %2784 = vmatmul.mubr.f32.gmra.mrb[0].mxu0 %v2783
      %v2785 = vpop.f32.mrb[0].mxu0
      %v2786 = vadd.f32 %v2601, %v2785
      %v2787 = vpop.f32.mrb[0].mxu0
      %2788 = vmatprep.mubr.f32.mxu0 0.0
      %v2789 = vand.u32 %v2058, 4294901760
      %v2790 = vsub.f32 %v2058, %v2789
      %v2791 = vand.u32 %v2790, 4294901760
      %2792 = vmatmul.mubr.f32.gmra.mrb[0].mxu0 %v2791
      %v2793 = vpop.f32.mrb[0].mxu0
      %v2794 = vadd.f32 %v2608, %v2793
      %v2795 = vpop.f32.mrb[0].mxu0
      %2796 = vmatprep.mubr.f32.mxu0 0.0
      %v2797 = vand.u32 %v2061, 4294901760
      %v2798 = vsub.f32 %v2061, %v2797
      %v2799 = vand.u32 %v2798, 4294901760
      %2800 = vmatmul.mubr.f32.gmra.mrb[0].mxu0 %v2799
      %v2801 = vpop.f32.mrb[0].mxu0
      %v2802 = vadd.f32 %v2615, %v2801
      %v2803 = vpop.f32.mrb[0].mxu0
      %2804 = vmatprep.mubr.f32.mxu0 0.0
      %v2805 = vand.u32 %v2064, 4294901760
      %v2806 = vsub.f32 %v2064, %v2805
      %v2807 = vand.u32 %v2806, 4294901760
      %2808 = vmatmul.mubr.f32.gmra.mrb[0].mxu0 %v2807
      %v2809 = vpop.f32.mrb[0].mxu0
      %v2810 = vadd.f32 %v2622, %v2809
      %v2811 = vpop.f32.mrb[0].mxu0
      %2812 = vmatprep.mubr.f32.mxu0 0.0
      %v2813 = vand.u32 %v2067, 4294901760
      %v2814 = vsub.f32 %v2067, %v2813
      %v2815 = vand.u32 %v2814, 4294901760
      %2816 = vmatmul.mubr.f32.gmra.mrb[0].mxu0 %v2815
      %v2817 = vpop.f32.mrb[0].mxu0
      %v2818 = vadd.f32 %v2629, %v2817
      %v2819 = vpop.f32.mrb[0].mxu0
      %2820 = vmatprep.mubr.f32.mxu0 0.0
      %v2821 = vand.u32 %v2070, 4294901760
      %v2822 = vsub.f32 %v2070, %v2821
      %v2823 = vand.u32 %v2822, 4294901760
      %2824 = vmatmul.mubr.f32.gmra.mrb[0].mxu0 %v2823
      %v2825 = vpop.f32.mrb[0].mxu0
      %v2826 = vadd.f32 %v2636, %v2825
      %v2827 = vpop.f32.mrb[0].mxu0
      %2828 = vmatprep.mubr.f32.mxu0 0.0
      %v2829 = vand.u32 %v2073, 4294901760
      %v2830 = vsub.f32 %v2073, %v2829
      %v2831 = vand.u32 %v2830, 4294901760
      %2832 = vmatmul.mubr.f32.gmra.mrb[0].mxu0 %v2831
      %v2833 = vpop.f32.mrb[0].mxu0
      %v2834 = vadd.f32 %v2643, %v2833
      %v2835 = vpop.f32.mrb[0].mxu0
      %2836 = vmatprep.mubr.f32.mxu0 0.0
      %v2837 = vand.u32 %v2076, 4294901760
      %v2838 = vsub.f32 %v2076, %v2837
      %v2839 = vand.u32 %v2838, 4294901760
      %2840 = vmatmul.mubr.f32.gmra.mrb[0].mxu0 %v2839
      %v2841 = vpop.f32.mrb[0].mxu0
      %v2842 = vadd.f32 %v2650, %v2841
      %v2843 = vpop.f32.mrb[0].mxu0
      %2844 = vmatprep.mubr.f32.mxu0 0.0
      %v2845 = vand.u32 %v2079, 4294901760
      %v2846 = vsub.f32 %v2079, %v2845
      %v2847 = vand.u32 %v2846, 4294901760
      %2848 = vmatmul.mubr.f32.gmra.mrb[0].mxu0 %v2847
      %v2849 = vpop.f32.mrb[0].mxu0
      %v2850 = vadd.f32 %v2657, %v2849
      %v2851 = vpop.f32.mrb[0].mxu0
      %2852 = vmatprep.mubr.f32.mxu0 0.0
      %v2853 = vand.u32 %v2082, 4294901760
      %v2854 = vsub.f32 %v2082, %v2853
      %v2855 = vand.u32 %v2854, 4294901760
      %2856 = vmatmul.mubr.f32.gmra.mrb[0].mxu0 %v2855
      %v2857 = vpop.f32.mrb[0].mxu0
      %v2858 = vadd.f32 %v2664, %v2857
      %v2859 = vpop.f32.mrb[0].mxu0
      %2860 = vmatprep.mubr.f32.mxu0 0.0
      %v2861 = vand.u32 %v2085, 4294901760
      %v2862 = vsub.f32 %v2085, %v2861
      %v2863 = vand.u32 %v2862, 4294901760
      %2864 = vmatmul.mubr.f32.gmra.mrb[0].mxu0 %v2863
      %v2865 = vpop.f32.mrb[0].mxu0
      %v2866 = vadd.f32 %v2671, %v2865
      %v2867 = vpop.f32.mrb[0].mxu0
      %2868 = vmatprep.mubr.f32.mxu0 0.0
      %v2869 = vand.u32 %v2088, 4294901760
      %v2870 = vsub.f32 %v2088, %v2869
      %v2871 = vand.u32 %v2870, 4294901760
      %2872 = vmatmul.mubr.f32.gmra.mrb[0].mxu0 %v2871
      %v2873 = vpop.f32.mrb[0].mxu0
      %v2874 = vadd.f32 %v2678, %v2873
      %v2875 = vpop.f32.mrb[0].mxu0
      %2876 = vmatprep.mubr.f32.mxu0 0.0
      %v2877 = vand.u32 %v2091, 4294901760
      %v2878 = vsub.f32 %v2091, %v2877
      %v2879 = vand.u32 %v2878, 4294901760
      %2880 = vmatmul.mubr.f32.gmra.mrb[0].mxu0 %v2879
      %v2881 = vpop.f32.mrb[0].mxu0
      %v2882 = vadd.f32 %v2685, %v2881
      %v2883 = vpop.f32.mrb[0].mxu0
      %2884 = vdwg.mxu0
      %2885 = vmatprep.subr.mxu0 0.0
      %v2886 = vand.u32 %v2040, 4294901760
      %v2887 = vsub.f32 %v2040, %v2886
      %v2888 = vand.u32 %v2887, 4294901760
      %2889 = vmatpush1.msra.mxu0 %v2888
      %2890 = vmatprep.subr.mxu0 0.0
      %v2891 = vand.u32 %v2041, 4294901760
      %v2892 = vsub.f32 %v2041, %v2891
      %v2893 = vand.u32 %v2892, 4294901760
      %2894 = vmatpush1.msra.mxu0 %v2893
      %2895 = vmatprep.subr.mxu0 0.0
      %v2896 = vand.u32 %v2042, 4294901760
      %v2897 = vsub.f32 %v2042, %v2896
      %v2898 = vand.u32 %v2897, 4294901760
      %2899 = vmatpush1.msra.mxu0 %v2898
      %2900 = vmatprep.subr.mxu0 0.0
      %v2901 = vand.u32 %v2043, 4294901760
      %v2902 = vsub.f32 %v2043, %v2901
      %v2903 = vand.u32 %v2902, 4294901760
      %2904 = vmatpush1.msra.mxu0 %v2903
      %2905 = vmatprep.subr.mxu0 0.0
      %2906 = vmatpush1.msra.mxu0 0.0
      %2907 = vmatprep.subr.mxu0 0.0
      %2908 = vmatpush1.msra.mxu0 0.0
      %2909 = vmatprep.subr.mxu0 0.0
      %2910 = vmatpush1.msra.mxu0 0.0
      %2911 = vmatprep.subr.mxu0 0.0
      %2912 = vmatpush1.msra.mxu0 0.0
      %2913 = vmatprep.subr.mxu0 0.0
      %2914 = vmatpush1.msra.mxu0 0.0
      %2915 = vmatprep.subr.mxu0 0.0
      %2916 = vmatpush1.msra.mxu0 0.0
      %2917 = vmatprep.subr.mxu0 0.0
      %2918 = vmatpush1.msra.mxu0 0.0
      %2919 = vmatprep.subr.mxu0 0.0
      %2920 = vmatpush1.msra.mxu0 0.0
      %2921 = vmatprep.subr.mxu0 0.0
      %2922 = vmatpush1.msra.mxu0 0.0
      %2923 = vmatprep.subr.mxu0 0.0
      %2924 = vmatpush1.msra.mxu0 0.0
      %2925 = vmatprep.subr.mxu0 0.0
      %2926 = vmatpush1.msra.mxu0 0.0
      %2927 = vmatprep.subr.mxu0 0.0
      %2928 = vmatpush1.msra.mxu0 0.0
      %2929 = vmatprep.subr.mxu0 0.0
      %2930 = vmatpush1.msra.mxu0 0.0
      %2931 = vmatprep.subr.mxu0 0.0
      %2932 = vmatpush1.msra.mxu0 0.0
      %2933 = vmatprep.subr.mxu0 0.0
      %2934 = vmatpush1.msra.mxu0 0.0
      %2935 = vmatprep.subr.mxu0 0.0
      %2936 = vmatpush1.msra.mxu0 0.0
      %2937 = vmatprep.subr.mxu0 0.0
      %2938 = vmatpush1.msra.mxu0 0.0
      %2939 = vmatprep.subr.mxu0 0.0
      %2940 = vmatpush1.msra.mxu0 0.0
      %2941 = vmatprep.subr.mxu0 0.0
      %2942 = vmatpush1.msra.mxu0 0.0
      %2943 = vmatprep.subr.mxu0 0.0
      %2944 = vmatpush1.msra.mxu0 0.0
      %2945 = vmatprep.subr.mxu0 0.0
      %2946 = vmatpush1.msra.mxu0 0.0
      %2947 = vmatprep.subr.mxu0 0.0
      %2948 = vmatpush1.msra.mxu0 0.0
      %2949 = vmatprep.subr.mxu0 0.0
      %2950 = vmatpush1.msra.mxu0 0.0
      %2951 = vmatprep.subr.mxu0 0.0
      %2952 = vmatpush1.msra.mxu0 0.0
      %2953 = vmatprep.subr.mxu0 0.0
      %2954 = vmatpush1.msra.mxu0 0.0
      %2955 = vmatprep.subr.mxu0 0.0
      %2956 = vmatpush1.msra.mxu0 0.0
      %2957 = vmatprep.subr.mxu0 0.0
      %2958 = vmatpush1.msra.mxu0 0.0
      %2959 = vmatprep.subr.mxu0 0.0
      %2960 = vmatpush1.msra.mxu0 0.0
      %2961 = vmatprep.mubr.f32.mxu0 0.0
      %v2962 = vand.u32 %v2046, 4294901760
      %2963 = vmatmul.mubr.f32.gmra.mrb[0].mxu0 %v2962
      %v2964 = vpop.f32.mrb[0].mxu0
      %v2965 = vadd.f32 %v2762, %v2964
      %v2966 = vpop.f32.mrb[0].mxu0
      %2967 = vmatprep.mubr.f32.mxu0 0.0
      %v2968 = vand.u32 %v2049, 4294901760
      %2969 = vmatmul.mubr.f32.gmra.mrb[0].mxu0 %v2968
      %v2970 = vpop.f32.mrb[0].mxu0
      %v2971 = vadd.f32 %v2770, %v2970
      %v2972 = vpop.f32.mrb[0].mxu0
      %2973 = vmatprep.mubr.f32.mxu0 0.0
      %v2974 = vand.u32 %v2052, 4294901760
      %2975 = vmatmul.mubr.f32.gmra.mrb[0].mxu0 %v2974
      %v2976 = vpop.f32.mrb[0].mxu0
      %v2977 = vadd.f32 %v2778, %v2976
      %v2978 = vpop.f32.mrb[0].mxu0
      %2979 = vmatprep.mubr.f32.mxu0 0.0
      %v2980 = vand.u32 %v2055, 4294901760
      %2981 = vmatmul.mubr.f32.gmra.mrb[0].mxu0 %v2980
      %v2982 = vpop.f32.mrb[0].mxu0
      %v2983 = vadd.f32 %v2786, %v2982
      %v2984 = vpop.f32.mrb[0].mxu0
      %2985 = vmatprep.mubr.f32.mxu0 0.0
      %v2986 = vand.u32 %v2058, 4294901760
      %2987 = vmatmul.mubr.f32.gmra.mrb[0].mxu0 %v2986
      %v2988 = vpop.f32.mrb[0].mxu0
      %v2989 = vadd.f32 %v2794, %v2988
      %v2990 = vpop.f32.mrb[0].mxu0
      %2991 = vmatprep.mubr.f32.mxu0 0.0
      %v2992 = vand.u32 %v2061, 4294901760
      %2993 = vmatmul.mubr.f32.gmra.mrb[0].mxu0 %v2992
      %v2994 = vpop.f32.mrb[0].mxu0
      %v2995 = vadd.f32 %v2802, %v2994
      %v2996 = vpop.f32.mrb[0].mxu0
      %2997 = vmatprep.mubr.f32.mxu0 0.0
      %v2998 = vand.u32 %v2064, 4294901760
      %2999 = vmatmul.mubr.f32.gmra.mrb[0].mxu0 %v2998
      %v3000 = vpop.f32.mrb[0].mxu0
      %v3001 = vadd.f32 %v2810, %v3000
      %v3002 = vpop.f32.mrb[0].mxu0
      %3003 = vmatprep.mubr.f32.mxu0 0.0
      %v3004 = vand.u32 %v2067, 4294901760
      %3005 = vmatmul.mubr.f32.gmra.mrb[0].mxu0 %v3004
      %v3006 = vpop.f32.mrb[0].mxu0
      %v3007 = vadd.f32 %v2818, %v3006
      %v3008 = vpop.f32.mrb[0].mxu0
      %3009 = vmatprep.mubr.f32.mxu0 0.0
      %v3010 = vand.u32 %v2070, 4294901760
      %3011 = vmatmul.mubr.f32.gmra.mrb[0].mxu0 %v3010
      %v3012 = vpop.f32.mrb[0].mxu0
      %v3013 = vadd.f32 %v2826, %v3012
      %v3014 = vpop.f32.mrb[0].mxu0
      %3015 = vmatprep.mubr.f32.mxu0 0.0
      %v3016 = vand.u32 %v2073, 4294901760
      %3017 = vmatmul.mubr.f32.gmra.mrb[0].mxu0 %v3016
      %v3018 = vpop.f32.mrb[0].mxu0
      %v3019 = vadd.f32 %v2834, %v3018
      %v3020 = vpop.f32.mrb[0].mxu0
      %3021 = vmatprep.mubr.f32.mxu0 0.0
      %v3022 = vand.u32 %v2076, 4294901760
      %3023 = vmatmul.mubr.f32.gmra.mrb[0].mxu0 %v3022
      %v3024 = vpop.f32.mrb[0].mxu0
      %v3025 = vadd.f32 %v2842, %v3024
      %v3026 = vpop.f32.mrb[0].mxu0
      %3027 = vmatprep.mubr.f32.mxu0 0.0
      %v3028 = vand.u32 %v2079, 4294901760
      %3029 = vmatmul.mubr.f32.gmra.mrb[0].mxu0 %v3028
      %v3030 = vpop.f32.mrb[0].mxu0
      %v3031 = vadd.f32 %v2850, %v3030
      %v3032 = vpop.f32.mrb[0].mxu0
      %3033 = vmatprep.mubr.f32.mxu0 0.0
      %v3034 = vand.u32 %v2082, 4294901760
      %3035 = vmatmul.mubr.f32.gmra.mrb[0].mxu0 %v3034
      %v3036 = vpop.f32.mrb[0].mxu0
      %v3037 = vadd.f32 %v2858, %v3036
      %v3038 = vpop.f32.mrb[0].mxu0
      %3039 = vmatprep.mubr.f32.mxu0 0.0
      %v3040 = vand.u32 %v2085, 4294901760
      %3041 = vmatmul.mubr.f32.gmra.mrb[0].mxu0 %v3040
      %v3042 = vpop.f32.mrb[0].mxu0
      %v3043 = vadd.f32 %v2866, %v3042
      %v3044 = vpop.f32.mrb[0].mxu0
      %3045 = vmatprep.mubr.f32.mxu0 0.0
      %v3046 = vand.u32 %v2088, 4294901760
      %3047 = vmatmul.mubr.f32.gmra.mrb[0].mxu0 %v3046
      %v3048 = vpop.f32.mrb[0].mxu0
      %v3049 = vadd.f32 %v2874, %v3048
      %v3050 = vpop.f32.mrb[0].mxu0
      %3051 = vmatprep.mubr.f32.mxu0 0.0
      %v3052 = vand.u32 %v2091, 4294901760
      %3053 = vmatmul.mubr.f32.gmra.mrb[0].mxu0 %v3052
      %v3054 = vpop.f32.mrb[0].mxu0
      %v3055 = vadd.f32 %v2882, %v3054
      %v3056 = vpop.f32.mrb[0].mxu0
      %3057 = vdwg.mxu0
      %3058 = vmatprep.subr.mxu0 0.0
      %v3059 = vand.u32 %v2040, 4294901760
      %3060 = vmatpush1.msra.mxu0 %v3059
      %3061 = vmatprep.subr.mxu0 0.0
      %v3062 = vand.u32 %v2041, 4294901760
      %3063 = vmatpush1.msra.mxu0 %v3062
      %3064 = vmatprep.subr.mxu0 0.0
      %v3065 = vand.u32 %v2042, 4294901760
      %3066 = vmatpush1.msra.mxu0 %v3065
      %3067 = vmatprep.subr.mxu0 0.0
      %v3068 = vand.u32 %v2043, 4294901760
      %3069 = vmatpush1.msra.mxu0 %v3068
      %3070 = vmatprep.subr.mxu0 0.0
      %3071 = vmatpush1.msra.mxu0 0.0
      %3072 = vmatprep.subr.mxu0 0.0
      %3073 = vmatpush1.msra.mxu0 0.0
      %3074 = vmatprep.subr.mxu0 0.0
      %3075 = vmatpush1.msra.mxu0 0.0
      %3076 = vmatprep.subr.mxu0 0.0
      %3077 = vmatpush1.msra.mxu0 0.0
      %3078 = vmatprep.subr.mxu0 0.0
      %3079 = vmatpush1.msra.mxu0 0.0
      %3080 = vmatprep.subr.mxu0 0.0
      %3081 = vmatpush1.msra.mxu0 0.0
      %3082 = vmatprep.subr.mxu0 0.0
      %3083 = vmatpush1.msra.mxu0 0.0
      %3084 = vmatprep.subr.mxu0 0.0
      %3085 = vmatpush1.msra.mxu0 0.0
      %3086 = vmatprep.subr.mxu0 0.0
      %3087 = vmatpush1.msra.mxu0 0.0
      %3088 = vmatprep.subr.mxu0 0.0
      %3089 = vmatpush1.msra.mxu0 0.0
      %3090 = vmatprep.subr.mxu0 0.0
      %3091 = vmatpush1.msra.mxu0 0.0
      %3092 = vmatprep.subr.mxu0 0.0
      %3093 = vmatpush1.msra.mxu0 0.0
      %3094 = vmatprep.subr.mxu0 0.0
      %3095 = vmatpush1.msra.mxu0 0.0
      %3096 = vmatprep.subr.mxu0 0.0
      %3097 = vmatpush1.msra.mxu0 0.0
      %3098 = vmatprep.subr.mxu0 0.0
      %3099 = vmatpush1.msra.mxu0 0.0
      %3100 = vmatprep.subr.mxu0 0.0
      %3101 = vmatpush1.msra.mxu0 0.0
      %3102 = vmatprep.subr.mxu0 0.0
      %3103 = vmatpush1.msra.mxu0 0.0
      %3104 = vmatprep.subr.mxu0 0.0
      %3105 = vmatpush1.msra.mxu0 0.0
      %3106 = vmatprep.subr.mxu0 0.0
      %3107 = vmatpush1.msra.mxu0 0.0
      %3108 = vmatprep.subr.mxu0 0.0
      %3109 = vmatpush1.msra.mxu0 0.0
      %3110 = vmatprep.subr.mxu0 0.0
      %3111 = vmatpush1.msra.mxu0 0.0
      %3112 = vmatprep.subr.mxu0 0.0
      %3113 = vmatpush1.msra.mxu0 0.0
      %3114 = vmatprep.subr.mxu0 0.0
      %3115 = vmatpush1.msra.mxu0 0.0
      %3116 = vmatprep.subr.mxu0 0.0
      %3117 = vmatpush1.msra.mxu0 0.0
      %3118 = vmatprep.subr.mxu0 0.0
      %3119 = vmatpush1.msra.mxu0 0.0
      %3120 = vmatprep.subr.mxu0 0.0
      %3121 = vmatpush1.msra.mxu0 0.0
      %3122 = vmatprep.subr.mxu0 0.0
      %3123 = vmatpush1.msra.mxu0 0.0
      %3124 = vmatprep.subr.mxu0 0.0
      %3125 = vmatpush1.msra.mxu0 0.0
      %3126 = vmatprep.mubr.f32.mxu0 0.0
      %v3127 = vand.u32 %v2046, 4294901760
      %3128 = vmatmul.mubr.f32.gmra.mrb[0].mxu0 %v3127
      %v3129 = vpop.f32.mrb[0].mxu0
      %v3130 = vadd.f32 %v2965, %v3129
      %v3131 = vpop.f32.mrb[0].mxu0
      %3132 = vmatprep.mubr.f32.mxu0 0.0
      %v3133 = vand.u32 %v2049, 4294901760
      %3134 = vmatmul.mubr.f32.gmra.mrb[0].mxu0 %v3133
      %v3135 = vpop.f32.mrb[0].mxu0
      %v3136 = vadd.f32 %v2971, %v3135
      %v3137 = vpop.f32.mrb[0].mxu0
      %3138 = vmatprep.mubr.f32.mxu0 0.0
      %v3139 = vand.u32 %v2052, 4294901760
      %3140 = vmatmul.mubr.f32.gmra.mrb[0].mxu0 %v3139
      %v3141 = vpop.f32.mrb[0].mxu0
      %v3142 = vadd.f32 %v2977, %v3141
      %v3143 = vpop.f32.mrb[0].mxu0
      %3144 = vmatprep.mubr.f32.mxu0 0.0
      %v3145 = vand.u32 %v2055, 4294901760
      %3146 = vmatmul.mubr.f32.gmra.mrb[0].mxu0 %v3145
      %v3147 = vpop.f32.mrb[0].mxu0
      %v3148 = vadd.f32 %v2983, %v3147
      %v3149 = vpop.f32.mrb[0].mxu0
      %3150 = vmatprep.mubr.f32.mxu0 0.0
      %v3151 = vand.u32 %v2058, 4294901760
      %3152 = vmatmul.mubr.f32.gmra.mrb[0].mxu0 %v3151
      %v3153 = vpop.f32.mrb[0].mxu0
      %v3154 = vadd.f32 %v2989, %v3153
      %v3155 = vpop.f32.mrb[0].mxu0
      %3156 = vmatprep.mubr.f32.mxu0 0.0
      %v3157 = vand.u32 %v2061, 4294901760
      %3158 = vmatmul.mubr.f32.gmra.mrb[0].mxu0 %v3157
      %v3159 = vpop.f32.mrb[0].mxu0
      %v3160 = vadd.f32 %v2995, %v3159
      %v3161 = vpop.f32.mrb[0].mxu0
      %3162 = vmatprep.mubr.f32.mxu0 0.0
      %v3163 = vand.u32 %v2064, 4294901760
      %3164 = vmatmul.mubr.f32.gmra.mrb[0].mxu0 %v3163
      %v3165 = vpop.f32.mrb[0].mxu0
      %v3166 = vadd.f32 %v3001, %v3165
      %v3167 = vpop.f32.mrb[0].mxu0
      %3168 = vmatprep.mubr.f32.mxu0 0.0
      %v3169 = vand.u32 %v2067, 4294901760
      %3170 = vmatmul.mubr.f32.gmra.mrb[0].mxu0 %v3169
      %v3171 = vpop.f32.mrb[0].mxu0
      %v3172 = vadd.f32 %v3007, %v3171
      %v3173 = vpop.f32.mrb[0].mxu0
      %3174 = vmatprep.mubr.f32.mxu0 0.0
      %v3175 = vand.u32 %v2070, 4294901760
      %3176 = vmatmul.mubr.f32.gmra.mrb[0].mxu0 %v3175
      %v3177 = vpop.f32.mrb[0].mxu0
      %v3178 = vadd.f32 %v3013, %v3177
      %v3179 = vpop.f32.mrb[0].mxu0
      %3180 = vmatprep.mubr.f32.mxu0 0.0
      %v3181 = vand.u32 %v2073, 4294901760
      %3182 = vmatmul.mubr.f32.gmra.mrb[0].mxu0 %v3181
      %v3183 = vpop.f32.mrb[0].mxu0
      %v3184 = vadd.f32 %v3019, %v3183
      %v3185 = vpop.f32.mrb[0].mxu0
      %3186 = vmatprep.mubr.f32.mxu0 0.0
      %v3187 = vand.u32 %v2076, 4294901760
      %3188 = vmatmul.mubr.f32.gmra.mrb[0].mxu0 %v3187
      %v3189 = vpop.f32.mrb[0].mxu0
      %v3190 = vadd.f32 %v3025, %v3189
      %v3191 = vpop.f32.mrb[0].mxu0
      %3192 = vmatprep.mubr.f32.mxu0 0.0
      %v3193 = vand.u32 %v2079, 4294901760
      %3194 = vmatmul.mubr.f32.gmra.mrb[0].mxu0 %v3193
      %v3195 = vpop.f32.mrb[0].mxu0
      %v3196 = vadd.f32 %v3031, %v3195
      %v3197 = vpop.f32.mrb[0].mxu0
      %3198 = vmatprep.mubr.f32.mxu0 0.0
      %v3199 = vand.u32 %v2082, 4294901760
      %3200 = vmatmul.mubr.f32.gmra.mrb[0].mxu0 %v3199
      %v3201 = vpop.f32.mrb[0].mxu0
      %v3202 = vadd.f32 %v3037, %v3201
      %v3203 = vpop.f32.mrb[0].mxu0
      %3204 = vmatprep.mubr.f32.mxu0 0.0
      %v3205 = vand.u32 %v2085, 4294901760
      %3206 = vmatmul.mubr.f32.gmra.mrb[0].mxu0 %v3205
      %v3207 = vpop.f32.mrb[0].mxu0
      %v3208 = vadd.f32 %v3043, %v3207
      %v3209 = vpop.f32.mrb[0].mxu0
      %3210 = vmatprep.mubr.f32.mxu0 0.0
      %v3211 = vand.u32 %v2088, 4294901760
      %3212 = vmatmul.mubr.f32.gmra.mrb[0].mxu0 %v3211
      %v3213 = vpop.f32.mrb[0].mxu0
      %v3214 = vadd.f32 %v3049, %v3213
      %v3215 = vpop.f32.mrb[0].mxu0
      %3216 = vmatprep.mubr.f32.mxu0 0.0
      %v3217 = vand.u32 %v2091, 4294901760
      %3218 = vmatmul.mubr.f32.gmra.mrb[0].mxu0 %v3217
      %v3219 = vpop.f32.mrb[0].mxu0
      %v3220 = vadd.f32 %v3055, %v3219
      %v3221 = vpop.f32.mrb[0].mxu0
      %3222 = vdwg.mxu0
      %3239 = vrot.lane.b32.xlu0 %v3130, 96
      %v3240 = vpop.permute.xlu0 %3239
      %3241 = vrot.lane.b32.xlu0 %v3136, 96
      %v3242 = vpop.permute.xlu0 %3241
      %3243 = vrot.lane.b32.xlu0 %v3142, 96
      %v3244 = vpop.permute.xlu0 %3243
      %3245 = vrot.lane.b32.xlu0 %v3148, 96
      %v3246 = vpop.permute.xlu0 %3245
      %3247 = vrot.lane.b32.xlu0 %v3154, 96
      %v3248 = vpop.permute.xlu0 %3247
      %3249 = vrot.lane.b32.xlu0 %v3160, 96
      %v3250 = vpop.permute.xlu0 %3249
      %3251 = vrot.lane.b32.xlu0 %v3166, 96
      %v3252 = vpop.permute.xlu0 %3251
      %3253 = vrot.lane.b32.xlu0 %v3172, 96
      %v3254 = vpop.permute.xlu0 %3253
      %3255 = vrot.lane.b32.xlu0 %v3178, 96
      %v3256 = vpop.permute.xlu0 %3255
      %3257 = vrot.lane.b32.xlu0 %v3184, 96
      %v3258 = vpop.permute.xlu0 %3257
      %3259 = vrot.lane.b32.xlu0 %v3190, 96
      %v3260 = vpop.permute.xlu0 %3259
      %3261 = vrot.lane.b32.xlu0 %v3196, 96
      %v3262 = vpop.permute.xlu0 %3261
      %3263 = vrot.lane.b32.xlu0 %v3202, 96
      %v3264 = vpop.permute.xlu0 %3263
      %3265 = vrot.lane.b32.xlu0 %v3208, 96
      %v3266 = vpop.permute.xlu0 %3265
      %3267 = vrot.lane.b32.xlu0 %v3214, 96
      %v3268 = vpop.permute.xlu0 %3267
      %3269 = vrot.lane.b32.xlu0 %v3220, 96
      %v3270 = vpop.permute.xlu0 %3269
      %v3287 = vmul.f32 %v3130, %v3240
      %v3288 = vmul.f32 %v3136, %v3242
      %v3289 = vmul.f32 %v3142, %v3244
      %v3290 = vmul.f32 %v3148, %v3246
      %v3291 = vmul.f32 %v3154, %v3248
      %v3292 = vmul.f32 %v3160, %v3250
      %v3293 = vmul.f32 %v3166, %v3252
      %v3294 = vmul.f32 %v3172, %v3254
      %v3295 = vmul.f32 %v3178, %v3256
      %v3296 = vmul.f32 %v3184, %v3258
      %v3297 = vmul.f32 %v3190, %v3260
      %v3298 = vmul.f32 %v3196, %v3262
      %v3299 = vmul.f32 %v3202, %v3264
      %v3300 = vmul.f32 %v3208, %v3266
      %v3301 = vmul.f32 %v3214, %v3268
      %v3302 = vmul.f32 %v3220, %v3270
      %v3303 = vld [vmem:[%s526] sm:$0xff]
      %v3304 = vld [vmem:[%s526 + $0x8] sm:$0xff]
      %v3305 = vld [vmem:[%s526 + $0x10] sm:$0xff]
      %v3306 = vld [vmem:[%s526 + $0x18] sm:$0xff]
      %v3307 = vld [vmem:[%s526 + $0x20] sm:$0xff]
      %v3308 = vld [vmem:[%s526 + $0x28] sm:$0xff]
      %v3309 = vld [vmem:[%s526 + $0x30] sm:$0xff]
      %v3310 = vld [vmem:[%s526 + $0x38] sm:$0xff]
      %v3311 = vld [vmem:[%s526 + $0x40] sm:$0xff]
      %v3312 = vld [vmem:[%s526 + $0x48] sm:$0xff]
      %v3313 = vld [vmem:[%s526 + $0x50] sm:$0xff]
      %v3314 = vld [vmem:[%s526 + $0x58] sm:$0xff]
      %v3315 = vld [vmem:[%s526 + $0x60] sm:$0xff]
      %v3316 = vld [vmem:[%s526 + $0x68] sm:$0xff]
      %v3317 = vld [vmem:[%s526 + $0x70] sm:$0xff]
      %v3318 = vld [vmem:[%s526 + $0x78] sm:$0xff]
      %3335 = vrot.lane.b32.xlu0 %v3287, 32
      %v3336 = vpop.permute.xlu0 %3335
      %3337 = vrot.lane.b32.xlu0 %v3288, 32
      %v3338 = vpop.permute.xlu0 %3337
      %3339 = vrot.lane.b32.xlu0 %v3289, 32
      %v3340 = vpop.permute.xlu0 %3339
      %3341 = vrot.lane.b32.xlu0 %v3290, 32
      %v3342 = vpop.permute.xlu0 %3341
      %3343 = vrot.lane.b32.xlu0 %v3291, 32
      %v3344 = vpop.permute.xlu0 %3343
      %3345 = vrot.lane.b32.xlu0 %v3292, 32
      %v3346 = vpop.permute.xlu0 %3345
      %3347 = vrot.lane.b32.xlu0 %v3293, 32
      %v3348 = vpop.permute.xlu0 %3347
      %3349 = vrot.lane.b32.xlu0 %v3294, 32
      %v3350 = vpop.permute.xlu0 %3349
      %3351 = vrot.lane.b32.xlu0 %v3295, 32
      %v3352 = vpop.permute.xlu0 %3351
      %3353 = vrot.lane.b32.xlu0 %v3296, 32
      %v3354 = vpop.permute.xlu0 %3353
      %3355 = vrot.lane.b32.xlu0 %v3297, 32
      %v3356 = vpop.permute.xlu0 %3355
      %3357 = vrot.lane.b32.xlu0 %v3298, 32
      %v3358 = vpop.permute.xlu0 %3357
      %3359 = vrot.lane.b32.xlu0 %v3299, 32
      %v3360 = vpop.permute.xlu0 %3359
      %3361 = vrot.lane.b32.xlu0 %v3300, 32
      %v3362 = vpop.permute.xlu0 %3361
      %3363 = vrot.lane.b32.xlu0 %v3301, 32
      %v3364 = vpop.permute.xlu0 %3363
      %3365 = vrot.lane.b32.xlu0 %v3302, 32
      %v3366 = vpop.permute.xlu0 %3365
      %v3383 = vsel %vm2044, %v3303, %v3336
      %v3384 = vsel %vm2044, %v3304, %v3338
      %v3385 = vsel %vm2044, %v3305, %v3340
      %v3386 = vsel %vm2044, %v3306, %v3342
      %v3387 = vsel %vm2044, %v3307, %v3344
      %v3388 = vsel %vm2044, %v3308, %v3346
      %v3389 = vsel %vm2044, %v3309, %v3348
      %v3390 = vsel %vm2044, %v3310, %v3350
      %v3391 = vsel %vm2044, %v3311, %v3352
      %v3392 = vsel %vm2044, %v3312, %v3354
      %v3393 = vsel %vm2044, %v3313, %v3356
      %v3394 = vsel %vm2044, %v3314, %v3358
      %v3395 = vsel %vm2044, %v3315, %v3360
      %v3396 = vsel %vm2044, %v3316, %v3362
      %v3397 = vsel %vm2044, %v3317, %v3364
      %v3398 = vsel %vm2044, %v3318, %v3366
      %v3399 = vld [vmem:[%s8] sm:$0xff]
      %v3400 = vld [vmem:[%s8 + $0x8] sm:$0xff]
      %v3401 = vld [vmem:[%s8 + $0x10] sm:$0xff]
      %v3402 = vld [vmem:[%s8 + $0x18] sm:$0xff]
      %v3403 = vld [vmem:[%s8 + $0x20] sm:$0xff]
      %v3404 = vld [vmem:[%s8 + $0x28] sm:$0xff]
      %v3405 = vld [vmem:[%s8 + $0x30] sm:$0xff]
      %v3406 = vld [vmem:[%s8 + $0x38] sm:$0xff]
      %vm3407 = vcmask 523264
      %v3409 = vsel %vm3407, %v3383, 0
      %v3412 = vsel %vm3407, %v3384, 0
      %v3415 = vsel %vm3407, %v3385, 0
      %v3418 = vsel %vm3407, %v3386, 0
      %v3421 = vsel %vm3407, %v3387, 0
      %v3424 = vsel %vm3407, %v3388, 0
      %v3427 = vsel %vm3407, %v3389, 0
      %v3430 = vsel %vm3407, %v3390, 0
      %v3433 = vsel %vm3407, %v3391, 0
      %v3436 = vsel %vm3407, %v3392, 0
      %v3439 = vsel %vm3407, %v3393, 0
      %v3442 = vsel %vm3407, %v3394, 0
      %v3445 = vsel %vm3407, %v3395, 0
      %v3448 = vsel %vm3407, %v3396, 0
      %v3451 = vsel %vm3407, %v3397, 0
      %v3454 = vsel %vm3407, %v3398, 0
      %3456 = vmatprep.subr.mxu0 0.0
      %v3457 = vand.u32 %v3399, 4294901760
      %3458 = vmatpush1.msra.mxu0 %v3457
      %3459 = vmatprep.subr.mxu0 0.0
      %v3460 = vand.u32 %v3400, 4294901760
      %3461 = vmatpush1.msra.mxu0 %v3460
      %3462 = vmatprep.subr.mxu0 0.0
      %v3463 = vand.u32 %v3401, 4294901760
      %3464 = vmatpush1.msra.mxu0 %v3463
      %3465 = vmatprep.subr.mxu0 0.0
      %v3466 = vand.u32 %v3402, 4294901760
      %3467 = vmatpush1.msra.mxu0 %v3466
      %3468 = vmatprep.subr.mxu0 0.0
      %v3469 = vand.u32 %v3403, 4294901760
      %3470 = vmatpush1.msra.mxu0 %v3469
      %3471 = vmatprep.subr.mxu0 0.0
      %v3472 = vand.u32 %v3404, 4294901760
      %3473 = vmatpush1.msra.mxu0 %v3472
      %3474 = vmatprep.subr.mxu0 0.0
      %v3475 = vand.u32 %v3405, 4294901760
      %3476 = vmatpush1.msra.mxu0 %v3475
      %3477 = vmatprep.subr.mxu0 0.0
      %v3478 = vand.u32 %v3406, 4294901760
      %3479 = vmatpush1.msra.mxu0 %v3478
      %3480 = vmatprep.subr.mxu0 0.0
      %3481 = vmatpush1.msra.mxu0 0.0
      %3482 = vmatprep.subr.mxu0 0.0
      %3483 = vmatpush1.msra.mxu0 0.0
      %3484 = vmatprep.subr.mxu0 0.0
      %3485 = vmatpush1.msra.mxu0 0.0
      %3486 = vmatprep.subr.mxu0 0.0
      %3487 = vmatpush1.msra.mxu0 0.0
      %3488 = vmatprep.subr.mxu0 0.0
      %3489 = vmatpush1.msra.mxu0 0.0
      %3490 = vmatprep.subr.mxu0 0.0
      %3491 = vmatpush1.msra.mxu0 0.0
      %3492 = vmatprep.subr.mxu0 0.0
      %3493 = vmatpush1.msra.mxu0 0.0
      %3494 = vmatprep.subr.mxu0 0.0
      %3495 = vmatpush1.msra.mxu0 0.0
      %3496 = vmatprep.subr.mxu0 0.0
      %3497 = vmatpush1.msra.mxu0 0.0
      %3498 = vmatprep.subr.mxu0 0.0
      %3499 = vmatpush1.msra.mxu0 0.0
      %3500 = vmatprep.subr.mxu0 0.0
      %3501 = vmatpush1.msra.mxu0 0.0
      %3502 = vmatprep.subr.mxu0 0.0
      %3503 = vmatpush1.msra.mxu0 0.0
      %3504 = vmatprep.subr.mxu0 0.0
      %3505 = vmatpush1.msra.mxu0 0.0
      %3506 = vmatprep.subr.mxu0 0.0
      %3507 = vmatpush1.msra.mxu0 0.0
      %3508 = vmatprep.subr.mxu0 0.0
      %3509 = vmatpush1.msra.mxu0 0.0
      %3510 = vmatprep.subr.mxu0 0.0
      %3511 = vmatpush1.msra.mxu0 0.0
      %3512 = vmatprep.subr.mxu0 0.0
      %3513 = vmatpush1.msra.mxu0 0.0
      %3514 = vmatprep.subr.mxu0 0.0
      %3515 = vmatpush1.msra.mxu0 0.0
      %3516 = vmatprep.subr.mxu0 0.0
      %3517 = vmatpush1.msra.mxu0 0.0
      %3518 = vmatprep.subr.mxu0 0.0
      %3519 = vmatpush1.msra.mxu0 0.0
      %3520 = vmatprep.subr.mxu0 0.0
      %3521 = vmatpush1.msra.mxu0 0.0
      %3522 = vmatprep.subr.mxu0 0.0
      %3523 = vmatpush1.msra.mxu0 0.0
      %3524 = vmatprep.subr.mxu0 0.0
      %3525 = vmatpush1.msra.mxu0 0.0
      %3526 = vmatprep.subr.mxu0 0.0
      %3527 = vmatpush1.msra.mxu0 0.0
      %3528 = vmatprep.mubr.f32.mxu0 0.0
      %v3529 = vand.u32 %v3409, 4294901760
      %v3530 = vsub.f32 %v3409, %v3529
      %v3531 = vand.u32 %v3530, 4294901760
      %v3532 = vsub.f32 %v3530, %v3531
      %v3533 = vand.u32 %v3532, 4294901760
      %3534 = vmatmul.mubr.f32.gmra.mrb[0].mxu0 %v3533
      %v3535 = vpop.f32.mrb[0].mxu0
      %v3536 = vadd.f32 0.0, %v3535
      %v3537 = vpop.f32.mrb[0].mxu0
      %3538 = vmatprep.mubr.f32.mxu0 0.0
      %v3539 = vand.u32 %v3412, 4294901760
      %v3540 = vsub.f32 %v3412, %v3539
      %v3541 = vand.u32 %v3540, 4294901760
      %v3542 = vsub.f32 %v3540, %v3541
      %v3543 = vand.u32 %v3542, 4294901760
      %3544 = vmatmul.mubr.f32.gmra.mrb[0].mxu0 %v3543
      %v3545 = vpop.f32.mrb[0].mxu0
      %v3546 = vadd.f32 0.0, %v3545
      %v3547 = vpop.f32.mrb[0].mxu0
      %3548 = vmatprep.mubr.f32.mxu0 0.0
      %v3549 = vand.u32 %v3415, 4294901760
      %v3550 = vsub.f32 %v3415, %v3549
      %v3551 = vand.u32 %v3550, 4294901760
      %v3552 = vsub.f32 %v3550, %v3551
      %v3553 = vand.u32 %v3552, 4294901760
      %3554 = vmatmul.mubr.f32.gmra.mrb[0].mxu0 %v3553
      %v3555 = vpop.f32.mrb[0].mxu0
      %v3556 = vadd.f32 0.0, %v3555
      %v3557 = vpop.f32.mrb[0].mxu0
      %3558 = vmatprep.mubr.f32.mxu0 0.0
      %v3559 = vand.u32 %v3418, 4294901760
      %v3560 = vsub.f32 %v3418, %v3559
      %v3561 = vand.u32 %v3560, 4294901760
      %v3562 = vsub.f32 %v3560, %v3561
      %v3563 = vand.u32 %v3562, 4294901760
      %3564 = vmatmul.mubr.f32.gmra.mrb[0].mxu0 %v3563
      %v3565 = vpop.f32.mrb[0].mxu0
      %v3566 = vadd.f32 0.0, %v3565
      %v3567 = vpop.f32.mrb[0].mxu0
      %3568 = vmatprep.mubr.f32.mxu0 0.0
      %v3569 = vand.u32 %v3421, 4294901760
      %v3570 = vsub.f32 %v3421, %v3569
      %v3571 = vand.u32 %v3570, 4294901760
      %v3572 = vsub.f32 %v3570, %v3571
      %v3573 = vand.u32 %v3572, 4294901760
      %3574 = vmatmul.mubr.f32.gmra.mrb[0].mxu0 %v3573
      %v3575 = vpop.f32.mrb[0].mxu0
      %v3576 = vadd.f32 0.0, %v3575
      %v3577 = vpop.f32.mrb[0].mxu0
      %3578 = vmatprep.mubr.f32.mxu0 0.0
      %v3579 = vand.u32 %v3424, 4294901760
      %v3580 = vsub.f32 %v3424, %v3579
      %v3581 = vand.u32 %v3580, 4294901760
      %v3582 = vsub.f32 %v3580, %v3581
      %v3583 = vand.u32 %v3582, 4294901760
      %3584 = vmatmul.mubr.f32.gmra.mrb[0].mxu0 %v3583
      %v3585 = vpop.f32.mrb[0].mxu0
      %v3586 = vadd.f32 0.0, %v3585
      %v3587 = vpop.f32.mrb[0].mxu0
      %3588 = vmatprep.mubr.f32.mxu0 0.0
      %v3589 = vand.u32 %v3427, 4294901760
      %v3590 = vsub.f32 %v3427, %v3589
      %v3591 = vand.u32 %v3590, 4294901760
      %v3592 = vsub.f32 %v3590, %v3591
      %v3593 = vand.u32 %v3592, 4294901760
      %3594 = vmatmul.mubr.f32.gmra.mrb[0].mxu0 %v3593
      %v3595 = vpop.f32.mrb[0].mxu0
      %v3596 = vadd.f32 0.0, %v3595
      %v3597 = vpop.f32.mrb[0].mxu0
      %3598 = vmatprep.mubr.f32.mxu0 0.0
      %v3599 = vand.u32 %v3430, 4294901760
      %v3600 = vsub.f32 %v3430, %v3599
      %v3601 = vand.u32 %v3600, 4294901760
      %v3602 = vsub.f32 %v3600, %v3601
      %v3603 = vand.u32 %v3602, 4294901760
      %3604 = vmatmul.mubr.f32.gmra.mrb[0].mxu0 %v3603
      %v3605 = vpop.f32.mrb[0].mxu0
      %v3606 = vadd.f32 0.0, %v3605
      %v3607 = vpop.f32.mrb[0].mxu0
      %3608 = vmatprep.mubr.f32.mxu0 0.0
      %v3609 = vand.u32 %v3433, 4294901760
      %v3610 = vsub.f32 %v3433, %v3609
      %v3611 = vand.u32 %v3610, 4294901760
      %v3612 = vsub.f32 %v3610, %v3611
      %v3613 = vand.u32 %v3612, 4294901760
      %3614 = vmatmul.mubr.f32.gmra.mrb[0].mxu0 %v3613
      %v3615 = vpop.f32.mrb[0].mxu0
      %v3616 = vadd.f32 0.0, %v3615
      %v3617 = vpop.f32.mrb[0].mxu0
      %3618 = vmatprep.mubr.f32.mxu0 0.0
      %v3619 = vand.u32 %v3436, 4294901760
      %v3620 = vsub.f32 %v3436, %v3619
      %v3621 = vand.u32 %v3620, 4294901760
      %v3622 = vsub.f32 %v3620, %v3621
      %v3623 = vand.u32 %v3622, 4294901760
      %3624 = vmatmul.mubr.f32.gmra.mrb[0].mxu0 %v3623
      %v3625 = vpop.f32.mrb[0].mxu0
      %v3626 = vadd.f32 0.0, %v3625
      %v3627 = vpop.f32.mrb[0].mxu0
      %3628 = vmatprep.mubr.f32.mxu0 0.0
      %v3629 = vand.u32 %v3439, 4294901760
      %v3630 = vsub.f32 %v3439, %v3629
      %v3631 = vand.u32 %v3630, 4294901760
      %v3632 = vsub.f32 %v3630, %v3631
      %v3633 = vand.u32 %v3632, 4294901760
      %3634 = vmatmul.mubr.f32.gmra.mrb[0].mxu0 %v3633
      %v3635 = vpop.f32.mrb[0].mxu0
      %v3636 = vadd.f32 0.0, %v3635
      %v3637 = vpop.f32.mrb[0].mxu0
      %3638 = vmatprep.mubr.f32.mxu0 0.0
      %v3639 = vand.u32 %v3442, 4294901760
      %v3640 = vsub.f32 %v3442, %v3639
      %v3641 = vand.u32 %v3640, 4294901760
      %v3642 = vsub.f32 %v3640, %v3641
      %v3643 = vand.u32 %v3642, 4294901760
      %3644 = vmatmul.mubr.f32.gmra.mrb[0].mxu0 %v3643
      %v3645 = vpop.f32.mrb[0].mxu0
      %v3646 = vadd.f32 0.0, %v3645
      %v3647 = vpop.f32.mrb[0].mxu0
      %3648 = vmatprep.mubr.f32.mxu0 0.0
      %v3649 = vand.u32 %v3445, 4294901760
      %v3650 = vsub.f32 %v3445, %v3649
      %v3651 = vand.u32 %v3650, 4294901760
      %v3652 = vsub.f32 %v3650, %v3651
      %v3653 = vand.u32 %v3652, 4294901760
      %3654 = vmatmul.mubr.f32.gmra.mrb[0].mxu0 %v3653
      %v3655 = vpop.f32.mrb[0].mxu0
      %v3656 = vadd.f32 0.0, %v3655
      %v3657 = vpop.f32.mrb[0].mxu0
      %3658 = vmatprep.mubr.f32.mxu0 0.0
      %v3659 = vand.u32 %v3448, 4294901760
      %v3660 = vsub.f32 %v3448, %v3659
      %v3661 = vand.u32 %v3660, 4294901760
      %v3662 = vsub.f32 %v3660, %v3661
      %v3663 = vand.u32 %v3662, 4294901760
      %3664 = vmatmul.mubr.f32.gmra.mrb[0].mxu0 %v3663
      %v3665 = vpop.f32.mrb[0].mxu0
      %v3666 = vadd.f32 0.0, %v3665
      %v3667 = vpop.f32.mrb[0].mxu0
      %3668 = vmatprep.mubr.f32.mxu0 0.0
      %v3669 = vand.u32 %v3451, 4294901760
      %v3670 = vsub.f32 %v3451, %v3669
      %v3671 = vand.u32 %v3670, 4294901760
      %v3672 = vsub.f32 %v3670, %v3671
      %v3673 = vand.u32 %v3672, 4294901760
      %3674 = vmatmul.mubr.f32.gmra.mrb[0].mxu0 %v3673
      %v3675 = vpop.f32.mrb[0].mxu0
      %v3676 = vadd.f32 0.0, %v3675
      %v3677 = vpop.f32.mrb[0].mxu0
      %3678 = vmatprep.mubr.f32.mxu0 0.0
      %v3679 = vand.u32 %v3454, 4294901760
      %v3680 = vsub.f32 %v3454, %v3679
      %v3681 = vand.u32 %v3680, 4294901760
      %v3682 = vsub.f32 %v3680, %v3681
      %v3683 = vand.u32 %v3682, 4294901760
      %3684 = vmatmul.mubr.f32.gmra.mrb[0].mxu0 %v3683
      %v3685 = vpop.f32.mrb[0].mxu0
      %v3686 = vadd.f32 0.0, %v3685
      %v3687 = vpop.f32.mrb[0].mxu0
      %3688 = vdwg.mxu0
      %3689 = vmatprep.subr.mxu0 0.0
      %v3690 = vand.u32 %v3399, 4294901760
      %v3691 = vsub.f32 %v3399, %v3690
      %v3692 = vand.u32 %v3691, 4294901760
      %v3693 = vsub.f32 %v3691, %v3692
      %v3694 = vand.u32 %v3693, 4294901760
      %3695 = vmatpush1.msra.mxu0 %v3694
      %3696 = vmatprep.subr.mxu0 0.0
      %v3697 = vand.u32 %v3400, 4294901760
      %v3698 = vsub.f32 %v3400, %v3697
      %v3699 = vand.u32 %v3698, 4294901760
      %v3700 = vsub.f32 %v3698, %v3699
      %v3701 = vand.u32 %v3700, 4294901760
      %3702 = vmatpush1.msra.mxu0 %v3701
      %3703 = vmatprep.subr.mxu0 0.0
      %v3704 = vand.u32 %v3401, 4294901760
      %v3705 = vsub.f32 %v3401, %v3704
      %v3706 = vand.u32 %v3705, 4294901760
      %v3707 = vsub.f32 %v3705, %v3706
      %v3708 = vand.u32 %v3707, 4294901760
      %3709 = vmatpush1.msra.mxu0 %v3708
      %3710 = vmatprep.subr.mxu0 0.0
      %v3711 = vand.u32 %v3402, 4294901760
      %v3712 = vsub.f32 %v3402, %v3711
      %v3713 = vand.u32 %v3712, 4294901760
      %v3714 = vsub.f32 %v3712, %v3713
      %v3715 = vand.u32 %v3714, 4294901760
      %3716 = vmatpush1.msra.mxu0 %v3715
      %3717 = vmatprep.subr.mxu0 0.0
      %v3718 = vand.u32 %v3403, 4294901760
      %v3719 = vsub.f32 %v3403, %v3718
      %v3720 = vand.u32 %v3719, 4294901760
      %v3721 = vsub.f32 %v3719, %v3720
      %v3722 = vand.u32 %v3721, 4294901760
      %3723 = vmatpush1.msra.mxu0 %v3722
      %3724 = vmatprep.subr.mxu0 0.0
      %v3725 = vand.u32 %v3404, 4294901760
      %v3726 = vsub.f32 %v3404, %v3725
      %v3727 = vand.u32 %v3726, 4294901760
      %v3728 = vsub.f32 %v3726, %v3727
      %v3729 = vand.u32 %v3728, 4294901760
      %3730 = vmatpush1.msra.mxu0 %v3729
      %3731 = vmatprep.subr.mxu0 0.0
      %v3732 = vand.u32 %v3405, 4294901760
      %v3733 = vsub.f32 %v3405, %v3732
      %v3734 = vand.u32 %v3733, 4294901760
      %v3735 = vsub.f32 %v3733, %v3734
      %v3736 = vand.u32 %v3735, 4294901760
      %3737 = vmatpush1.msra.mxu0 %v3736
      %3738 = vmatprep.subr.mxu0 0.0
      %v3739 = vand.u32 %v3406, 4294901760
      %v3740 = vsub.f32 %v3406, %v3739
      %v3741 = vand.u32 %v3740, 4294901760
      %v3742 = vsub.f32 %v3740, %v3741
      %v3743 = vand.u32 %v3742, 4294901760
      %3744 = vmatpush1.msra.mxu0 %v3743
      %3745 = vmatprep.subr.mxu0 0.0
      %3746 = vmatpush1.msra.mxu0 0.0
      %3747 = vmatprep.subr.mxu0 0.0
      %3748 = vmatpush1.msra.mxu0 0.0
      %3749 = vmatprep.subr.mxu0 0.0
      %3750 = vmatpush1.msra.mxu0 0.0
      %3751 = vmatprep.subr.mxu0 0.0
      %3752 = vmatpush1.msra.mxu0 0.0
      %3753 = vmatprep.subr.mxu0 0.0
      %3754 = vmatpush1.msra.mxu0 0.0
      %3755 = vmatprep.subr.mxu0 0.0
      %3756 = vmatpush1.msra.mxu0 0.0
      %3757 = vmatprep.subr.mxu0 0.0
      %3758 = vmatpush1.msra.mxu0 0.0
      %3759 = vmatprep.subr.mxu0 0.0
      %3760 = vmatpush1.msra.mxu0 0.0
      %3761 = vmatprep.subr.mxu0 0.0
      %3762 = vmatpush1.msra.mxu0 0.0
      %3763 = vmatprep.subr.mxu0 0.0
      %3764 = vmatpush1.msra.mxu0 0.0
      %3765 = vmatprep.subr.mxu0 0.0
      %3766 = vmatpush1.msra.mxu0 0.0
      %3767 = vmatprep.subr.mxu0 0.0
      %3768 = vmatpush1.msra.mxu0 0.0
      %3769 = vmatprep.subr.mxu0 0.0
      %3770 = vmatpush1.msra.mxu0 0.0
      %3771 = vmatprep.subr.mxu0 0.0
      %3772 = vmatpush1.msra.mxu0 0.0
      %3773 = vmatprep.subr.mxu0 0.0
      %3774 = vmatpush1.msra.mxu0 0.0
      %3775 = vmatprep.subr.mxu0 0.0
      %3776 = vmatpush1.msra.mxu0 0.0
      %3777 = vmatprep.subr.mxu0 0.0
      %3778 = vmatpush1.msra.mxu0 0.0
      %3779 = vmatprep.subr.mxu0 0.0
      %3780 = vmatpush1.msra.mxu0 0.0
      %3781 = vmatprep.subr.mxu0 0.0
      %3782 = vmatpush1.msra.mxu0 0.0
      %3783 = vmatprep.subr.mxu0 0.0
      %3784 = vmatpush1.msra.mxu0 0.0
      %3785 = vmatprep.subr.mxu0 0.0
      %3786 = vmatpush1.msra.mxu0 0.0
      %3787 = vmatprep.subr.mxu0 0.0
      %3788 = vmatpush1.msra.mxu0 0.0
      %3789 = vmatprep.subr.mxu0 0.0
      %3790 = vmatpush1.msra.mxu0 0.0
      %3791 = vmatprep.subr.mxu0 0.0
      %3792 = vmatpush1.msra.mxu0 0.0
      %3793 = vmatprep.mubr.f32.mxu0 0.0
      %v3794 = vand.u32 %v3409, 4294901760
      %3795 = vmatmul.mubr.f32.gmra.mrb[0].mxu0 %v3794
      %v3796 = vpop.f32.mrb[0].mxu0
      %v3797 = vadd.f32 %v3536, %v3796
      %v3798 = vpop.f32.mrb[0].mxu0
      %3799 = vmatprep.mubr.f32.mxu0 0.0
      %v3800 = vand.u32 %v3412, 4294901760
      %3801 = vmatmul.mubr.f32.gmra.mrb[0].mxu0 %v3800
      %v3802 = vpop.f32.mrb[0].mxu0
      %v3803 = vadd.f32 %v3546, %v3802
      %v3804 = vpop.f32.mrb[0].mxu0
      %3805 = vmatprep.mubr.f32.mxu0 0.0
      %v3806 = vand.u32 %v3415, 4294901760
      %3807 = vmatmul.mubr.f32.gmra.mrb[0].mxu0 %v3806
      %v3808 = vpop.f32.mrb[0].mxu0
      %v3809 = vadd.f32 %v3556, %v3808
      %v3810 = vpop.f32.mrb[0].mxu0
      %3811 = vmatprep.mubr.f32.mxu0 0.0
      %v3812 = vand.u32 %v3418, 4294901760
      %3813 = vmatmul.mubr.f32.gmra.mrb[0].mxu0 %v3812
      %v3814 = vpop.f32.mrb[0].mxu0
      %v3815 = vadd.f32 %v3566, %v3814
      %v3816 = vpop.f32.mrb[0].mxu0
      %3817 = vmatprep.mubr.f32.mxu0 0.0
      %v3818 = vand.u32 %v3421, 4294901760
      %3819 = vmatmul.mubr.f32.gmra.mrb[0].mxu0 %v3818
      %v3820 = vpop.f32.mrb[0].mxu0
      %v3821 = vadd.f32 %v3576, %v3820
      %v3822 = vpop.f32.mrb[0].mxu0
      %3823 = vmatprep.mubr.f32.mxu0 0.0
      %v3824 = vand.u32 %v3424, 4294901760
      %3825 = vmatmul.mubr.f32.gmra.mrb[0].mxu0 %v3824
      %v3826 = vpop.f32.mrb[0].mxu0
      %v3827 = vadd.f32 %v3586, %v3826
      %v3828 = vpop.f32.mrb[0].mxu0
      %3829 = vmatprep.mubr.f32.mxu0 0.0
      %v3830 = vand.u32 %v3427, 4294901760
      %3831 = vmatmul.mubr.f32.gmra.mrb[0].mxu0 %v3830
      %v3832 = vpop.f32.mrb[0].mxu0
      %v3833 = vadd.f32 %v3596, %v3832
      %v3834 = vpop.f32.mrb[0].mxu0
      %3835 = vmatprep.mubr.f32.mxu0 0.0
      %v3836 = vand.u32 %v3430, 4294901760
      %3837 = vmatmul.mubr.f32.gmra.mrb[0].mxu0 %v3836
      %v3838 = vpop.f32.mrb[0].mxu0
      %v3839 = vadd.f32 %v3606, %v3838
      %v3840 = vpop.f32.mrb[0].mxu0
      %3841 = vmatprep.mubr.f32.mxu0 0.0
      %v3842 = vand.u32 %v3433, 4294901760
      %3843 = vmatmul.mubr.f32.gmra.mrb[0].mxu0 %v3842
      %v3844 = vpop.f32.mrb[0].mxu0
      %v3845 = vadd.f32 %v3616, %v3844
      %v3846 = vpop.f32.mrb[0].mxu0
      %3847 = vmatprep.mubr.f32.mxu0 0.0
      %v3848 = vand.u32 %v3436, 4294901760
      %3849 = vmatmul.mubr.f32.gmra.mrb[0].mxu0 %v3848
      %v3850 = vpop.f32.mrb[0].mxu0
      %v3851 = vadd.f32 %v3626, %v3850
      %v3852 = vpop.f32.mrb[0].mxu0
      %3853 = vmatprep.mubr.f32.mxu0 0.0
      %v3854 = vand.u32 %v3439, 4294901760
      %3855 = vmatmul.mubr.f32.gmra.mrb[0].mxu0 %v3854
      %v3856 = vpop.f32.mrb[0].mxu0
      %v3857 = vadd.f32 %v3636, %v3856
      %v3858 = vpop.f32.mrb[0].mxu0
      %3859 = vmatprep.mubr.f32.mxu0 0.0
      %v3860 = vand.u32 %v3442, 4294901760
      %3861 = vmatmul.mubr.f32.gmra.mrb[0].mxu0 %v3860
      %v3862 = vpop.f32.mrb[0].mxu0
      %v3863 = vadd.f32 %v3646, %v3862
      %v3864 = vpop.f32.mrb[0].mxu0
      %3865 = vmatprep.mubr.f32.mxu0 0.0
      %v3866 = vand.u32 %v3445, 4294901760
      %3867 = vmatmul.mubr.f32.gmra.mrb[0].mxu0 %v3866
      %v3868 = vpop.f32.mrb[0].mxu0
      %v3869 = vadd.f32 %v3656, %v3868
      %v3870 = vpop.f32.mrb[0].mxu0
      %3871 = vmatprep.mubr.f32.mxu0 0.0
      %v3872 = vand.u32 %v3448, 4294901760
      %3873 = vmatmul.mubr.f32.gmra.mrb[0].mxu0 %v3872
      %v3874 = vpop.f32.mrb[0].mxu0
      %v3875 = vadd.f32 %v3666, %v3874
      %v3876 = vpop.f32.mrb[0].mxu0
      %3877 = vmatprep.mubr.f32.mxu0 0.0
      %v3878 = vand.u32 %v3451, 4294901760
      %3879 = vmatmul.mubr.f32.gmra.mrb[0].mxu0 %v3878
      %v3880 = vpop.f32.mrb[0].mxu0
      %v3881 = vadd.f32 %v3676, %v3880
      %v3882 = vpop.f32.mrb[0].mxu0
      %3883 = vmatprep.mubr.f32.mxu0 0.0
      %v3884 = vand.u32 %v3454, 4294901760
      %3885 = vmatmul.mubr.f32.gmra.mrb[0].mxu0 %v3884
      %v3886 = vpop.f32.mrb[0].mxu0
      %v3887 = vadd.f32 %v3686, %v3886
      %v3888 = vpop.f32.mrb[0].mxu0
      %3889 = vdwg.mxu0
      %3890 = vmatprep.subr.mxu0 0.0
      %v3891 = vand.u32 %v3399, 4294901760
      %v3892 = vsub.f32 %v3399, %v3891
      %3893 = vmatpush1.msra.mxu0 %v3892
      %3894 = vmatprep.subr.mxu0 0.0
      %v3895 = vand.u32 %v3400, 4294901760
      %v3896 = vsub.f32 %v3400, %v3895
      %3897 = vmatpush1.msra.mxu0 %v3896
      %3898 = vmatprep.subr.mxu0 0.0
      %v3899 = vand.u32 %v3401, 4294901760
      %v3900 = vsub.f32 %v3401, %v3899
      %3901 = vmatpush1.msra.mxu0 %v3900
      %3902 = vmatprep.subr.mxu0 0.0
      %v3903 = vand.u32 %v3402, 4294901760
      %v3904 = vsub.f32 %v3402, %v3903
      %3905 = vmatpush1.msra.mxu0 %v3904
      %3906 = vmatprep.subr.mxu0 0.0
      %v3907 = vand.u32 %v3403, 4294901760
      %v3908 = vsub.f32 %v3403, %v3907
      %3909 = vmatpush1.msra.mxu0 %v3908
      %3910 = vmatprep.subr.mxu0 0.0
      %v3911 = vand.u32 %v3404, 4294901760
      %v3912 = vsub.f32 %v3404, %v3911
      %3913 = vmatpush1.msra.mxu0 %v3912
      %3914 = vmatprep.subr.mxu0 0.0
      %v3915 = vand.u32 %v3405, 4294901760
      %v3916 = vsub.f32 %v3405, %v3915
      %3917 = vmatpush1.msra.mxu0 %v3916
      %3918 = vmatprep.subr.mxu0 0.0
      %v3919 = vand.u32 %v3406, 4294901760
      %v3920 = vsub.f32 %v3406, %v3919
      %3921 = vmatpush1.msra.mxu0 %v3920
      %3922 = vmatprep.subr.mxu0 0.0
      %3923 = vmatpush1.msra.mxu0 0.0
      %3924 = vmatprep.subr.mxu0 0.0
      %3925 = vmatpush1.msra.mxu0 0.0
      %3926 = vmatprep.subr.mxu0 0.0
      %3927 = vmatpush1.msra.mxu0 0.0
      %3928 = vmatprep.subr.mxu0 0.0
      %3929 = vmatpush1.msra.mxu0 0.0
      %3930 = vmatprep.subr.mxu0 0.0
      %3931 = vmatpush1.msra.mxu0 0.0
      %3932 = vmatprep.subr.mxu0 0.0
      %3933 = vmatpush1.msra.mxu0 0.0
      %3934 = vmatprep.subr.mxu0 0.0
      %3935 = vmatpush1.msra.mxu0 0.0
      %3936 = vmatprep.subr.mxu0 0.0
      %3937 = vmatpush1.msra.mxu0 0.0
      %3938 = vmatprep.subr.mxu0 0.0
      %3939 = vmatpush1.msra.mxu0 0.0
      %3940 = vmatprep.subr.mxu0 0.0
      %3941 = vmatpush1.msra.mxu0 0.0
      %3942 = vmatprep.subr.mxu0 0.0
      %3943 = vmatpush1.msra.mxu0 0.0
      %3944 = vmatprep.subr.mxu0 0.0
      %3945 = vmatpush1.msra.mxu0 0.0
      %3946 = vmatprep.subr.mxu0 0.0
      %3947 = vmatpush1.msra.mxu0 0.0
      %3948 = vmatprep.subr.mxu0 0.0
      %3949 = vmatpush1.msra.mxu0 0.0
      %3950 = vmatprep.subr.mxu0 0.0
      %3951 = vmatpush1.msra.mxu0 0.0
      %3952 = vmatprep.subr.mxu0 0.0
      %3953 = vmatpush1.msra.mxu0 0.0
      %3954 = vmatprep.subr.mxu0 0.0
      %3955 = vmatpush1.msra.mxu0 0.0
      %3956 = vmatprep.subr.mxu0 0.0
      %3957 = vmatpush1.msra.mxu0 0.0
      %3958 = vmatprep.subr.mxu0 0.0
      %3959 = vmatpush1.msra.mxu0 0.0
      %3960 = vmatprep.subr.mxu0 0.0
      %3961 = vmatpush1.msra.mxu0 0.0
      %3962 = vmatprep.subr.mxu0 0.0
      %3963 = vmatpush1.msra.mxu0 0.0
      %3964 = vmatprep.subr.mxu0 0.0
      %3965 = vmatpush1.msra.mxu0 0.0
      %3966 = vmatprep.subr.mxu0 0.0
      %3967 = vmatpush1.msra.mxu0 0.0
      %3968 = vmatprep.subr.mxu0 0.0
      %3969 = vmatpush1.msra.mxu0 0.0
      %3970 = vmatprep.mubr.f32.mxu0 0.0
      %v3971 = vand.u32 %v3409, 4294901760
      %v3972 = vsub.f32 %v3409, %v3971
      %3973 = vmatmul.mubr.f32.gmra.mrb[0].mxu0 %v3972
      %v3974 = vpop.f32.mrb[0].mxu0
      %v3975 = vadd.f32 %v3797, %v3974
      %v3976 = vpop.f32.mrb[0].mxu0
      %3977 = vmatprep.mubr.f32.mxu0 0.0
      %v3978 = vand.u32 %v3412, 4294901760
      %v3979 = vsub.f32 %v3412, %v3978
      %3980 = vmatmul.mubr.f32.gmra.mrb[0].mxu0 %v3979
      %v3981 = vpop.f32.mrb[0].mxu0
      %v3982 = vadd.f32 %v3803, %v3981
      %v3983 = vpop.f32.mrb[0].mxu0
      %3984 = vmatprep.mubr.f32.mxu0 0.0
      %v3985 = vand.u32 %v3415, 4294901760
      %v3986 = vsub.f32 %v3415, %v3985
      %3987 = vmatmul.mubr.f32.gmra.mrb[0].mxu0 %v3986
      %v3988 = vpop.f32.mrb[0].mxu0
      %v3989 = vadd.f32 %v3809, %v3988
      %v3990 = vpop.f32.mrb[0].mxu0
      %3991 = vmatprep.mubr.f32.mxu0 0.0
      %v3992 = vand.u32 %v3418, 4294901760
      %v3993 = vsub.f32 %v3418, %v3992
      %3994 = vmatmul.mubr.f32.gmra.mrb[0].mxu0 %v3993
      %v3995 = vpop.f32.mrb[0].mxu0
      %v3996 = vadd.f32 %v3815, %v3995
      %v3997 = vpop.f32.mrb[0].mxu0
      %3998 = vmatprep.mubr.f32.mxu0 0.0
      %v3999 = vand.u32 %v3421, 4294901760
      %v4000 = vsub.f32 %v3421, %v3999
      %4001 = vmatmul.mubr.f32.gmra.mrb[0].mxu0 %v4000
      %v4002 = vpop.f32.mrb[0].mxu0
      %v4003 = vadd.f32 %v3821, %v4002
      %v4004 = vpop.f32.mrb[0].mxu0
      %4005 = vmatprep.mubr.f32.mxu0 0.0
      %v4006 = vand.u32 %v3424, 4294901760
      %v4007 = vsub.f32 %v3424, %v4006
      %4008 = vmatmul.mubr.f32.gmra.mrb[0].mxu0 %v4007
      %v4009 = vpop.f32.mrb[0].mxu0
      %v4010 = vadd.f32 %v3827, %v4009
      %v4011 = vpop.f32.mrb[0].mxu0
      %4012 = vmatprep.mubr.f32.mxu0 0.0
      %v4013 = vand.u32 %v3427, 4294901760
      %v4014 = vsub.f32 %v3427, %v4013
      %4015 = vmatmul.mubr.f32.gmra.mrb[0].mxu0 %v4014
      %v4016 = vpop.f32.mrb[0].mxu0
      %v4017 = vadd.f32 %v3833, %v4016
      %v4018 = vpop.f32.mrb[0].mxu0
      %4019 = vmatprep.mubr.f32.mxu0 0.0
      %v4020 = vand.u32 %v3430, 4294901760
      %v4021 = vsub.f32 %v3430, %v4020
      %4022 = vmatmul.mubr.f32.gmra.mrb[0].mxu0 %v4021
      %v4023 = vpop.f32.mrb[0].mxu0
      %v4024 = vadd.f32 %v3839, %v4023
      %v4025 = vpop.f32.mrb[0].mxu0
      %4026 = vmatprep.mubr.f32.mxu0 0.0
      %v4027 = vand.u32 %v3433, 4294901760
      %v4028 = vsub.f32 %v3433, %v4027
      %4029 = vmatmul.mubr.f32.gmra.mrb[0].mxu0 %v4028
      %v4030 = vpop.f32.mrb[0].mxu0
      %v4031 = vadd.f32 %v3845, %v4030
      %v4032 = vpop.f32.mrb[0].mxu0
      %4033 = vmatprep.mubr.f32.mxu0 0.0
      %v4034 = vand.u32 %v3436, 4294901760
      %v4035 = vsub.f32 %v3436, %v4034
      %4036 = vmatmul.mubr.f32.gmra.mrb[0].mxu0 %v4035
      %v4037 = vpop.f32.mrb[0].mxu0
      %v4038 = vadd.f32 %v3851, %v4037
      %v4039 = vpop.f32.mrb[0].mxu0
      %4040 = vmatprep.mubr.f32.mxu0 0.0
      %v4041 = vand.u32 %v3439, 4294901760
      %v4042 = vsub.f32 %v3439, %v4041
      %4043 = vmatmul.mubr.f32.gmra.mrb[0].mxu0 %v4042
      %v4044 = vpop.f32.mrb[0].mxu0
      %v4045 = vadd.f32 %v3857, %v4044
      %v4046 = vpop.f32.mrb[0].mxu0
      %4047 = vmatprep.mubr.f32.mxu0 0.0
      %v4048 = vand.u32 %v3442, 4294901760
      %v4049 = vsub.f32 %v3442, %v4048
      %4050 = vmatmul.mubr.f32.gmra.mrb[0].mxu0 %v4049
      %v4051 = vpop.f32.mrb[0].mxu0
      %v4052 = vadd.f32 %v3863, %v4051
      %v4053 = vpop.f32.mrb[0].mxu0
      %4054 = vmatprep.mubr.f32.mxu0 0.0
      %v4055 = vand.u32 %v3445, 4294901760
      %v4056 = vsub.f32 %v3445, %v4055
      %4057 = vmatmul.mubr.f32.gmra.mrb[0].mxu0 %v4056
      %v4058 = vpop.f32.mrb[0].mxu0
      %v4059 = vadd.f32 %v3869, %v4058
      %v4060 = vpop.f32.mrb[0].mxu0
      %4061 = vmatprep.mubr.f32.mxu0 0.0
      %v4062 = vand.u32 %v3448, 4294901760
      %v4063 = vsub.f32 %v3448, %v4062
      %4064 = vmatmul.mubr.f32.gmra.mrb[0].mxu0 %v4063
      %v4065 = vpop.f32.mrb[0].mxu0
      %v4066 = vadd.f32 %v3875, %v4065
      %v4067 = vpop.f32.mrb[0].mxu0
      %4068 = vmatprep.mubr.f32.mxu0 0.0
      %v4069 = vand.u32 %v3451, 4294901760
      %v4070 = vsub.f32 %v3451, %v4069
      %4071 = vmatmul.mubr.f32.gmra.mrb[0].mxu0 %v4070
      %v4072 = vpop.f32.mrb[0].mxu0
      %v4073 = vadd.f32 %v3881, %v4072
      %v4074 = vpop.f32.mrb[0].mxu0
      %4075 = vmatprep.mubr.f32.mxu0 0.0
      %v4076 = vand.u32 %v3454, 4294901760
      %v4077 = vsub.f32 %v3454, %v4076
      %4078 = vmatmul.mubr.f32.gmra.mrb[0].mxu0 %v4077
      %v4079 = vpop.f32.mrb[0].mxu0
      %v4080 = vadd.f32 %v3887, %v4079
      %v4081 = vpop.f32.mrb[0].mxu0
      %4082 = vdwg.mxu0
      %4083 = vmatprep.subr.mxu0 0.0
      %v4084 = vand.u32 %v3399, 4294901760
      %4085 = vmatpush1.msra.mxu0 %v4084
      %4086 = vmatprep.subr.mxu0 0.0
      %v4087 = vand.u32 %v3400, 4294901760
      %4088 = vmatpush1.msra.mxu0 %v4087
      %4089 = vmatprep.subr.mxu0 0.0
      %v4090 = vand.u32 %v3401, 4294901760
      %4091 = vmatpush1.msra.mxu0 %v4090
      %4092 = vmatprep.subr.mxu0 0.0
      %v4093 = vand.u32 %v3402, 4294901760
      %4094 = vmatpush1.msra.mxu0 %v4093
      %4095 = vmatprep.subr.mxu0 0.0
      %v4096 = vand.u32 %v3403, 4294901760
      %4097 = vmatpush1.msra.mxu0 %v4096
      %4098 = vmatprep.subr.mxu0 0.0
      %v4099 = vand.u32 %v3404, 4294901760
      %4100 = vmatpush1.msra.mxu0 %v4099
      %4101 = vmatprep.subr.mxu0 0.0
      %v4102 = vand.u32 %v3405, 4294901760
      %4103 = vmatpush1.msra.mxu0 %v4102
      %4104 = vmatprep.subr.mxu0 0.0
      %v4105 = vand.u32 %v3406, 4294901760
      %4106 = vmatpush1.msra.mxu0 %v4105
      %4107 = vmatprep.subr.mxu0 0.0
      %4108 = vmatpush1.msra.mxu0 0.0
      %4109 = vmatprep.subr.mxu0 0.0
      %4110 = vmatpush1.msra.mxu0 0.0
      %4111 = vmatprep.subr.mxu0 0.0
      %4112 = vmatpush1.msra.mxu0 0.0
      %4113 = vmatprep.subr.mxu0 0.0
      %4114 = vmatpush1.msra.mxu0 0.0
      %4115 = vmatprep.subr.mxu0 0.0
      %4116 = vmatpush1.msra.mxu0 0.0
      %4117 = vmatprep.subr.mxu0 0.0
      %4118 = vmatpush1.msra.mxu0 0.0
      %4119 = vmatprep.subr.mxu0 0.0
      %4120 = vmatpush1.msra.mxu0 0.0
      %4121 = vmatprep.subr.mxu0 0.0
      %4122 = vmatpush1.msra.mxu0 0.0
      %4123 = vmatprep.subr.mxu0 0.0
      %4124 = vmatpush1.msra.mxu0 0.0
      %4125 = vmatprep.subr.mxu0 0.0
      %4126 = vmatpush1.msra.mxu0 0.0
      %4127 = vmatprep.subr.mxu0 0.0
      %4128 = vmatpush1.msra.mxu0 0.0
      %4129 = vmatprep.subr.mxu0 0.0
      %4130 = vmatpush1.msra.mxu0 0.0
      %4131 = vmatprep.subr.mxu0 0.0
      %4132 = vmatpush1.msra.mxu0 0.0
      %4133 = vmatprep.subr.mxu0 0.0
      %4134 = vmatpush1.msra.mxu0 0.0
      %4135 = vmatprep.subr.mxu0 0.0
      %4136 = vmatpush1.msra.mxu0 0.0
      %4137 = vmatprep.subr.mxu0 0.0
      %4138 = vmatpush1.msra.mxu0 0.0
      %4139 = vmatprep.subr.mxu0 0.0
      %4140 = vmatpush1.msra.mxu0 0.0
      %4141 = vmatprep.subr.mxu0 0.0
      %4142 = vmatpush1.msra.mxu0 0.0
      %4143 = vmatprep.subr.mxu0 0.0
      %4144 = vmatpush1.msra.mxu0 0.0
      %4145 = vmatprep.subr.mxu0 0.0
      %4146 = vmatpush1.msra.mxu0 0.0
      %4147 = vmatprep.subr.mxu0 0.0
      %4148 = vmatpush1.msra.mxu0 0.0
      %4149 = vmatprep.subr.mxu0 0.0
      %4150 = vmatpush1.msra.mxu0 0.0
      %4151 = vmatprep.subr.mxu0 0.0
      %4152 = vmatpush1.msra.mxu0 0.0
      %4153 = vmatprep.subr.mxu0 0.0
      %4154 = vmatpush1.msra.mxu0 0.0
      %4155 = vmatprep.mubr.f32.mxu0 0.0
      %v4156 = vand.u32 %v3409, 4294901760
      %v4157 = vsub.f32 %v3409, %v4156
      %v4158 = vand.u32 %v4157, 4294901760
      %4159 = vmatmul.mubr.f32.gmra.mrb[0].mxu0 %v4158
      %v4160 = vpop.f32.mrb[0].mxu0
      %v4161 = vadd.f32 %v3975, %v4160
      %v4162 = vpop.f32.mrb[0].mxu0
      %4163 = vmatprep.mubr.f32.mxu0 0.0
      %v4164 = vand.u32 %v3412, 4294901760
      %v4165 = vsub.f32 %v3412, %v4164
      %v4166 = vand.u32 %v4165, 4294901760
      %4167 = vmatmul.mubr.f32.gmra.mrb[0].mxu0 %v4166
      %v4168 = vpop.f32.mrb[0].mxu0
      %v4169 = vadd.f32 %v3982, %v4168
      %v4170 = vpop.f32.mrb[0].mxu0
      %4171 = vmatprep.mubr.f32.mxu0 0.0
      %v4172 = vand.u32 %v3415, 4294901760
      %v4173 = vsub.f32 %v3415, %v4172
      %v4174 = vand.u32 %v4173, 4294901760
      %4175 = vmatmul.mubr.f32.gmra.mrb[0].mxu0 %v4174
      %v4176 = vpop.f32.mrb[0].mxu0
      %v4177 = vadd.f32 %v3989, %v4176
      %v4178 = vpop.f32.mrb[0].mxu0
      %4179 = vmatprep.mubr.f32.mxu0 0.0
      %v4180 = vand.u32 %v3418, 4294901760
      %v4181 = vsub.f32 %v3418, %v4180
      %v4182 = vand.u32 %v4181, 4294901760
      %4183 = vmatmul.mubr.f32.gmra.mrb[0].mxu0 %v4182
      %v4184 = vpop.f32.mrb[0].mxu0
      %v4185 = vadd.f32 %v3996, %v4184
      %v4186 = vpop.f32.mrb[0].mxu0
      %4187 = vmatprep.mubr.f32.mxu0 0.0
      %v4188 = vand.u32 %v3421, 4294901760
      %v4189 = vsub.f32 %v3421, %v4188
      %v4190 = vand.u32 %v4189, 4294901760
      %4191 = vmatmul.mubr.f32.gmra.mrb[0].mxu0 %v4190
      %v4192 = vpop.f32.mrb[0].mxu0
      %v4193 = vadd.f32 %v4003, %v4192
      %v4194 = vpop.f32.mrb[0].mxu0
      %4195 = vmatprep.mubr.f32.mxu0 0.0
      %v4196 = vand.u32 %v3424, 4294901760
      %v4197 = vsub.f32 %v3424, %v4196
      %v4198 = vand.u32 %v4197, 4294901760
      %4199 = vmatmul.mubr.f32.gmra.mrb[0].mxu0 %v4198
      %v4200 = vpop.f32.mrb[0].mxu0
      %v4201 = vadd.f32 %v4010, %v4200
      %v4202 = vpop.f32.mrb[0].mxu0
      %4203 = vmatprep.mubr.f32.mxu0 0.0
      %v4204 = vand.u32 %v3427, 4294901760
      %v4205 = vsub.f32 %v3427, %v4204
      %v4206 = vand.u32 %v4205, 4294901760
      %4207 = vmatmul.mubr.f32.gmra.mrb[0].mxu0 %v4206
      %v4208 = vpop.f32.mrb[0].mxu0
      %v4209 = vadd.f32 %v4017, %v4208
      %v4210 = vpop.f32.mrb[0].mxu0
      %4211 = vmatprep.mubr.f32.mxu0 0.0
      %v4212 = vand.u32 %v3430, 4294901760
      %v4213 = vsub.f32 %v3430, %v4212
      %v4214 = vand.u32 %v4213, 4294901760
      %4215 = vmatmul.mubr.f32.gmra.mrb[0].mxu0 %v4214
      %v4216 = vpop.f32.mrb[0].mxu0
      %v4217 = vadd.f32 %v4024, %v4216
      %v4218 = vpop.f32.mrb[0].mxu0
      %4219 = vmatprep.mubr.f32.mxu0 0.0
      %v4220 = vand.u32 %v3433, 4294901760
      %v4221 = vsub.f32 %v3433, %v4220
      %v4222 = vand.u32 %v4221, 4294901760
      %4223 = vmatmul.mubr.f32.gmra.mrb[0].mxu0 %v4222
      %v4224 = vpop.f32.mrb[0].mxu0
      %v4225 = vadd.f32 %v4031, %v4224
      %v4226 = vpop.f32.mrb[0].mxu0
      %4227 = vmatprep.mubr.f32.mxu0 0.0
      %v4228 = vand.u32 %v3436, 4294901760
      %v4229 = vsub.f32 %v3436, %v4228
      %v4230 = vand.u32 %v4229, 4294901760
      %4231 = vmatmul.mubr.f32.gmra.mrb[0].mxu0 %v4230
      %v4232 = vpop.f32.mrb[0].mxu0
      %v4233 = vadd.f32 %v4038, %v4232
      %v4234 = vpop.f32.mrb[0].mxu0
      %4235 = vmatprep.mubr.f32.mxu0 0.0
      %v4236 = vand.u32 %v3439, 4294901760
      %v4237 = vsub.f32 %v3439, %v4236
      %v4238 = vand.u32 %v4237, 4294901760
      %4239 = vmatmul.mubr.f32.gmra.mrb[0].mxu0 %v4238
      %v4240 = vpop.f32.mrb[0].mxu0
      %v4241 = vadd.f32 %v4045, %v4240
      %v4242 = vpop.f32.mrb[0].mxu0
      %4243 = vmatprep.mubr.f32.mxu0 0.0
      %v4244 = vand.u32 %v3442, 4294901760
      %v4245 = vsub.f32 %v3442, %v4244
      %v4246 = vand.u32 %v4245, 4294901760
      %4247 = vmatmul.mubr.f32.gmra.mrb[0].mxu0 %v4246
      %v4248 = vpop.f32.mrb[0].mxu0
      %v4249 = vadd.f32 %v4052, %v4248
      %v4250 = vpop.f32.mrb[0].mxu0
      %4251 = vmatprep.mubr.f32.mxu0 0.0
      %v4252 = vand.u32 %v3445, 4294901760
      %v4253 = vsub.f32 %v3445, %v4252
      %v4254 = vand.u32 %v4253, 4294901760
      %4255 = vmatmul.mubr.f32.gmra.mrb[0].mxu0 %v4254
      %v4256 = vpop.f32.mrb[0].mxu0
      %v4257 = vadd.f32 %v4059, %v4256
      %v4258 = vpop.f32.mrb[0].mxu0
      %4259 = vmatprep.mubr.f32.mxu0 0.0
      %v4260 = vand.u32 %v3448, 4294901760
      %v4261 = vsub.f32 %v3448, %v4260
      %v4262 = vand.u32 %v4261, 4294901760
      %4263 = vmatmul.mubr.f32.gmra.mrb[0].mxu0 %v4262
      %v4264 = vpop.f32.mrb[0].mxu0
      %v4265 = vadd.f32 %v4066, %v4264
      %v4266 = vpop.f32.mrb[0].mxu0
      %4267 = vmatprep.mubr.f32.mxu0 0.0
      %v4268 = vand.u32 %v3451, 4294901760
      %v4269 = vsub.f32 %v3451, %v4268
      %v4270 = vand.u32 %v4269, 4294901760
      %4271 = vmatmul.mubr.f32.gmra.mrb[0].mxu0 %v4270
      %v4272 = vpop.f32.mrb[0].mxu0
      %v4273 = vadd.f32 %v4073, %v4272
      %v4274 = vpop.f32.mrb[0].mxu0
      %4275 = vmatprep.mubr.f32.mxu0 0.0
      %v4276 = vand.u32 %v3454, 4294901760
      %v4277 = vsub.f32 %v3454, %v4276
      %v4278 = vand.u32 %v4277, 4294901760
      %4279 = vmatmul.mubr.f32.gmra.mrb[0].mxu0 %v4278
      %v4280 = vpop.f32.mrb[0].mxu0
      %v4281 = vadd.f32 %v4080, %v4280
      %v4282 = vpop.f32.mrb[0].mxu0
      %4283 = vdwg.mxu0
      %4284 = vmatprep.subr.mxu0 0.0
      %v4285 = vand.u32 %v3399, 4294901760
      %v4286 = vsub.f32 %v3399, %v4285
      %v4287 = vand.u32 %v4286, 4294901760
      %4288 = vmatpush1.msra.mxu0 %v4287
      %4289 = vmatprep.subr.mxu0 0.0
      %v4290 = vand.u32 %v3400, 4294901760
      %v4291 = vsub.f32 %v3400, %v4290
      %v4292 = vand.u32 %v4291, 4294901760
      %4293 = vmatpush1.msra.mxu0 %v4292
      %4294 = vmatprep.subr.mxu0 0.0
      %v4295 = vand.u32 %v3401, 4294901760
      %v4296 = vsub.f32 %v3401, %v4295
      %v4297 = vand.u32 %v4296, 4294901760
      %4298 = vmatpush1.msra.mxu0 %v4297
      %4299 = vmatprep.subr.mxu0 0.0
      %v4300 = vand.u32 %v3402, 4294901760
      %v4301 = vsub.f32 %v3402, %v4300
      %v4302 = vand.u32 %v4301, 4294901760
      %4303 = vmatpush1.msra.mxu0 %v4302
      %4304 = vmatprep.subr.mxu0 0.0
      %v4305 = vand.u32 %v3403, 4294901760
      %v4306 = vsub.f32 %v3403, %v4305
      %v4307 = vand.u32 %v4306, 4294901760
      %4308 = vmatpush1.msra.mxu0 %v4307
      %4309 = vmatprep.subr.mxu0 0.0
      %v4310 = vand.u32 %v3404, 4294901760
      %v4311 = vsub.f32 %v3404, %v4310
      %v4312 = vand.u32 %v4311, 4294901760
      %4313 = vmatpush1.msra.mxu0 %v4312
      %4314 = vmatprep.subr.mxu0 0.0
      %v4315 = vand.u32 %v3405, 4294901760
      %v4316 = vsub.f32 %v3405, %v4315
      %v4317 = vand.u32 %v4316, 4294901760
      %4318 = vmatpush1.msra.mxu0 %v4317
      %4319 = vmatprep.subr.mxu0 0.0
      %v4320 = vand.u32 %v3406, 4294901760
      %v4321 = vsub.f32 %v3406, %v4320
      %v4322 = vand.u32 %v4321, 4294901760
      %4323 = vmatpush1.msra.mxu0 %v4322
      %4324 = vmatprep.subr.mxu0 0.0
      %4325 = vmatpush1.msra.mxu0 0.0
      %4326 = vmatprep.subr.mxu0 0.0
      %4327 = vmatpush1.msra.mxu0 0.0
      %4328 = vmatprep.subr.mxu0 0.0
      %4329 = vmatpush1.msra.mxu0 0.0
      %4330 = vmatprep.subr.mxu0 0.0
      %4331 = vmatpush1.msra.mxu0 0.0
      %4332 = vmatprep.subr.mxu0 0.0
      %4333 = vmatpush1.msra.mxu0 0.0
      %4334 = vmatprep.subr.mxu0 0.0
      %4335 = vmatpush1.msra.mxu0 0.0
      %4336 = vmatprep.subr.mxu0 0.0
      %4337 = vmatpush1.msra.mxu0 0.0
      %4338 = vmatprep.subr.mxu0 0.0
      %4339 = vmatpush1.msra.mxu0 0.0
      %4340 = vmatprep.subr.mxu0 0.0
      %4341 = vmatpush1.msra.mxu0 0.0
      %4342 = vmatprep.subr.mxu0 0.0
      %4343 = vmatpush1.msra.mxu0 0.0
      %4344 = vmatprep.subr.mxu0 0.0
      %4345 = vmatpush1.msra.mxu0 0.0
      %4346 = vmatprep.subr.mxu0 0.0
      %4347 = vmatpush1.msra.mxu0 0.0
      %4348 = vmatprep.subr.mxu0 0.0
      %4349 = vmatpush1.msra.mxu0 0.0
      %4350 = vmatprep.subr.mxu0 0.0
      %4351 = vmatpush1.msra.mxu0 0.0
      %4352 = vmatprep.subr.mxu0 0.0
      %4353 = vmatpush1.msra.mxu0 0.0
      %4354 = vmatprep.subr.mxu0 0.0
      %4355 = vmatpush1.msra.mxu0 0.0
      %4356 = vmatprep.subr.mxu0 0.0
      %4357 = vmatpush1.msra.mxu0 0.0
      %4358 = vmatprep.subr.mxu0 0.0
      %4359 = vmatpush1.msra.mxu0 0.0
      %4360 = vmatprep.subr.mxu0 0.0
      %4361 = vmatpush1.msra.mxu0 0.0
      %4362 = vmatprep.subr.mxu0 0.0
      %4363 = vmatpush1.msra.mxu0 0.0
      %4364 = vmatprep.subr.mxu0 0.0
      %4365 = vmatpush1.msra.mxu0 0.0
      %4366 = vmatprep.subr.mxu0 0.0
      %4367 = vmatpush1.msra.mxu0 0.0
      %4368 = vmatprep.subr.mxu0 0.0
      %4369 = vmatpush1.msra.mxu0 0.0
      %4370 = vmatprep.subr.mxu0 0.0
      %4371 = vmatpush1.msra.mxu0 0.0
      %4372 = vmatprep.mubr.f32.mxu0 0.0
      %v4373 = vand.u32 %v3409, 4294901760
      %4374 = vmatmul.mubr.f32.gmra.mrb[0].mxu0 %v4373
      %v4375 = vpop.f32.mrb[0].mxu0
      %v4376 = vadd.f32 %v4161, %v4375
      %v4377 = vpop.f32.mrb[0].mxu0
      %4378 = vmatprep.mubr.f32.mxu0 0.0
      %v4379 = vand.u32 %v3412, 4294901760
      %4380 = vmatmul.mubr.f32.gmra.mrb[0].mxu0 %v4379
      %v4381 = vpop.f32.mrb[0].mxu0
      %v4382 = vadd.f32 %v4169, %v4381
      %v4383 = vpop.f32.mrb[0].mxu0
      %4384 = vmatprep.mubr.f32.mxu0 0.0
      %v4385 = vand.u32 %v3415, 4294901760
      %4386 = vmatmul.mubr.f32.gmra.mrb[0].mxu0 %v4385
      %v4387 = vpop.f32.mrb[0].mxu0
      %v4388 = vadd.f32 %v4177, %v4387
      %v4389 = vpop.f32.mrb[0].mxu0
      %4390 = vmatprep.mubr.f32.mxu0 0.0
      %v4391 = vand.u32 %v3418, 4294901760
      %4392 = vmatmul.mubr.f32.gmra.mrb[0].mxu0 %v4391
      %v4393 = vpop.f32.mrb[0].mxu0
      %v4394 = vadd.f32 %v4185, %v4393
      %v4395 = vpop.f32.mrb[0].mxu0
      %4396 = vmatprep.mubr.f32.mxu0 0.0
      %v4397 = vand.u32 %v3421, 4294901760
      %4398 = vmatmul.mubr.f32.gmra.mrb[0].mxu0 %v4397
      %v4399 = vpop.f32.mrb[0].mxu0
      %v4400 = vadd.f32 %v4193, %v4399
      %v4401 = vpop.f32.mrb[0].mxu0
      %4402 = vmatprep.mubr.f32.mxu0 0.0
      %v4403 = vand.u32 %v3424, 4294901760
      %4404 = vmatmul.mubr.f32.gmra.mrb[0].mxu0 %v4403
      %v4405 = vpop.f32.mrb[0].mxu0
      %v4406 = vadd.f32 %v4201, %v4405
      %v4407 = vpop.f32.mrb[0].mxu0
      %4408 = vmatprep.mubr.f32.mxu0 0.0
      %v4409 = vand.u32 %v3427, 4294901760
      %4410 = vmatmul.mubr.f32.gmra.mrb[0].mxu0 %v4409
      %v4411 = vpop.f32.mrb[0].mxu0
      %v4412 = vadd.f32 %v4209, %v4411
      %v4413 = vpop.f32.mrb[0].mxu0
      %4414 = vmatprep.mubr.f32.mxu0 0.0
      %v4415 = vand.u32 %v3430, 4294901760
      %4416 = vmatmul.mubr.f32.gmra.mrb[0].mxu0 %v4415
      %v4417 = vpop.f32.mrb[0].mxu0
      %v4418 = vadd.f32 %v4217, %v4417
      %v4419 = vpop.f32.mrb[0].mxu0
      %4420 = vmatprep.mubr.f32.mxu0 0.0
      %v4421 = vand.u32 %v3433, 4294901760
      %4422 = vmatmul.mubr.f32.gmra.mrb[0].mxu0 %v4421
      %v4423 = vpop.f32.mrb[0].mxu0
      %v4424 = vadd.f32 %v4225, %v4423
      %v4425 = vpop.f32.mrb[0].mxu0
      %4426 = vmatprep.mubr.f32.mxu0 0.0
      %v4427 = vand.u32 %v3436, 4294901760
      %4428 = vmatmul.mubr.f32.gmra.mrb[0].mxu0 %v4427
      %v4429 = vpop.f32.mrb[0].mxu0
      %v4430 = vadd.f32 %v4233, %v4429
      %v4431 = vpop.f32.mrb[0].mxu0
      %4432 = vmatprep.mubr.f32.mxu0 0.0
      %v4433 = vand.u32 %v3439, 4294901760
      %4434 = vmatmul.mubr.f32.gmra.mrb[0].mxu0 %v4433
      %v4435 = vpop.f32.mrb[0].mxu0
      %v4436 = vadd.f32 %v4241, %v4435
      %v4437 = vpop.f32.mrb[0].mxu0
      %4438 = vmatprep.mubr.f32.mxu0 0.0
      %v4439 = vand.u32 %v3442, 4294901760
      %4440 = vmatmul.mubr.f32.gmra.mrb[0].mxu0 %v4439
      %v4441 = vpop.f32.mrb[0].mxu0
      %v4442 = vadd.f32 %v4249, %v4441
      %v4443 = vpop.f32.mrb[0].mxu0
      %4444 = vmatprep.mubr.f32.mxu0 0.0
      %v4445 = vand.u32 %v3445, 4294901760
      %4446 = vmatmul.mubr.f32.gmra.mrb[0].mxu0 %v4445
      %v4447 = vpop.f32.mrb[0].mxu0
      %v4448 = vadd.f32 %v4257, %v4447
      %v4449 = vpop.f32.mrb[0].mxu0
      %4450 = vmatprep.mubr.f32.mxu0 0.0
      %v4451 = vand.u32 %v3448, 4294901760
      %4452 = vmatmul.mubr.f32.gmra.mrb[0].mxu0 %v4451
      %v4453 = vpop.f32.mrb[0].mxu0
      %v4454 = vadd.f32 %v4265, %v4453
      %v4455 = vpop.f32.mrb[0].mxu0
      %4456 = vmatprep.mubr.f32.mxu0 0.0
      %v4457 = vand.u32 %v3451, 4294901760
      %4458 = vmatmul.mubr.f32.gmra.mrb[0].mxu0 %v4457
      %v4459 = vpop.f32.mrb[0].mxu0
      %v4460 = vadd.f32 %v4273, %v4459
      %v4461 = vpop.f32.mrb[0].mxu0
      %4462 = vmatprep.mubr.f32.mxu0 0.0
      %v4463 = vand.u32 %v3454, 4294901760
      %4464 = vmatmul.mubr.f32.gmra.mrb[0].mxu0 %v4463
      %v4465 = vpop.f32.mrb[0].mxu0
      %v4466 = vadd.f32 %v4281, %v4465
      %v4467 = vpop.f32.mrb[0].mxu0
      %4468 = vdwg.mxu0
      %4469 = vmatprep.subr.mxu0 0.0
      %v4470 = vand.u32 %v3399, 4294901760
      %4471 = vmatpush1.msra.mxu0 %v4470
      %4472 = vmatprep.subr.mxu0 0.0
      %v4473 = vand.u32 %v3400, 4294901760
      %4474 = vmatpush1.msra.mxu0 %v4473
      %4475 = vmatprep.subr.mxu0 0.0
      %v4476 = vand.u32 %v3401, 4294901760
      %4477 = vmatpush1.msra.mxu0 %v4476
      %4478 = vmatprep.subr.mxu0 0.0
      %v4479 = vand.u32 %v3402, 4294901760
      %4480 = vmatpush1.msra.mxu0 %v4479
      %4481 = vmatprep.subr.mxu0 0.0
      %v4482 = vand.u32 %v3403, 4294901760
      %4483 = vmatpush1.msra.mxu0 %v4482
      %4484 = vmatprep.subr.mxu0 0.0
      %v4485 = vand.u32 %v3404, 4294901760
      %4486 = vmatpush1.msra.mxu0 %v4485
      %4487 = vmatprep.subr.mxu0 0.0
      %v4488 = vand.u32 %v3405, 4294901760
      %4489 = vmatpush1.msra.mxu0 %v4488
      %4490 = vmatprep.subr.mxu0 0.0
      %v4491 = vand.u32 %v3406, 4294901760
      %4492 = vmatpush1.msra.mxu0 %v4491
      %4493 = vmatprep.subr.mxu0 0.0
      %4494 = vmatpush1.msra.mxu0 0.0
      %4495 = vmatprep.subr.mxu0 0.0
      %4496 = vmatpush1.msra.mxu0 0.0
      %4497 = vmatprep.subr.mxu0 0.0
      %4498 = vmatpush1.msra.mxu0 0.0
      %4499 = vmatprep.subr.mxu0 0.0
      %4500 = vmatpush1.msra.mxu0 0.0
      %4501 = vmatprep.subr.mxu0 0.0
      %4502 = vmatpush1.msra.mxu0 0.0
      %4503 = vmatprep.subr.mxu0 0.0
      %4504 = vmatpush1.msra.mxu0 0.0
      %4505 = vmatprep.subr.mxu0 0.0
      %4506 = vmatpush1.msra.mxu0 0.0
      %4507 = vmatprep.subr.mxu0 0.0
      %4508 = vmatpush1.msra.mxu0 0.0
      %4509 = vmatprep.subr.mxu0 0.0
      %4510 = vmatpush1.msra.mxu0 0.0
      %4511 = vmatprep.subr.mxu0 0.0
      %4512 = vmatpush1.msra.mxu0 0.0
      %4513 = vmatprep.subr.mxu0 0.0
      %4514 = vmatpush1.msra.mxu0 0.0
      %4515 = vmatprep.subr.mxu0 0.0
      %4516 = vmatpush1.msra.mxu0 0.0
      %4517 = vmatprep.subr.mxu0 0.0
      %4518 = vmatpush1.msra.mxu0 0.0
      %4519 = vmatprep.subr.mxu0 0.0
      %4520 = vmatpush1.msra.mxu0 0.0
      %4521 = vmatprep.subr.mxu0 0.0
      %4522 = vmatpush1.msra.mxu0 0.0
      %4523 = vmatprep.subr.mxu0 0.0
      %4524 = vmatpush1.msra.mxu0 0.0
      %4525 = vmatprep.subr.mxu0 0.0
      %4526 = vmatpush1.msra.mxu0 0.0
      %4527 = vmatprep.subr.mxu0 0.0
      %4528 = vmatpush1.msra.mxu0 0.0
      %4529 = vmatprep.subr.mxu0 0.0
      %4530 = vmatpush1.msra.mxu0 0.0
      %4531 = vmatprep.subr.mxu0 0.0
      %4532 = vmatpush1.msra.mxu0 0.0
      %4533 = vmatprep.subr.mxu0 0.0
      %4534 = vmatpush1.msra.mxu0 0.0
      %4535 = vmatprep.subr.mxu0 0.0
      %4536 = vmatpush1.msra.mxu0 0.0
      %4537 = vmatprep.subr.mxu0 0.0
      %4538 = vmatpush1.msra.mxu0 0.0
      %4539 = vmatprep.subr.mxu0 0.0
      %4540 = vmatpush1.msra.mxu0 0.0
      %4541 = vmatprep.mubr.f32.mxu0 0.0
      %v4542 = vand.u32 %v3409, 4294901760
      %4543 = vmatmul.mubr.f32.gmra.mrb[0].mxu0 %v4542
      %v4544 = vpop.f32.mrb[0].mxu0
      %v4545 = vadd.f32 %v4376, %v4544
      %v4546 = vpop.f32.mrb[0].mxu0
      %4547 = vmatprep.mubr.f32.mxu0 0.0
      %v4548 = vand.u32 %v3412, 4294901760
      %4549 = vmatmul.mubr.f32.gmra.mrb[0].mxu0 %v4548
      %v4550 = vpop.f32.mrb[0].mxu0
      %v4551 = vadd.f32 %v4382, %v4550
      %v4552 = vpop.f32.mrb[0].mxu0
      %4553 = vmatprep.mubr.f32.mxu0 0.0
      %v4554 = vand.u32 %v3415, 4294901760
      %4555 = vmatmul.mubr.f32.gmra.mrb[0].mxu0 %v4554
      %v4556 = vpop.f32.mrb[0].mxu0
      %v4557 = vadd.f32 %v4388, %v4556
      %v4558 = vpop.f32.mrb[0].mxu0
      %4559 = vmatprep.mubr.f32.mxu0 0.0
      %v4560 = vand.u32 %v3418, 4294901760
      %4561 = vmatmul.mubr.f32.gmra.mrb[0].mxu0 %v4560
      %v4562 = vpop.f32.mrb[0].mxu0
      %v4563 = vadd.f32 %v4394, %v4562
      %v4564 = vpop.f32.mrb[0].mxu0
      %4565 = vmatprep.mubr.f32.mxu0 0.0
      %v4566 = vand.u32 %v3421, 4294901760
      %4567 = vmatmul.mubr.f32.gmra.mrb[0].mxu0 %v4566
      %v4568 = vpop.f32.mrb[0].mxu0
      %v4569 = vadd.f32 %v4400, %v4568
      %v4570 = vpop.f32.mrb[0].mxu0
      %4571 = vmatprep.mubr.f32.mxu0 0.0
      %v4572 = vand.u32 %v3424, 4294901760
      %4573 = vmatmul.mubr.f32.gmra.mrb[0].mxu0 %v4572
      %v4574 = vpop.f32.mrb[0].mxu0
      %v4575 = vadd.f32 %v4406, %v4574
      %v4576 = vpop.f32.mrb[0].mxu0
      %4577 = vmatprep.mubr.f32.mxu0 0.0
      %v4578 = vand.u32 %v3427, 4294901760
      %4579 = vmatmul.mubr.f32.gmra.mrb[0].mxu0 %v4578
      %v4580 = vpop.f32.mrb[0].mxu0
      %v4581 = vadd.f32 %v4412, %v4580
      %v4582 = vpop.f32.mrb[0].mxu0
      %4583 = vmatprep.mubr.f32.mxu0 0.0
      %v4584 = vand.u32 %v3430, 4294901760
      %4585 = vmatmul.mubr.f32.gmra.mrb[0].mxu0 %v4584
      %v4586 = vpop.f32.mrb[0].mxu0
      %v4587 = vadd.f32 %v4418, %v4586
      %v4588 = vpop.f32.mrb[0].mxu0
      %4589 = vmatprep.mubr.f32.mxu0 0.0
      %v4590 = vand.u32 %v3433, 4294901760
      %4591 = vmatmul.mubr.f32.gmra.mrb[0].mxu0 %v4590
      %v4592 = vpop.f32.mrb[0].mxu0
      %v4593 = vadd.f32 %v4424, %v4592
      %v4594 = vpop.f32.mrb[0].mxu0
      %4595 = vmatprep.mubr.f32.mxu0 0.0
      %v4596 = vand.u32 %v3436, 4294901760
      %4597 = vmatmul.mubr.f32.gmra.mrb[0].mxu0 %v4596
      %v4598 = vpop.f32.mrb[0].mxu0
      %v4599 = vadd.f32 %v4430, %v4598
      %v4600 = vpop.f32.mrb[0].mxu0
      %4601 = vmatprep.mubr.f32.mxu0 0.0
      %v4602 = vand.u32 %v3439, 4294901760
      %4603 = vmatmul.mubr.f32.gmra.mrb[0].mxu0 %v4602
      %v4604 = vpop.f32.mrb[0].mxu0
      %v4605 = vadd.f32 %v4436, %v4604
      %v4606 = vpop.f32.mrb[0].mxu0
      %4607 = vmatprep.mubr.f32.mxu0 0.0
      %v4608 = vand.u32 %v3442, 4294901760
      %4609 = vmatmul.mubr.f32.gmra.mrb[0].mxu0 %v4608
      %v4610 = vpop.f32.mrb[0].mxu0
      %v4611 = vadd.f32 %v4442, %v4610
      %v4612 = vpop.f32.mrb[0].mxu0
      %4613 = vmatprep.mubr.f32.mxu0 0.0
      %v4614 = vand.u32 %v3445, 4294901760
      %4615 = vmatmul.mubr.f32.gmra.mrb[0].mxu0 %v4614
      %v4616 = vpop.f32.mrb[0].mxu0
      %v4617 = vadd.f32 %v4448, %v4616
      %v4618 = vpop.f32.mrb[0].mxu0
      %4619 = vmatprep.mubr.f32.mxu0 0.0
      %v4620 = vand.u32 %v3448, 4294901760
      %4621 = vmatmul.mubr.f32.gmra.mrb[0].mxu0 %v4620
      %v4622 = vpop.f32.mrb[0].mxu0
      %v4623 = vadd.f32 %v4454, %v4622
      %v4624 = vpop.f32.mrb[0].mxu0
      %4625 = vmatprep.mubr.f32.mxu0 0.0
      %v4626 = vand.u32 %v3451, 4294901760
      %4627 = vmatmul.mubr.f32.gmra.mrb[0].mxu0 %v4626
      %v4628 = vpop.f32.mrb[0].mxu0
      %v4629 = vadd.f32 %v4460, %v4628
      %v4630 = vpop.f32.mrb[0].mxu0
      %4631 = vmatprep.mubr.f32.mxu0 0.0
      %v4632 = vand.u32 %v3454, 4294901760
      %4633 = vmatmul.mubr.f32.gmra.mrb[0].mxu0 %v4632
      %v4634 = vpop.f32.mrb[0].mxu0
      %v4635 = vadd.f32 %v4466, %v4634
      %v4636 = vpop.f32.mrb[0].mxu0
      %4637 = vdwg.mxu0
      %v4638 = vld [vmem:[%s536] sm:$0xff]
      %v4639 = vld [vmem:[%s536 + $0x8] sm:$0xff]
      %v4640 = vld [vmem:[%s536 + $0x10] sm:$0xff]
      %v4641 = vld [vmem:[%s536 + $0x18] sm:$0xff]
      %v4642 = vld [vmem:[%s536 + $0x20] sm:$0xff]
      %v4643 = vld [vmem:[%s536 + $0x28] sm:$0xff]
      %v4644 = vld [vmem:[%s536 + $0x30] sm:$0xff]
      %v4645 = vld [vmem:[%s536 + $0x38] sm:$0xff]
      %v4646 = vld [vmem:[%s536 + $0x40] sm:$0xff]
      %v4647 = vld [vmem:[%s536 + $0x48] sm:$0xff]
      %v4648 = vld [vmem:[%s536 + $0x50] sm:$0xff]
      %v4649 = vld [vmem:[%s536 + $0x58] sm:$0xff]
      %v4650 = vld [vmem:[%s536 + $0x60] sm:$0xff]
      %v4651 = vld [vmem:[%s536 + $0x68] sm:$0xff]
      %v4652 = vld [vmem:[%s536 + $0x70] sm:$0xff]
      %v4653 = vld [vmem:[%s536 + $0x78] sm:$0xff]
      %v4654 = vld [vmem:[%s11 + $0x3] sm:$0x1]
      %4656 = vset.pattern.permute.xlu0 4
      %4657 = vperm.xlu0 %4656, %v4638
      %v4658 = vpop.permute.xlu0 %4657
      %4661 = vset.pattern.permute.xlu0 4
      %4662 = vperm.xlu0 %4661, %v4639
      %v4663 = vpop.permute.xlu0 %4662
      %4666 = vset.pattern.permute.xlu0 4
      %4667 = vperm.xlu0 %4666, %v4640
      %v4668 = vpop.permute.xlu0 %4667
      %4671 = vset.pattern.permute.xlu0 4
      %4672 = vperm.xlu0 %4671, %v4641
      %v4673 = vpop.permute.xlu0 %4672
      %4676 = vset.pattern.permute.xlu0 4
      %4677 = vperm.xlu0 %4676, %v4642
      %v4678 = vpop.permute.xlu0 %4677
      %4681 = vset.pattern.permute.xlu0 4
      %4682 = vperm.xlu0 %4681, %v4643
      %v4683 = vpop.permute.xlu0 %4682
      %4686 = vset.pattern.permute.xlu0 4
      %4687 = vperm.xlu0 %4686, %v4644
      %v4688 = vpop.permute.xlu0 %4687
      %4691 = vset.pattern.permute.xlu0 4
      %4692 = vperm.xlu0 %4691, %v4645
      %v4693 = vpop.permute.xlu0 %4692
      %4696 = vset.pattern.permute.xlu0 4
      %4697 = vperm.xlu0 %4696, %v4646
      %v4698 = vpop.permute.xlu0 %4697
      %4701 = vset.pattern.permute.xlu0 4
      %4702 = vperm.xlu0 %4701, %v4647
      %v4703 = vpop.permute.xlu0 %4702
      %4706 = vset.pattern.permute.xlu0 4
      %4707 = vperm.xlu0 %4706, %v4648
      %v4708 = vpop.permute.xlu0 %4707
      %4711 = vset.pattern.permute.xlu0 4
      %4712 = vperm.xlu0 %4711, %v4649
      %v4713 = vpop.permute.xlu0 %4712
      %4716 = vset.pattern.permute.xlu0 4
      %4717 = vperm.xlu0 %4716, %v4650
      %v4718 = vpop.permute.xlu0 %4717
      %4721 = vset.pattern.permute.xlu0 4
      %4722 = vperm.xlu0 %4721, %v4651
      %v4723 = vpop.permute.xlu0 %4722
      %4726 = vset.pattern.permute.xlu0 4
      %4727 = vperm.xlu0 %4726, %v4652
      %v4728 = vpop.permute.xlu0 %4727
      %4731 = vset.pattern.permute.xlu0 4
      %4732 = vperm.xlu0 %4731, %v4653
      %v4733 = vpop.permute.xlu0 %4732
      %v4735 = vlaneseq
      %v4736 = vshrl.u32 %v4735, 7
      %v4737 = vsub.s32 0, %v4736
      %v4738 = vrot.slane %v4654, %v4737
      %v4739 = vmul.f32 %v4658, %v4738
      %v4740 = vmul.f32 %v4663, %v4738
      %v4741 = vmul.f32 %v4668, %v4738
      %v4742 = vmul.f32 %v4673, %v4738
      %v4743 = vmul.f32 %v4678, %v4738
      %v4744 = vmul.f32 %v4683, %v4738
      %v4745 = vmul.f32 %v4688, %v4738
      %v4746 = vmul.f32 %v4693, %v4738
      %v4747 = vmul.f32 %v4698, %v4738
      %v4748 = vmul.f32 %v4703, %v4738
      %v4749 = vmul.f32 %v4708, %v4738
      %v4750 = vmul.f32 %v4713, %v4738
      %v4751 = vmul.f32 %v4718, %v4738
      %v4752 = vmul.f32 %v4723, %v4738
      %v4753 = vmul.f32 %v4728, %v4738
      %v4754 = vmul.f32 %v4733, %v4738
      %4771 = vrot.lane.b32.xlu0 %v4739, 64
      %v4772 = vpop.permute.xlu0 %4771
      %4773 = vrot.lane.b32.xlu0 %v4740, 64
      %v4774 = vpop.permute.xlu0 %4773
      %4775 = vrot.lane.b32.xlu0 %v4741, 64
      %v4776 = vpop.permute.xlu0 %4775
      %4777 = vrot.lane.b32.xlu0 %v4742, 64
      %v4778 = vpop.permute.xlu0 %4777
      %4779 = vrot.lane.b32.xlu0 %v4743, 64
      %v4780 = vpop.permute.xlu0 %4779
      %4781 = vrot.lane.b32.xlu0 %v4744, 64
      %v4782 = vpop.permute.xlu0 %4781
      %4783 = vrot.lane.b32.xlu0 %v4745, 64
      %v4784 = vpop.permute.xlu0 %4783
      %4785 = vrot.lane.b32.xlu0 %v4746, 64
      %v4786 = vpop.permute.xlu0 %4785
      %4787 = vrot.lane.b32.xlu0 %v4747, 64
      %v4788 = vpop.permute.xlu0 %4787
      %4789 = vrot.lane.b32.xlu0 %v4748, 64
      %v4790 = vpop.permute.xlu0 %4789
      %4791 = vrot.lane.b32.xlu0 %v4749, 64
      %v4792 = vpop.permute.xlu0 %4791
      %4793 = vrot.lane.b32.xlu0 %v4750, 64
      %v4794 = vpop.permute.xlu0 %4793
      %4795 = vrot.lane.b32.xlu0 %v4751, 64
      %v4796 = vpop.permute.xlu0 %4795
      %4797 = vrot.lane.b32.xlu0 %v4752, 64
      %v4798 = vpop.permute.xlu0 %4797
      %4799 = vrot.lane.b32.xlu0 %v4753, 64
      %v4800 = vpop.permute.xlu0 %4799
      %4801 = vrot.lane.b32.xlu0 %v4754, 64
      %v4802 = vpop.permute.xlu0 %4801
      %v4819 = vadd.f32 %v4545, %v4772
      %v4820 = vadd.f32 %v4551, %v4774
      %v4821 = vadd.f32 %v4557, %v4776
      %v4822 = vadd.f32 %v4563, %v4778
      %v4823 = vadd.f32 %v4569, %v4780
      %v4824 = vadd.f32 %v4575, %v4782
      %v4825 = vadd.f32 %v4581, %v4784
      %v4826 = vadd.f32 %v4587, %v4786
      %v4827 = vadd.f32 %v4593, %v4788
      %v4828 = vadd.f32 %v4599, %v4790
      %v4829 = vadd.f32 %v4605, %v4792
      %v4830 = vadd.f32 %v4611, %v4794
      %v4831 = vadd.f32 %v4617, %v4796
      %v4832 = vadd.f32 %v4623, %v4798
      %v4833 = vadd.f32 %v4629, %v4800
      %v4834 = vadd.f32 %v4635, %v4802
      %v4835 = vld [vmem:[%s11] sm:$0x1]
      %v4836 = vlaneseq
      %v4837 = vshrl.u32 %v4836, 7
      %v4838 = vsub.s32 0, %v4837
      %v4839 = vrot.slane %v4835, %v4838
      %4841 = vrot.lane.b32.xlu0 %v4839, 64
      %v4842 = vpop.permute.xlu0 %4841
      %v4844 = vadd.f32 %v4819, %v4842
      %v4845 = vadd.f32 %v4820, %v4842
      %v4846 = vadd.f32 %v4821, %v4842
      %v4847 = vadd.f32 %v4822, %v4842
      %v4848 = vadd.f32 %v4823, %v4842
      %v4849 = vadd.f32 %v4824, %v4842
      %v4850 = vadd.f32 %v4825, %v4842
      %v4851 = vadd.f32 %v4826, %v4842
      %v4852 = vadd.f32 %v4827, %v4842
      %v4853 = vadd.f32 %v4828, %v4842
      %v4854 = vadd.f32 %v4829, %v4842
      %v4855 = vadd.f32 %v4830, %v4842
      %v4856 = vadd.f32 %v4831, %v4842
      %v4857 = vadd.f32 %v4832, %v4842
      %v4858 = vadd.f32 %v4833, %v4842
      %v4859 = vadd.f32 %v4834, %v4842
      %4876 = vrot.lane.b32.xlu0 %v4545, 96
      %v4877 = vpop.permute.xlu0 %4876
      %4878 = vrot.lane.b32.xlu0 %v4551, 96
      %v4879 = vpop.permute.xlu0 %4878
      %4880 = vrot.lane.b32.xlu0 %v4557, 96
      %v4881 = vpop.permute.xlu0 %4880
      %4882 = vrot.lane.b32.xlu0 %v4563, 96
      %v4883 = vpop.permute.xlu0 %4882
      %4884 = vrot.lane.b32.xlu0 %v4569, 96
      %v4885 = vpop.permute.xlu0 %4884
      %4886 = vrot.lane.b32.xlu0 %v4575, 96
      %v4887 = vpop.permute.xlu0 %4886
      %4888 = vrot.lane.b32.xlu0 %v4581, 96
      %v4889 = vpop.permute.xlu0 %4888
      %4890 = vrot.lane.b32.xlu0 %v4587, 96
      %v4891 = vpop.permute.xlu0 %4890
      %4892 = vrot.lane.b32.xlu0 %v4593, 96
      %v4893 = vpop.permute.xlu0 %4892
      %4894 = vrot.lane.b32.xlu0 %v4599, 96
      %v4895 = vpop.permute.xlu0 %4894
      %4896 = vrot.lane.b32.xlu0 %v4605, 96
      %v4897 = vpop.permute.xlu0 %4896
      %4898 = vrot.lane.b32.xlu0 %v4611, 96
      %v4899 = vpop.permute.xlu0 %4898
      %4900 = vrot.lane.b32.xlu0 %v4617, 96
      %v4901 = vpop.permute.xlu0 %4900
      %4902 = vrot.lane.b32.xlu0 %v4623, 96
      %v4903 = vpop.permute.xlu0 %4902
      %4904 = vrot.lane.b32.xlu0 %v4629, 96
      %v4905 = vpop.permute.xlu0 %4904
      %4906 = vrot.lane.b32.xlu0 %v4635, 96
      %v4907 = vpop.permute.xlu0 %4906
      %v4924 = vmul.f32 %v4545, %v4877
      %v4925 = vmul.f32 %v4551, %v4879
      %v4926 = vmul.f32 %v4557, %v4881
      %v4927 = vmul.f32 %v4563, %v4883
      %v4928 = vmul.f32 %v4569, %v4885
      %v4929 = vmul.f32 %v4575, %v4887
      %v4930 = vmul.f32 %v4581, %v4889
      %v4931 = vmul.f32 %v4587, %v4891
      %v4932 = vmul.f32 %v4593, %v4893
      %v4933 = vmul.f32 %v4599, %v4895
      %v4934 = vmul.f32 %v4605, %v4897
      %v4935 = vmul.f32 %v4611, %v4899
      %v4936 = vmul.f32 %v4617, %v4901
      %v4937 = vmul.f32 %v4623, %v4903
      %v4938 = vmul.f32 %v4629, %v4905
      %v4939 = vmul.f32 %v4635, %v4907
      %v4940 = vld [vmem:[%s9] sm:$0xff]
      %v4941 = vld [vmem:[%s9 + $0x8] sm:$0xff]
      %v4942 = vld [vmem:[%s9 + $0x10] sm:$0xff]
      %v4943 = vld [vmem:[%s9 + $0x18] sm:$0xff]
      %v4944 = vld [vmem:[%s11 + $0x4] sm:$0x1]
      %v4945 = vlaneseq
      %v4946 = vshrl.u32 %v4945, 7
      %v4947 = vsub.s32 0, %v4946
      %v4948 = vrot.slane %v4944, %v4947
      %v4950 = vsel %vm2044, %v4924, 0
      %v4953 = vsel %vm2044, %v4925, 0
      %v4956 = vsel %vm2044, %v4926, 0
      %v4959 = vsel %vm2044, %v4927, 0
      %v4962 = vsel %vm2044, %v4928, 0
      %v4965 = vsel %vm2044, %v4929, 0
      %v4968 = vsel %vm2044, %v4930, 0
      %v4971 = vsel %vm2044, %v4931, 0
      %v4974 = vsel %vm2044, %v4932, 0
      %v4977 = vsel %vm2044, %v4933, 0
      %v4980 = vsel %vm2044, %v4934, 0
      %v4983 = vsel %vm2044, %v4935, 0
      %v4986 = vsel %vm2044, %v4936, 0
      %v4989 = vsel %vm2044, %v4937, 0
      %v4992 = vsel %vm2044, %v4938, 0
      %v4995 = vsel %vm2044, %v4939, 0
      %4997 = vmatprep.subr.mxu0 0.0
      %v4998 = vand.u32 %v4940, 4294901760
      %4999 = vmatpush1.msra.mxu0 %v4998
      %5000 = vmatprep.subr.mxu0 0.0
      %v5001 = vand.u32 %v4941, 4294901760
      %5002 = vmatpush1.msra.mxu0 %v5001
      %5003 = vmatprep.subr.mxu0 0.0
      %v5004 = vand.u32 %v4942, 4294901760
      %5005 = vmatpush1.msra.mxu0 %v5004
      %5006 = vmatprep.subr.mxu0 0.0
      %v5007 = vand.u32 %v4943, 4294901760
      %5008 = vmatpush1.msra.mxu0 %v5007
      %5009 = vmatprep.subr.mxu0 0.0
      %5010 = vmatpush1.msra.mxu0 0.0
      %5011 = vmatprep.subr.mxu0 0.0
      %5012 = vmatpush1.msra.mxu0 0.0
      %5013 = vmatprep.subr.mxu0 0.0
      %5014 = vmatpush1.msra.mxu0 0.0
      %5015 = vmatprep.subr.mxu0 0.0
      %5016 = vmatpush1.msra.mxu0 0.0
      %5017 = vmatprep.subr.mxu0 0.0
      %5018 = vmatpush1.msra.mxu0 0.0
      %5019 = vmatprep.subr.mxu0 0.0
      %5020 = vmatpush1.msra.mxu0 0.0
      %5021 = vmatprep.subr.mxu0 0.0
      %5022 = vmatpush1.msra.mxu0 0.0
      %5023 = vmatprep.subr.mxu0 0.0
      %5024 = vmatpush1.msra.mxu0 0.0
      %5025 = vmatprep.subr.mxu0 0.0
      %5026 = vmatpush1.msra.mxu0 0.0
      %5027 = vmatprep.subr.mxu0 0.0
      %5028 = vmatpush1.msra.mxu0 0.0
      %5029 = vmatprep.subr.mxu0 0.0
      %5030 = vmatpush1.msra.mxu0 0.0
      %5031 = vmatprep.subr.mxu0 0.0
      %5032 = vmatpush1.msra.mxu0 0.0
      %5033 = vmatprep.subr.mxu0 0.0
      %5034 = vmatpush1.msra.mxu0 0.0
      %5035 = vmatprep.subr.mxu0 0.0
      %5036 = vmatpush1.msra.mxu0 0.0
      %5037 = vmatprep.subr.mxu0 0.0
      %5038 = vmatpush1.msra.mxu0 0.0
      %5039 = vmatprep.subr.mxu0 0.0
      %5040 = vmatpush1.msra.mxu0 0.0
      %5041 = vmatprep.subr.mxu0 0.0
      %5042 = vmatpush1.msra.mxu0 0.0
      %5043 = vmatprep.subr.mxu0 0.0
      %5044 = vmatpush1.msra.mxu0 0.0
      %5045 = vmatprep.subr.mxu0 0.0
      %5046 = vmatpush1.msra.mxu0 0.0
      %5047 = vmatprep.subr.mxu0 0.0
      %5048 = vmatpush1.msra.mxu0 0.0
      %5049 = vmatprep.subr.mxu0 0.0
      %5050 = vmatpush1.msra.mxu0 0.0
      %5051 = vmatprep.subr.mxu0 0.0
      %5052 = vmatpush1.msra.mxu0 0.0
      %5053 = vmatprep.subr.mxu0 0.0
      %5054 = vmatpush1.msra.mxu0 0.0
      %5055 = vmatprep.subr.mxu0 0.0
      %5056 = vmatpush1.msra.mxu0 0.0
      %5057 = vmatprep.subr.mxu0 0.0
      %5058 = vmatpush1.msra.mxu0 0.0
      %5059 = vmatprep.subr.mxu0 0.0
      %5060 = vmatpush1.msra.mxu0 0.0
      %5061 = vmatprep.subr.mxu0 0.0
      %5062 = vmatpush1.msra.mxu0 0.0
      %5063 = vmatprep.subr.mxu0 0.0
      %5064 = vmatpush1.msra.mxu0 0.0
      %5065 = vmatprep.mubr.f32.mxu0 0.0
      %v5066 = vand.u32 %v4950, 4294901760
      %v5067 = vsub.f32 %v4950, %v5066
      %v5068 = vand.u32 %v5067, 4294901760
      %v5069 = vsub.f32 %v5067, %v5068
      %v5070 = vand.u32 %v5069, 4294901760
      %5071 = vmatmul.mubr.f32.gmra.mrb[0].mxu0 %v5070
      %v5072 = vpop.f32.mrb[0].mxu0
      %v5073 = vadd.f32 %v4948, %v5072
      %v5074 = vpop.f32.mrb[0].mxu0
      %5075 = vmatprep.mubr.f32.mxu0 0.0
      %v5076 = vand.u32 %v4953, 4294901760
      %v5077 = vsub.f32 %v4953, %v5076
      %v5078 = vand.u32 %v5077, 4294901760
      %v5079 = vsub.f32 %v5077, %v5078
      %v5080 = vand.u32 %v5079, 4294901760
      %5081 = vmatmul.mubr.f32.gmra.mrb[0].mxu0 %v5080
      %v5082 = vpop.f32.mrb[0].mxu0
      %v5083 = vadd.f32 %v4948, %v5082
      %v5084 = vpop.f32.mrb[0].mxu0
      %5085 = vmatprep.mubr.f32.mxu0 0.0
      %v5086 = vand.u32 %v4956, 4294901760
      %v5087 = vsub.f32 %v4956, %v5086
      %v5088 = vand.u32 %v5087, 4294901760
      %v5089 = vsub.f32 %v5087, %v5088
      %v5090 = vand.u32 %v5089, 4294901760
      %5091 = vmatmul.mubr.f32.gmra.mrb[0].mxu0 %v5090
      %v5092 = vpop.f32.mrb[0].mxu0
      %v5093 = vadd.f32 %v4948, %v5092
      %v5094 = vpop.f32.mrb[0].mxu0
      %5095 = vmatprep.mubr.f32.mxu0 0.0
      %v5096 = vand.u32 %v4959, 4294901760
      %v5097 = vsub.f32 %v4959, %v5096
      %v5098 = vand.u32 %v5097, 4294901760
      %v5099 = vsub.f32 %v5097, %v5098
      %v5100 = vand.u32 %v5099, 4294901760
      %5101 = vmatmul.mubr.f32.gmra.mrb[0].mxu0 %v5100
      %v5102 = vpop.f32.mrb[0].mxu0
      %v5103 = vadd.f32 %v4948, %v5102
      %v5104 = vpop.f32.mrb[0].mxu0
      %5105 = vmatprep.mubr.f32.mxu0 0.0
      %v5106 = vand.u32 %v4962, 4294901760
      %v5107 = vsub.f32 %v4962, %v5106
      %v5108 = vand.u32 %v5107, 4294901760
      %v5109 = vsub.f32 %v5107, %v5108
      %v5110 = vand.u32 %v5109, 4294901760
      %5111 = vmatmul.mubr.f32.gmra.mrb[0].mxu0 %v5110
      %v5112 = vpop.f32.mrb[0].mxu0
      %v5113 = vadd.f32 %v4948, %v5112
      %v5114 = vpop.f32.mrb[0].mxu0
      %5115 = vmatprep.mubr.f32.mxu0 0.0
      %v5116 = vand.u32 %v4965, 4294901760
      %v5117 = vsub.f32 %v4965, %v5116
      %v5118 = vand.u32 %v5117, 4294901760
      %v5119 = vsub.f32 %v5117, %v5118
      %v5120 = vand.u32 %v5119, 4294901760
      %5121 = vmatmul.mubr.f32.gmra.mrb[0].mxu0 %v5120
      %v5122 = vpop.f32.mrb[0].mxu0
      %v5123 = vadd.f32 %v4948, %v5122
      %v5124 = vpop.f32.mrb[0].mxu0
      %5125 = vmatprep.mubr.f32.mxu0 0.0
      %v5126 = vand.u32 %v4968, 4294901760
      %v5127 = vsub.f32 %v4968, %v5126
      %v5128 = vand.u32 %v5127, 4294901760
      %v5129 = vsub.f32 %v5127, %v5128
      %v5130 = vand.u32 %v5129, 4294901760
      %5131 = vmatmul.mubr.f32.gmra.mrb[0].mxu0 %v5130
      %v5132 = vpop.f32.mrb[0].mxu0
      %v5133 = vadd.f32 %v4948, %v5132
      %v5134 = vpop.f32.mrb[0].mxu0
      %5135 = vmatprep.mubr.f32.mxu0 0.0
      %v5136 = vand.u32 %v4971, 4294901760
      %v5137 = vsub.f32 %v4971, %v5136
      %v5138 = vand.u32 %v5137, 4294901760
      %v5139 = vsub.f32 %v5137, %v5138
      %v5140 = vand.u32 %v5139, 4294901760
      %5141 = vmatmul.mubr.f32.gmra.mrb[0].mxu0 %v5140
      %v5142 = vpop.f32.mrb[0].mxu0
      %v5143 = vadd.f32 %v4948, %v5142
      %v5144 = vpop.f32.mrb[0].mxu0
      %5145 = vmatprep.mubr.f32.mxu0 0.0
      %v5146 = vand.u32 %v4974, 4294901760
      %v5147 = vsub.f32 %v4974, %v5146
      %v5148 = vand.u32 %v5147, 4294901760
      %v5149 = vsub.f32 %v5147, %v5148
      %v5150 = vand.u32 %v5149, 4294901760
      %5151 = vmatmul.mubr.f32.gmra.mrb[0].mxu0 %v5150
      %v5152 = vpop.f32.mrb[0].mxu0
      %v5153 = vadd.f32 %v4948, %v5152
      %v5154 = vpop.f32.mrb[0].mxu0
      %5155 = vmatprep.mubr.f32.mxu0 0.0
      %v5156 = vand.u32 %v4977, 4294901760
      %v5157 = vsub.f32 %v4977, %v5156
      %v5158 = vand.u32 %v5157, 4294901760
      %v5159 = vsub.f32 %v5157, %v5158
      %v5160 = vand.u32 %v5159, 4294901760
      %5161 = vmatmul.mubr.f32.gmra.mrb[0].mxu0 %v5160
      %v5162 = vpop.f32.mrb[0].mxu0
      %v5163 = vadd.f32 %v4948, %v5162
      %v5164 = vpop.f32.mrb[0].mxu0
      %5165 = vmatprep.mubr.f32.mxu0 0.0
      %v5166 = vand.u32 %v4980, 4294901760
      %v5167 = vsub.f32 %v4980, %v5166
      %v5168 = vand.u32 %v5167, 4294901760
      %v5169 = vsub.f32 %v5167, %v5168
      %v5170 = vand.u32 %v5169, 4294901760
      %5171 = vmatmul.mubr.f32.gmra.mrb[0].mxu0 %v5170
      %v5172 = vpop.f32.mrb[0].mxu0
      %v5173 = vadd.f32 %v4948, %v5172
      %v5174 = vpop.f32.mrb[0].mxu0
      %5175 = vmatprep.mubr.f32.mxu0 0.0
      %v5176 = vand.u32 %v4983, 4294901760
      %v5177 = vsub.f32 %v4983, %v5176
      %v5178 = vand.u32 %v5177, 4294901760
      %v5179 = vsub.f32 %v5177, %v5178
      %v5180 = vand.u32 %v5179, 4294901760
      %5181 = vmatmul.mubr.f32.gmra.mrb[0].mxu0 %v5180
      %v5182 = vpop.f32.mrb[0].mxu0
      %v5183 = vadd.f32 %v4948, %v5182
      %v5184 = vpop.f32.mrb[0].mxu0
      %5185 = vmatprep.mubr.f32.mxu0 0.0
      %v5186 = vand.u32 %v4986, 4294901760
      %v5187 = vsub.f32 %v4986, %v5186
      %v5188 = vand.u32 %v5187, 4294901760
      %v5189 = vsub.f32 %v5187, %v5188
      %v5190 = vand.u32 %v5189, 4294901760
      %5191 = vmatmul.mubr.f32.gmra.mrb[0].mxu0 %v5190
      %v5192 = vpop.f32.mrb[0].mxu0
      %v5193 = vadd.f32 %v4948, %v5192
      %v5194 = vpop.f32.mrb[0].mxu0
      %5195 = vmatprep.mubr.f32.mxu0 0.0
      %v5196 = vand.u32 %v4989, 4294901760
      %v5197 = vsub.f32 %v4989, %v5196
      %v5198 = vand.u32 %v5197, 4294901760
      %v5199 = vsub.f32 %v5197, %v5198
      %v5200 = vand.u32 %v5199, 4294901760
      %5201 = vmatmul.mubr.f32.gmra.mrb[0].mxu0 %v5200
      %v5202 = vpop.f32.mrb[0].mxu0
      %v5203 = vadd.f32 %v4948, %v5202
      %v5204 = vpop.f32.mrb[0].mxu0
      %5205 = vmatprep.mubr.f32.mxu0 0.0
      %v5206 = vand.u32 %v4992, 4294901760
      %v5207 = vsub.f32 %v4992, %v5206
      %v5208 = vand.u32 %v5207, 4294901760
      %v5209 = vsub.f32 %v5207, %v5208
      %v5210 = vand.u32 %v5209, 4294901760
      %5211 = vmatmul.mubr.f32.gmra.mrb[0].mxu0 %v5210
      %v5212 = vpop.f32.mrb[0].mxu0
      %v5213 = vadd.f32 %v4948, %v5212
      %v5214 = vpop.f32.mrb[0].mxu0
      %5215 = vmatprep.mubr.f32.mxu0 0.0
      %v5216 = vand.u32 %v4995, 4294901760
      %v5217 = vsub.f32 %v4995, %v5216
      %v5218 = vand.u32 %v5217, 4294901760
      %v5219 = vsub.f32 %v5217, %v5218
      %v5220 = vand.u32 %v5219, 4294901760
      %5221 = vmatmul.mubr.f32.gmra.mrb[0].mxu0 %v5220
      %v5222 = vpop.f32.mrb[0].mxu0
      %v5223 = vadd.f32 %v4948, %v5222
      %v5224 = vpop.f32.mrb[0].mxu0
      %5225 = vdwg.mxu0
      %5226 = vmatprep.subr.mxu0 0.0
      %v5227 = vand.u32 %v4940, 4294901760
      %v5228 = vsub.f32 %v4940, %v5227
      %v5229 = vand.u32 %v5228, 4294901760
      %v5230 = vsub.f32 %v5228, %v5229
      %v5231 = vand.u32 %v5230, 4294901760
      %5232 = vmatpush1.msra.mxu0 %v5231
      %5233 = vmatprep.subr.mxu0 0.0
      %v5234 = vand.u32 %v4941, 4294901760
      %v5235 = vsub.f32 %v4941, %v5234
      %v5236 = vand.u32 %v5235, 4294901760
      %v5237 = vsub.f32 %v5235, %v5236
      %v5238 = vand.u32 %v5237, 4294901760
      %5239 = vmatpush1.msra.mxu0 %v5238
      %5240 = vmatprep.subr.mxu0 0.0
      %v5241 = vand.u32 %v4942, 4294901760
      %v5242 = vsub.f32 %v4942, %v5241
      %v5243 = vand.u32 %v5242, 4294901760
      %v5244 = vsub.f32 %v5242, %v5243
      %v5245 = vand.u32 %v5244, 4294901760
      %5246 = vmatpush1.msra.mxu0 %v5245
      %5247 = vmatprep.subr.mxu0 0.0
      %v5248 = vand.u32 %v4943, 4294901760
      %v5249 = vsub.f32 %v4943, %v5248
      %v5250 = vand.u32 %v5249, 4294901760
      %v5251 = vsub.f32 %v5249, %v5250
      %v5252 = vand.u32 %v5251, 4294901760
      %5253 = vmatpush1.msra.mxu0 %v5252
      %5254 = vmatprep.subr.mxu0 0.0
      %5255 = vmatpush1.msra.mxu0 0.0
      %5256 = vmatprep.subr.mxu0 0.0
      %5257 = vmatpush1.msra.mxu0 0.0
      %5258 = vmatprep.subr.mxu0 0.0
      %5259 = vmatpush1.msra.mxu0 0.0
      %5260 = vmatprep.subr.mxu0 0.0
      %5261 = vmatpush1.msra.mxu0 0.0
      %5262 = vmatprep.subr.mxu0 0.0
      %5263 = vmatpush1.msra.mxu0 0.0
      %5264 = vmatprep.subr.mxu0 0.0
      %5265 = vmatpush1.msra.mxu0 0.0
      %5266 = vmatprep.subr.mxu0 0.0
      %5267 = vmatpush1.msra.mxu0 0.0
      %5268 = vmatprep.subr.mxu0 0.0
      %5269 = vmatpush1.msra.mxu0 0.0
      %5270 = vmatprep.subr.mxu0 0.0
      %5271 = vmatpush1.msra.mxu0 0.0
      %5272 = vmatprep.subr.mxu0 0.0
      %5273 = vmatpush1.msra.mxu0 0.0
      %5274 = vmatprep.subr.mxu0 0.0
      %5275 = vmatpush1.msra.mxu0 0.0
      %5276 = vmatprep.subr.mxu0 0.0
      %5277 = vmatpush1.msra.mxu0 0.0
      %5278 = vmatprep.subr.mxu0 0.0
      %5279 = vmatpush1.msra.mxu0 0.0
      %5280 = vmatprep.subr.mxu0 0.0
      %5281 = vmatpush1.msra.mxu0 0.0
      %5282 = vmatprep.subr.mxu0 0.0
      %5283 = vmatpush1.msra.mxu0 0.0
      %5284 = vmatprep.subr.mxu0 0.0
      %5285 = vmatpush1.msra.mxu0 0.0
      %5286 = vmatprep.subr.mxu0 0.0
      %5287 = vmatpush1.msra.mxu0 0.0
      %5288 = vmatprep.subr.mxu0 0.0
      %5289 = vmatpush1.msra.mxu0 0.0
      %5290 = vmatprep.subr.mxu0 0.0
      %5291 = vmatpush1.msra.mxu0 0.0
      %5292 = vmatprep.subr.mxu0 0.0
      %5293 = vmatpush1.msra.mxu0 0.0
      %5294 = vmatprep.subr.mxu0 0.0
      %5295 = vmatpush1.msra.mxu0 0.0
      %5296 = vmatprep.subr.mxu0 0.0
      %5297 = vmatpush1.msra.mxu0 0.0
      %5298 = vmatprep.subr.mxu0 0.0
      %5299 = vmatpush1.msra.mxu0 0.0
      %5300 = vmatprep.subr.mxu0 0.0
      %5301 = vmatpush1.msra.mxu0 0.0
      %5302 = vmatprep.subr.mxu0 0.0
      %5303 = vmatpush1.msra.mxu0 0.0
      %5304 = vmatprep.subr.mxu0 0.0
      %5305 = vmatpush1.msra.mxu0 0.0
      %5306 = vmatprep.subr.mxu0 0.0
      %5307 = vmatpush1.msra.mxu0 0.0
      %5308 = vmatprep.subr.mxu0 0.0
      %5309 = vmatpush1.msra.mxu0 0.0
      %5310 = vmatprep.mubr.f32.mxu0 0.0
      %v5311 = vand.u32 %v4950, 4294901760
      %5312 = vmatmul.mubr.f32.gmra.mrb[0].mxu0 %v5311
      %v5313 = vpop.f32.mrb[0].mxu0
      %v5314 = vadd.f32 %v5073, %v5313
      %v5315 = vpop.f32.mrb[0].mxu0
      %5316 = vmatprep.mubr.f32.mxu0 0.0
      %v5317 = vand.u32 %v4953, 4294901760
      %5318 = vmatmul.mubr.f32.gmra.mrb[0].mxu0 %v5317
      %v5319 = vpop.f32.mrb[0].mxu0
      %v5320 = vadd.f32 %v5083, %v5319
      %v5321 = vpop.f32.mrb[0].mxu0
      %5322 = vmatprep.mubr.f32.mxu0 0.0
      %v5323 = vand.u32 %v4956, 4294901760
      %5324 = vmatmul.mubr.f32.gmra.mrb[0].mxu0 %v5323
      %v5325 = vpop.f32.mrb[0].mxu0
      %v5326 = vadd.f32 %v5093, %v5325
      %v5327 = vpop.f32.mrb[0].mxu0
      %5328 = vmatprep.mubr.f32.mxu0 0.0
      %v5329 = vand.u32 %v4959, 4294901760
      %5330 = vmatmul.mubr.f32.gmra.mrb[0].mxu0 %v5329
      %v5331 = vpop.f32.mrb[0].mxu0
      %v5332 = vadd.f32 %v5103, %v5331
      %v5333 = vpop.f32.mrb[0].mxu0
      %5334 = vmatprep.mubr.f32.mxu0 0.0
      %v5335 = vand.u32 %v4962, 4294901760
      %5336 = vmatmul.mubr.f32.gmra.mrb[0].mxu0 %v5335
      %v5337 = vpop.f32.mrb[0].mxu0
      %v5338 = vadd.f32 %v5113, %v5337
      %v5339 = vpop.f32.mrb[0].mxu0
      %5340 = vmatprep.mubr.f32.mxu0 0.0
      %v5341 = vand.u32 %v4965, 4294901760
      %5342 = vmatmul.mubr.f32.gmra.mrb[0].mxu0 %v5341
      %v5343 = vpop.f32.mrb[0].mxu0
      %v5344 = vadd.f32 %v5123, %v5343
      %v5345 = vpop.f32.mrb[0].mxu0
      %5346 = vmatprep.mubr.f32.mxu0 0.0
      %v5347 = vand.u32 %v4968, 4294901760
      %5348 = vmatmul.mubr.f32.gmra.mrb[0].mxu0 %v5347
      %v5349 = vpop.f32.mrb[0].mxu0
      %v5350 = vadd.f32 %v5133, %v5349
      %v5351 = vpop.f32.mrb[0].mxu0
      %5352 = vmatprep.mubr.f32.mxu0 0.0
      %v5353 = vand.u32 %v4971, 4294901760
      %5354 = vmatmul.mubr.f32.gmra.mrb[0].mxu0 %v5353
      %v5355 = vpop.f32.mrb[0].mxu0
      %v5356 = vadd.f32 %v5143, %v5355
      %v5357 = vpop.f32.mrb[0].mxu0
      %5358 = vmatprep.mubr.f32.mxu0 0.0
      %v5359 = vand.u32 %v4974, 4294901760
      %5360 = vmatmul.mubr.f32.gmra.mrb[0].mxu0 %v5359
      %v5361 = vpop.f32.mrb[0].mxu0
      %v5362 = vadd.f32 %v5153, %v5361
      %v5363 = vpop.f32.mrb[0].mxu0
      %5364 = vmatprep.mubr.f32.mxu0 0.0
      %v5365 = vand.u32 %v4977, 4294901760
      %5366 = vmatmul.mubr.f32.gmra.mrb[0].mxu0 %v5365
      %v5367 = vpop.f32.mrb[0].mxu0
      %v5368 = vadd.f32 %v5163, %v5367
      %v5369 = vpop.f32.mrb[0].mxu0
      %5370 = vmatprep.mubr.f32.mxu0 0.0
      %v5371 = vand.u32 %v4980, 4294901760
      %5372 = vmatmul.mubr.f32.gmra.mrb[0].mxu0 %v5371
      %v5373 = vpop.f32.mrb[0].mxu0
      %v5374 = vadd.f32 %v5173, %v5373
      %v5375 = vpop.f32.mrb[0].mxu0
      %5376 = vmatprep.mubr.f32.mxu0 0.0
      %v5377 = vand.u32 %v4983, 4294901760
      %5378 = vmatmul.mubr.f32.gmra.mrb[0].mxu0 %v5377
      %v5379 = vpop.f32.mrb[0].mxu0
      %v5380 = vadd.f32 %v5183, %v5379
      %v5381 = vpop.f32.mrb[0].mxu0
      %5382 = vmatprep.mubr.f32.mxu0 0.0
      %v5383 = vand.u32 %v4986, 4294901760
      %5384 = vmatmul.mubr.f32.gmra.mrb[0].mxu0 %v5383
      %v5385 = vpop.f32.mrb[0].mxu0
      %v5386 = vadd.f32 %v5193, %v5385
      %v5387 = vpop.f32.mrb[0].mxu0
      %5388 = vmatprep.mubr.f32.mxu0 0.0
      %v5389 = vand.u32 %v4989, 4294901760
      %5390 = vmatmul.mubr.f32.gmra.mrb[0].mxu0 %v5389
      %v5391 = vpop.f32.mrb[0].mxu0
      %v5392 = vadd.f32 %v5203, %v5391
      %v5393 = vpop.f32.mrb[0].mxu0
      %5394 = vmatprep.mubr.f32.mxu0 0.0
      %v5395 = vand.u32 %v4992, 4294901760
      %5396 = vmatmul.mubr.f32.gmra.mrb[0].mxu0 %v5395
      %v5397 = vpop.f32.mrb[0].mxu0
      %v5398 = vadd.f32 %v5213, %v5397
      %v5399 = vpop.f32.mrb[0].mxu0
      %5400 = vmatprep.mubr.f32.mxu0 0.0
      %v5401 = vand.u32 %v4995, 4294901760
      %5402 = vmatmul.mubr.f32.gmra.mrb[0].mxu0 %v5401
      %v5403 = vpop.f32.mrb[0].mxu0
      %v5404 = vadd.f32 %v5223, %v5403
      %v5405 = vpop.f32.mrb[0].mxu0
      %5406 = vdwg.mxu0
      %5407 = vmatprep.subr.mxu0 0.0
      %v5408 = vand.u32 %v4940, 4294901760
      %v5409 = vsub.f32 %v4940, %v5408
      %5410 = vmatpush1.msra.mxu0 %v5409
      %5411 = vmatprep.subr.mxu0 0.0
      %v5412 = vand.u32 %v4941, 4294901760
      %v5413 = vsub.f32 %v4941, %v5412
      %5414 = vmatpush1.msra.mxu0 %v5413
      %5415 = vmatprep.subr.mxu0 0.0
      %v5416 = vand.u32 %v4942, 4294901760
      %v5417 = vsub.f32 %v4942, %v5416
      %5418 = vmatpush1.msra.mxu0 %v5417
      %5419 = vmatprep.subr.mxu0 0.0
      %v5420 = vand.u32 %v4943, 4294901760
      %v5421 = vsub.f32 %v4943, %v5420
      %5422 = vmatpush1.msra.mxu0 %v5421
      %5423 = vmatprep.subr.mxu0 0.0
      %5424 = vmatpush1.msra.mxu0 0.0
      %5425 = vmatprep.subr.mxu0 0.0
      %5426 = vmatpush1.msra.mxu0 0.0
      %5427 = vmatprep.subr.mxu0 0.0
      %5428 = vmatpush1.msra.mxu0 0.0
      %5429 = vmatprep.subr.mxu0 0.0
      %5430 = vmatpush1.msra.mxu0 0.0
      %5431 = vmatprep.subr.mxu0 0.0
      %5432 = vmatpush1.msra.mxu0 0.0
      %5433 = vmatprep.subr.mxu0 0.0
      %5434 = vmatpush1.msra.mxu0 0.0
      %5435 = vmatprep.subr.mxu0 0.0
      %5436 = vmatpush1.msra.mxu0 0.0
      %5437 = vmatprep.subr.mxu0 0.0
      %5438 = vmatpush1.msra.mxu0 0.0
      %5439 = vmatprep.subr.mxu0 0.0
      %5440 = vmatpush1.msra.mxu0 0.0
      %5441 = vmatprep.subr.mxu0 0.0
      %5442 = vmatpush1.msra.mxu0 0.0
      %5443 = vmatprep.subr.mxu0 0.0
      %5444 = vmatpush1.msra.mxu0 0.0
      %5445 = vmatprep.subr.mxu0 0.0
      %5446 = vmatpush1.msra.mxu0 0.0
      %5447 = vmatprep.subr.mxu0 0.0
      %5448 = vmatpush1.msra.mxu0 0.0
      %5449 = vmatprep.subr.mxu0 0.0
      %5450 = vmatpush1.msra.mxu0 0.0
      %5451 = vmatprep.subr.mxu0 0.0
      %5452 = vmatpush1.msra.mxu0 0.0
      %5453 = vmatprep.subr.mxu0 0.0
      %5454 = vmatpush1.msra.mxu0 0.0
      %5455 = vmatprep.subr.mxu0 0.0
      %5456 = vmatpush1.msra.mxu0 0.0
      %5457 = vmatprep.subr.mxu0 0.0
      %5458 = vmatpush1.msra.mxu0 0.0
      %5459 = vmatprep.subr.mxu0 0.0
      %5460 = vmatpush1.msra.mxu0 0.0
      %5461 = vmatprep.subr.mxu0 0.0
      %5462 = vmatpush1.msra.mxu0 0.0
      %5463 = vmatprep.subr.mxu0 0.0
      %5464 = vmatpush1.msra.mxu0 0.0
      %5465 = vmatprep.subr.mxu0 0.0
      %5466 = vmatpush1.msra.mxu0 0.0
      %5467 = vmatprep.subr.mxu0 0.0
      %5468 = vmatpush1.msra.mxu0 0.0
      %5469 = vmatprep.subr.mxu0 0.0
      %5470 = vmatpush1.msra.mxu0 0.0
      %5471 = vmatprep.subr.mxu0 0.0
      %5472 = vmatpush1.msra.mxu0 0.0
      %5473 = vmatprep.subr.mxu0 0.0
      %5474 = vmatpush1.msra.mxu0 0.0
      %5475 = vmatprep.subr.mxu0 0.0
      %5476 = vmatpush1.msra.mxu0 0.0
      %5477 = vmatprep.subr.mxu0 0.0
      %5478 = vmatpush1.msra.mxu0 0.0
      %5479 = vmatprep.mubr.f32.mxu0 0.0
      %v5480 = vand.u32 %v4950, 4294901760
      %v5481 = vsub.f32 %v4950, %v5480
      %5482 = vmatmul.mubr.f32.gmra.mrb[0].mxu0 %v5481
      %v5483 = vpop.f32.mrb[0].mxu0
      %v5484 = vadd.f32 %v5314, %v5483
      %v5485 = vpop.f32.mrb[0].mxu0
      %5486 = vmatprep.mubr.f32.mxu0 0.0
      %v5487 = vand.u32 %v4953, 4294901760
      %v5488 = vsub.f32 %v4953, %v5487
      %5489 = vmatmul.mubr.f32.gmra.mrb[0].mxu0 %v5488
      %v5490 = vpop.f32.mrb[0].mxu0
      %v5491 = vadd.f32 %v5320, %v5490
      %v5492 = vpop.f32.mrb[0].mxu0
      %5493 = vmatprep.mubr.f32.mxu0 0.0
      %v5494 = vand.u32 %v4956, 4294901760
      %v5495 = vsub.f32 %v4956, %v5494
      %5496 = vmatmul.mubr.f32.gmra.mrb[0].mxu0 %v5495
      %v5497 = vpop.f32.mrb[0].mxu0
      %v5498 = vadd.f32 %v5326, %v5497
      %v5499 = vpop.f32.mrb[0].mxu0
      %5500 = vmatprep.mubr.f32.mxu0 0.0
      %v5501 = vand.u32 %v4959, 4294901760
      %v5502 = vsub.f32 %v4959, %v5501
      %5503 = vmatmul.mubr.f32.gmra.mrb[0].mxu0 %v5502
      %v5504 = vpop.f32.mrb[0].mxu0
      %v5505 = vadd.f32 %v5332, %v5504
      %v5506 = vpop.f32.mrb[0].mxu0
      %5507 = vmatprep.mubr.f32.mxu0 0.0
      %v5508 = vand.u32 %v4962, 4294901760
      %v5509 = vsub.f32 %v4962, %v5508
      %5510 = vmatmul.mubr.f32.gmra.mrb[0].mxu0 %v5509
      %v5511 = vpop.f32.mrb[0].mxu0
      %v5512 = vadd.f32 %v5338, %v5511
      %v5513 = vpop.f32.mrb[0].mxu0
      %5514 = vmatprep.mubr.f32.mxu0 0.0
      %v5515 = vand.u32 %v4965, 4294901760
      %v5516 = vsub.f32 %v4965, %v5515
      %5517 = vmatmul.mubr.f32.gmra.mrb[0].mxu0 %v5516
      %v5518 = vpop.f32.mrb[0].mxu0
      %v5519 = vadd.f32 %v5344, %v5518
      %v5520 = vpop.f32.mrb[0].mxu0
      %5521 = vmatprep.mubr.f32.mxu0 0.0
      %v5522 = vand.u32 %v4968, 4294901760
      %v5523 = vsub.f32 %v4968, %v5522
      %5524 = vmatmul.mubr.f32.gmra.mrb[0].mxu0 %v5523
      %v5525 = vpop.f32.mrb[0].mxu0
      %v5526 = vadd.f32 %v5350, %v5525
      %v5527 = vpop.f32.mrb[0].mxu0
      %5528 = vmatprep.mubr.f32.mxu0 0.0
      %v5529 = vand.u32 %v4971, 4294901760
      %v5530 = vsub.f32 %v4971, %v5529
      %5531 = vmatmul.mubr.f32.gmra.mrb[0].mxu0 %v5530
      %v5532 = vpop.f32.mrb[0].mxu0
      %v5533 = vadd.f32 %v5356, %v5532
      %v5534 = vpop.f32.mrb[0].mxu0
      %5535 = vmatprep.mubr.f32.mxu0 0.0
      %v5536 = vand.u32 %v4974, 4294901760
      %v5537 = vsub.f32 %v4974, %v5536
      %5538 = vmatmul.mubr.f32.gmra.mrb[0].mxu0 %v5537
      %v5539 = vpop.f32.mrb[0].mxu0
      %v5540 = vadd.f32 %v5362, %v5539
      %v5541 = vpop.f32.mrb[0].mxu0
      %5542 = vmatprep.mubr.f32.mxu0 0.0
      %v5543 = vand.u32 %v4977, 4294901760
      %v5544 = vsub.f32 %v4977, %v5543
      %5545 = vmatmul.mubr.f32.gmra.mrb[0].mxu0 %v5544
      %v5546 = vpop.f32.mrb[0].mxu0
      %v5547 = vadd.f32 %v5368, %v5546
      %v5548 = vpop.f32.mrb[0].mxu0
      %5549 = vmatprep.mubr.f32.mxu0 0.0
      %v5550 = vand.u32 %v4980, 4294901760
      %v5551 = vsub.f32 %v4980, %v5550
      %5552 = vmatmul.mubr.f32.gmra.mrb[0].mxu0 %v5551
      %v5553 = vpop.f32.mrb[0].mxu0
      %v5554 = vadd.f32 %v5374, %v5553
      %v5555 = vpop.f32.mrb[0].mxu0
      %5556 = vmatprep.mubr.f32.mxu0 0.0
      %v5557 = vand.u32 %v4983, 4294901760
      %v5558 = vsub.f32 %v4983, %v5557
      %5559 = vmatmul.mubr.f32.gmra.mrb[0].mxu0 %v5558
      %v5560 = vpop.f32.mrb[0].mxu0
      %v5561 = vadd.f32 %v5380, %v5560
      %v5562 = vpop.f32.mrb[0].mxu0
      %5563 = vmatprep.mubr.f32.mxu0 0.0
      %v5564 = vand.u32 %v4986, 4294901760
      %v5565 = vsub.f32 %v4986, %v5564
      %5566 = vmatmul.mubr.f32.gmra.mrb[0].mxu0 %v5565
      %v5567 = vpop.f32.mrb[0].mxu0
      %v5568 = vadd.f32 %v5386, %v5567
      %v5569 = vpop.f32.mrb[0].mxu0
      %5570 = vmatprep.mubr.f32.mxu0 0.0
      %v5571 = vand.u32 %v4989, 4294901760
      %v5572 = vsub.f32 %v4989, %v5571
      %5573 = vmatmul.mubr.f32.gmra.mrb[0].mxu0 %v5572
      %v5574 = vpop.f32.mrb[0].mxu0
      %v5575 = vadd.f32 %v5392, %v5574
      %v5576 = vpop.f32.mrb[0].mxu0
      %5577 = vmatprep.mubr.f32.mxu0 0.0
      %v5578 = vand.u32 %v4992, 4294901760
      %v5579 = vsub.f32 %v4992, %v5578
      %5580 = vmatmul.mubr.f32.gmra.mrb[0].mxu0 %v5579
      %v5581 = vpop.f32.mrb[0].mxu0
      %v5582 = vadd.f32 %v5398, %v5581
      %v5583 = vpop.f32.mrb[0].mxu0
      %5584 = vmatprep.mubr.f32.mxu0 0.0
      %v5585 = vand.u32 %v4995, 4294901760
      %v5586 = vsub.f32 %v4995, %v5585
      %5587 = vmatmul.mubr.f32.gmra.mrb[0].mxu0 %v5586
      %v5588 = vpop.f32.mrb[0].mxu0
      %v5589 = vadd.f32 %v5404, %v5588
      %v5590 = vpop.f32.mrb[0].mxu0
      %5591 = vdwg.mxu0
      %5592 = vmatprep.subr.mxu0 0.0
      %v5593 = vand.u32 %v4940, 4294901760
      %5594 = vmatpush1.msra.mxu0 %v5593
      %5595 = vmatprep.subr.mxu0 0.0
      %v5596 = vand.u32 %v4941, 4294901760
      %5597 = vmatpush1.msra.mxu0 %v5596
      %5598 = vmatprep.subr.mxu0 0.0
      %v5599 = vand.u32 %v4942, 4294901760
      %5600 = vmatpush1.msra.mxu0 %v5599
      %5601 = vmatprep.subr.mxu0 0.0
      %v5602 = vand.u32 %v4943, 4294901760
      %5603 = vmatpush1.msra.mxu0 %v5602
      %5604 = vmatprep.subr.mxu0 0.0
      %5605 = vmatpush1.msra.mxu0 0.0
      %5606 = vmatprep.subr.mxu0 0.0
      %5607 = vmatpush1.msra.mxu0 0.0
      %5608 = vmatprep.subr.mxu0 0.0
      %5609 = vmatpush1.msra.mxu0 0.0
      %5610 = vmatprep.subr.mxu0 0.0
      %5611 = vmatpush1.msra.mxu0 0.0
      %5612 = vmatprep.subr.mxu0 0.0
      %5613 = vmatpush1.msra.mxu0 0.0
      %5614 = vmatprep.subr.mxu0 0.0
      %5615 = vmatpush1.msra.mxu0 0.0
      %5616 = vmatprep.subr.mxu0 0.0
      %5617 = vmatpush1.msra.mxu0 0.0
      %5618 = vmatprep.subr.mxu0 0.0
      %5619 = vmatpush1.msra.mxu0 0.0
      %5620 = vmatprep.subr.mxu0 0.0
      %5621 = vmatpush1.msra.mxu0 0.0
      %5622 = vmatprep.subr.mxu0 0.0
      %5623 = vmatpush1.msra.mxu0 0.0
      %5624 = vmatprep.subr.mxu0 0.0
      %5625 = vmatpush1.msra.mxu0 0.0
      %5626 = vmatprep.subr.mxu0 0.0
      %5627 = vmatpush1.msra.mxu0 0.0
      %5628 = vmatprep.subr.mxu0 0.0
      %5629 = vmatpush1.msra.mxu0 0.0
      %5630 = vmatprep.subr.mxu0 0.0
      %5631 = vmatpush1.msra.mxu0 0.0
      %5632 = vmatprep.subr.mxu0 0.0
      %5633 = vmatpush1.msra.mxu0 0.0
      %5634 = vmatprep.subr.mxu0 0.0
      %5635 = vmatpush1.msra.mxu0 0.0
      %5636 = vmatprep.subr.mxu0 0.0
      %5637 = vmatpush1.msra.mxu0 0.0
      %5638 = vmatprep.subr.mxu0 0.0
      %5639 = vmatpush1.msra.mxu0 0.0
      %5640 = vmatprep.subr.mxu0 0.0
      %5641 = vmatpush1.msra.mxu0 0.0
      %5642 = vmatprep.subr.mxu0 0.0
      %5643 = vmatpush1.msra.mxu0 0.0
      %5644 = vmatprep.subr.mxu0 0.0
      %5645 = vmatpush1.msra.mxu0 0.0
      %5646 = vmatprep.subr.mxu0 0.0
      %5647 = vmatpush1.msra.mxu0 0.0
      %5648 = vmatprep.subr.mxu0 0.0
      %5649 = vmatpush1.msra.mxu0 0.0
      %5650 = vmatprep.subr.mxu0 0.0
      %5651 = vmatpush1.msra.mxu0 0.0
      %5652 = vmatprep.subr.mxu0 0.0
      %5653 = vmatpush1.msra.mxu0 0.0
      %5654 = vmatprep.subr.mxu0 0.0
      %5655 = vmatpush1.msra.mxu0 0.0
      %5656 = vmatprep.subr.mxu0 0.0
      %5657 = vmatpush1.msra.mxu0 0.0
      %5658 = vmatprep.subr.mxu0 0.0
      %5659 = vmatpush1.msra.mxu0 0.0
      %5660 = vmatprep.mubr.f32.mxu0 0.0
      %v5661 = vand.u32 %v4950, 4294901760
      %v5662 = vsub.f32 %v4950, %v5661
      %v5663 = vand.u32 %v5662, 4294901760
      %5664 = vmatmul.mubr.f32.gmra.mrb[0].mxu0 %v5663
      %v5665 = vpop.f32.mrb[0].mxu0
      %v5666 = vadd.f32 %v5484, %v5665
      %v5667 = vpop.f32.mrb[0].mxu0
      %5668 = vmatprep.mubr.f32.mxu0 0.0
      %v5669 = vand.u32 %v4953, 4294901760
      %v5670 = vsub.f32 %v4953, %v5669
      %v5671 = vand.u32 %v5670, 4294901760
      %5672 = vmatmul.mubr.f32.gmra.mrb[0].mxu0 %v5671
      %v5673 = vpop.f32.mrb[0].mxu0
      %v5674 = vadd.f32 %v5491, %v5673
      %v5675 = vpop.f32.mrb[0].mxu0
      %5676 = vmatprep.mubr.f32.mxu0 0.0
      %v5677 = vand.u32 %v4956, 4294901760
      %v5678 = vsub.f32 %v4956, %v5677
      %v5679 = vand.u32 %v5678, 4294901760
      %5680 = vmatmul.mubr.f32.gmra.mrb[0].mxu0 %v5679
      %v5681 = vpop.f32.mrb[0].mxu0
      %v5682 = vadd.f32 %v5498, %v5681
      %v5683 = vpop.f32.mrb[0].mxu0
      %5684 = vmatprep.mubr.f32.mxu0 0.0
      %v5685 = vand.u32 %v4959, 4294901760
      %v5686 = vsub.f32 %v4959, %v5685
      %v5687 = vand.u32 %v5686, 4294901760
      %5688 = vmatmul.mubr.f32.gmra.mrb[0].mxu0 %v5687
      %v5689 = vpop.f32.mrb[0].mxu0
      %v5690 = vadd.f32 %v5505, %v5689
      %v5691 = vpop.f32.mrb[0].mxu0
      %5692 = vmatprep.mubr.f32.mxu0 0.0
      %v5693 = vand.u32 %v4962, 4294901760
      %v5694 = vsub.f32 %v4962, %v5693
      %v5695 = vand.u32 %v5694, 4294901760
      %5696 = vmatmul.mubr.f32.gmra.mrb[0].mxu0 %v5695
      %v5697 = vpop.f32.mrb[0].mxu0
      %v5698 = vadd.f32 %v5512, %v5697
      %v5699 = vpop.f32.mrb[0].mxu0
      %5700 = vmatprep.mubr.f32.mxu0 0.0
      %v5701 = vand.u32 %v4965, 4294901760
      %v5702 = vsub.f32 %v4965, %v5701
      %v5703 = vand.u32 %v5702, 4294901760
      %5704 = vmatmul.mubr.f32.gmra.mrb[0].mxu0 %v5703
      %v5705 = vpop.f32.mrb[0].mxu0
      %v5706 = vadd.f32 %v5519, %v5705
      %v5707 = vpop.f32.mrb[0].mxu0
      %5708 = vmatprep.mubr.f32.mxu0 0.0
      %v5709 = vand.u32 %v4968, 4294901760
      %v5710 = vsub.f32 %v4968, %v5709
      %v5711 = vand.u32 %v5710, 4294901760
      %5712 = vmatmul.mubr.f32.gmra.mrb[0].mxu0 %v5711
      %v5713 = vpop.f32.mrb[0].mxu0
      %v5714 = vadd.f32 %v5526, %v5713
      %v5715 = vpop.f32.mrb[0].mxu0
      %5716 = vmatprep.mubr.f32.mxu0 0.0
      %v5717 = vand.u32 %v4971, 4294901760
      %v5718 = vsub.f32 %v4971, %v5717
      %v5719 = vand.u32 %v5718, 4294901760
      %5720 = vmatmul.mubr.f32.gmra.mrb[0].mxu0 %v5719
      %v5721 = vpop.f32.mrb[0].mxu0
      %v5722 = vadd.f32 %v5533, %v5721
      %v5723 = vpop.f32.mrb[0].mxu0
      %5724 = vmatprep.mubr.f32.mxu0 0.0
      %v5725 = vand.u32 %v4974, 4294901760
      %v5726 = vsub.f32 %v4974, %v5725
      %v5727 = vand.u32 %v5726, 4294901760
      %5728 = vmatmul.mubr.f32.gmra.mrb[0].mxu0 %v5727
      %v5729 = vpop.f32.mrb[0].mxu0
      %v5730 = vadd.f32 %v5540, %v5729
      %v5731 = vpop.f32.mrb[0].mxu0
      %5732 = vmatprep.mubr.f32.mxu0 0.0
      %v5733 = vand.u32 %v4977, 4294901760
      %v5734 = vsub.f32 %v4977, %v5733
      %v5735 = vand.u32 %v5734, 4294901760
      %5736 = vmatmul.mubr.f32.gmra.mrb[0].mxu0 %v5735
      %v5737 = vpop.f32.mrb[0].mxu0
      %v5738 = vadd.f32 %v5547, %v5737
      %v5739 = vpop.f32.mrb[0].mxu0
      %5740 = vmatprep.mubr.f32.mxu0 0.0
      %v5741 = vand.u32 %v4980, 4294901760
      %v5742 = vsub.f32 %v4980, %v5741
      %v5743 = vand.u32 %v5742, 4294901760
      %5744 = vmatmul.mubr.f32.gmra.mrb[0].mxu0 %v5743
      %v5745 = vpop.f32.mrb[0].mxu0
      %v5746 = vadd.f32 %v5554, %v5745
      %v5747 = vpop.f32.mrb[0].mxu0
      %5748 = vmatprep.mubr.f32.mxu0 0.0
      %v5749 = vand.u32 %v4983, 4294901760
      %v5750 = vsub.f32 %v4983, %v5749
      %v5751 = vand.u32 %v5750, 4294901760
      %5752 = vmatmul.mubr.f32.gmra.mrb[0].mxu0 %v5751
      %v5753 = vpop.f32.mrb[0].mxu0
      %v5754 = vadd.f32 %v5561, %v5753
      %v5755 = vpop.f32.mrb[0].mxu0
      %5756 = vmatprep.mubr.f32.mxu0 0.0
      %v5757 = vand.u32 %v4986, 4294901760
      %v5758 = vsub.f32 %v4986, %v5757
      %v5759 = vand.u32 %v5758, 4294901760
      %5760 = vmatmul.mubr.f32.gmra.mrb[0].mxu0 %v5759
      %v5761 = vpop.f32.mrb[0].mxu0
      %v5762 = vadd.f32 %v5568, %v5761
      %v5763 = vpop.f32.mrb[0].mxu0
      %5764 = vmatprep.mubr.f32.mxu0 0.0
      %v5765 = vand.u32 %v4989, 4294901760
      %v5766 = vsub.f32 %v4989, %v5765
      %v5767 = vand.u32 %v5766, 4294901760
      %5768 = vmatmul.mubr.f32.gmra.mrb[0].mxu0 %v5767
      %v5769 = vpop.f32.mrb[0].mxu0
      %v5770 = vadd.f32 %v5575, %v5769
      %v5771 = vpop.f32.mrb[0].mxu0
      %5772 = vmatprep.mubr.f32.mxu0 0.0
      %v5773 = vand.u32 %v4992, 4294901760
      %v5774 = vsub.f32 %v4992, %v5773
      %v5775 = vand.u32 %v5774, 4294901760
      %5776 = vmatmul.mubr.f32.gmra.mrb[0].mxu0 %v5775
      %v5777 = vpop.f32.mrb[0].mxu0
      %v5778 = vadd.f32 %v5582, %v5777
      %v5779 = vpop.f32.mrb[0].mxu0
      %5780 = vmatprep.mubr.f32.mxu0 0.0
      %v5781 = vand.u32 %v4995, 4294901760
      %v5782 = vsub.f32 %v4995, %v5781
      %v5783 = vand.u32 %v5782, 4294901760
      %5784 = vmatmul.mubr.f32.gmra.mrb[0].mxu0 %v5783
      %v5785 = vpop.f32.mrb[0].mxu0
      %v5786 = vadd.f32 %v5589, %v5785
      %v5787 = vpop.f32.mrb[0].mxu0
      %5788 = vdwg.mxu0
      %5789 = vmatprep.subr.mxu0 0.0
      %v5790 = vand.u32 %v4940, 4294901760
      %v5791 = vsub.f32 %v4940, %v5790
      %v5792 = vand.u32 %v5791, 4294901760
      %5793 = vmatpush1.msra.mxu0 %v5792
      %5794 = vmatprep.subr.mxu0 0.0
      %v5795 = vand.u32 %v4941, 4294901760
      %v5796 = vsub.f32 %v4941, %v5795
      %v5797 = vand.u32 %v5796, 4294901760
      %5798 = vmatpush1.msra.mxu0 %v5797
      %5799 = vmatprep.subr.mxu0 0.0
      %v5800 = vand.u32 %v4942, 4294901760
      %v5801 = vsub.f32 %v4942, %v5800
      %v5802 = vand.u32 %v5801, 4294901760
      %5803 = vmatpush1.msra.mxu0 %v5802
      %5804 = vmatprep.subr.mxu0 0.0
      %v5805 = vand.u32 %v4943, 4294901760
      %v5806 = vsub.f32 %v4943, %v5805
      %v5807 = vand.u32 %v5806, 4294901760
      %5808 = vmatpush1.msra.mxu0 %v5807
      %5809 = vmatprep.subr.mxu0 0.0
      %5810 = vmatpush1.msra.mxu0 0.0
      %5811 = vmatprep.subr.mxu0 0.0
      %5812 = vmatpush1.msra.mxu0 0.0
      %5813 = vmatprep.subr.mxu0 0.0
      %5814 = vmatpush1.msra.mxu0 0.0
      %5815 = vmatprep.subr.mxu0 0.0
      %5816 = vmatpush1.msra.mxu0 0.0
      %5817 = vmatprep.subr.mxu0 0.0
      %5818 = vmatpush1.msra.mxu0 0.0
      %5819 = vmatprep.subr.mxu0 0.0
      %5820 = vmatpush1.msra.mxu0 0.0
      %5821 = vmatprep.subr.mxu0 0.0
      %5822 = vmatpush1.msra.mxu0 0.0
      %5823 = vmatprep.subr.mxu0 0.0
      %5824 = vmatpush1.msra.mxu0 0.0
      %5825 = vmatprep.subr.mxu0 0.0
      %5826 = vmatpush1.msra.mxu0 0.0
      %5827 = vmatprep.subr.mxu0 0.0
      %5828 = vmatpush1.msra.mxu0 0.0
      %5829 = vmatprep.subr.mxu0 0.0
      %5830 = vmatpush1.msra.mxu0 0.0
      %5831 = vmatprep.subr.mxu0 0.0
      %5832 = vmatpush1.msra.mxu0 0.0
      %5833 = vmatprep.subr.mxu0 0.0
      %5834 = vmatpush1.msra.mxu0 0.0
      %5835 = vmatprep.subr.mxu0 0.0
      %5836 = vmatpush1.msra.mxu0 0.0
      %5837 = vmatprep.subr.mxu0 0.0
      %5838 = vmatpush1.msra.mxu0 0.0
      %5839 = vmatprep.subr.mxu0 0.0
      %5840 = vmatpush1.msra.mxu0 0.0
      %5841 = vmatprep.subr.mxu0 0.0
      %5842 = vmatpush1.msra.mxu0 0.0
      %5843 = vmatprep.subr.mxu0 0.0
      %5844 = vmatpush1.msra.mxu0 0.0
      %5845 = vmatprep.subr.mxu0 0.0
      %5846 = vmatpush1.msra.mxu0 0.0
      %5847 = vmatprep.subr.mxu0 0.0
      %5848 = vmatpush1.msra.mxu0 0.0
      %5849 = vmatprep.subr.mxu0 0.0
      %5850 = vmatpush1.msra.mxu0 0.0
      %5851 = vmatprep.subr.mxu0 0.0
      %5852 = vmatpush1.msra.mxu0 0.0
      %5853 = vmatprep.subr.mxu0 0.0
      %5854 = vmatpush1.msra.mxu0 0.0
      %5855 = vmatprep.subr.mxu0 0.0
      %5856 = vmatpush1.msra.mxu0 0.0
      %5857 = vmatprep.subr.mxu0 0.0
      %5858 = vmatpush1.msra.mxu0 0.0
      %5859 = vmatprep.subr.mxu0 0.0
      %5860 = vmatpush1.msra.mxu0 0.0
      %5861 = vmatprep.subr.mxu0 0.0
      %5862 = vmatpush1.msra.mxu0 0.0
      %5863 = vmatprep.subr.mxu0 0.0
      %5864 = vmatpush1.msra.mxu0 0.0
      %5865 = vmatprep.mubr.f32.mxu0 0.0
      %v5866 = vand.u32 %v4950, 4294901760
      %5867 = vmatmul.mubr.f32.gmra.mrb[0].mxu0 %v5866
      %v5868 = vpop.f32.mrb[0].mxu0
      %v5869 = vadd.f32 %v5666, %v5868
      %v5870 = vpop.f32.mrb[0].mxu0
      %5871 = vmatprep.mubr.f32.mxu0 0.0
      %v5872 = vand.u32 %v4953, 4294901760
      %5873 = vmatmul.mubr.f32.gmra.mrb[0].mxu0 %v5872
      %v5874 = vpop.f32.mrb[0].mxu0
      %v5875 = vadd.f32 %v5674, %v5874
      %v5876 = vpop.f32.mrb[0].mxu0
      %5877 = vmatprep.mubr.f32.mxu0 0.0
      %v5878 = vand.u32 %v4956, 4294901760
      %5879 = vmatmul.mubr.f32.gmra.mrb[0].mxu0 %v5878
      %v5880 = vpop.f32.mrb[0].mxu0
      %v5881 = vadd.f32 %v5682, %v5880
      %v5882 = vpop.f32.mrb[0].mxu0
      %5883 = vmatprep.mubr.f32.mxu0 0.0
      %v5884 = vand.u32 %v4959, 4294901760
      %5885 = vmatmul.mubr.f32.gmra.mrb[0].mxu0 %v5884
      %v5886 = vpop.f32.mrb[0].mxu0
      %v5887 = vadd.f32 %v5690, %v5886
      %v5888 = vpop.f32.mrb[0].mxu0
      %5889 = vmatprep.mubr.f32.mxu0 0.0
      %v5890 = vand.u32 %v4962, 4294901760
      %5891 = vmatmul.mubr.f32.gmra.mrb[0].mxu0 %v5890
      %v5892 = vpop.f32.mrb[0].mxu0
      %v5893 = vadd.f32 %v5698, %v5892
      %v5894 = vpop.f32.mrb[0].mxu0
      %5895 = vmatprep.mubr.f32.mxu0 0.0
      %v5896 = vand.u32 %v4965, 4294901760
      %5897 = vmatmul.mubr.f32.gmra.mrb[0].mxu0 %v5896
      %v5898 = vpop.f32.mrb[0].mxu0
      %v5899 = vadd.f32 %v5706, %v5898
      %v5900 = vpop.f32.mrb[0].mxu0
      %5901 = vmatprep.mubr.f32.mxu0 0.0
      %v5902 = vand.u32 %v4968, 4294901760
      %5903 = vmatmul.mubr.f32.gmra.mrb[0].mxu0 %v5902
      %v5904 = vpop.f32.mrb[0].mxu0
      %v5905 = vadd.f32 %v5714, %v5904
      %v5906 = vpop.f32.mrb[0].mxu0
      %5907 = vmatprep.mubr.f32.mxu0 0.0
      %v5908 = vand.u32 %v4971, 4294901760
      %5909 = vmatmul.mubr.f32.gmra.mrb[0].mxu0 %v5908
      %v5910 = vpop.f32.mrb[0].mxu0
      %v5911 = vadd.f32 %v5722, %v5910
      %v5912 = vpop.f32.mrb[0].mxu0
      %5913 = vmatprep.mubr.f32.mxu0 0.0
      %v5914 = vand.u32 %v4974, 4294901760
      %5915 = vmatmul.mubr.f32.gmra.mrb[0].mxu0 %v5914
      %v5916 = vpop.f32.mrb[0].mxu0
      %v5917 = vadd.f32 %v5730, %v5916
      %v5918 = vpop.f32.mrb[0].mxu0
      %5919 = vmatprep.mubr.f32.mxu0 0.0
      %v5920 = vand.u32 %v4977, 4294901760
      %5921 = vmatmul.mubr.f32.gmra.mrb[0].mxu0 %v5920
      %v5922 = vpop.f32.mrb[0].mxu0
      %v5923 = vadd.f32 %v5738, %v5922
      %v5924 = vpop.f32.mrb[0].mxu0
      %5925 = vmatprep.mubr.f32.mxu0 0.0
      %v5926 = vand.u32 %v4980, 4294901760
      %5927 = vmatmul.mubr.f32.gmra.mrb[0].mxu0 %v5926
      %v5928 = vpop.f32.mrb[0].mxu0
      %v5929 = vadd.f32 %v5746, %v5928
      %v5930 = vpop.f32.mrb[0].mxu0
      %5931 = vmatprep.mubr.f32.mxu0 0.0
      %v5932 = vand.u32 %v4983, 4294901760
      %5933 = vmatmul.mubr.f32.gmra.mrb[0].mxu0 %v5932
      %v5934 = vpop.f32.mrb[0].mxu0
      %v5935 = vadd.f32 %v5754, %v5934
      %v5936 = vpop.f32.mrb[0].mxu0
      %5937 = vmatprep.mubr.f32.mxu0 0.0
      %v5938 = vand.u32 %v4986, 4294901760
      %5939 = vmatmul.mubr.f32.gmra.mrb[0].mxu0 %v5938
      %v5940 = vpop.f32.mrb[0].mxu0
      %v5941 = vadd.f32 %v5762, %v5940
      %v5942 = vpop.f32.mrb[0].mxu0
      %5943 = vmatprep.mubr.f32.mxu0 0.0
      %v5944 = vand.u32 %v4989, 4294901760
      %5945 = vmatmul.mubr.f32.gmra.mrb[0].mxu0 %v5944
      %v5946 = vpop.f32.mrb[0].mxu0
      %v5947 = vadd.f32 %v5770, %v5946
      %v5948 = vpop.f32.mrb[0].mxu0
      %5949 = vmatprep.mubr.f32.mxu0 0.0
      %v5950 = vand.u32 %v4992, 4294901760
      %5951 = vmatmul.mubr.f32.gmra.mrb[0].mxu0 %v5950
      %v5952 = vpop.f32.mrb[0].mxu0
      %v5953 = vadd.f32 %v5778, %v5952
      %v5954 = vpop.f32.mrb[0].mxu0
      %5955 = vmatprep.mubr.f32.mxu0 0.0
      %v5956 = vand.u32 %v4995, 4294901760
      %5957 = vmatmul.mubr.f32.gmra.mrb[0].mxu0 %v5956
      %v5958 = vpop.f32.mrb[0].mxu0
      %v5959 = vadd.f32 %v5786, %v5958
      %v5960 = vpop.f32.mrb[0].mxu0
      %5961 = vdwg.mxu0
      %5962 = vmatprep.subr.mxu0 0.0
      %v5963 = vand.u32 %v4940, 4294901760
      %5964 = vmatpush1.msra.mxu0 %v5963
      %5965 = vmatprep.subr.mxu0 0.0
      %v5966 = vand.u32 %v4941, 4294901760
      %5967 = vmatpush1.msra.mxu0 %v5966
      %5968 = vmatprep.subr.mxu0 0.0
      %v5969 = vand.u32 %v4942, 4294901760
      %5970 = vmatpush1.msra.mxu0 %v5969
      %5971 = vmatprep.subr.mxu0 0.0
      %v5972 = vand.u32 %v4943, 4294901760
      %5973 = vmatpush1.msra.mxu0 %v5972
      %5974 = vmatprep.subr.mxu0 0.0
      %5975 = vmatpush1.msra.mxu0 0.0
      %5976 = vmatprep.subr.mxu0 0.0
      %5977 = vmatpush1.msra.mxu0 0.0
      %5978 = vmatprep.subr.mxu0 0.0
      %5979 = vmatpush1.msra.mxu0 0.0
      %5980 = vmatprep.subr.mxu0 0.0
      %5981 = vmatpush1.msra.mxu0 0.0
      %5982 = vmatprep.subr.mxu0 0.0
      %5983 = vmatpush1.msra.mxu0 0.0
      %5984 = vmatprep.subr.mxu0 0.0
      %5985 = vmatpush1.msra.mxu0 0.0
      %5986 = vmatprep.subr.mxu0 0.0
      %5987 = vmatpush1.msra.mxu0 0.0
      %5988 = vmatprep.subr.mxu0 0.0
      %5989 = vmatpush1.msra.mxu0 0.0
      %5990 = vmatprep.subr.mxu0 0.0
      %5991 = vmatpush1.msra.mxu0 0.0
      %5992 = vmatprep.subr.mxu0 0.0
      %5993 = vmatpush1.msra.mxu0 0.0
      %5994 = vmatprep.subr.mxu0 0.0
      %5995 = vmatpush1.msra.mxu0 0.0
      %5996 = vmatprep.subr.mxu0 0.0
      %5997 = vmatpush1.msra.mxu0 0.0
      %5998 = vmatprep.subr.mxu0 0.0
      %5999 = vmatpush1.msra.mxu0 0.0
      %6000 = vmatprep.subr.mxu0 0.0
      %6001 = vmatpush1.msra.mxu0 0.0
      %6002 = vmatprep.subr.mxu0 0.0
      %6003 = vmatpush1.msra.mxu0 0.0
      %6004 = vmatprep.subr.mxu0 0.0
      %6005 = vmatpush1.msra.mxu0 0.0
      %6006 = vmatprep.subr.mxu0 0.0
      %6007 = vmatpush1.msra.mxu0 0.0
      %6008 = vmatprep.subr.mxu0 0.0
      %6009 = vmatpush1.msra.mxu0 0.0
      %6010 = vmatprep.subr.mxu0 0.0
      %6011 = vmatpush1.msra.mxu0 0.0
      %6012 = vmatprep.subr.mxu0 0.0
      %6013 = vmatpush1.msra.mxu0 0.0
      %6014 = vmatprep.subr.mxu0 0.0
      %6015 = vmatpush1.msra.mxu0 0.0
      %6016 = vmatprep.subr.mxu0 0.0
      %6017 = vmatpush1.msra.mxu0 0.0
      %6018 = vmatprep.subr.mxu0 0.0
      %6019 = vmatpush1.msra.mxu0 0.0
      %6020 = vmatprep.subr.mxu0 0.0
      %6021 = vmatpush1.msra.mxu0 0.0
      %6022 = vmatprep.subr.mxu0 0.0
      %6023 = vmatpush1.msra.mxu0 0.0
      %6024 = vmatprep.subr.mxu0 0.0
      %6025 = vmatpush1.msra.mxu0 0.0
      %6026 = vmatprep.subr.mxu0 0.0
      %6027 = vmatpush1.msra.mxu0 0.0
      %6028 = vmatprep.subr.mxu0 0.0
      %6029 = vmatpush1.msra.mxu0 0.0
      %6030 = vmatprep.mubr.f32.mxu0 0.0
      %v6031 = vand.u32 %v4950, 4294901760
      %6032 = vmatmul.mubr.f32.gmra.mrb[0].mxu0 %v6031
      %v6033 = vpop.f32.mrb[0].mxu0
      %v6034 = vadd.f32 %v5869, %v6033
      %v6035 = vpop.f32.mrb[0].mxu0
      %6036 = vmatprep.mubr.f32.mxu0 0.0
      %v6037 = vand.u32 %v4953, 4294901760
      %6038 = vmatmul.mubr.f32.gmra.mrb[0].mxu0 %v6037
      %v6039 = vpop.f32.mrb[0].mxu0
      %v6040 = vadd.f32 %v5875, %v6039
      %v6041 = vpop.f32.mrb[0].mxu0
      %6042 = vmatprep.mubr.f32.mxu0 0.0
      %v6043 = vand.u32 %v4956, 4294901760
      %6044 = vmatmul.mubr.f32.gmra.mrb[0].mxu0 %v6043
      %v6045 = vpop.f32.mrb[0].mxu0
      %v6046 = vadd.f32 %v5881, %v6045
      %v6047 = vpop.f32.mrb[0].mxu0
      %6048 = vmatprep.mubr.f32.mxu0 0.0
      %v6049 = vand.u32 %v4959, 4294901760
      %6050 = vmatmul.mubr.f32.gmra.mrb[0].mxu0 %v6049
      %v6051 = vpop.f32.mrb[0].mxu0
      %v6052 = vadd.f32 %v5887, %v6051
      %v6053 = vpop.f32.mrb[0].mxu0
      %6054 = vmatprep.mubr.f32.mxu0 0.0
      %v6055 = vand.u32 %v4962, 4294901760
      %6056 = vmatmul.mubr.f32.gmra.mrb[0].mxu0 %v6055
      %v6057 = vpop.f32.mrb[0].mxu0
      %v6058 = vadd.f32 %v5893, %v6057
      %v6059 = vpop.f32.mrb[0].mxu0
      %6060 = vmatprep.mubr.f32.mxu0 0.0
      %v6061 = vand.u32 %v4965, 4294901760
      %6062 = vmatmul.mubr.f32.gmra.mrb[0].mxu0 %v6061
      %v6063 = vpop.f32.mrb[0].mxu0
      %v6064 = vadd.f32 %v5899, %v6063
      %v6065 = vpop.f32.mrb[0].mxu0
      %6066 = vmatprep.mubr.f32.mxu0 0.0
      %v6067 = vand.u32 %v4968, 4294901760
      %6068 = vmatmul.mubr.f32.gmra.mrb[0].mxu0 %v6067
      %v6069 = vpop.f32.mrb[0].mxu0
      %v6070 = vadd.f32 %v5905, %v6069
      %v6071 = vpop.f32.mrb[0].mxu0
      %6072 = vmatprep.mubr.f32.mxu0 0.0
      %v6073 = vand.u32 %v4971, 4294901760
      %6074 = vmatmul.mubr.f32.gmra.mrb[0].mxu0 %v6073
      %v6075 = vpop.f32.mrb[0].mxu0
      %v6076 = vadd.f32 %v5911, %v6075
      %v6077 = vpop.f32.mrb[0].mxu0
      %6078 = vmatprep.mubr.f32.mxu0 0.0
      %v6079 = vand.u32 %v4974, 4294901760
      %6080 = vmatmul.mubr.f32.gmra.mrb[0].mxu0 %v6079
      %v6081 = vpop.f32.mrb[0].mxu0
      %v6082 = vadd.f32 %v5917, %v6081
      %v6083 = vpop.f32.mrb[0].mxu0
      %6084 = vmatprep.mubr.f32.mxu0 0.0
      %v6085 = vand.u32 %v4977, 4294901760
      %6086 = vmatmul.mubr.f32.gmra.mrb[0].mxu0 %v6085
      %v6087 = vpop.f32.mrb[0].mxu0
      %v6088 = vadd.f32 %v5923, %v6087
      %v6089 = vpop.f32.mrb[0].mxu0
      %6090 = vmatprep.mubr.f32.mxu0 0.0
      %v6091 = vand.u32 %v4980, 4294901760
      %6092 = vmatmul.mubr.f32.gmra.mrb[0].mxu0 %v6091
      %v6093 = vpop.f32.mrb[0].mxu0
      %v6094 = vadd.f32 %v5929, %v6093
      %v6095 = vpop.f32.mrb[0].mxu0
      %6096 = vmatprep.mubr.f32.mxu0 0.0
      %v6097 = vand.u32 %v4983, 4294901760
      %6098 = vmatmul.mubr.f32.gmra.mrb[0].mxu0 %v6097
      %v6099 = vpop.f32.mrb[0].mxu0
      %v6100 = vadd.f32 %v5935, %v6099
      %v6101 = vpop.f32.mrb[0].mxu0
      %6102 = vmatprep.mubr.f32.mxu0 0.0
      %v6103 = vand.u32 %v4986, 4294901760
      %6104 = vmatmul.mubr.f32.gmra.mrb[0].mxu0 %v6103
      %v6105 = vpop.f32.mrb[0].mxu0
      %v6106 = vadd.f32 %v5941, %v6105
      %v6107 = vpop.f32.mrb[0].mxu0
      %6108 = vmatprep.mubr.f32.mxu0 0.0
      %v6109 = vand.u32 %v4989, 4294901760
      %6110 = vmatmul.mubr.f32.gmra.mrb[0].mxu0 %v6109
      %v6111 = vpop.f32.mrb[0].mxu0
      %v6112 = vadd.f32 %v5947, %v6111
      %v6113 = vpop.f32.mrb[0].mxu0
      %6114 = vmatprep.mubr.f32.mxu0 0.0
      %v6115 = vand.u32 %v4992, 4294901760
      %6116 = vmatmul.mubr.f32.gmra.mrb[0].mxu0 %v6115
      %v6117 = vpop.f32.mrb[0].mxu0
      %v6118 = vadd.f32 %v5953, %v6117
      %v6119 = vpop.f32.mrb[0].mxu0
      %6120 = vmatprep.mubr.f32.mxu0 0.0
      %v6121 = vand.u32 %v4995, 4294901760
      %6122 = vmatmul.mubr.f32.gmra.mrb[0].mxu0 %v6121
      %v6123 = vpop.f32.mrb[0].mxu0
      %v6124 = vadd.f32 %v5959, %v6123
      %v6125 = vpop.f32.mrb[0].mxu0
      %6126 = vdwg.mxu0
      %v6127 = vsel %vm2044, %v6034, 0.0
      %6128 = vadd.xlane.f32.xlu0 %v6127
      %v6129 = vpop.xlane.xlu0 %6128
      %v6130 = vsel %vm2044, %v6040, 0.0
      %6131 = vadd.xlane.f32.xlu0 %v6130
      %v6132 = vpop.xlane.xlu0 %6131
      %v6133 = vsel %vm2044, %v6046, 0.0
      %6134 = vadd.xlane.f32.xlu0 %v6133
      %v6135 = vpop.xlane.xlu0 %6134
      %v6136 = vsel %vm2044, %v6052, 0.0
      %6137 = vadd.xlane.f32.xlu0 %v6136
      %v6138 = vpop.xlane.xlu0 %6137
      %v6139 = vsel %vm2044, %v6058, 0.0
      %6140 = vadd.xlane.f32.xlu0 %v6139
      %v6141 = vpop.xlane.xlu0 %6140
      %v6142 = vsel %vm2044, %v6064, 0.0
      %6143 = vadd.xlane.f32.xlu0 %v6142
      %v6144 = vpop.xlane.xlu0 %6143
      %v6145 = vsel %vm2044, %v6070, 0.0
      %6146 = vadd.xlane.f32.xlu0 %v6145
      %v6147 = vpop.xlane.xlu0 %6146
      %v6148 = vsel %vm2044, %v6076, 0.0
      %6149 = vadd.xlane.f32.xlu0 %v6148
      %v6150 = vpop.xlane.xlu0 %6149
      %v6151 = vsel %vm2044, %v6082, 0.0
      %6152 = vadd.xlane.f32.xlu0 %v6151
      %v6153 = vpop.xlane.xlu0 %6152
      %v6154 = vsel %vm2044, %v6088, 0.0
      %6155 = vadd.xlane.f32.xlu0 %v6154
      %v6156 = vpop.xlane.xlu0 %6155
      %v6157 = vsel %vm2044, %v6094, 0.0
      %6158 = vadd.xlane.f32.xlu0 %v6157
      %v6159 = vpop.xlane.xlu0 %6158
      %v6160 = vsel %vm2044, %v6100, 0.0
      %6161 = vadd.xlane.f32.xlu0 %v6160
      %v6162 = vpop.xlane.xlu0 %6161
      %v6163 = vsel %vm2044, %v6106, 0.0
      %6164 = vadd.xlane.f32.xlu0 %v6163
      %v6165 = vpop.xlane.xlu0 %6164
      %v6166 = vsel %vm2044, %v6112, 0.0
      %6167 = vadd.xlane.f32.xlu0 %v6166
      %v6168 = vpop.xlane.xlu0 %6167
      %v6169 = vsel %vm2044, %v6118, 0.0
      %6170 = vadd.xlane.f32.xlu0 %v6169
      %v6171 = vpop.xlane.xlu0 %6170
      %v6172 = vsel %vm2044, %v6124, 0.0
      %6173 = vadd.xlane.f32.xlu0 %v6172
      %v6174 = vpop.xlane.xlu0 %6173
      %v6175 = vrcp.pop 32.0
      %v6176 = vmul.f32 %v6129, %v6175
      %v6177 = vmul.f32 %v6132, %v6175
      %v6178 = vmul.f32 %v6135, %v6175
      %v6179 = vmul.f32 %v6138, %v6175
      %v6180 = vmul.f32 %v6141, %v6175
      %v6181 = vmul.f32 %v6144, %v6175
      %v6182 = vmul.f32 %v6147, %v6175
      %v6183 = vmul.f32 %v6150, %v6175
      %v6184 = vmul.f32 %v6153, %v6175
      %v6185 = vmul.f32 %v6156, %v6175
      %v6186 = vmul.f32 %v6159, %v6175
      %v6187 = vmul.f32 %v6162, %v6175
      %v6188 = vmul.f32 %v6165, %v6175
      %v6189 = vmul.f32 %v6168, %v6175
      %v6190 = vmul.f32 %v6171, %v6175
      %v6191 = vmul.f32 %v6174, %v6175
      %v6192 = vsub.f32 %v6034, %v6176
      %v6193 = vsub.f32 %v6040, %v6177
      %v6194 = vsub.f32 %v6046, %v6178
      %v6195 = vsub.f32 %v6052, %v6179
      %v6196 = vsub.f32 %v6058, %v6180
      %v6197 = vsub.f32 %v6064, %v6181
      %v6198 = vsub.f32 %v6070, %v6182
      %v6199 = vsub.f32 %v6076, %v6183
      %v6200 = vsub.f32 %v6082, %v6184
      %v6201 = vsub.f32 %v6088, %v6185
      %v6202 = vsub.f32 %v6094, %v6186
      %v6203 = vsub.f32 %v6100, %v6187
      %v6204 = vsub.f32 %v6106, %v6188
      %v6205 = vsub.f32 %v6112, %v6189
      %v6206 = vsub.f32 %v6118, %v6190
      %v6207 = vsub.f32 %v6124, %v6191
      %v6208 = vmul.f32 %v6192, %v6192
      %v6209 = vmul.f32 %v6193, %v6193
      %v6210 = vmul.f32 %v6194, %v6194
      %v6211 = vmul.f32 %v6195, %v6195
      %v6212 = vmul.f32 %v6196, %v6196
      %v6213 = vmul.f32 %v6197, %v6197
      %v6214 = vmul.f32 %v6198, %v6198
      %v6215 = vmul.f32 %v6199, %v6199
      %v6216 = vmul.f32 %v6200, %v6200
      %v6217 = vmul.f32 %v6201, %v6201
      %v6218 = vmul.f32 %v6202, %v6202
      %v6219 = vmul.f32 %v6203, %v6203
      %v6220 = vmul.f32 %v6204, %v6204
      %v6221 = vmul.f32 %v6205, %v6205
      %v6222 = vmul.f32 %v6206, %v6206
      %v6223 = vmul.f32 %v6207, %v6207
      %v6224 = vsel %vm2044, %v6208, 0.0
      %6225 = vadd.xlane.f32.xlu0 %v6224
      %v6226 = vpop.xlane.xlu0 %6225
      %v6227 = vsel %vm2044, %v6209, 0.0
      %6228 = vadd.xlane.f32.xlu0 %v6227
      %v6229 = vpop.xlane.xlu0 %6228
      %v6230 = vsel %vm2044, %v6210, 0.0
      %6231 = vadd.xlane.f32.xlu0 %v6230
      %v6232 = vpop.xlane.xlu0 %6231
      %v6233 = vsel %vm2044, %v6211, 0.0
      %6234 = vadd.xlane.f32.xlu0 %v6233
      %v6235 = vpop.xlane.xlu0 %6234
      %v6236 = vsel %vm2044, %v6212, 0.0
      %6237 = vadd.xlane.f32.xlu0 %v6236
      %v6238 = vpop.xlane.xlu0 %6237
      %v6239 = vsel %vm2044, %v6213, 0.0
      %6240 = vadd.xlane.f32.xlu0 %v6239
      %v6241 = vpop.xlane.xlu0 %6240
      %v6242 = vsel %vm2044, %v6214, 0.0
      %6243 = vadd.xlane.f32.xlu0 %v6242
      %v6244 = vpop.xlane.xlu0 %6243
      %v6245 = vsel %vm2044, %v6215, 0.0
      %6246 = vadd.xlane.f32.xlu0 %v6245
      %v6247 = vpop.xlane.xlu0 %6246
      %v6248 = vsel %vm2044, %v6216, 0.0
      %6249 = vadd.xlane.f32.xlu0 %v6248
      %v6250 = vpop.xlane.xlu0 %6249
      %v6251 = vsel %vm2044, %v6217, 0.0
      %6252 = vadd.xlane.f32.xlu0 %v6251
      %v6253 = vpop.xlane.xlu0 %6252
      %v6254 = vsel %vm2044, %v6218, 0.0
      %6255 = vadd.xlane.f32.xlu0 %v6254
      %v6256 = vpop.xlane.xlu0 %6255
      %v6257 = vsel %vm2044, %v6219, 0.0
      %6258 = vadd.xlane.f32.xlu0 %v6257
      %v6259 = vpop.xlane.xlu0 %6258
      %v6260 = vsel %vm2044, %v6220, 0.0
      %6261 = vadd.xlane.f32.xlu0 %v6260
      %v6262 = vpop.xlane.xlu0 %6261
      %v6263 = vsel %vm2044, %v6221, 0.0
      %6264 = vadd.xlane.f32.xlu0 %v6263
      %v6265 = vpop.xlane.xlu0 %6264
      %v6266 = vsel %vm2044, %v6222, 0.0
      %6267 = vadd.xlane.f32.xlu0 %v6266
      %v6268 = vpop.xlane.xlu0 %6267
      %v6269 = vsel %vm2044, %v6223, 0.0
      %6270 = vadd.xlane.f32.xlu0 %v6269
      %v6271 = vpop.xlane.xlu0 %6270
      %v6272 = vmul.f32 %v6226, %v6175
      %v6273 = vmul.f32 %v6229, %v6175
      %v6274 = vmul.f32 %v6232, %v6175
      %v6275 = vmul.f32 %v6235, %v6175
      %v6276 = vmul.f32 %v6238, %v6175
      %v6277 = vmul.f32 %v6241, %v6175
      %v6278 = vmul.f32 %v6244, %v6175
      %v6279 = vmul.f32 %v6247, %v6175
      %v6280 = vmul.f32 %v6250, %v6175
      %v6281 = vmul.f32 %v6253, %v6175
      %v6282 = vmul.f32 %v6256, %v6175
      %v6283 = vmul.f32 %v6259, %v6175
      %v6284 = vmul.f32 %v6262, %v6175
      %v6285 = vmul.f32 %v6265, %v6175
      %v6286 = vmul.f32 %v6268, %v6175
      %v6287 = vmul.f32 %v6271, %v6175
      %v6288 = vadd.f32 %v6272, 1e-05
      %v6289 = vadd.f32 %v6273, 1e-05
      %v6290 = vadd.f32 %v6274, 1e-05
      %v6291 = vadd.f32 %v6275, 1e-05
      %v6292 = vadd.f32 %v6276, 1e-05
      %v6293 = vadd.f32 %v6277, 1e-05
      %v6294 = vadd.f32 %v6278, 1e-05
      %v6295 = vadd.f32 %v6279, 1e-05
      %v6296 = vadd.f32 %v6280, 1e-05
      %v6297 = vadd.f32 %v6281, 1e-05
      %v6298 = vadd.f32 %v6282, 1e-05
      %v6299 = vadd.f32 %v6283, 1e-05
      %v6300 = vadd.f32 %v6284, 1e-05
      %v6301 = vadd.f32 %v6285, 1e-05
      %v6302 = vadd.f32 %v6286, 1e-05
      %v6303 = vadd.f32 %v6287, 1e-05
      %v6304 = vrsqrt.pop %v6288
      %v6305 = vrsqrt.pop %v6289
      %v6306 = vrsqrt.pop %v6290
      %v6307 = vrsqrt.pop %v6291
      %v6308 = vrsqrt.pop %v6292
      %v6309 = vrsqrt.pop %v6293
      %v6310 = vrsqrt.pop %v6294
      %v6311 = vrsqrt.pop %v6295
      %v6312 = vrsqrt.pop %v6296
      %v6313 = vrsqrt.pop %v6297
      %v6314 = vrsqrt.pop %v6298
      %v6315 = vrsqrt.pop %v6299
      %v6316 = vrsqrt.pop %v6300
      %v6317 = vrsqrt.pop %v6301
      %v6318 = vrsqrt.pop %v6302
      %v6319 = vrsqrt.pop %v6303
      %v6320 = vmul.f32 %v6192, %v6304
      %v6321 = vmul.f32 %v6193, %v6305
      %v6322 = vmul.f32 %v6194, %v6306
      %v6323 = vmul.f32 %v6195, %v6307
      %v6324 = vmul.f32 %v6196, %v6308
      %v6325 = vmul.f32 %v6197, %v6309
      %v6326 = vmul.f32 %v6198, %v6310
      %v6327 = vmul.f32 %v6199, %v6311
      %v6328 = vmul.f32 %v6200, %v6312
      %v6329 = vmul.f32 %v6201, %v6313
      %v6330 = vmul.f32 %v6202, %v6314
      %v6331 = vmul.f32 %v6203, %v6315
      %v6332 = vmul.f32 %v6204, %v6316
      %v6333 = vmul.f32 %v6205, %v6317
      %v6334 = vmul.f32 %v6206, %v6318
      %v6335 = vmul.f32 %v6207, %v6319
      %v6336 = vld [vmem:[%s11 + $0x5] sm:$0x1]
      %v6337 = vlaneseq
      %v6338 = vshrl.u32 %v6337, 7
      %v6339 = vsub.s32 0, %v6338
      %v6340 = vrot.slane %v6336, %v6339
      %v6341 = vmul.f32 %v6320, %v6340
      %v6342 = vmul.f32 %v6321, %v6340
      %v6343 = vmul.f32 %v6322, %v6340
      %v6344 = vmul.f32 %v6323, %v6340
      %v6345 = vmul.f32 %v6324, %v6340
      %v6346 = vmul.f32 %v6325, %v6340
      %v6347 = vmul.f32 %v6326, %v6340
      %v6348 = vmul.f32 %v6327, %v6340
      %v6349 = vmul.f32 %v6328, %v6340
      %v6350 = vmul.f32 %v6329, %v6340
      %v6351 = vmul.f32 %v6330, %v6340
      %v6352 = vmul.f32 %v6331, %v6340
      %v6353 = vmul.f32 %v6332, %v6340
      %v6354 = vmul.f32 %v6333, %v6340
      %v6355 = vmul.f32 %v6334, %v6340
      %v6356 = vmul.f32 %v6335, %v6340
      %v6357 = vld [vmem:[%s11 + $0x6] sm:$0x1]
      %v6358 = vlaneseq
      %v6359 = vshrl.u32 %v6358, 7
      %v6360 = vsub.s32 0, %v6359
      %v6361 = vrot.slane %v6357, %v6360
      %v6362 = vadd.f32 %v6341, %v6361
      %v6363 = vadd.f32 %v6342, %v6361
      %v6364 = vadd.f32 %v6343, %v6361
      %v6365 = vadd.f32 %v6344, %v6361
      %v6366 = vadd.f32 %v6345, %v6361
      %v6367 = vadd.f32 %v6346, %v6361
      %v6368 = vadd.f32 %v6347, %v6361
      %v6369 = vadd.f32 %v6348, %v6361
      %v6370 = vadd.f32 %v6349, %v6361
      %v6371 = vadd.f32 %v6350, %v6361
      %v6372 = vadd.f32 %v6351, %v6361
      %v6373 = vadd.f32 %v6352, %v6361
      %v6374 = vadd.f32 %v6353, %v6361
      %v6375 = vadd.f32 %v6354, %v6361
      %v6376 = vadd.f32 %v6355, %v6361
      %v6377 = vadd.f32 %v6356, %v6361
      %v6378 = vmax.f32 %v6362, 0.0
      %v6379 = vmax.f32 %v6363, 0.0
      %v6380 = vmax.f32 %v6364, 0.0
      %v6381 = vmax.f32 %v6365, 0.0
      %v6382 = vmax.f32 %v6366, 0.0
      %v6383 = vmax.f32 %v6367, 0.0
      %v6384 = vmax.f32 %v6368, 0.0
      %v6385 = vmax.f32 %v6369, 0.0
      %v6386 = vmax.f32 %v6370, 0.0
      %v6387 = vmax.f32 %v6371, 0.0
      %v6388 = vmax.f32 %v6372, 0.0
      %v6389 = vmax.f32 %v6373, 0.0
      %v6390 = vmax.f32 %v6374, 0.0
      %v6391 = vmax.f32 %v6375, 0.0
      %v6392 = vmax.f32 %v6376, 0.0
      %v6393 = vmax.f32 %v6377, 0.0
      %6410 = vrot.lane.b32.xlu0 %v4844, 64
      %v6411 = vpop.permute.xlu0 %6410
      %6412 = vrot.lane.b32.xlu0 %v4845, 64
      %v6413 = vpop.permute.xlu0 %6412
      %6414 = vrot.lane.b32.xlu0 %v4846, 64
      %v6415 = vpop.permute.xlu0 %6414
      %6416 = vrot.lane.b32.xlu0 %v4847, 64
      %v6417 = vpop.permute.xlu0 %6416
      %6418 = vrot.lane.b32.xlu0 %v4848, 64
      %v6419 = vpop.permute.xlu0 %6418
      %6420 = vrot.lane.b32.xlu0 %v4849, 64
      %v6421 = vpop.permute.xlu0 %6420
      %6422 = vrot.lane.b32.xlu0 %v4850, 64
      %v6423 = vpop.permute.xlu0 %6422
      %6424 = vrot.lane.b32.xlu0 %v4851, 64
      %v6425 = vpop.permute.xlu0 %6424
      %6426 = vrot.lane.b32.xlu0 %v4852, 64
      %v6427 = vpop.permute.xlu0 %6426
      %6428 = vrot.lane.b32.xlu0 %v4853, 64
      %v6429 = vpop.permute.xlu0 %6428
      %6430 = vrot.lane.b32.xlu0 %v4854, 64
      %v6431 = vpop.permute.xlu0 %6430
      %6432 = vrot.lane.b32.xlu0 %v4855, 64
      %v6433 = vpop.permute.xlu0 %6432
      %6434 = vrot.lane.b32.xlu0 %v4856, 64
      %v6435 = vpop.permute.xlu0 %6434
      %6436 = vrot.lane.b32.xlu0 %v4857, 64
      %v6437 = vpop.permute.xlu0 %6436
      %6438 = vrot.lane.b32.xlu0 %v4858, 64
      %v6439 = vpop.permute.xlu0 %6438
      %6440 = vrot.lane.b32.xlu0 %v4859, 64
      %v6441 = vpop.permute.xlu0 %6440
      %v6458 = vsel %vm2044, %v6411, 0.0
      %6459 = vadd.xlane.f32.xlu0 %v6458
      %v6460 = vpop.xlane.xlu0 %6459
      %v6461 = vsel %vm2044, %v6413, 0.0
      %6462 = vadd.xlane.f32.xlu0 %v6461
      %v6463 = vpop.xlane.xlu0 %6462
      %v6464 = vsel %vm2044, %v6415, 0.0
      %6465 = vadd.xlane.f32.xlu0 %v6464
      %v6466 = vpop.xlane.xlu0 %6465
      %v6467 = vsel %vm2044, %v6417, 0.0
      %6468 = vadd.xlane.f32.xlu0 %v6467
      %v6469 = vpop.xlane.xlu0 %6468
      %v6470 = vsel %vm2044, %v6419, 0.0
      %6471 = vadd.xlane.f32.xlu0 %v6470
      %v6472 = vpop.xlane.xlu0 %6471
      %v6473 = vsel %vm2044, %v6421, 0.0
      %6474 = vadd.xlane.f32.xlu0 %v6473
      %v6475 = vpop.xlane.xlu0 %6474
      %v6476 = vsel %vm2044, %v6423, 0.0
      %6477 = vadd.xlane.f32.xlu0 %v6476
      %v6478 = vpop.xlane.xlu0 %6477
      %v6479 = vsel %vm2044, %v6425, 0.0
      %6480 = vadd.xlane.f32.xlu0 %v6479
      %v6481 = vpop.xlane.xlu0 %6480
      %v6482 = vsel %vm2044, %v6427, 0.0
      %6483 = vadd.xlane.f32.xlu0 %v6482
      %v6484 = vpop.xlane.xlu0 %6483
      %v6485 = vsel %vm2044, %v6429, 0.0
      %6486 = vadd.xlane.f32.xlu0 %v6485
      %v6487 = vpop.xlane.xlu0 %6486
      %v6488 = vsel %vm2044, %v6431, 0.0
      %6489 = vadd.xlane.f32.xlu0 %v6488
      %v6490 = vpop.xlane.xlu0 %6489
      %v6491 = vsel %vm2044, %v6433, 0.0
      %6492 = vadd.xlane.f32.xlu0 %v6491
      %v6493 = vpop.xlane.xlu0 %6492
      %v6494 = vsel %vm2044, %v6435, 0.0
      %6495 = vadd.xlane.f32.xlu0 %v6494
      %v6496 = vpop.xlane.xlu0 %6495
      %v6497 = vsel %vm2044, %v6437, 0.0
      %6498 = vadd.xlane.f32.xlu0 %v6497
      %v6499 = vpop.xlane.xlu0 %6498
      %v6500 = vsel %vm2044, %v6439, 0.0
      %6501 = vadd.xlane.f32.xlu0 %v6500
      %v6502 = vpop.xlane.xlu0 %6501
      %v6503 = vsel %vm2044, %v6441, 0.0
      %6504 = vadd.xlane.f32.xlu0 %v6503
      %v6505 = vpop.xlane.xlu0 %6504
      %v6506 = vmul.f32 %v6460, %v6175
      %v6507 = vmul.f32 %v6463, %v6175
      %v6508 = vmul.f32 %v6466, %v6175
      %v6509 = vmul.f32 %v6469, %v6175
      %v6510 = vmul.f32 %v6472, %v6175
      %v6511 = vmul.f32 %v6475, %v6175
      %v6512 = vmul.f32 %v6478, %v6175
      %v6513 = vmul.f32 %v6481, %v6175
      %v6514 = vmul.f32 %v6484, %v6175
      %v6515 = vmul.f32 %v6487, %v6175
      %v6516 = vmul.f32 %v6490, %v6175
      %v6517 = vmul.f32 %v6493, %v6175
      %v6518 = vmul.f32 %v6496, %v6175
      %v6519 = vmul.f32 %v6499, %v6175
      %v6520 = vmul.f32 %v6502, %v6175
      %v6521 = vmul.f32 %v6505, %v6175
      %v6522 = vsub.f32 %v4844, %v6506
      %v6523 = vsub.f32 %v4845, %v6507
      %v6524 = vsub.f32 %v4846, %v6508
      %v6525 = vsub.f32 %v4847, %v6509
      %v6526 = vsub.f32 %v4848, %v6510
      %v6527 = vsub.f32 %v4849, %v6511
      %v6528 = vsub.f32 %v4850, %v6512
      %v6529 = vsub.f32 %v4851, %v6513
      %v6530 = vsub.f32 %v4852, %v6514
      %v6531 = vsub.f32 %v4853, %v6515
      %v6532 = vsub.f32 %v4854, %v6516
      %v6533 = vsub.f32 %v4855, %v6517
      %v6534 = vsub.f32 %v4856, %v6518
      %v6535 = vsub.f32 %v4857, %v6519
      %v6536 = vsub.f32 %v4858, %v6520
      %v6537 = vsub.f32 %v4859, %v6521
      %v6538 = vmul.f32 %v6522, %v6522
      %v6539 = vmul.f32 %v6523, %v6523
      %v6540 = vmul.f32 %v6524, %v6524
      %v6541 = vmul.f32 %v6525, %v6525
      %v6542 = vmul.f32 %v6526, %v6526
      %v6543 = vmul.f32 %v6527, %v6527
      %v6544 = vmul.f32 %v6528, %v6528
      %v6545 = vmul.f32 %v6529, %v6529
      %v6546 = vmul.f32 %v6530, %v6530
      %v6547 = vmul.f32 %v6531, %v6531
      %v6548 = vmul.f32 %v6532, %v6532
      %v6549 = vmul.f32 %v6533, %v6533
      %v6550 = vmul.f32 %v6534, %v6534
      %v6551 = vmul.f32 %v6535, %v6535
      %v6552 = vmul.f32 %v6536, %v6536
      %v6553 = vmul.f32 %v6537, %v6537
      %6570 = vrot.lane.b32.xlu0 %v6538, 64
      %v6571 = vpop.permute.xlu0 %6570
      %6572 = vrot.lane.b32.xlu0 %v6539, 64
      %v6573 = vpop.permute.xlu0 %6572
      %6574 = vrot.lane.b32.xlu0 %v6540, 64
      %v6575 = vpop.permute.xlu0 %6574
      %6576 = vrot.lane.b32.xlu0 %v6541, 64
      %v6577 = vpop.permute.xlu0 %6576
      %6578 = vrot.lane.b32.xlu0 %v6542, 64
      %v6579 = vpop.permute.xlu0 %6578
      %6580 = vrot.lane.b32.xlu0 %v6543, 64
      %v6581 = vpop.permute.xlu0 %6580
      %6582 = vrot.lane.b32.xlu0 %v6544, 64
      %v6583 = vpop.permute.xlu0 %6582
      %6584 = vrot.lane.b32.xlu0 %v6545, 64
      %v6585 = vpop.permute.xlu0 %6584
      %6586 = vrot.lane.b32.xlu0 %v6546, 64
      %v6587 = vpop.permute.xlu0 %6586
      %6588 = vrot.lane.b32.xlu0 %v6547, 64
      %v6589 = vpop.permute.xlu0 %6588
      %6590 = vrot.lane.b32.xlu0 %v6548, 64
      %v6591 = vpop.permute.xlu0 %6590
      %6592 = vrot.lane.b32.xlu0 %v6549, 64
      %v6593 = vpop.permute.xlu0 %6592
      %6594 = vrot.lane.b32.xlu0 %v6550, 64
      %v6595 = vpop.permute.xlu0 %6594
      %6596 = vrot.lane.b32.xlu0 %v6551, 64
      %v6597 = vpop.permute.xlu0 %6596
      %6598 = vrot.lane.b32.xlu0 %v6552, 64
      %v6599 = vpop.permute.xlu0 %6598
      %6600 = vrot.lane.b32.xlu0 %v6553, 64
      %v6601 = vpop.permute.xlu0 %6600
      %v6618 = vsel %vm2044, %v6571, 0.0
      %6619 = vadd.xlane.f32.xlu0 %v6618
      %v6620 = vpop.xlane.xlu0 %6619
      %v6621 = vsel %vm2044, %v6573, 0.0
      %6622 = vadd.xlane.f32.xlu0 %v6621
      %v6623 = vpop.xlane.xlu0 %6622
      %v6624 = vsel %vm2044, %v6575, 0.0
      %6625 = vadd.xlane.f32.xlu0 %v6624
      %v6626 = vpop.xlane.xlu0 %6625
      %v6627 = vsel %vm2044, %v6577, 0.0
      %6628 = vadd.xlane.f32.xlu0 %v6627
      %v6629 = vpop.xlane.xlu0 %6628
      %v6630 = vsel %vm2044, %v6579, 0.0
      %6631 = vadd.xlane.f32.xlu0 %v6630
      %v6632 = vpop.xlane.xlu0 %6631
      %v6633 = vsel %vm2044, %v6581, 0.0
      %6634 = vadd.xlane.f32.xlu0 %v6633
      %v6635 = vpop.xlane.xlu0 %6634
      %v6636 = vsel %vm2044, %v6583, 0.0
      %6637 = vadd.xlane.f32.xlu0 %v6636
      %v6638 = vpop.xlane.xlu0 %6637
      %v6639 = vsel %vm2044, %v6585, 0.0
      %6640 = vadd.xlane.f32.xlu0 %v6639
      %v6641 = vpop.xlane.xlu0 %6640
      %v6642 = vsel %vm2044, %v6587, 0.0
      %6643 = vadd.xlane.f32.xlu0 %v6642
      %v6644 = vpop.xlane.xlu0 %6643
      %v6645 = vsel %vm2044, %v6589, 0.0
      %6646 = vadd.xlane.f32.xlu0 %v6645
      %v6647 = vpop.xlane.xlu0 %6646
      %v6648 = vsel %vm2044, %v6591, 0.0
      %6649 = vadd.xlane.f32.xlu0 %v6648
      %v6650 = vpop.xlane.xlu0 %6649
      %v6651 = vsel %vm2044, %v6593, 0.0
      %6652 = vadd.xlane.f32.xlu0 %v6651
      %v6653 = vpop.xlane.xlu0 %6652
      %v6654 = vsel %vm2044, %v6595, 0.0
      %6655 = vadd.xlane.f32.xlu0 %v6654
      %v6656 = vpop.xlane.xlu0 %6655
      %v6657 = vsel %vm2044, %v6597, 0.0
      %6658 = vadd.xlane.f32.xlu0 %v6657
      %v6659 = vpop.xlane.xlu0 %6658
      %v6660 = vsel %vm2044, %v6599, 0.0
      %6661 = vadd.xlane.f32.xlu0 %v6660
      %v6662 = vpop.xlane.xlu0 %6661
      %v6663 = vsel %vm2044, %v6601, 0.0
      %6664 = vadd.xlane.f32.xlu0 %v6663
      %v6665 = vpop.xlane.xlu0 %6664
      %v6666 = vmul.f32 %v6620, %v6175
      %v6667 = vmul.f32 %v6623, %v6175
      %v6668 = vmul.f32 %v6626, %v6175
      %v6669 = vmul.f32 %v6629, %v6175
      %v6670 = vmul.f32 %v6632, %v6175
      %v6671 = vmul.f32 %v6635, %v6175
      %v6672 = vmul.f32 %v6638, %v6175
      %v6673 = vmul.f32 %v6641, %v6175
      %v6674 = vmul.f32 %v6644, %v6175
      %v6675 = vmul.f32 %v6647, %v6175
      %v6676 = vmul.f32 %v6650, %v6175
      %v6677 = vmul.f32 %v6653, %v6175
      %v6678 = vmul.f32 %v6656, %v6175
      %v6679 = vmul.f32 %v6659, %v6175
      %v6680 = vmul.f32 %v6662, %v6175
      %v6681 = vmul.f32 %v6665, %v6175
      %v6682 = vadd.f32 %v6666, 1e-05
      %v6683 = vadd.f32 %v6667, 1e-05
      %v6684 = vadd.f32 %v6668, 1e-05
      %v6685 = vadd.f32 %v6669, 1e-05
      %v6686 = vadd.f32 %v6670, 1e-05
      %v6687 = vadd.f32 %v6671, 1e-05
      %v6688 = vadd.f32 %v6672, 1e-05
      %v6689 = vadd.f32 %v6673, 1e-05
      %v6690 = vadd.f32 %v6674, 1e-05
      %v6691 = vadd.f32 %v6675, 1e-05
      %v6692 = vadd.f32 %v6676, 1e-05
      %v6693 = vadd.f32 %v6677, 1e-05
      %v6694 = vadd.f32 %v6678, 1e-05
      %v6695 = vadd.f32 %v6679, 1e-05
      %v6696 = vadd.f32 %v6680, 1e-05
      %v6697 = vadd.f32 %v6681, 1e-05
      %v6698 = vrsqrt.pop %v6682
      %v6699 = vrsqrt.pop %v6683
      %v6700 = vrsqrt.pop %v6684
      %v6701 = vrsqrt.pop %v6685
      %v6702 = vrsqrt.pop %v6686
      %v6703 = vrsqrt.pop %v6687
      %v6704 = vrsqrt.pop %v6688
      %v6705 = vrsqrt.pop %v6689
      %v6706 = vrsqrt.pop %v6690
      %v6707 = vrsqrt.pop %v6691
      %v6708 = vrsqrt.pop %v6692
      %v6709 = vrsqrt.pop %v6693
      %v6710 = vrsqrt.pop %v6694
      %v6711 = vrsqrt.pop %v6695
      %v6712 = vrsqrt.pop %v6696
      %v6713 = vrsqrt.pop %v6697
      %v6714 = vmul.f32 %v6522, %v6698
      %v6715 = vmul.f32 %v6523, %v6699
      %v6716 = vmul.f32 %v6524, %v6700
      %v6717 = vmul.f32 %v6525, %v6701
      %v6718 = vmul.f32 %v6526, %v6702
      %v6719 = vmul.f32 %v6527, %v6703
      %v6720 = vmul.f32 %v6528, %v6704
      %v6721 = vmul.f32 %v6529, %v6705
      %v6722 = vmul.f32 %v6530, %v6706
      %v6723 = vmul.f32 %v6531, %v6707
      %v6724 = vmul.f32 %v6532, %v6708
      %v6725 = vmul.f32 %v6533, %v6709
      %v6726 = vmul.f32 %v6534, %v6710
      %v6727 = vmul.f32 %v6535, %v6711
      %v6728 = vmul.f32 %v6536, %v6712
      %v6729 = vmul.f32 %v6537, %v6713
      %v6730 = vld [vmem:[%s11 + $0x1] sm:$0x1]
      %v6731 = vlaneseq
      %v6732 = vshrl.u32 %v6731, 7
      %v6733 = vsub.s32 0, %v6732
      %v6734 = vrot.slane %v6730, %v6733
      %6736 = vrot.lane.b32.xlu0 %v6734, 64
      %v6737 = vpop.permute.xlu0 %6736
      %v6739 = vmul.f32 %v6714, %v6737
      %v6740 = vmul.f32 %v6715, %v6737
      %v6741 = vmul.f32 %v6716, %v6737
      %v6742 = vmul.f32 %v6717, %v6737
      %v6743 = vmul.f32 %v6718, %v6737
      %v6744 = vmul.f32 %v6719, %v6737
      %v6745 = vmul.f32 %v6720, %v6737
      %v6746 = vmul.f32 %v6721, %v6737
      %v6747 = vmul.f32 %v6722, %v6737
      %v6748 = vmul.f32 %v6723, %v6737
      %v6749 = vmul.f32 %v6724, %v6737
      %v6750 = vmul.f32 %v6725, %v6737
      %v6751 = vmul.f32 %v6726, %v6737
      %v6752 = vmul.f32 %v6727, %v6737
      %v6753 = vmul.f32 %v6728, %v6737
      %v6754 = vmul.f32 %v6729, %v6737
      %v6755 = vld [vmem:[%s11 + $0x2] sm:$0x1]
      %v6756 = vlaneseq
      %v6757 = vshrl.u32 %v6756, 7
      %v6758 = vsub.s32 0, %v6757
      %v6759 = vrot.slane %v6755, %v6758
      %6761 = vrot.lane.b32.xlu0 %v6759, 64
      %v6762 = vpop.permute.xlu0 %6761
      %v6764 = vadd.f32 %v6739, %v6762
      %v6765 = vadd.f32 %v6740, %v6762
      %v6766 = vadd.f32 %v6741, %v6762
      %v6767 = vadd.f32 %v6742, %v6762
      %v6768 = vadd.f32 %v6743, %v6762
      %v6769 = vadd.f32 %v6744, %v6762
      %v6770 = vadd.f32 %v6745, %v6762
      %v6771 = vadd.f32 %v6746, %v6762
      %v6772 = vadd.f32 %v6747, %v6762
      %v6773 = vadd.f32 %v6748, %v6762
      %v6774 = vadd.f32 %v6749, %v6762
      %v6775 = vadd.f32 %v6750, %v6762
      %v6776 = vadd.f32 %v6751, %v6762
      %v6777 = vadd.f32 %v6752, %v6762
      %v6778 = vadd.f32 %v6753, %v6762
      %v6779 = vadd.f32 %v6754, %v6762
      %v6780 = vmax.f32 %v6764, 0.0
      %v6781 = vmax.f32 %v6765, 0.0
      %v6782 = vmax.f32 %v6766, 0.0
      %v6783 = vmax.f32 %v6767, 0.0
      %v6784 = vmax.f32 %v6768, 0.0
      %v6785 = vmax.f32 %v6769, 0.0
      %v6786 = vmax.f32 %v6770, 0.0
      %v6787 = vmax.f32 %v6771, 0.0
      %v6788 = vmax.f32 %v6772, 0.0
      %v6789 = vmax.f32 %v6773, 0.0
      %v6790 = vmax.f32 %v6774, 0.0
      %v6791 = vmax.f32 %v6775, 0.0
      %v6792 = vmax.f32 %v6776, 0.0
      %v6793 = vmax.f32 %v6777, 0.0
      %v6794 = vmax.f32 %v6778, 0.0
      %v6795 = vmax.f32 %v6779, 0.0
      %6812 = vrot.lane.b32.xlu0 %v6780, 96
      %v6813 = vpop.permute.xlu0 %6812
      %6814 = vrot.lane.b32.xlu0 %v6781, 96
      %v6815 = vpop.permute.xlu0 %6814
      %6816 = vrot.lane.b32.xlu0 %v6782, 96
      %v6817 = vpop.permute.xlu0 %6816
      %6818 = vrot.lane.b32.xlu0 %v6783, 96
      %v6819 = vpop.permute.xlu0 %6818
      %6820 = vrot.lane.b32.xlu0 %v6784, 96
      %v6821 = vpop.permute.xlu0 %6820
      %6822 = vrot.lane.b32.xlu0 %v6785, 96
      %v6823 = vpop.permute.xlu0 %6822
      %6824 = vrot.lane.b32.xlu0 %v6786, 96
      %v6825 = vpop.permute.xlu0 %6824
      %6826 = vrot.lane.b32.xlu0 %v6787, 96
      %v6827 = vpop.permute.xlu0 %6826
      %6828 = vrot.lane.b32.xlu0 %v6788, 96
      %v6829 = vpop.permute.xlu0 %6828
      %6830 = vrot.lane.b32.xlu0 %v6789, 96
      %v6831 = vpop.permute.xlu0 %6830
      %6832 = vrot.lane.b32.xlu0 %v6790, 96
      %v6833 = vpop.permute.xlu0 %6832
      %6834 = vrot.lane.b32.xlu0 %v6791, 96
      %v6835 = vpop.permute.xlu0 %6834
      %6836 = vrot.lane.b32.xlu0 %v6792, 96
      %v6837 = vpop.permute.xlu0 %6836
      %6838 = vrot.lane.b32.xlu0 %v6793, 96
      %v6839 = vpop.permute.xlu0 %6838
      %6840 = vrot.lane.b32.xlu0 %v6794, 96
      %v6841 = vpop.permute.xlu0 %6840
      %6842 = vrot.lane.b32.xlu0 %v6795, 96
      %v6843 = vpop.permute.xlu0 %6842
      %v6860 = vsel %vm2044, %v6378, %v6813
      %v6861 = vsel %vm2044, %v6379, %v6815
      %v6862 = vsel %vm2044, %v6380, %v6817
      %v6863 = vsel %vm2044, %v6381, %v6819
      %v6864 = vsel %vm2044, %v6382, %v6821
      %v6865 = vsel %vm2044, %v6383, %v6823
      %v6866 = vsel %vm2044, %v6384, %v6825
      %v6867 = vsel %vm2044, %v6385, %v6827
      %v6868 = vsel %vm2044, %v6386, %v6829
      %v6869 = vsel %vm2044, %v6387, %v6831
      %v6870 = vsel %vm2044, %v6388, %v6833
      %v6871 = vsel %vm2044, %v6389, %v6835
      %v6872 = vsel %vm2044, %v6390, %v6837
      %v6873 = vsel %vm2044, %v6391, %v6839
      %v6874 = vsel %vm2044, %v6392, %v6841
      %v6875 = vsel %vm2044, %v6393, %v6843
      %v6876 = vld [vmem:[%s10] sm:$0xff]
      %v6877 = vld [vmem:[%s10 + $0x8] sm:$0xff]
      %v6878 = vld [vmem:[%s10 + $0x10] sm:$0xff]
      %v6879 = vld [vmem:[%s10 + $0x18] sm:$0xff]
      %v6880 = vld [vmem:[%s10 + $0x20] sm:$0xff]
      %v6881 = vld [vmem:[%s10 + $0x28] sm:$0xff]
      %v6882 = vld [vmem:[%s10 + $0x30] sm:$0xff]
      %v6883 = vld [vmem:[%s10 + $0x38] sm:$0xff]
      %v6884 = vld [vmem:[%s11 + $0x7] sm:$0x1]
      %v6885 = vlaneseq
      %v6886 = vshrl.u32 %v6885, 7
      %v6887 = vsub.s32 0, %v6886
      %v6888 = vrot.slane %v6884, %v6887
      %v6890 = vsel %vm3407, %v6860, 0
      %v6893 = vsel %vm3407, %v6861, 0
      %v6896 = vsel %vm3407, %v6862, 0
      %v6899 = vsel %vm3407, %v6863, 0
      %v6902 = vsel %vm3407, %v6864, 0
      %v6905 = vsel %vm3407, %v6865, 0
      %v6908 = vsel %vm3407, %v6866, 0
      %v6911 = vsel %vm3407, %v6867, 0
      %v6914 = vsel %vm3407, %v6868, 0
      %v6917 = vsel %vm3407, %v6869, 0
      %v6920 = vsel %vm3407, %v6870, 0
      %v6923 = vsel %vm3407, %v6871, 0
      %v6926 = vsel %vm3407, %v6872, 0
      %v6929 = vsel %vm3407, %v6873, 0
      %v6932 = vsel %vm3407, %v6874, 0
      %v6935 = vsel %vm3407, %v6875, 0
      %6937 = vmatprep.subr.mxu0 0.0
      %v6938 = vand.u32 %v6876, 4294901760
      %6939 = vmatpush1.msra.mxu0 %v6938
      %6940 = vmatprep.subr.mxu0 0.0
      %v6941 = vand.u32 %v6877, 4294901760
      %6942 = vmatpush1.msra.mxu0 %v6941
      %6943 = vmatprep.subr.mxu0 0.0
      %v6944 = vand.u32 %v6878, 4294901760
      %6945 = vmatpush1.msra.mxu0 %v6944
      %6946 = vmatprep.subr.mxu0 0.0
      %v6947 = vand.u32 %v6879, 4294901760
      %6948 = vmatpush1.msra.mxu0 %v6947
      %6949 = vmatprep.subr.mxu0 0.0
      %v6950 = vand.u32 %v6880, 4294901760
      %6951 = vmatpush1.msra.mxu0 %v6950
      %6952 = vmatprep.subr.mxu0 0.0
      %v6953 = vand.u32 %v6881, 4294901760
      %6954 = vmatpush1.msra.mxu0 %v6953
      %6955 = vmatprep.subr.mxu0 0.0
      %v6956 = vand.u32 %v6882, 4294901760
      %6957 = vmatpush1.msra.mxu0 %v6956
      %6958 = vmatprep.subr.mxu0 0.0
      %v6959 = vand.u32 %v6883, 4294901760
      %6960 = vmatpush1.msra.mxu0 %v6959
      %6961 = vmatprep.subr.mxu0 0.0
      %6962 = vmatpush1.msra.mxu0 0.0
      %6963 = vmatprep.subr.mxu0 0.0
      %6964 = vmatpush1.msra.mxu0 0.0
      %6965 = vmatprep.subr.mxu0 0.0
      %6966 = vmatpush1.msra.mxu0 0.0
      %6967 = vmatprep.subr.mxu0 0.0
      %6968 = vmatpush1.msra.mxu0 0.0
      %6969 = vmatprep.subr.mxu0 0.0
      %6970 = vmatpush1.msra.mxu0 0.0
      %6971 = vmatprep.subr.mxu0 0.0
      %6972 = vmatpush1.msra.mxu0 0.0
      %6973 = vmatprep.subr.mxu0 0.0
      %6974 = vmatpush1.msra.mxu0 0.0
      %6975 = vmatprep.subr.mxu0 0.0
      %6976 = vmatpush1.msra.mxu0 0.0
      %6977 = vmatprep.subr.mxu0 0.0
      %6978 = vmatpush1.msra.mxu0 0.0
      %6979 = vmatprep.subr.mxu0 0.0
      %6980 = vmatpush1.msra.mxu0 0.0
      %6981 = vmatprep.subr.mxu0 0.0
      %6982 = vmatpush1.msra.mxu0 0.0
      %6983 = vmatprep.subr.mxu0 0.0
      %6984 = vmatpush1.msra.mxu0 0.0
      %6985 = vmatprep.subr.mxu0 0.0
      %6986 = vmatpush1.msra.mxu0 0.0
      %6987 = vmatprep.subr.mxu0 0.0
      %6988 = vmatpush1.msra.mxu0 0.0
      %6989 = vmatprep.subr.mxu0 0.0
      %6990 = vmatpush1.msra.mxu0 0.0
      %6991 = vmatprep.subr.mxu0 0.0
      %6992 = vmatpush1.msra.mxu0 0.0
      %6993 = vmatprep.subr.mxu0 0.0
      %6994 = vmatpush1.msra.mxu0 0.0
      %6995 = vmatprep.subr.mxu0 0.0
      %6996 = vmatpush1.msra.mxu0 0.0
      %6997 = vmatprep.subr.mxu0 0.0
      %6998 = vmatpush1.msra.mxu0 0.0
      %6999 = vmatprep.subr.mxu0 0.0
      %7000 = vmatpush1.msra.mxu0 0.0
      %7001 = vmatprep.subr.mxu0 0.0
      %7002 = vmatpush1.msra.mxu0 0.0
      %7003 = vmatprep.subr.mxu0 0.0
      %7004 = vmatpush1.msra.mxu0 0.0
      %7005 = vmatprep.subr.mxu0 0.0
      %7006 = vmatpush1.msra.mxu0 0.0
      %7007 = vmatprep.subr.mxu0 0.0
      %7008 = vmatpush1.msra.mxu0 0.0
      %7009 = vmatprep.mubr.f32.mxu0 0.0
      %v7010 = vand.u32 %v6890, 4294901760
      %v7011 = vsub.f32 %v6890, %v7010
      %v7012 = vand.u32 %v7011, 4294901760
      %v7013 = vsub.f32 %v7011, %v7012
      %v7014 = vand.u32 %v7013, 4294901760
      %7015 = vmatmul.mubr.f32.gmra.mrb[0].mxu0 %v7014
      %v7016 = vpop.f32.mrb[0].mxu0
      %v7017 = vadd.f32 %v6888, %v7016
      %v7018 = vpop.f32.mrb[0].mxu0
      %7019 = vmatprep.mubr.f32.mxu0 0.0
      %v7020 = vand.u32 %v6893, 4294901760
      %v7021 = vsub.f32 %v6893, %v7020
      %v7022 = vand.u32 %v7021, 4294901760
      %v7023 = vsub.f32 %v7021, %v7022
      %v7024 = vand.u32 %v7023, 4294901760
      %7025 = vmatmul.mubr.f32.gmra.mrb[0].mxu0 %v7024
      %v7026 = vpop.f32.mrb[0].mxu0
      %v7027 = vadd.f32 %v6888, %v7026
      %v7028 = vpop.f32.mrb[0].mxu0
      %7029 = vmatprep.mubr.f32.mxu0 0.0
      %v7030 = vand.u32 %v6896, 4294901760
      %v7031 = vsub.f32 %v6896, %v7030
      %v7032 = vand.u32 %v7031, 4294901760
      %v7033 = vsub.f32 %v7031, %v7032
      %v7034 = vand.u32 %v7033, 4294901760
      %7035 = vmatmul.mubr.f32.gmra.mrb[0].mxu0 %v7034
      %v7036 = vpop.f32.mrb[0].mxu0
      %v7037 = vadd.f32 %v6888, %v7036
      %v7038 = vpop.f32.mrb[0].mxu0
      %7039 = vmatprep.mubr.f32.mxu0 0.0
      %v7040 = vand.u32 %v6899, 4294901760
      %v7041 = vsub.f32 %v6899, %v7040
      %v7042 = vand.u32 %v7041, 4294901760
      %v7043 = vsub.f32 %v7041, %v7042
      %v7044 = vand.u32 %v7043, 4294901760
      %7045 = vmatmul.mubr.f32.gmra.mrb[0].mxu0 %v7044
      %v7046 = vpop.f32.mrb[0].mxu0
      %v7047 = vadd.f32 %v6888, %v7046
      %v7048 = vpop.f32.mrb[0].mxu0
      %7049 = vmatprep.mubr.f32.mxu0 0.0
      %v7050 = vand.u32 %v6902, 4294901760
      %v7051 = vsub.f32 %v6902, %v7050
      %v7052 = vand.u32 %v7051, 4294901760
      %v7053 = vsub.f32 %v7051, %v7052
      %v7054 = vand.u32 %v7053, 4294901760
      %7055 = vmatmul.mubr.f32.gmra.mrb[0].mxu0 %v7054
      %v7056 = vpop.f32.mrb[0].mxu0
      %v7057 = vadd.f32 %v6888, %v7056
      %v7058 = vpop.f32.mrb[0].mxu0
      %7059 = vmatprep.mubr.f32.mxu0 0.0
      %v7060 = vand.u32 %v6905, 4294901760
      %v7061 = vsub.f32 %v6905, %v7060
      %v7062 = vand.u32 %v7061, 4294901760
      %v7063 = vsub.f32 %v7061, %v7062
      %v7064 = vand.u32 %v7063, 4294901760
      %7065 = vmatmul.mubr.f32.gmra.mrb[0].mxu0 %v7064
      %v7066 = vpop.f32.mrb[0].mxu0
      %v7067 = vadd.f32 %v6888, %v7066
      %v7068 = vpop.f32.mrb[0].mxu0
      %7069 = vmatprep.mubr.f32.mxu0 0.0
      %v7070 = vand.u32 %v6908, 4294901760
      %v7071 = vsub.f32 %v6908, %v7070
      %v7072 = vand.u32 %v7071, 4294901760
      %v7073 = vsub.f32 %v7071, %v7072
      %v7074 = vand.u32 %v7073, 4294901760
      %7075 = vmatmul.mubr.f32.gmra.mrb[0].mxu0 %v7074
      %v7076 = vpop.f32.mrb[0].mxu0
      %v7077 = vadd.f32 %v6888, %v7076
      %v7078 = vpop.f32.mrb[0].mxu0
      %7079 = vmatprep.mubr.f32.mxu0 0.0
      %v7080 = vand.u32 %v6911, 4294901760
      %v7081 = vsub.f32 %v6911, %v7080
      %v7082 = vand.u32 %v7081, 4294901760
      %v7083 = vsub.f32 %v7081, %v7082
      %v7084 = vand.u32 %v7083, 4294901760
      %7085 = vmatmul.mubr.f32.gmra.mrb[0].mxu0 %v7084
      %v7086 = vpop.f32.mrb[0].mxu0
      %v7087 = vadd.f32 %v6888, %v7086
      %v7088 = vpop.f32.mrb[0].mxu0
      %7089 = vmatprep.mubr.f32.mxu0 0.0
      %v7090 = vand.u32 %v6914, 4294901760
      %v7091 = vsub.f32 %v6914, %v7090
      %v7092 = vand.u32 %v7091, 4294901760
      %v7093 = vsub.f32 %v7091, %v7092
      %v7094 = vand.u32 %v7093, 4294901760
      %7095 = vmatmul.mubr.f32.gmra.mrb[0].mxu0 %v7094
      %v7096 = vpop.f32.mrb[0].mxu0
      %v7097 = vadd.f32 %v6888, %v7096
      %v7098 = vpop.f32.mrb[0].mxu0
      %7099 = vmatprep.mubr.f32.mxu0 0.0
      %v7100 = vand.u32 %v6917, 4294901760
      %v7101 = vsub.f32 %v6917, %v7100
      %v7102 = vand.u32 %v7101, 4294901760
      %v7103 = vsub.f32 %v7101, %v7102
      %v7104 = vand.u32 %v7103, 4294901760
      %7105 = vmatmul.mubr.f32.gmra.mrb[0].mxu0 %v7104
      %v7106 = vpop.f32.mrb[0].mxu0
      %v7107 = vadd.f32 %v6888, %v7106
      %v7108 = vpop.f32.mrb[0].mxu0
      %7109 = vmatprep.mubr.f32.mxu0 0.0
      %v7110 = vand.u32 %v6920, 4294901760
      %v7111 = vsub.f32 %v6920, %v7110
      %v7112 = vand.u32 %v7111, 4294901760
      %v7113 = vsub.f32 %v7111, %v7112
      %v7114 = vand.u32 %v7113, 4294901760
      %7115 = vmatmul.mubr.f32.gmra.mrb[0].mxu0 %v7114
      %v7116 = vpop.f32.mrb[0].mxu0
      %v7117 = vadd.f32 %v6888, %v7116
      %v7118 = vpop.f32.mrb[0].mxu0
      %7119 = vmatprep.mubr.f32.mxu0 0.0
      %v7120 = vand.u32 %v6923, 4294901760
      %v7121 = vsub.f32 %v6923, %v7120
      %v7122 = vand.u32 %v7121, 4294901760
      %v7123 = vsub.f32 %v7121, %v7122
      %v7124 = vand.u32 %v7123, 4294901760
      %7125 = vmatmul.mubr.f32.gmra.mrb[0].mxu0 %v7124
      %v7126 = vpop.f32.mrb[0].mxu0
      %v7127 = vadd.f32 %v6888, %v7126
      %v7128 = vpop.f32.mrb[0].mxu0
      %7129 = vmatprep.mubr.f32.mxu0 0.0
      %v7130 = vand.u32 %v6926, 4294901760
      %v7131 = vsub.f32 %v6926, %v7130
      %v7132 = vand.u32 %v7131, 4294901760
      %v7133 = vsub.f32 %v7131, %v7132
      %v7134 = vand.u32 %v7133, 4294901760
      %7135 = vmatmul.mubr.f32.gmra.mrb[0].mxu0 %v7134
      %v7136 = vpop.f32.mrb[0].mxu0
      %v7137 = vadd.f32 %v6888, %v7136
      %v7138 = vpop.f32.mrb[0].mxu0
      %7139 = vmatprep.mubr.f32.mxu0 0.0
      %v7140 = vand.u32 %v6929, 4294901760
      %v7141 = vsub.f32 %v6929, %v7140
      %v7142 = vand.u32 %v7141, 4294901760
      %v7143 = vsub.f32 %v7141, %v7142
      %v7144 = vand.u32 %v7143, 4294901760
      %7145 = vmatmul.mubr.f32.gmra.mrb[0].mxu0 %v7144
      %v7146 = vpop.f32.mrb[0].mxu0
      %v7147 = vadd.f32 %v6888, %v7146
      %v7148 = vpop.f32.mrb[0].mxu0
      %7149 = vmatprep.mubr.f32.mxu0 0.0
      %v7150 = vand.u32 %v6932, 4294901760
      %v7151 = vsub.f32 %v6932, %v7150
      %v7152 = vand.u32 %v7151, 4294901760
      %v7153 = vsub.f32 %v7151, %v7152
      %v7154 = vand.u32 %v7153, 4294901760
      %7155 = vmatmul.mubr.f32.gmra.mrb[0].mxu0 %v7154
      %v7156 = vpop.f32.mrb[0].mxu0
      %v7157 = vadd.f32 %v6888, %v7156
      %v7158 = vpop.f32.mrb[0].mxu0
      %7159 = vmatprep.mubr.f32.mxu0 0.0
      %v7160 = vand.u32 %v6935, 4294901760
      %v7161 = vsub.f32 %v6935, %v7160
      %v7162 = vand.u32 %v7161, 4294901760
      %v7163 = vsub.f32 %v7161, %v7162
      %v7164 = vand.u32 %v7163, 4294901760
      %7165 = vmatmul.mubr.f32.gmra.mrb[0].mxu0 %v7164
      %v7166 = vpop.f32.mrb[0].mxu0
      %v7167 = vadd.f32 %v6888, %v7166
      %v7168 = vpop.f32.mrb[0].mxu0
      %7169 = vdwg.mxu0
      %7170 = vmatprep.subr.mxu0 0.0
      %v7171 = vand.u32 %v6876, 4294901760
      %v7172 = vsub.f32 %v6876, %v7171
      %v7173 = vand.u32 %v7172, 4294901760
      %v7174 = vsub.f32 %v7172, %v7173
      %v7175 = vand.u32 %v7174, 4294901760
      %7176 = vmatpush1.msra.mxu0 %v7175
      %7177 = vmatprep.subr.mxu0 0.0
      %v7178 = vand.u32 %v6877, 4294901760
      %v7179 = vsub.f32 %v6877, %v7178
      %v7180 = vand.u32 %v7179, 4294901760
      %v7181 = vsub.f32 %v7179, %v7180
      %v7182 = vand.u32 %v7181, 4294901760
      %7183 = vmatpush1.msra.mxu0 %v7182
      %7184 = vmatprep.subr.mxu0 0.0
      %v7185 = vand.u32 %v6878, 4294901760
      %v7186 = vsub.f32 %v6878, %v7185
      %v7187 = vand.u32 %v7186, 4294901760
      %v7188 = vsub.f32 %v7186, %v7187
      %v7189 = vand.u32 %v7188, 4294901760
      %7190 = vmatpush1.msra.mxu0 %v7189
      %7191 = vmatprep.subr.mxu0 0.0
      %v7192 = vand.u32 %v6879, 4294901760
      %v7193 = vsub.f32 %v6879, %v7192
      %v7194 = vand.u32 %v7193, 4294901760
      %v7195 = vsub.f32 %v7193, %v7194
      %v7196 = vand.u32 %v7195, 4294901760
      %7197 = vmatpush1.msra.mxu0 %v7196
      %7198 = vmatprep.subr.mxu0 0.0
      %v7199 = vand.u32 %v6880, 4294901760
      %v7200 = vsub.f32 %v6880, %v7199
      %v7201 = vand.u32 %v7200, 4294901760
      %v7202 = vsub.f32 %v7200, %v7201
      %v7203 = vand.u32 %v7202, 4294901760
      %7204 = vmatpush1.msra.mxu0 %v7203
      %7205 = vmatprep.subr.mxu0 0.0
      %v7206 = vand.u32 %v6881, 4294901760
      %v7207 = vsub.f32 %v6881, %v7206
      %v7208 = vand.u32 %v7207, 4294901760
      %v7209 = vsub.f32 %v7207, %v7208
      %v7210 = vand.u32 %v7209, 4294901760
      %7211 = vmatpush1.msra.mxu0 %v7210
      %7212 = vmatprep.subr.mxu0 0.0
      %v7213 = vand.u32 %v6882, 4294901760
      %v7214 = vsub.f32 %v6882, %v7213
      %v7215 = vand.u32 %v7214, 4294901760
      %v7216 = vsub.f32 %v7214, %v7215
      %v7217 = vand.u32 %v7216, 4294901760
      %7218 = vmatpush1.msra.mxu0 %v7217
      %7219 = vmatprep.subr.mxu0 0.0
      %v7220 = vand.u32 %v6883, 4294901760
      %v7221 = vsub.f32 %v6883, %v7220
      %v7222 = vand.u32 %v7221, 4294901760
      %v7223 = vsub.f32 %v7221, %v7222
      %v7224 = vand.u32 %v7223, 4294901760
      %7225 = vmatpush1.msra.mxu0 %v7224
      %7226 = vmatprep.subr.mxu0 0.0
      %7227 = vmatpush1.msra.mxu0 0.0
      %7228 = vmatprep.subr.mxu0 0.0
      %7229 = vmatpush1.msra.mxu0 0.0
      %7230 = vmatprep.subr.mxu0 0.0
      %7231 = vmatpush1.msra.mxu0 0.0
      %7232 = vmatprep.subr.mxu0 0.0
      %7233 = vmatpush1.msra.mxu0 0.0
      %7234 = vmatprep.subr.mxu0 0.0
      %7235 = vmatpush1.msra.mxu0 0.0
      %7236 = vmatprep.subr.mxu0 0.0
      %7237 = vmatpush1.msra.mxu0 0.0
      %7238 = vmatprep.subr.mxu0 0.0
      %7239 = vmatpush1.msra.mxu0 0.0
      %7240 = vmatprep.subr.mxu0 0.0
      %7241 = vmatpush1.msra.mxu0 0.0
      %7242 = vmatprep.subr.mxu0 0.0
      %7243 = vmatpush1.msra.mxu0 0.0
      %7244 = vmatprep.subr.mxu0 0.0
      %7245 = vmatpush1.msra.mxu0 0.0
      %7246 = vmatprep.subr.mxu0 0.0
      %7247 = vmatpush1.msra.mxu0 0.0
      %7248 = vmatprep.subr.mxu0 0.0
      %7249 = vmatpush1.msra.mxu0 0.0
      %7250 = vmatprep.subr.mxu0 0.0
      %7251 = vmatpush1.msra.mxu0 0.0
      %7252 = vmatprep.subr.mxu0 0.0
      %7253 = vmatpush1.msra.mxu0 0.0
      %7254 = vmatprep.subr.mxu0 0.0
      %7255 = vmatpush1.msra.mxu0 0.0
      %7256 = vmatprep.subr.mxu0 0.0
      %7257 = vmatpush1.msra.mxu0 0.0
      %7258 = vmatprep.subr.mxu0 0.0
      %7259 = vmatpush1.msra.mxu0 0.0
      %7260 = vmatprep.subr.mxu0 0.0
      %7261 = vmatpush1.msra.mxu0 0.0
      %7262 = vmatprep.subr.mxu0 0.0
      %7263 = vmatpush1.msra.mxu0 0.0
      %7264 = vmatprep.subr.mxu0 0.0
      %7265 = vmatpush1.msra.mxu0 0.0
      %7266 = vmatprep.subr.mxu0 0.0
      %7267 = vmatpush1.msra.mxu0 0.0
      %7268 = vmatprep.subr.mxu0 0.0
      %7269 = vmatpush1.msra.mxu0 0.0
      %7270 = vmatprep.subr.mxu0 0.0
      %7271 = vmatpush1.msra.mxu0 0.0
      %7272 = vmatprep.subr.mxu0 0.0
      %7273 = vmatpush1.msra.mxu0 0.0
      %7274 = vmatprep.mubr.f32.mxu0 0.0
      %v7275 = vand.u32 %v6890, 4294901760
      %7276 = vmatmul.mubr.f32.gmra.mrb[0].mxu0 %v7275
      %v7277 = vpop.f32.mrb[0].mxu0
      %v7278 = vadd.f32 %v7017, %v7277
      %v7279 = vpop.f32.mrb[0].mxu0
      %7280 = vmatprep.mubr.f32.mxu0 0.0
      %v7281 = vand.u32 %v6893, 4294901760
      %7282 = vmatmul.mubr.f32.gmra.mrb[0].mxu0 %v7281
      %v7283 = vpop.f32.mrb[0].mxu0
      %v7284 = vadd.f32 %v7027, %v7283
      %v7285 = vpop.f32.mrb[0].mxu0
      %7286 = vmatprep.mubr.f32.mxu0 0.0
      %v7287 = vand.u32 %v6896, 4294901760
      %7288 = vmatmul.mubr.f32.gmra.mrb[0].mxu0 %v7287
      %v7289 = vpop.f32.mrb[0].mxu0
      %v7290 = vadd.f32 %v7037, %v7289
      %v7291 = vpop.f32.mrb[0].mxu0
      %7292 = vmatprep.mubr.f32.mxu0 0.0
      %v7293 = vand.u32 %v6899, 4294901760
      %7294 = vmatmul.mubr.f32.gmra.mrb[0].mxu0 %v7293
      %v7295 = vpop.f32.mrb[0].mxu0
      %v7296 = vadd.f32 %v7047, %v7295
      %v7297 = vpop.f32.mrb[0].mxu0
      %7298 = vmatprep.mubr.f32.mxu0 0.0
      %v7299 = vand.u32 %v6902, 4294901760
      %7300 = vmatmul.mubr.f32.gmra.mrb[0].mxu0 %v7299
      %v7301 = vpop.f32.mrb[0].mxu0
      %v7302 = vadd.f32 %v7057, %v7301
      %v7303 = vpop.f32.mrb[0].mxu0
      %7304 = vmatprep.mubr.f32.mxu0 0.0
      %v7305 = vand.u32 %v6905, 4294901760
      %7306 = vmatmul.mubr.f32.gmra.mrb[0].mxu0 %v7305
      %v7307 = vpop.f32.mrb[0].mxu0
      %v7308 = vadd.f32 %v7067, %v7307
      %v7309 = vpop.f32.mrb[0].mxu0
      %7310 = vmatprep.mubr.f32.mxu0 0.0
      %v7311 = vand.u32 %v6908, 4294901760
      %7312 = vmatmul.mubr.f32.gmra.mrb[0].mxu0 %v7311
      %v7313 = vpop.f32.mrb[0].mxu0
      %v7314 = vadd.f32 %v7077, %v7313
      %v7315 = vpop.f32.mrb[0].mxu0
      %7316 = vmatprep.mubr.f32.mxu0 0.0
      %v7317 = vand.u32 %v6911, 4294901760
      %7318 = vmatmul.mubr.f32.gmra.mrb[0].mxu0 %v7317
      %v7319 = vpop.f32.mrb[0].mxu0
      %v7320 = vadd.f32 %v7087, %v7319
      %v7321 = vpop.f32.mrb[0].mxu0
      %7322 = vmatprep.mubr.f32.mxu0 0.0
      %v7323 = vand.u32 %v6914, 4294901760
      %7324 = vmatmul.mubr.f32.gmra.mrb[0].mxu0 %v7323
      %v7325 = vpop.f32.mrb[0].mxu0
      %v7326 = vadd.f32 %v7097, %v7325
      %v7327 = vpop.f32.mrb[0].mxu0
      %7328 = vmatprep.mubr.f32.mxu0 0.0
      %v7329 = vand.u32 %v6917, 4294901760
      %7330 = vmatmul.mubr.f32.gmra.mrb[0].mxu0 %v7329
      %v7331 = vpop.f32.mrb[0].mxu0
      %v7332 = vadd.f32 %v7107, %v7331
      %v7333 = vpop.f32.mrb[0].mxu0
      %7334 = vmatprep.mubr.f32.mxu0 0.0
      %v7335 = vand.u32 %v6920, 4294901760
      %7336 = vmatmul.mubr.f32.gmra.mrb[0].mxu0 %v7335
      %v7337 = vpop.f32.mrb[0].mxu0
      %v7338 = vadd.f32 %v7117, %v7337
      %v7339 = vpop.f32.mrb[0].mxu0
      %7340 = vmatprep.mubr.f32.mxu0 0.0
      %v7341 = vand.u32 %v6923, 4294901760
      %7342 = vmatmul.mubr.f32.gmra.mrb[0].mxu0 %v7341
      %v7343 = vpop.f32.mrb[0].mxu0
      %v7344 = vadd.f32 %v7127, %v7343
      %v7345 = vpop.f32.mrb[0].mxu0
      %7346 = vmatprep.mubr.f32.mxu0 0.0
      %v7347 = vand.u32 %v6926, 4294901760
      %7348 = vmatmul.mubr.f32.gmra.mrb[0].mxu0 %v7347
      %v7349 = vpop.f32.mrb[0].mxu0
      %v7350 = vadd.f32 %v7137, %v7349
      %v7351 = vpop.f32.mrb[0].mxu0
      %7352 = vmatprep.mubr.f32.mxu0 0.0
      %v7353 = vand.u32 %v6929, 4294901760
      %7354 = vmatmul.mubr.f32.gmra.mrb[0].mxu0 %v7353
      %v7355 = vpop.f32.mrb[0].mxu0
      %v7356 = vadd.f32 %v7147, %v7355
      %v7357 = vpop.f32.mrb[0].mxu0
      %7358 = vmatprep.mubr.f32.mxu0 0.0
      %v7359 = vand.u32 %v6932, 4294901760
      %7360 = vmatmul.mubr.f32.gmra.mrb[0].mxu0 %v7359
      %v7361 = vpop.f32.mrb[0].mxu0
      %v7362 = vadd.f32 %v7157, %v7361
      %v7363 = vpop.f32.mrb[0].mxu0
      %7364 = vmatprep.mubr.f32.mxu0 0.0
      %v7365 = vand.u32 %v6935, 4294901760
      %7366 = vmatmul.mubr.f32.gmra.mrb[0].mxu0 %v7365
      %v7367 = vpop.f32.mrb[0].mxu0
      %v7368 = vadd.f32 %v7167, %v7367
      %v7369 = vpop.f32.mrb[0].mxu0
      %7370 = vdwg.mxu0
      %7371 = vmatprep.subr.mxu0 0.0
      %v7372 = vand.u32 %v6876, 4294901760
      %v7373 = vsub.f32 %v6876, %v7372
      %7374 = vmatpush1.msra.mxu0 %v7373
      %7375 = vmatprep.subr.mxu0 0.0
      %v7376 = vand.u32 %v6877, 4294901760
      %v7377 = vsub.f32 %v6877, %v7376
      %7378 = vmatpush1.msra.mxu0 %v7377
      %7379 = vmatprep.subr.mxu0 0.0
      %v7380 = vand.u32 %v6878, 4294901760
      %v7381 = vsub.f32 %v6878, %v7380
      %7382 = vmatpush1.msra.mxu0 %v7381
      %7383 = vmatprep.subr.mxu0 0.0
      %v7384 = vand.u32 %v6879, 4294901760
      %v7385 = vsub.f32 %v6879, %v7384
      %7386 = vmatpush1.msra.mxu0 %v7385
      %7387 = vmatprep.subr.mxu0 0.0
      %v7388 = vand.u32 %v6880, 4294901760
      %v7389 = vsub.f32 %v6880, %v7388
      %7390 = vmatpush1.msra.mxu0 %v7389
      %7391 = vmatprep.subr.mxu0 0.0
      %v7392 = vand.u32 %v6881, 4294901760
      %v7393 = vsub.f32 %v6881, %v7392
      %7394 = vmatpush1.msra.mxu0 %v7393
      %7395 = vmatprep.subr.mxu0 0.0
      %v7396 = vand.u32 %v6882, 4294901760
      %v7397 = vsub.f32 %v6882, %v7396
      %7398 = vmatpush1.msra.mxu0 %v7397
      %7399 = vmatprep.subr.mxu0 0.0
      %v7400 = vand.u32 %v6883, 4294901760
      %v7401 = vsub.f32 %v6883, %v7400
      %7402 = vmatpush1.msra.mxu0 %v7401
      %7403 = vmatprep.subr.mxu0 0.0
      %7404 = vmatpush1.msra.mxu0 0.0
      %7405 = vmatprep.subr.mxu0 0.0
      %7406 = vmatpush1.msra.mxu0 0.0
      %7407 = vmatprep.subr.mxu0 0.0
      %7408 = vmatpush1.msra.mxu0 0.0
      %7409 = vmatprep.subr.mxu0 0.0
      %7410 = vmatpush1.msra.mxu0 0.0
      %7411 = vmatprep.subr.mxu0 0.0
      %7412 = vmatpush1.msra.mxu0 0.0
      %7413 = vmatprep.subr.mxu0 0.0
      %7414 = vmatpush1.msra.mxu0 0.0
      %7415 = vmatprep.subr.mxu0 0.0
      %7416 = vmatpush1.msra.mxu0 0.0
      %7417 = vmatprep.subr.mxu0 0.0
      %7418 = vmatpush1.msra.mxu0 0.0
      %7419 = vmatprep.subr.mxu0 0.0
      %7420 = vmatpush1.msra.mxu0 0.0
      %7421 = vmatprep.subr.mxu0 0.0
      %7422 = vmatpush1.msra.mxu0 0.0
      %7423 = vmatprep.subr.mxu0 0.0
      %7424 = vmatpush1.msra.mxu0 0.0
      %7425 = vmatprep.subr.mxu0 0.0
      %7426 = vmatpush1.msra.mxu0 0.0
      %7427 = vmatprep.subr.mxu0 0.0
      %7428 = vmatpush1.msra.mxu0 0.0
      %7429 = vmatprep.subr.mxu0 0.0
      %7430 = vmatpush1.msra.mxu0 0.0
      %7431 = vmatprep.subr.mxu0 0.0
      %7432 = vmatpush1.msra.mxu0 0.0
      %7433 = vmatprep.subr.mxu0 0.0
      %7434 = vmatpush1.msra.mxu0 0.0
      %7435 = vmatprep.subr.mxu0 0.0
      %7436 = vmatpush1.msra.mxu0 0.0
      %7437 = vmatprep.subr.mxu0 0.0
      %7438 = vmatpush1.msra.mxu0 0.0
      %7439 = vmatprep.subr.mxu0 0.0
      %7440 = vmatpush1.msra.mxu0 0.0
      %7441 = vmatprep.subr.mxu0 0.0
      %7442 = vmatpush1.msra.mxu0 0.0
      %7443 = vmatprep.subr.mxu0 0.0
      %7444 = vmatpush1.msra.mxu0 0.0
      %7445 = vmatprep.subr.mxu0 0.0
      %7446 = vmatpush1.msra.mxu0 0.0
      %7447 = vmatprep.subr.mxu0 0.0
      %7448 = vmatpush1.msra.mxu0 0.0
      %7449 = vmatprep.subr.mxu0 0.0
      %7450 = vmatpush1.msra.mxu0 0.0
      %7451 = vmatprep.mubr.f32.mxu0 0.0
      %v7452 = vand.u32 %v6890, 4294901760
      %v7453 = vsub.f32 %v6890, %v7452
      %7454 = vmatmul.mubr.f32.gmra.mrb[0].mxu0 %v7453
      %v7455 = vpop.f32.mrb[0].mxu0
      %v7456 = vadd.f32 %v7278, %v7455
      %v7457 = vpop.f32.mrb[0].mxu0
      %7458 = vmatprep.mubr.f32.mxu0 0.0
      %v7459 = vand.u32 %v6893, 4294901760
      %v7460 = vsub.f32 %v6893, %v7459
      %7461 = vmatmul.mubr.f32.gmra.mrb[0].mxu0 %v7460
      %v7462 = vpop.f32.mrb[0].mxu0
      %v7463 = vadd.f32 %v7284, %v7462
      %v7464 = vpop.f32.mrb[0].mxu0
      %7465 = vmatprep.mubr.f32.mxu0 0.0
      %v7466 = vand.u32 %v6896, 4294901760
      %v7467 = vsub.f32 %v6896, %v7466
      %7468 = vmatmul.mubr.f32.gmra.mrb[0].mxu0 %v7467
      %v7469 = vpop.f32.mrb[0].mxu0
      %v7470 = vadd.f32 %v7290, %v7469
      %v7471 = vpop.f32.mrb[0].mxu0
      %7472 = vmatprep.mubr.f32.mxu0 0.0
      %v7473 = vand.u32 %v6899, 4294901760
      %v7474 = vsub.f32 %v6899, %v7473
      %7475 = vmatmul.mubr.f32.gmra.mrb[0].mxu0 %v7474
      %v7476 = vpop.f32.mrb[0].mxu0
      %v7477 = vadd.f32 %v7296, %v7476
      %v7478 = vpop.f32.mrb[0].mxu0
      %7479 = vmatprep.mubr.f32.mxu0 0.0
      %v7480 = vand.u32 %v6902, 4294901760
      %v7481 = vsub.f32 %v6902, %v7480
      %7482 = vmatmul.mubr.f32.gmra.mrb[0].mxu0 %v7481
      %v7483 = vpop.f32.mrb[0].mxu0
      %v7484 = vadd.f32 %v7302, %v7483
      %v7485 = vpop.f32.mrb[0].mxu0
      %7486 = vmatprep.mubr.f32.mxu0 0.0
      %v7487 = vand.u32 %v6905, 4294901760
      %v7488 = vsub.f32 %v6905, %v7487
      %7489 = vmatmul.mubr.f32.gmra.mrb[0].mxu0 %v7488
      %v7490 = vpop.f32.mrb[0].mxu0
      %v7491 = vadd.f32 %v7308, %v7490
      %v7492 = vpop.f32.mrb[0].mxu0
      %7493 = vmatprep.mubr.f32.mxu0 0.0
      %v7494 = vand.u32 %v6908, 4294901760
      %v7495 = vsub.f32 %v6908, %v7494
      %7496 = vmatmul.mubr.f32.gmra.mrb[0].mxu0 %v7495
      %v7497 = vpop.f32.mrb[0].mxu0
      %v7498 = vadd.f32 %v7314, %v7497
      %v7499 = vpop.f32.mrb[0].mxu0
      %7500 = vmatprep.mubr.f32.mxu0 0.0
      %v7501 = vand.u32 %v6911, 4294901760
      %v7502 = vsub.f32 %v6911, %v7501
      %7503 = vmatmul.mubr.f32.gmra.mrb[0].mxu0 %v7502
      %v7504 = vpop.f32.mrb[0].mxu0
      %v7505 = vadd.f32 %v7320, %v7504
      %v7506 = vpop.f32.mrb[0].mxu0
      %7507 = vmatprep.mubr.f32.mxu0 0.0
      %v7508 = vand.u32 %v6914, 4294901760
      %v7509 = vsub.f32 %v6914, %v7508
      %7510 = vmatmul.mubr.f32.gmra.mrb[0].mxu0 %v7509
      %v7511 = vpop.f32.mrb[0].mxu0
      %v7512 = vadd.f32 %v7326, %v7511
      %v7513 = vpop.f32.mrb[0].mxu0
      %7514 = vmatprep.mubr.f32.mxu0 0.0
      %v7515 = vand.u32 %v6917, 4294901760
      %v7516 = vsub.f32 %v6917, %v7515
      %7517 = vmatmul.mubr.f32.gmra.mrb[0].mxu0 %v7516
      %v7518 = vpop.f32.mrb[0].mxu0
      %v7519 = vadd.f32 %v7332, %v7518
      %v7520 = vpop.f32.mrb[0].mxu0
      %7521 = vmatprep.mubr.f32.mxu0 0.0
      %v7522 = vand.u32 %v6920, 4294901760
      %v7523 = vsub.f32 %v6920, %v7522
      %7524 = vmatmul.mubr.f32.gmra.mrb[0].mxu0 %v7523
      %v7525 = vpop.f32.mrb[0].mxu0
      %v7526 = vadd.f32 %v7338, %v7525
      %v7527 = vpop.f32.mrb[0].mxu0
      %7528 = vmatprep.mubr.f32.mxu0 0.0
      %v7529 = vand.u32 %v6923, 4294901760
      %v7530 = vsub.f32 %v6923, %v7529
      %7531 = vmatmul.mubr.f32.gmra.mrb[0].mxu0 %v7530
      %v7532 = vpop.f32.mrb[0].mxu0
      %v7533 = vadd.f32 %v7344, %v7532
      %v7534 = vpop.f32.mrb[0].mxu0
      %7535 = vmatprep.mubr.f32.mxu0 0.0
      %v7536 = vand.u32 %v6926, 4294901760
      %v7537 = vsub.f32 %v6926, %v7536
      %7538 = vmatmul.mubr.f32.gmra.mrb[0].mxu0 %v7537
      %v7539 = vpop.f32.mrb[0].mxu0
      %v7540 = vadd.f32 %v7350, %v7539
      %v7541 = vpop.f32.mrb[0].mxu0
      %7542 = vmatprep.mubr.f32.mxu0 0.0
      %v7543 = vand.u32 %v6929, 4294901760
      %v7544 = vsub.f32 %v6929, %v7543
      %7545 = vmatmul.mubr.f32.gmra.mrb[0].mxu0 %v7544
      %v7546 = vpop.f32.mrb[0].mxu0
      %v7547 = vadd.f32 %v7356, %v7546
      %v7548 = vpop.f32.mrb[0].mxu0
      %7549 = vmatprep.mubr.f32.mxu0 0.0
      %v7550 = vand.u32 %v6932, 4294901760
      %v7551 = vsub.f32 %v6932, %v7550
      %7552 = vmatmul.mubr.f32.gmra.mrb[0].mxu0 %v7551
      %v7553 = vpop.f32.mrb[0].mxu0
      %v7554 = vadd.f32 %v7362, %v7553
      %v7555 = vpop.f32.mrb[0].mxu0
      %7556 = vmatprep.mubr.f32.mxu0 0.0
      %v7557 = vand.u32 %v6935, 4294901760
      %v7558 = vsub.f32 %v6935, %v7557
      %7559 = vmatmul.mubr.f32.gmra.mrb[0].mxu0 %v7558
      %v7560 = vpop.f32.mrb[0].mxu0
      %v7561 = vadd.f32 %v7368, %v7560
      %v7562 = vpop.f32.mrb[0].mxu0
      %7563 = vdwg.mxu0
      %7564 = vmatprep.subr.mxu0 0.0
      %v7565 = vand.u32 %v6876, 4294901760
      %7566 = vmatpush1.msra.mxu0 %v7565
      %7567 = vmatprep.subr.mxu0 0.0
      %v7568 = vand.u32 %v6877, 4294901760
      %7569 = vmatpush1.msra.mxu0 %v7568
      %7570 = vmatprep.subr.mxu0 0.0
      %v7571 = vand.u32 %v6878, 4294901760
      %7572 = vmatpush1.msra.mxu0 %v7571
      %7573 = vmatprep.subr.mxu0 0.0
      %v7574 = vand.u32 %v6879, 4294901760
      %7575 = vmatpush1.msra.mxu0 %v7574
      %7576 = vmatprep.subr.mxu0 0.0
      %v7577 = vand.u32 %v6880, 4294901760
      %7578 = vmatpush1.msra.mxu0 %v7577
      %7579 = vmatprep.subr.mxu0 0.0
      %v7580 = vand.u32 %v6881, 4294901760
      %7581 = vmatpush1.msra.mxu0 %v7580
      %7582 = vmatprep.subr.mxu0 0.0
      %v7583 = vand.u32 %v6882, 4294901760
      %7584 = vmatpush1.msra.mxu0 %v7583
      %7585 = vmatprep.subr.mxu0 0.0
      %v7586 = vand.u32 %v6883, 4294901760
      %7587 = vmatpush1.msra.mxu0 %v7586
      %7588 = vmatprep.subr.mxu0 0.0
      %7589 = vmatpush1.msra.mxu0 0.0
      %7590 = vmatprep.subr.mxu0 0.0
      %7591 = vmatpush1.msra.mxu0 0.0
      %7592 = vmatprep.subr.mxu0 0.0
      %7593 = vmatpush1.msra.mxu0 0.0
      %7594 = vmatprep.subr.mxu0 0.0
      %7595 = vmatpush1.msra.mxu0 0.0
      %7596 = vmatprep.subr.mxu0 0.0
      %7597 = vmatpush1.msra.mxu0 0.0
      %7598 = vmatprep.subr.mxu0 0.0
      %7599 = vmatpush1.msra.mxu0 0.0
      %7600 = vmatprep.subr.mxu0 0.0
      %7601 = vmatpush1.msra.mxu0 0.0
      %7602 = vmatprep.subr.mxu0 0.0
      %7603 = vmatpush1.msra.mxu0 0.0
      %7604 = vmatprep.subr.mxu0 0.0
      %7605 = vmatpush1.msra.mxu0 0.0
      %7606 = vmatprep.subr.mxu0 0.0
      %7607 = vmatpush1.msra.mxu0 0.0
      %7608 = vmatprep.subr.mxu0 0.0
      %7609 = vmatpush1.msra.mxu0 0.0
      %7610 = vmatprep.subr.mxu0 0.0
      %7611 = vmatpush1.msra.mxu0 0.0
      %7612 = vmatprep.subr.mxu0 0.0
      %7613 = vmatpush1.msra.mxu0 0.0
      %7614 = vmatprep.subr.mxu0 0.0
      %7615 = vmatpush1.msra.mxu0 0.0
      %7616 = vmatprep.subr.mxu0 0.0
      %7617 = vmatpush1.msra.mxu0 0.0
      %7618 = vmatprep.subr.mxu0 0.0
      %7619 = vmatpush1.msra.mxu0 0.0
      %7620 = vmatprep.subr.mxu0 0.0
      %7621 = vmatpush1.msra.mxu0 0.0
      %7622 = vmatprep.subr.mxu0 0.0
      %7623 = vmatpush1.msra.mxu0 0.0
      %7624 = vmatprep.subr.mxu0 0.0
      %7625 = vmatpush1.msra.mxu0 0.0
      %7626 = vmatprep.subr.mxu0 0.0
      %7627 = vmatpush1.msra.mxu0 0.0
      %7628 = vmatprep.subr.mxu0 0.0
      %7629 = vmatpush1.msra.mxu0 0.0
      %7630 = vmatprep.subr.mxu0 0.0
      %7631 = vmatpush1.msra.mxu0 0.0
      %7632 = vmatprep.subr.mxu0 0.0
      %7633 = vmatpush1.msra.mxu0 0.0
      %7634 = vmatprep.subr.mxu0 0.0
      %7635 = vmatpush1.msra.mxu0 0.0
      %7636 = vmatprep.mubr.f32.mxu0 0.0
      %v7637 = vand.u32 %v6890, 4294901760
      %v7638 = vsub.f32 %v6890, %v7637
      %v7639 = vand.u32 %v7638, 4294901760
      %7640 = vmatmul.mubr.f32.gmra.mrb[0].mxu0 %v7639
      %v7641 = vpop.f32.mrb[0].mxu0
      %v7642 = vadd.f32 %v7456, %v7641
      %v7643 = vpop.f32.mrb[0].mxu0
      %7644 = vmatprep.mubr.f32.mxu0 0.0
      %v7645 = vand.u32 %v6893, 4294901760
      %v7646 = vsub.f32 %v6893, %v7645
      %v7647 = vand.u32 %v7646, 4294901760
      %7648 = vmatmul.mubr.f32.gmra.mrb[0].mxu0 %v7647
      %v7649 = vpop.f32.mrb[0].mxu0
      %v7650 = vadd.f32 %v7463, %v7649
      %v7651 = vpop.f32.mrb[0].mxu0
      %7652 = vmatprep.mubr.f32.mxu0 0.0
      %v7653 = vand.u32 %v6896, 4294901760
      %v7654 = vsub.f32 %v6896, %v7653
      %v7655 = vand.u32 %v7654, 4294901760
      %7656 = vmatmul.mubr.f32.gmra.mrb[0].mxu0 %v7655
      %v7657 = vpop.f32.mrb[0].mxu0
      %v7658 = vadd.f32 %v7470, %v7657
      %v7659 = vpop.f32.mrb[0].mxu0
      %7660 = vmatprep.mubr.f32.mxu0 0.0
      %v7661 = vand.u32 %v6899, 4294901760
      %v7662 = vsub.f32 %v6899, %v7661
      %v7663 = vand.u32 %v7662, 4294901760
      %7664 = vmatmul.mubr.f32.gmra.mrb[0].mxu0 %v7663
      %v7665 = vpop.f32.mrb[0].mxu0
      %v7666 = vadd.f32 %v7477, %v7665
      %v7667 = vpop.f32.mrb[0].mxu0
      %7668 = vmatprep.mubr.f32.mxu0 0.0
      %v7669 = vand.u32 %v6902, 4294901760
      %v7670 = vsub.f32 %v6902, %v7669
      %v7671 = vand.u32 %v7670, 4294901760
      %7672 = vmatmul.mubr.f32.gmra.mrb[0].mxu0 %v7671
      %v7673 = vpop.f32.mrb[0].mxu0
      %v7674 = vadd.f32 %v7484, %v7673
      %v7675 = vpop.f32.mrb[0].mxu0
      %7676 = vmatprep.mubr.f32.mxu0 0.0
      %v7677 = vand.u32 %v6905, 4294901760
      %v7678 = vsub.f32 %v6905, %v7677
      %v7679 = vand.u32 %v7678, 4294901760
      %7680 = vmatmul.mubr.f32.gmra.mrb[0].mxu0 %v7679
      %v7681 = vpop.f32.mrb[0].mxu0
      %v7682 = vadd.f32 %v7491, %v7681
      %v7683 = vpop.f32.mrb[0].mxu0
      %7684 = vmatprep.mubr.f32.mxu0 0.0
      %v7685 = vand.u32 %v6908, 4294901760
      %v7686 = vsub.f32 %v6908, %v7685
      %v7687 = vand.u32 %v7686, 4294901760
      %7688 = vmatmul.mubr.f32.gmra.mrb[0].mxu0 %v7687
      %v7689 = vpop.f32.mrb[0].mxu0
      %v7690 = vadd.f32 %v7498, %v7689
      %v7691 = vpop.f32.mrb[0].mxu0
      %7692 = vmatprep.mubr.f32.mxu0 0.0
      %v7693 = vand.u32 %v6911, 4294901760
      %v7694 = vsub.f32 %v6911, %v7693
      %v7695 = vand.u32 %v7694, 4294901760
      %7696 = vmatmul.mubr.f32.gmra.mrb[0].mxu0 %v7695
      %v7697 = vpop.f32.mrb[0].mxu0
      %v7698 = vadd.f32 %v7505, %v7697
      %v7699 = vpop.f32.mrb[0].mxu0
      %7700 = vmatprep.mubr.f32.mxu0 0.0
      %v7701 = vand.u32 %v6914, 4294901760
      %v7702 = vsub.f32 %v6914, %v7701
      %v7703 = vand.u32 %v7702, 4294901760
      %7704 = vmatmul.mubr.f32.gmra.mrb[0].mxu0 %v7703
      %v7705 = vpop.f32.mrb[0].mxu0
      %v7706 = vadd.f32 %v7512, %v7705
      %v7707 = vpop.f32.mrb[0].mxu0
      %7708 = vmatprep.mubr.f32.mxu0 0.0
      %v7709 = vand.u32 %v6917, 4294901760
      %v7710 = vsub.f32 %v6917, %v7709
      %v7711 = vand.u32 %v7710, 4294901760
      %7712 = vmatmul.mubr.f32.gmra.mrb[0].mxu0 %v7711
      %v7713 = vpop.f32.mrb[0].mxu0
      %v7714 = vadd.f32 %v7519, %v7713
      %v7715 = vpop.f32.mrb[0].mxu0
      %7716 = vmatprep.mubr.f32.mxu0 0.0
      %v7717 = vand.u32 %v6920, 4294901760
      %v7718 = vsub.f32 %v6920, %v7717
      %v7719 = vand.u32 %v7718, 4294901760
      %7720 = vmatmul.mubr.f32.gmra.mrb[0].mxu0 %v7719
      %v7721 = vpop.f32.mrb[0].mxu0
      %v7722 = vadd.f32 %v7526, %v7721
      %v7723 = vpop.f32.mrb[0].mxu0
      %7724 = vmatprep.mubr.f32.mxu0 0.0
      %v7725 = vand.u32 %v6923, 4294901760
      %v7726 = vsub.f32 %v6923, %v7725
      %v7727 = vand.u32 %v7726, 4294901760
      %7728 = vmatmul.mubr.f32.gmra.mrb[0].mxu0 %v7727
      %v7729 = vpop.f32.mrb[0].mxu0
      %v7730 = vadd.f32 %v7533, %v7729
      %v7731 = vpop.f32.mrb[0].mxu0
      %7732 = vmatprep.mubr.f32.mxu0 0.0
      %v7733 = vand.u32 %v6926, 4294901760
      %v7734 = vsub.f32 %v6926, %v7733
      %v7735 = vand.u32 %v7734, 4294901760
      %7736 = vmatmul.mubr.f32.gmra.mrb[0].mxu0 %v7735
      %v7737 = vpop.f32.mrb[0].mxu0
      %v7738 = vadd.f32 %v7540, %v7737
      %v7739 = vpop.f32.mrb[0].mxu0
      %7740 = vmatprep.mubr.f32.mxu0 0.0
      %v7741 = vand.u32 %v6929, 4294901760
      %v7742 = vsub.f32 %v6929, %v7741
      %v7743 = vand.u32 %v7742, 4294901760
      %7744 = vmatmul.mubr.f32.gmra.mrb[0].mxu0 %v7743
      %v7745 = vpop.f32.mrb[0].mxu0
      %v7746 = vadd.f32 %v7547, %v7745
      %v7747 = vpop.f32.mrb[0].mxu0
      %7748 = vmatprep.mubr.f32.mxu0 0.0
      %v7749 = vand.u32 %v6932, 4294901760
      %v7750 = vsub.f32 %v6932, %v7749
      %v7751 = vand.u32 %v7750, 4294901760
      %7752 = vmatmul.mubr.f32.gmra.mrb[0].mxu0 %v7751
      %v7753 = vpop.f32.mrb[0].mxu0
      %v7754 = vadd.f32 %v7554, %v7753
      %v7755 = vpop.f32.mrb[0].mxu0
      %7756 = vmatprep.mubr.f32.mxu0 0.0
      %v7757 = vand.u32 %v6935, 4294901760
      %v7758 = vsub.f32 %v6935, %v7757
      %v7759 = vand.u32 %v7758, 4294901760
      %7760 = vmatmul.mubr.f32.gmra.mrb[0].mxu0 %v7759
      %v7761 = vpop.f32.mrb[0].mxu0
      %v7762 = vadd.f32 %v7561, %v7761
      %v7763 = vpop.f32.mrb[0].mxu0
      %7764 = vdwg.mxu0
      %7765 = vmatprep.subr.mxu0 0.0
      %v7766 = vand.u32 %v6876, 4294901760
      %v7767 = vsub.f32 %v6876, %v7766
      %v7768 = vand.u32 %v7767, 4294901760
      %7769 = vmatpush1.msra.mxu0 %v7768
      %7770 = vmatprep.subr.mxu0 0.0
      %v7771 = vand.u32 %v6877, 4294901760
      %v7772 = vsub.f32 %v6877, %v7771
      %v7773 = vand.u32 %v7772, 4294901760
      %7774 = vmatpush1.msra.mxu0 %v7773
      %7775 = vmatprep.subr.mxu0 0.0
      %v7776 = vand.u32 %v6878, 4294901760
      %v7777 = vsub.f32 %v6878, %v7776
      %v7778 = vand.u32 %v7777, 4294901760
      %7779 = vmatpush1.msra.mxu0 %v7778
      %7780 = vmatprep.subr.mxu0 0.0
      %v7781 = vand.u32 %v6879, 4294901760
      %v7782 = vsub.f32 %v6879, %v7781
      %v7783 = vand.u32 %v7782, 4294901760
      %7784 = vmatpush1.msra.mxu0 %v7783
      %7785 = vmatprep.subr.mxu0 0.0
      %v7786 = vand.u32 %v6880, 4294901760
      %v7787 = vsub.f32 %v6880, %v7786
      %v7788 = vand.u32 %v7787, 4294901760
      %7789 = vmatpush1.msra.mxu0 %v7788
      %7790 = vmatprep.subr.mxu0 0.0
      %v7791 = vand.u32 %v6881, 4294901760
      %v7792 = vsub.f32 %v6881, %v7791
      %v7793 = vand.u32 %v7792, 4294901760
      %7794 = vmatpush1.msra.mxu0 %v7793
      %7795 = vmatprep.subr.mxu0 0.0
      %v7796 = vand.u32 %v6882, 4294901760
      %v7797 = vsub.f32 %v6882, %v7796
      %v7798 = vand.u32 %v7797, 4294901760
      %7799 = vmatpush1.msra.mxu0 %v7798
      %7800 = vmatprep.subr.mxu0 0.0
      %v7801 = vand.u32 %v6883, 4294901760
      %v7802 = vsub.f32 %v6883, %v7801
      %v7803 = vand.u32 %v7802, 4294901760
      %7804 = vmatpush1.msra.mxu0 %v7803
      %7805 = vmatprep.subr.mxu0 0.0
      %7806 = vmatpush1.msra.mxu0 0.0
      %7807 = vmatprep.subr.mxu0 0.0
      %7808 = vmatpush1.msra.mxu0 0.0
      %7809 = vmatprep.subr.mxu0 0.0
      %7810 = vmatpush1.msra.mxu0 0.0
      %7811 = vmatprep.subr.mxu0 0.0
      %7812 = vmatpush1.msra.mxu0 0.0
      %7813 = vmatprep.subr.mxu0 0.0
      %7814 = vmatpush1.msra.mxu0 0.0
      %7815 = vmatprep.subr.mxu0 0.0
      %7816 = vmatpush1.msra.mxu0 0.0
      %7817 = vmatprep.subr.mxu0 0.0
      %7818 = vmatpush1.msra.mxu0 0.0
      %7819 = vmatprep.subr.mxu0 0.0
      %7820 = vmatpush1.msra.mxu0 0.0
      %7821 = vmatprep.subr.mxu0 0.0
      %7822 = vmatpush1.msra.mxu0 0.0
      %7823 = vmatprep.subr.mxu0 0.0
      %7824 = vmatpush1.msra.mxu0 0.0
      %7825 = vmatprep.subr.mxu0 0.0
      %7826 = vmatpush1.msra.mxu0 0.0
      %7827 = vmatprep.subr.mxu0 0.0
      %7828 = vmatpush1.msra.mxu0 0.0
      %7829 = vmatprep.subr.mxu0 0.0
      %7830 = vmatpush1.msra.mxu0 0.0
      %7831 = vmatprep.subr.mxu0 0.0
      %7832 = vmatpush1.msra.mxu0 0.0
      %7833 = vmatprep.subr.mxu0 0.0
      %7834 = vmatpush1.msra.mxu0 0.0
      %7835 = vmatprep.subr.mxu0 0.0
      %7836 = vmatpush1.msra.mxu0 0.0
      %7837 = vmatprep.subr.mxu0 0.0
      %7838 = vmatpush1.msra.mxu0 0.0
      %7839 = vmatprep.subr.mxu0 0.0
      %7840 = vmatpush1.msra.mxu0 0.0
      %7841 = vmatprep.subr.mxu0 0.0
      %7842 = vmatpush1.msra.mxu0 0.0
      %7843 = vmatprep.subr.mxu0 0.0
      %7844 = vmatpush1.msra.mxu0 0.0
      %7845 = vmatprep.subr.mxu0 0.0
      %7846 = vmatpush1.msra.mxu0 0.0
      %7847 = vmatprep.subr.mxu0 0.0
      %7848 = vmatpush1.msra.mxu0 0.0
      %7849 = vmatprep.subr.mxu0 0.0
      %7850 = vmatpush1.msra.mxu0 0.0
      %7851 = vmatprep.subr.mxu0 0.0
      %7852 = vmatpush1.msra.mxu0 0.0
      %7853 = vmatprep.mubr.f32.mxu0 0.0
      %v7854 = vand.u32 %v6890, 4294901760
      %7855 = vmatmul.mubr.f32.gmra.mrb[0].mxu0 %v7854
      %v7856 = vpop.f32.mrb[0].mxu0
      %v7857 = vadd.f32 %v7642, %v7856
      %v7858 = vpop.f32.mrb[0].mxu0
      %7859 = vmatprep.mubr.f32.mxu0 0.0
      %v7860 = vand.u32 %v6893, 4294901760
      %7861 = vmatmul.mubr.f32.gmra.mrb[0].mxu0 %v7860
      %v7862 = vpop.f32.mrb[0].mxu0
      %v7863 = vadd.f32 %v7650, %v7862
      %v7864 = vpop.f32.mrb[0].mxu0
      %7865 = vmatprep.mubr.f32.mxu0 0.0
      %v7866 = vand.u32 %v6896, 4294901760
      %7867 = vmatmul.mubr.f32.gmra.mrb[0].mxu0 %v7866
      %v7868 = vpop.f32.mrb[0].mxu0
      %v7869 = vadd.f32 %v7658, %v7868
      %v7870 = vpop.f32.mrb[0].mxu0
      %7871 = vmatprep.mubr.f32.mxu0 0.0
      %v7872 = vand.u32 %v6899, 4294901760
      %7873 = vmatmul.mubr.f32.gmra.mrb[0].mxu0 %v7872
      %v7874 = vpop.f32.mrb[0].mxu0
      %v7875 = vadd.f32 %v7666, %v7874
      %v7876 = vpop.f32.mrb[0].mxu0
      %7877 = vmatprep.mubr.f32.mxu0 0.0
      %v7878 = vand.u32 %v6902, 4294901760
      %7879 = vmatmul.mubr.f32.gmra.mrb[0].mxu0 %v7878
      %v7880 = vpop.f32.mrb[0].mxu0
      %v7881 = vadd.f32 %v7674, %v7880
      %v7882 = vpop.f32.mrb[0].mxu0
      %7883 = vmatprep.mubr.f32.mxu0 0.0
      %v7884 = vand.u32 %v6905, 4294901760
      %7885 = vmatmul.mubr.f32.gmra.mrb[0].mxu0 %v7884
      %v7886 = vpop.f32.mrb[0].mxu0
      %v7887 = vadd.f32 %v7682, %v7886
      %v7888 = vpop.f32.mrb[0].mxu0
      %7889 = vmatprep.mubr.f32.mxu0 0.0
      %v7890 = vand.u32 %v6908, 4294901760
      %7891 = vmatmul.mubr.f32.gmra.mrb[0].mxu0 %v7890
      %v7892 = vpop.f32.mrb[0].mxu0
      %v7893 = vadd.f32 %v7690, %v7892
      %v7894 = vpop.f32.mrb[0].mxu0
      %7895 = vmatprep.mubr.f32.mxu0 0.0
      %v7896 = vand.u32 %v6911, 4294901760
      %7897 = vmatmul.mubr.f32.gmra.mrb[0].mxu0 %v7896
      %v7898 = vpop.f32.mrb[0].mxu0
      %v7899 = vadd.f32 %v7698, %v7898
      %v7900 = vpop.f32.mrb[0].mxu0
      %7901 = vmatprep.mubr.f32.mxu0 0.0
      %v7902 = vand.u32 %v6914, 4294901760
      %7903 = vmatmul.mubr.f32.gmra.mrb[0].mxu0 %v7902
      %v7904 = vpop.f32.mrb[0].mxu0
      %v7905 = vadd.f32 %v7706, %v7904
      %v7906 = vpop.f32.mrb[0].mxu0
      %7907 = vmatprep.mubr.f32.mxu0 0.0
      %v7908 = vand.u32 %v6917, 4294901760
      %7909 = vmatmul.mubr.f32.gmra.mrb[0].mxu0 %v7908
      %v7910 = vpop.f32.mrb[0].mxu0
      %v7911 = vadd.f32 %v7714, %v7910
      %v7912 = vpop.f32.mrb[0].mxu0
      %7913 = vmatprep.mubr.f32.mxu0 0.0
      %v7914 = vand.u32 %v6920, 4294901760
      %7915 = vmatmul.mubr.f32.gmra.mrb[0].mxu0 %v7914
      %v7916 = vpop.f32.mrb[0].mxu0
      %v7917 = vadd.f32 %v7722, %v7916
      %v7918 = vpop.f32.mrb[0].mxu0
      %7919 = vmatprep.mubr.f32.mxu0 0.0
      %v7920 = vand.u32 %v6923, 4294901760
      %7921 = vmatmul.mubr.f32.gmra.mrb[0].mxu0 %v7920
      %v7922 = vpop.f32.mrb[0].mxu0
      %v7923 = vadd.f32 %v7730, %v7922
      %v7924 = vpop.f32.mrb[0].mxu0
      %7925 = vmatprep.mubr.f32.mxu0 0.0
      %v7926 = vand.u32 %v6926, 4294901760
      %7927 = vmatmul.mubr.f32.gmra.mrb[0].mxu0 %v7926
      %v7928 = vpop.f32.mrb[0].mxu0
      %v7929 = vadd.f32 %v7738, %v7928
      %v7930 = vpop.f32.mrb[0].mxu0
      %7931 = vmatprep.mubr.f32.mxu0 0.0
      %v7932 = vand.u32 %v6929, 4294901760
      %7933 = vmatmul.mubr.f32.gmra.mrb[0].mxu0 %v7932
      %v7934 = vpop.f32.mrb[0].mxu0
      %v7935 = vadd.f32 %v7746, %v7934
      %v7936 = vpop.f32.mrb[0].mxu0
      %7937 = vmatprep.mubr.f32.mxu0 0.0
      %v7938 = vand.u32 %v6932, 4294901760
      %7939 = vmatmul.mubr.f32.gmra.mrb[0].mxu0 %v7938
      %v7940 = vpop.f32.mrb[0].mxu0
      %v7941 = vadd.f32 %v7754, %v7940
      %v7942 = vpop.f32.mrb[0].mxu0
      %7943 = vmatprep.mubr.f32.mxu0 0.0
      %v7944 = vand.u32 %v6935, 4294901760
      %7945 = vmatmul.mubr.f32.gmra.mrb[0].mxu0 %v7944
      %v7946 = vpop.f32.mrb[0].mxu0
      %v7947 = vadd.f32 %v7762, %v7946
      %v7948 = vpop.f32.mrb[0].mxu0
      %7949 = vdwg.mxu0
      %7950 = vmatprep.subr.mxu0 0.0
      %v7951 = vand.u32 %v6876, 4294901760
      %7952 = vmatpush1.msra.mxu0 %v7951
      %7953 = vmatprep.subr.mxu0 0.0
      %v7954 = vand.u32 %v6877, 4294901760
      %7955 = vmatpush1.msra.mxu0 %v7954
      %7956 = vmatprep.subr.mxu0 0.0
      %v7957 = vand.u32 %v6878, 4294901760
      %7958 = vmatpush1.msra.mxu0 %v7957
      %7959 = vmatprep.subr.mxu0 0.0
      %v7960 = vand.u32 %v6879, 4294901760
      %7961 = vmatpush1.msra.mxu0 %v7960
      %7962 = vmatprep.subr.mxu0 0.0
      %v7963 = vand.u32 %v6880, 4294901760
      %7964 = vmatpush1.msra.mxu0 %v7963
      %7965 = vmatprep.subr.mxu0 0.0
      %v7966 = vand.u32 %v6881, 4294901760
      %7967 = vmatpush1.msra.mxu0 %v7966
      %7968 = vmatprep.subr.mxu0 0.0
      %v7969 = vand.u32 %v6882, 4294901760
      %7970 = vmatpush1.msra.mxu0 %v7969
      %7971 = vmatprep.subr.mxu0 0.0
      %v7972 = vand.u32 %v6883, 4294901760
      %7973 = vmatpush1.msra.mxu0 %v7972
      %7974 = vmatprep.subr.mxu0 0.0
      %7975 = vmatpush1.msra.mxu0 0.0
      %7976 = vmatprep.subr.mxu0 0.0
      %7977 = vmatpush1.msra.mxu0 0.0
      %7978 = vmatprep.subr.mxu0 0.0
      %7979 = vmatpush1.msra.mxu0 0.0
      %7980 = vmatprep.subr.mxu0 0.0
      %7981 = vmatpush1.msra.mxu0 0.0
      %7982 = vmatprep.subr.mxu0 0.0
      %7983 = vmatpush1.msra.mxu0 0.0
      %7984 = vmatprep.subr.mxu0 0.0
      %7985 = vmatpush1.msra.mxu0 0.0
      %7986 = vmatprep.subr.mxu0 0.0
      %7987 = vmatpush1.msra.mxu0 0.0
      %7988 = vmatprep.subr.mxu0 0.0
      %7989 = vmatpush1.msra.mxu0 0.0
      %7990 = vmatprep.subr.mxu0 0.0
      %7991 = vmatpush1.msra.mxu0 0.0
      %7992 = vmatprep.subr.mxu0 0.0
      %7993 = vmatpush1.msra.mxu0 0.0
      %7994 = vmatprep.subr.mxu0 0.0
      %7995 = vmatpush1.msra.mxu0 0.0
      %7996 = vmatprep.subr.mxu0 0.0
      %7997 = vmatpush1.msra.mxu0 0.0
      %7998 = vmatprep.subr.mxu0 0.0
      %7999 = vmatpush1.msra.mxu0 0.0
      %8000 = vmatprep.subr.mxu0 0.0
      %8001 = vmatpush1.msra.mxu0 0.0
      %8002 = vmatprep.subr.mxu0 0.0
      %8003 = vmatpush1.msra.mxu0 0.0
      %8004 = vmatprep.subr.mxu0 0.0
      %8005 = vmatpush1.msra.mxu0 0.0
      %8006 = vmatprep.subr.mxu0 0.0
      %8007 = vmatpush1.msra.mxu0 0.0
      %8008 = vmatprep.subr.mxu0 0.0
      %8009 = vmatpush1.msra.mxu0 0.0
      %8010 = vmatprep.subr.mxu0 0.0
      %8011 = vmatpush1.msra.mxu0 0.0
      %8012 = vmatprep.subr.mxu0 0.0
      %8013 = vmatpush1.msra.mxu0 0.0
      %8014 = vmatprep.subr.mxu0 0.0
      %8015 = vmatpush1.msra.mxu0 0.0
      %8016 = vmatprep.subr.mxu0 0.0
      %8017 = vmatpush1.msra.mxu0 0.0
      %8018 = vmatprep.subr.mxu0 0.0
      %8019 = vmatpush1.msra.mxu0 0.0
      %8020 = vmatprep.subr.mxu0 0.0
      %8021 = vmatpush1.msra.mxu0 0.0
      %8022 = vmatprep.mubr.f32.mxu0 0.0
      %v8023 = vand.u32 %v6890, 4294901760
      %8024 = vmatmul.mubr.f32.gmra.mrb[0].mxu0 %v8023
      %v8025 = vpop.f32.mrb[0].mxu0
      %v8026 = vadd.f32 %v7857, %v8025
      %v8027 = vpop.f32.mrb[0].mxu0
      %8028 = vmatprep.mubr.f32.mxu0 0.0
      %v8029 = vand.u32 %v6893, 4294901760
      %8030 = vmatmul.mubr.f32.gmra.mrb[0].mxu0 %v8029
      %v8031 = vpop.f32.mrb[0].mxu0
      %v8032 = vadd.f32 %v7863, %v8031
      %v8033 = vpop.f32.mrb[0].mxu0
      %8034 = vmatprep.mubr.f32.mxu0 0.0
      %v8035 = vand.u32 %v6896, 4294901760
      %8036 = vmatmul.mubr.f32.gmra.mrb[0].mxu0 %v8035
      %v8037 = vpop.f32.mrb[0].mxu0
      %v8038 = vadd.f32 %v7869, %v8037
      %v8039 = vpop.f32.mrb[0].mxu0
      %8040 = vmatprep.mubr.f32.mxu0 0.0
      %v8041 = vand.u32 %v6899, 4294901760
      %8042 = vmatmul.mubr.f32.gmra.mrb[0].mxu0 %v8041
      %v8043 = vpop.f32.mrb[0].mxu0
      %v8044 = vadd.f32 %v7875, %v8043
      %v8045 = vpop.f32.mrb[0].mxu0
      %8046 = vmatprep.mubr.f32.mxu0 0.0
      %v8047 = vand.u32 %v6902, 4294901760
      %8048 = vmatmul.mubr.f32.gmra.mrb[0].mxu0 %v8047
      %v8049 = vpop.f32.mrb[0].mxu0
      %v8050 = vadd.f32 %v7881, %v8049
      %v8051 = vpop.f32.mrb[0].mxu0
      %8052 = vmatprep.mubr.f32.mxu0 0.0
      %v8053 = vand.u32 %v6905, 4294901760
      %8054 = vmatmul.mubr.f32.gmra.mrb[0].mxu0 %v8053
      %v8055 = vpop.f32.mrb[0].mxu0
      %v8056 = vadd.f32 %v7887, %v8055
      %v8057 = vpop.f32.mrb[0].mxu0
      %8058 = vmatprep.mubr.f32.mxu0 0.0
      %v8059 = vand.u32 %v6908, 4294901760
      %8060 = vmatmul.mubr.f32.gmra.mrb[0].mxu0 %v8059
      %v8061 = vpop.f32.mrb[0].mxu0
      %v8062 = vadd.f32 %v7893, %v8061
      %v8063 = vpop.f32.mrb[0].mxu0
      %8064 = vmatprep.mubr.f32.mxu0 0.0
      %v8065 = vand.u32 %v6911, 4294901760
      %8066 = vmatmul.mubr.f32.gmra.mrb[0].mxu0 %v8065
      %v8067 = vpop.f32.mrb[0].mxu0
      %v8068 = vadd.f32 %v7899, %v8067
      %v8069 = vpop.f32.mrb[0].mxu0
      %8070 = vmatprep.mubr.f32.mxu0 0.0
      %v8071 = vand.u32 %v6914, 4294901760
      %8072 = vmatmul.mubr.f32.gmra.mrb[0].mxu0 %v8071
      %v8073 = vpop.f32.mrb[0].mxu0
      %v8074 = vadd.f32 %v7905, %v8073
      %v8075 = vpop.f32.mrb[0].mxu0
      %8076 = vmatprep.mubr.f32.mxu0 0.0
      %v8077 = vand.u32 %v6917, 4294901760
      %8078 = vmatmul.mubr.f32.gmra.mrb[0].mxu0 %v8077
      %v8079 = vpop.f32.mrb[0].mxu0
      %v8080 = vadd.f32 %v7911, %v8079
      %v8081 = vpop.f32.mrb[0].mxu0
      %8082 = vmatprep.mubr.f32.mxu0 0.0
      %v8083 = vand.u32 %v6920, 4294901760
      %8084 = vmatmul.mubr.f32.gmra.mrb[0].mxu0 %v8083
      %v8085 = vpop.f32.mrb[0].mxu0
      %v8086 = vadd.f32 %v7917, %v8085
      %v8087 = vpop.f32.mrb[0].mxu0
      %8088 = vmatprep.mubr.f32.mxu0 0.0
      %v8089 = vand.u32 %v6923, 4294901760
      %8090 = vmatmul.mubr.f32.gmra.mrb[0].mxu0 %v8089
      %v8091 = vpop.f32.mrb[0].mxu0
      %v8092 = vadd.f32 %v7923, %v8091
      %v8093 = vpop.f32.mrb[0].mxu0
      %8094 = vmatprep.mubr.f32.mxu0 0.0
      %v8095 = vand.u32 %v6926, 4294901760
      %8096 = vmatmul.mubr.f32.gmra.mrb[0].mxu0 %v8095
      %v8097 = vpop.f32.mrb[0].mxu0
      %v8098 = vadd.f32 %v7929, %v8097
      %v8099 = vpop.f32.mrb[0].mxu0
      %8100 = vmatprep.mubr.f32.mxu0 0.0
      %v8101 = vand.u32 %v6929, 4294901760
      %8102 = vmatmul.mubr.f32.gmra.mrb[0].mxu0 %v8101
      %v8103 = vpop.f32.mrb[0].mxu0
      %v8104 = vadd.f32 %v7935, %v8103
      %v8105 = vpop.f32.mrb[0].mxu0
      %8106 = vmatprep.mubr.f32.mxu0 0.0
      %v8107 = vand.u32 %v6932, 4294901760
      %8108 = vmatmul.mubr.f32.gmra.mrb[0].mxu0 %v8107
      %v8109 = vpop.f32.mrb[0].mxu0
      %v8110 = vadd.f32 %v7941, %v8109
      %v8111 = vpop.f32.mrb[0].mxu0
      %8112 = vmatprep.mubr.f32.mxu0 0.0
      %v8113 = vand.u32 %v6935, 4294901760
      %8114 = vmatmul.mubr.f32.gmra.mrb[0].mxu0 %v8113
      %v8115 = vpop.f32.mrb[0].mxu0
      %v8116 = vadd.f32 %v7947, %v8115
      %v8117 = vpop.f32.mrb[0].mxu0
      %8118 = vdwg.mxu0
      %v8119 = vxor.u32 %v8026, 2147483648
      %v8120 = vxor.u32 %v8032, 2147483648
      %v8121 = vxor.u32 %v8038, 2147483648
      %v8122 = vxor.u32 %v8044, 2147483648
      %v8123 = vxor.u32 %v8050, 2147483648
      %v8124 = vxor.u32 %v8056, 2147483648
      %v8125 = vxor.u32 %v8062, 2147483648
      %v8126 = vxor.u32 %v8068, 2147483648
      %v8127 = vxor.u32 %v8074, 2147483648
      %v8128 = vxor.u32 %v8080, 2147483648
      %v8129 = vxor.u32 %v8086, 2147483648
      %v8130 = vxor.u32 %v8092, 2147483648
      %v8131 = vxor.u32 %v8098, 2147483648
      %v8132 = vxor.u32 %v8104, 2147483648
      %v8133 = vxor.u32 %v8110, 2147483648
      %v8134 = vxor.u32 %v8116, 2147483648
      %v8135 = vmul.f32 %v8119, 1.442695
      %v8136 = vpow.pop %v8135
      %v8137 = vmul.f32 %v8120, 1.442695
      %v8138 = vpow.pop %v8137
      %v8139 = vmul.f32 %v8121, 1.442695
      %v8140 = vpow.pop %v8139
      %v8141 = vmul.f32 %v8122, 1.442695
      %v8142 = vpow.pop %v8141
      %v8143 = vmul.f32 %v8123, 1.442695
      %v8144 = vpow.pop %v8143
      %v8145 = vmul.f32 %v8124, 1.442695
      %v8146 = vpow.pop %v8145
      %v8147 = vmul.f32 %v8125, 1.442695
      %v8148 = vpow.pop %v8147
      %v8149 = vmul.f32 %v8126, 1.442695
      %v8150 = vpow.pop %v8149
      %v8151 = vmul.f32 %v8127, 1.442695
      %v8152 = vpow.pop %v8151
      %v8153 = vmul.f32 %v8128, 1.442695
      %v8154 = vpow.pop %v8153
      %v8155 = vmul.f32 %v8129, 1.442695
      %v8156 = vpow.pop %v8155
      %v8157 = vmul.f32 %v8130, 1.442695
      %v8158 = vpow.pop %v8157
      %v8159 = vmul.f32 %v8131, 1.442695
      %v8160 = vpow.pop %v8159
      %v8161 = vmul.f32 %v8132, 1.442695
      %v8162 = vpow.pop %v8161
      %v8163 = vmul.f32 %v8133, 1.442695
      %v8164 = vpow.pop %v8163
      %v8165 = vmul.f32 %v8134, 1.442695
      %v8166 = vpow.pop %v8165
      %v8167 = vadd.f32 %v8136, 1.0
      %v8168 = vadd.f32 %v8138, 1.0
      %v8169 = vadd.f32 %v8140, 1.0
      %v8170 = vadd.f32 %v8142, 1.0
      %v8171 = vadd.f32 %v8144, 1.0
      %v8172 = vadd.f32 %v8146, 1.0
      %v8173 = vadd.f32 %v8148, 1.0
      %v8174 = vadd.f32 %v8150, 1.0
      %v8175 = vadd.f32 %v8152, 1.0
      %v8176 = vadd.f32 %v8154, 1.0
      %v8177 = vadd.f32 %v8156, 1.0
      %v8178 = vadd.f32 %v8158, 1.0
      %v8179 = vadd.f32 %v8160, 1.0
      %v8180 = vadd.f32 %v8162, 1.0
      %v8181 = vadd.f32 %v8164, 1.0
      %v8182 = vadd.f32 %v8166, 1.0
      %v8183 = vrcp.pop %v8167
      %v8184 = vmul.f32 1.0, %v8183
      %v8185 = vrcp.pop %v8168
      %v8186 = vmul.f32 1.0, %v8185
      %v8187 = vrcp.pop %v8169
      %v8188 = vmul.f32 1.0, %v8187
      %v8189 = vrcp.pop %v8170
      %v8190 = vmul.f32 1.0, %v8189
      %v8191 = vrcp.pop %v8171
      %v8192 = vmul.f32 1.0, %v8191
      %v8193 = vrcp.pop %v8172
      %v8194 = vmul.f32 1.0, %v8193
      %v8195 = vrcp.pop %v8173
      %v8196 = vmul.f32 1.0, %v8195
      %v8197 = vrcp.pop %v8174
      %v8198 = vmul.f32 1.0, %v8197
      %v8199 = vrcp.pop %v8175
      %v8200 = vmul.f32 1.0, %v8199
      %v8201 = vrcp.pop %v8176
      %v8202 = vmul.f32 1.0, %v8201
      %v8203 = vrcp.pop %v8177
      %v8204 = vmul.f32 1.0, %v8203
      %v8205 = vrcp.pop %v8178
      %v8206 = vmul.f32 1.0, %v8205
      %v8207 = vrcp.pop %v8179
      %v8208 = vmul.f32 1.0, %v8207
      %v8209 = vrcp.pop %v8180
      %v8210 = vmul.f32 1.0, %v8209
      %v8211 = vrcp.pop %v8181
      %v8212 = vmul.f32 1.0, %v8211
      %v8213 = vrcp.pop %v8182
      %v8214 = vmul.f32 1.0, %v8213
      %8231 = vrot.lane.b32.xlu0 %v8184, 127
      %v8232 = vpop.permute.xlu0 %8231
      %8233 = vrot.lane.b32.xlu0 %v8186, 127
      %v8234 = vpop.permute.xlu0 %8233
      %8235 = vrot.lane.b32.xlu0 %v8188, 127
      %v8236 = vpop.permute.xlu0 %8235
      %8237 = vrot.lane.b32.xlu0 %v8190, 127
      %v8238 = vpop.permute.xlu0 %8237
      %8239 = vrot.lane.b32.xlu0 %v8192, 127
      %v8240 = vpop.permute.xlu0 %8239
      %8241 = vrot.lane.b32.xlu0 %v8194, 127
      %v8242 = vpop.permute.xlu0 %8241
      %8243 = vrot.lane.b32.xlu0 %v8196, 127
      %v8244 = vpop.permute.xlu0 %8243
      %8245 = vrot.lane.b32.xlu0 %v8198, 127
      %v8246 = vpop.permute.xlu0 %8245
      %8247 = vrot.lane.b32.xlu0 %v8200, 127
      %v8248 = vpop.permute.xlu0 %8247
      %8249 = vrot.lane.b32.xlu0 %v8202, 127
      %v8250 = vpop.permute.xlu0 %8249
      %8251 = vrot.lane.b32.xlu0 %v8204, 127
      %v8252 = vpop.permute.xlu0 %8251
      %8253 = vrot.lane.b32.xlu0 %v8206, 127
      %v8254 = vpop.permute.xlu0 %8253
      %8255 = vrot.lane.b32.xlu0 %v8208, 127
      %v8256 = vpop.permute.xlu0 %8255
      %8257 = vrot.lane.b32.xlu0 %v8210, 127
      %v8258 = vpop.permute.xlu0 %8257
      %8259 = vrot.lane.b32.xlu0 %v8212, 127
      %v8260 = vpop.permute.xlu0 %8259
      %8261 = vrot.lane.b32.xlu0 %v8214, 127
      %v8262 = vpop.permute.xlu0 %8261
      %v8279 = vmul.f32 %v8026, %v8232
      %v8280 = vmul.f32 %v8032, %v8234
      %v8281 = vmul.f32 %v8038, %v8236
      %v8282 = vmul.f32 %v8044, %v8238
      %v8283 = vmul.f32 %v8050, %v8240
      %v8284 = vmul.f32 %v8056, %v8242
      %v8285 = vmul.f32 %v8062, %v8244
      %v8286 = vmul.f32 %v8068, %v8246
      %v8287 = vmul.f32 %v8074, %v8248
      %v8288 = vmul.f32 %v8080, %v8250
      %v8289 = vmul.f32 %v8086, %v8252
      %v8290 = vmul.f32 %v8092, %v8254
      %v8291 = vmul.f32 %v8098, %v8256
      %v8292 = vmul.f32 %v8104, %v8258
      %v8293 = vmul.f32 %v8110, %v8260
      %v8294 = vmul.f32 %v8116, %v8262
      %v8295 = vadd.f32 %v4638, 1.0
      %v8296 = vadd.f32 %v4639, 1.0
      %v8297 = vadd.f32 %v4640, 1.0
      %v8298 = vadd.f32 %v4641, 1.0
      %v8299 = vadd.f32 %v4642, 1.0
      %v8300 = vadd.f32 %v4643, 1.0
      %v8301 = vadd.f32 %v4644, 1.0
      %v8302 = vadd.f32 %v4645, 1.0
      %v8303 = vadd.f32 %v4646, 1.0
      %v8304 = vadd.f32 %v4647, 1.0
      %v8305 = vadd.f32 %v4648, 1.0
      %v8306 = vadd.f32 %v4649, 1.0
      %v8307 = vadd.f32 %v4650, 1.0
      %v8308 = vadd.f32 %v4651, 1.0
      %v8309 = vadd.f32 %v4652, 1.0
      %v8310 = vadd.f32 %v4653, 1.0
      %v8311 = vmul.f32 %v4638, %v8295
      %v8312 = vmul.f32 %v4639, %v8296
      %v8313 = vmul.f32 %v4640, %v8297
      %v8314 = vmul.f32 %v4641, %v8298
      %v8315 = vmul.f32 %v4642, %v8299
      %v8316 = vmul.f32 %v4643, %v8300
      %v8317 = vmul.f32 %v4644, %v8301
      %v8318 = vmul.f32 %v4645, %v8302
      %v8319 = vmul.f32 %v4646, %v8303
      %v8320 = vmul.f32 %v4647, %v8304
      %v8321 = vmul.f32 %v4648, %v8305
      %v8322 = vmul.f32 %v4649, %v8306
      %v8323 = vmul.f32 %v4650, %v8307
      %v8324 = vmul.f32 %v4651, %v8308
      %v8325 = vmul.f32 %v4652, %v8309
      %v8326 = vmul.f32 %v4653, %v8310
      %v8327 = vrcp.pop %v8311
      %v8328 = vrcp.pop %v8312
      %v8329 = vrcp.pop %v8313
      %v8330 = vrcp.pop %v8314
      %v8331 = vrcp.pop %v8315
      %v8332 = vrcp.pop %v8316
      %v8333 = vrcp.pop %v8317
      %v8334 = vrcp.pop %v8318
      %v8335 = vrcp.pop %v8319
      %v8336 = vrcp.pop %v8320
      %v8337 = vrcp.pop %v8321
      %v8338 = vrcp.pop %v8322
      %v8339 = vrcp.pop %v8323
      %v8340 = vrcp.pop %v8324
      %v8341 = vrcp.pop %v8325
      %v8342 = vrcp.pop %v8326
      %8344 = vset.pattern.permute.xlu0 0
      %8345 = vperm.xlu0 %8344, %v8279
      %v8346 = vpop.permute.xlu0 %8345
      %8349 = vset.pattern.permute.xlu0 0
      %8350 = vperm.xlu0 %8349, %v8280
      %v8351 = vpop.permute.xlu0 %8350
      %8354 = vset.pattern.permute.xlu0 0
      %8355 = vperm.xlu0 %8354, %v8281
      %v8356 = vpop.permute.xlu0 %8355
      %8359 = vset.pattern.permute.xlu0 0
      %8360 = vperm.xlu0 %8359, %v8282
      %v8361 = vpop.permute.xlu0 %8360
      %8364 = vset.pattern.permute.xlu0 0
      %8365 = vperm.xlu0 %8364, %v8283
      %v8366 = vpop.permute.xlu0 %8365
      %8369 = vset.pattern.permute.xlu0 0
      %8370 = vperm.xlu0 %8369, %v8284
      %v8371 = vpop.permute.xlu0 %8370
      %8374 = vset.pattern.permute.xlu0 0
      %8375 = vperm.xlu0 %8374, %v8285
      %v8376 = vpop.permute.xlu0 %8375
      %8379 = vset.pattern.permute.xlu0 0
      %8380 = vperm.xlu0 %8379, %v8286
      %v8381 = vpop.permute.xlu0 %8380
      %8384 = vset.pattern.permute.xlu0 0
      %8385 = vperm.xlu0 %8384, %v8287
      %v8386 = vpop.permute.xlu0 %8385
      %8389 = vset.pattern.permute.xlu0 0
      %8390 = vperm.xlu0 %8389, %v8288
      %v8391 = vpop.permute.xlu0 %8390
      %8394 = vset.pattern.permute.xlu0 0
      %8395 = vperm.xlu0 %8394, %v8289
      %v8396 = vpop.permute.xlu0 %8395
      %8399 = vset.pattern.permute.xlu0 0
      %8400 = vperm.xlu0 %8399, %v8290
      %v8401 = vpop.permute.xlu0 %8400
      %8404 = vset.pattern.permute.xlu0 0
      %8405 = vperm.xlu0 %8404, %v8291
      %v8406 = vpop.permute.xlu0 %8405
      %8409 = vset.pattern.permute.xlu0 0
      %8410 = vperm.xlu0 %8409, %v8292
      %v8411 = vpop.permute.xlu0 %8410
      %8414 = vset.pattern.permute.xlu0 0
      %8415 = vperm.xlu0 %8414, %v8293
      %v8416 = vpop.permute.xlu0 %8415
      %8419 = vset.pattern.permute.xlu0 0
      %8420 = vperm.xlu0 %8419, %v8294
      %v8421 = vpop.permute.xlu0 %8420
      %v8423 = vmul.f32 %v8346, %v4638
      %v8424 = vmul.f32 %v8351, %v4639
      %v8425 = vmul.f32 %v8356, %v4640
      %v8426 = vmul.f32 %v8361, %v4641
      %v8427 = vmul.f32 %v8366, %v4642
      %v8428 = vmul.f32 %v8371, %v4643
      %v8429 = vmul.f32 %v8376, %v4644
      %v8430 = vmul.f32 %v8381, %v4645
      %v8431 = vmul.f32 %v8386, %v4646
      %v8432 = vmul.f32 %v8391, %v4647
      %v8433 = vmul.f32 %v8396, %v4648
      %v8434 = vmul.f32 %v8401, %v4649
      %v8435 = vmul.f32 %v8406, %v4650
      %v8436 = vmul.f32 %v8411, %v4651
      %v8437 = vmul.f32 %v8416, %v4652
      %v8438 = vmul.f32 %v8421, %v4653
      %8440 = vset.pattern.permute.xlu0 3
      %8441 = vperm.xlu0 %8440, %v8327
      %v8442 = vpop.permute.xlu0 %8441
      %8445 = vset.pattern.permute.xlu0 3
      %8446 = vperm.xlu0 %8445, %v8328
      %v8447 = vpop.permute.xlu0 %8446
      %8450 = vset.pattern.permute.xlu0 3
      %8451 = vperm.xlu0 %8450, %v8329
      %v8452 = vpop.permute.xlu0 %8451
      %8455 = vset.pattern.permute.xlu0 3
      %8456 = vperm.xlu0 %8455, %v8330
      %v8457 = vpop.permute.xlu0 %8456
      %8460 = vset.pattern.permute.xlu0 3
      %8461 = vperm.xlu0 %8460, %v8331
      %v8462 = vpop.permute.xlu0 %8461
      %8465 = vset.pattern.permute.xlu0 3
      %8466 = vperm.xlu0 %8465, %v8332
      %v8467 = vpop.permute.xlu0 %8466
      %8470 = vset.pattern.permute.xlu0 3
      %8471 = vperm.xlu0 %8470, %v8333
      %v8472 = vpop.permute.xlu0 %8471
      %8475 = vset.pattern.permute.xlu0 3
      %8476 = vperm.xlu0 %8475, %v8334
      %v8477 = vpop.permute.xlu0 %8476
      %8480 = vset.pattern.permute.xlu0 3
      %8481 = vperm.xlu0 %8480, %v8335
      %v8482 = vpop.permute.xlu0 %8481
      %8485 = vset.pattern.permute.xlu0 3
      %8486 = vperm.xlu0 %8485, %v8336
      %v8487 = vpop.permute.xlu0 %8486
      %8490 = vset.pattern.permute.xlu0 3
      %8491 = vperm.xlu0 %8490, %v8337
      %v8492 = vpop.permute.xlu0 %8491
      %8495 = vset.pattern.permute.xlu0 3
      %8496 = vperm.xlu0 %8495, %v8338
      %v8497 = vpop.permute.xlu0 %8496
      %8500 = vset.pattern.permute.xlu0 3
      %8501 = vperm.xlu0 %8500, %v8339
      %v8502 = vpop.permute.xlu0 %8501
      %8505 = vset.pattern.permute.xlu0 3
      %8506 = vperm.xlu0 %8505, %v8340
      %v8507 = vpop.permute.xlu0 %8506
      %8510 = vset.pattern.permute.xlu0 3
      %8511 = vperm.xlu0 %8510, %v8341
      %v8512 = vpop.permute.xlu0 %8511
      %8515 = vset.pattern.permute.xlu0 3
      %8516 = vperm.xlu0 %8515, %v8342
      %v8517 = vpop.permute.xlu0 %8516
      %v8519 = vmul.f32 %v8423, %v8442
      %v8520 = vmul.f32 %v8424, %v8447
      %v8521 = vmul.f32 %v8425, %v8452
      %v8522 = vmul.f32 %v8426, %v8457
      %v8523 = vmul.f32 %v8427, %v8462
      %v8524 = vmul.f32 %v8428, %v8467
      %v8525 = vmul.f32 %v8429, %v8472
      %v8526 = vmul.f32 %v8430, %v8477
      %v8527 = vmul.f32 %v8431, %v8482
      %v8528 = vmul.f32 %v8432, %v8487
      %v8529 = vmul.f32 %v8433, %v8492
      %v8530 = vmul.f32 %v8434, %v8497
      %v8531 = vmul.f32 %v8435, %v8502
      %v8532 = vmul.f32 %v8436, %v8507
      %v8533 = vmul.f32 %v8437, %v8512
      %v8534 = vmul.f32 %v8438, %v8517
      %v8535 = vld [vmem:[#allocation4] sm:$0xff]
      %v8536 = vld [vmem:[#allocation4 + $0x8] sm:$0xff]
      %v8537 = vld [vmem:[%s517] sm:$0x1]
      %v8538 = vlaneseq
      %v8539 = vshrl.u32 %v8538, 7
      %v8540 = vsub.s32 0, %v8539
      %v8541 = vrot.slane %v8537, %v8540
      %vm8542 = vcmp.eq.s32.totalorder %v8535, %v8541
      %vm8543 = vcmp.eq.s32.totalorder %v8536, %v8541
      %v8544 = vsel %vm8542, 1, 0
      %v8545 = vsel %vm8543, 1, 0
      %v8546 = vcvt.s32.f32 %v8544
      %v8547 = vcvt.s32.f32 %v8545
      %v8548 = vld [vmem:[%s544] sm:$0xff]
      %v8549 = vld [vmem:[%s544 + $0x8] sm:$0xff]
      %8550 = vmatprep.subr.mxu0 0.0
      %v8551 = vand.u32 %v8519, 4294901760
      %8552 = vmatpush1.msra.mxu0 %v8551
      %8553 = vmatprep.subr.mxu0 0.0
      %v8554 = vand.u32 %v8520, 4294901760
      %8555 = vmatpush1.msra.mxu0 %v8554
      %8556 = vmatprep.subr.mxu0 0.0
      %v8557 = vand.u32 %v8521, 4294901760
      %8558 = vmatpush1.msra.mxu0 %v8557
      %8559 = vmatprep.subr.mxu0 0.0
      %v8560 = vand.u32 %v8522, 4294901760
      %8561 = vmatpush1.msra.mxu0 %v8560
      %8562 = vmatprep.subr.mxu0 0.0
      %v8563 = vand.u32 %v8523, 4294901760
      %8564 = vmatpush1.msra.mxu0 %v8563
      %8565 = vmatprep.subr.mxu0 0.0
      %v8566 = vand.u32 %v8524, 4294901760
      %8567 = vmatpush1.msra.mxu0 %v8566
      %8568 = vmatprep.subr.mxu0 0.0
      %v8569 = vand.u32 %v8525, 4294901760
      %8570 = vmatpush1.msra.mxu0 %v8569
      %8571 = vmatprep.subr.mxu0 0.0
      %v8572 = vand.u32 %v8526, 4294901760
      %8573 = vmatpush1.msra.mxu0 %v8572
      %8574 = vmatprep.subr.mxu0 0.0
      %v8575 = vand.u32 %v8527, 4294901760
      %8576 = vmatpush1.msra.mxu0 %v8575
      %8577 = vmatprep.subr.mxu0 0.0
      %v8578 = vand.u32 %v8528, 4294901760
      %8579 = vmatpush1.msra.mxu0 %v8578
      %8580 = vmatprep.subr.mxu0 0.0
      %v8581 = vand.u32 %v8529, 4294901760
      %8582 = vmatpush1.msra.mxu0 %v8581
      %8583 = vmatprep.subr.mxu0 0.0
      %v8584 = vand.u32 %v8530, 4294901760
      %8585 = vmatpush1.msra.mxu0 %v8584
      %8586 = vmatprep.subr.mxu0 0.0
      %v8587 = vand.u32 %v8531, 4294901760
      %8588 = vmatpush1.msra.mxu0 %v8587
      %8589 = vmatprep.subr.mxu0 0.0
      %v8590 = vand.u32 %v8532, 4294901760
      %8591 = vmatpush1.msra.mxu0 %v8590
      %8592 = vmatprep.subr.mxu0 0.0
      %v8593 = vand.u32 %v8533, 4294901760
      %8594 = vmatpush1.msra.mxu0 %v8593
      %8595 = vmatprep.subr.mxu0 0.0
      %v8596 = vand.u32 %v8534, 4294901760
      %8597 = vmatpush1.msra.mxu0 %v8596
      %8598 = vmatprep.subr.mxu0 0.0
      %8599 = vmatpush1.msra.mxu0 0.0
      %8600 = vmatprep.subr.mxu0 0.0
      %8601 = vmatpush1.msra.mxu0 0.0
      %8602 = vmatprep.subr.mxu0 0.0
      %8603 = vmatpush1.msra.mxu0 0.0
      %8604 = vmatprep.subr.mxu0 0.0
      %8605 = vmatpush1.msra.mxu0 0.0
      %8606 = vmatprep.subr.mxu0 0.0
      %8607 = vmatpush1.msra.mxu0 0.0
      %8608 = vmatprep.subr.mxu0 0.0
      %8609 = vmatpush1.msra.mxu0 0.0
      %8610 = vmatprep.subr.mxu0 0.0
      %8611 = vmatpush1.msra.mxu0 0.0
      %8612 = vmatprep.subr.mxu0 0.0
      %8613 = vmatpush1.msra.mxu0 0.0
      %8614 = vmatprep.subr.mxu0 0.0
      %8615 = vmatpush1.msra.mxu0 0.0
      %8616 = vmatprep.subr.mxu0 0.0
      %8617 = vmatpush1.msra.mxu0 0.0
      %8618 = vmatprep.subr.mxu0 0.0
      %8619 = vmatpush1.msra.mxu0 0.0
      %8620 = vmatprep.subr.mxu0 0.0
      %8621 = vmatpush1.msra.mxu0 0.0
      %8622 = vmatprep.subr.mxu0 0.0
      %8623 = vmatpush1.msra.mxu0 0.0
      %8624 = vmatprep.subr.mxu0 0.0
      %8625 = vmatpush1.msra.mxu0 0.0
      %8626 = vmatprep.subr.mxu0 0.0
      %8627 = vmatpush1.msra.mxu0 0.0
      %8628 = vmatprep.subr.mxu0 0.0
      %8629 = vmatpush1.msra.mxu0 0.0
      %8630 = vmatprep.mubr.f32.mxu0 0.0
      %v8631 = vand.u32 %v8546, 4294901760
      %v8632 = vsub.f32 %v8546, %v8631
      %v8633 = vand.u32 %v8632, 4294901760
      %v8634 = vsub.f32 %v8632, %v8633
      %v8635 = vand.u32 %v8634, 4294901760
      %8636 = vmatmul.mubr.f32.gmra.mrb[0].mxu0 %v8635
      %v8637 = vpop.f32.mrb[0].mxu0
      %v8638 = vadd.f32 0.0, %v8637
      %v8639 = vpop.f32.mrb[0].mxu0
      %8640 = vmatprep.mubr.f32.mxu0 0.0
      %v8641 = vand.u32 %v8547, 4294901760
      %v8642 = vsub.f32 %v8547, %v8641
      %v8643 = vand.u32 %v8642, 4294901760
      %v8644 = vsub.f32 %v8642, %v8643
      %v8645 = vand.u32 %v8644, 4294901760
      %8646 = vmatmul.mubr.f32.gmra.mrb[0].mxu0 %v8645
      %v8647 = vpop.f32.mrb[0].mxu0
      %v8648 = vadd.f32 0.0, %v8647
      %v8649 = vpop.f32.mrb[0].mxu0
      %8650 = vdwg.mxu0
      %8651 = vmatprep.subr.mxu0 0.0
      %v8652 = vand.u32 %v8519, 4294901760
      %v8653 = vsub.f32 %v8519, %v8652
      %v8654 = vand.u32 %v8653, 4294901760
      %v8655 = vsub.f32 %v8653, %v8654
      %v8656 = vand.u32 %v8655, 4294901760
      %8657 = vmatpush1.msra.mxu0 %v8656
      %8658 = vmatprep.subr.mxu0 0.0
      %v8659 = vand.u32 %v8520, 4294901760
      %v8660 = vsub.f32 %v8520, %v8659
      %v8661 = vand.u32 %v8660, 4294901760
      %v8662 = vsub.f32 %v8660, %v8661
      %v8663 = vand.u32 %v8662, 4294901760
      %8664 = vmatpush1.msra.mxu0 %v8663
      %8665 = vmatprep.subr.mxu0 0.0
      %v8666 = vand.u32 %v8521, 4294901760
      %v8667 = vsub.f32 %v8521, %v8666
      %v8668 = vand.u32 %v8667, 4294901760
      %v8669 = vsub.f32 %v8667, %v8668
      %v8670 = vand.u32 %v8669, 4294901760
      %8671 = vmatpush1.msra.mxu0 %v8670
      %8672 = vmatprep.subr.mxu0 0.0
      %v8673 = vand.u32 %v8522, 4294901760
      %v8674 = vsub.f32 %v8522, %v8673
      %v8675 = vand.u32 %v8674, 4294901760
      %v8676 = vsub.f32 %v8674, %v8675
      %v8677 = vand.u32 %v8676, 4294901760
      %8678 = vmatpush1.msra.mxu0 %v8677
      %8679 = vmatprep.subr.mxu0 0.0
      %v8680 = vand.u32 %v8523, 4294901760
      %v8681 = vsub.f32 %v8523, %v8680
      %v8682 = vand.u32 %v8681, 4294901760
      %v8683 = vsub.f32 %v8681, %v8682
      %v8684 = vand.u32 %v8683, 4294901760
      %8685 = vmatpush1.msra.mxu0 %v8684
      %8686 = vmatprep.subr.mxu0 0.0
      %v8687 = vand.u32 %v8524, 4294901760
      %v8688 = vsub.f32 %v8524, %v8687
      %v8689 = vand.u32 %v8688, 4294901760
      %v8690 = vsub.f32 %v8688, %v8689
      %v8691 = vand.u32 %v8690, 4294901760
      %8692 = vmatpush1.msra.mxu0 %v8691
      %8693 = vmatprep.subr.mxu0 0.0
      %v8694 = vand.u32 %v8525, 4294901760
      %v8695 = vsub.f32 %v8525, %v8694
      %v8696 = vand.u32 %v8695, 4294901760
      %v8697 = vsub.f32 %v8695, %v8696
      %v8698 = vand.u32 %v8697, 4294901760
      %8699 = vmatpush1.msra.mxu0 %v8698
      %8700 = vmatprep.subr.mxu0 0.0
      %v8701 = vand.u32 %v8526, 4294901760
      %v8702 = vsub.f32 %v8526, %v8701
      %v8703 = vand.u32 %v8702, 4294901760
      %v8704 = vsub.f32 %v8702, %v8703
      %v8705 = vand.u32 %v8704, 4294901760
      %8706 = vmatpush1.msra.mxu0 %v8705
      %8707 = vmatprep.subr.mxu0 0.0
      %v8708 = vand.u32 %v8527, 4294901760
      %v8709 = vsub.f32 %v8527, %v8708
      %v8710 = vand.u32 %v8709, 4294901760
      %v8711 = vsub.f32 %v8709, %v8710
      %v8712 = vand.u32 %v8711, 4294901760
      %8713 = vmatpush1.msra.mxu0 %v8712
      %8714 = vmatprep.subr.mxu0 0.0
      %v8715 = vand.u32 %v8528, 4294901760
      %v8716 = vsub.f32 %v8528, %v8715
      %v8717 = vand.u32 %v8716, 4294901760
      %v8718 = vsub.f32 %v8716, %v8717
      %v8719 = vand.u32 %v8718, 4294901760
      %8720 = vmatpush1.msra.mxu0 %v8719
      %8721 = vmatprep.subr.mxu0 0.0
      %v8722 = vand.u32 %v8529, 4294901760
      %v8723 = vsub.f32 %v8529, %v8722
      %v8724 = vand.u32 %v8723, 4294901760
      %v8725 = vsub.f32 %v8723, %v8724
      %v8726 = vand.u32 %v8725, 4294901760
      %8727 = vmatpush1.msra.mxu0 %v8726
      %8728 = vmatprep.subr.mxu0 0.0
      %v8729 = vand.u32 %v8530, 4294901760
      %v8730 = vsub.f32 %v8530, %v8729
      %v8731 = vand.u32 %v8730, 4294901760
      %v8732 = vsub.f32 %v8730, %v8731
      %v8733 = vand.u32 %v8732, 4294901760
      %8734 = vmatpush1.msra.mxu0 %v8733
      %8735 = vmatprep.subr.mxu0 0.0
      %v8736 = vand.u32 %v8531, 4294901760
      %v8737 = vsub.f32 %v8531, %v8736
      %v8738 = vand.u32 %v8737, 4294901760
      %v8739 = vsub.f32 %v8737, %v8738
      %v8740 = vand.u32 %v8739, 4294901760
      %8741 = vmatpush1.msra.mxu0 %v8740
      %8742 = vmatprep.subr.mxu0 0.0
      %v8743 = vand.u32 %v8532, 4294901760
      %v8744 = vsub.f32 %v8532, %v8743
      %v8745 = vand.u32 %v8744, 4294901760
      %v8746 = vsub.f32 %v8744, %v8745
      %v8747 = vand.u32 %v8746, 4294901760
      %8748 = vmatpush1.msra.mxu0 %v8747
      %8749 = vmatprep.subr.mxu0 0.0
      %v8750 = vand.u32 %v8533, 4294901760
      %v8751 = vsub.f32 %v8533, %v8750
      %v8752 = vand.u32 %v8751, 4294901760
      %v8753 = vsub.f32 %v8751, %v8752
      %v8754 = vand.u32 %v8753, 4294901760
      %8755 = vmatpush1.msra.mxu0 %v8754
      %8756 = vmatprep.subr.mxu0 0.0
      %v8757 = vand.u32 %v8534, 4294901760
      %v8758 = vsub.f32 %v8534, %v8757
      %v8759 = vand.u32 %v8758, 4294901760
      %v8760 = vsub.f32 %v8758, %v8759
      %v8761 = vand.u32 %v8760, 4294901760
      %8762 = vmatpush1.msra.mxu0 %v8761
      %8763 = vmatprep.subr.mxu0 0.0
      %8764 = vmatpush1.msra.mxu0 0.0
      %8765 = vmatprep.subr.mxu0 0.0
      %8766 = vmatpush1.msra.mxu0 0.0
      %8767 = vmatprep.subr.mxu0 0.0
      %8768 = vmatpush1.msra.mxu0 0.0
      %8769 = vmatprep.subr.mxu0 0.0
      %8770 = vmatpush1.msra.mxu0 0.0
      %8771 = vmatprep.subr.mxu0 0.0
      %8772 = vmatpush1.msra.mxu0 0.0
      %8773 = vmatprep.subr.mxu0 0.0
      %8774 = vmatpush1.msra.mxu0 0.0
      %8775 = vmatprep.subr.mxu0 0.0
      %8776 = vmatpush1.msra.mxu0 0.0
      %8777 = vmatprep.subr.mxu0 0.0
      %8778 = vmatpush1.msra.mxu0 0.0
      %8779 = vmatprep.subr.mxu0 0.0
      %8780 = vmatpush1.msra.mxu0 0.0
      %8781 = vmatprep.subr.mxu0 0.0
      %8782 = vmatpush1.msra.mxu0 0.0
      %8783 = vmatprep.subr.mxu0 0.0
      %8784 = vmatpush1.msra.mxu0 0.0
      %8785 = vmatprep.subr.mxu0 0.0
      %8786 = vmatpush1.msra.mxu0 0.0
      %8787 = vmatprep.subr.mxu0 0.0
      %8788 = vmatpush1.msra.mxu0 0.0
      %8789 = vmatprep.subr.mxu0 0.0
      %8790 = vmatpush1.msra.mxu0 0.0
      %8791 = vmatprep.subr.mxu0 0.0
      %8792 = vmatpush1.msra.mxu0 0.0
      %8793 = vmatprep.subr.mxu0 0.0
      %8794 = vmatpush1.msra.mxu0 0.0
      %8795 = vmatprep.mubr.f32.mxu0 0.0
      %v8796 = vand.u32 %v8546, 4294901760
      %8797 = vmatmul.mubr.f32.gmra.mrb[0].mxu0 %v8796
      %v8798 = vpop.f32.mrb[0].mxu0
      %v8799 = vadd.f32 %v8638, %v8798
      %v8800 = vpop.f32.mrb[0].mxu0
      %8801 = vmatprep.mubr.f32.mxu0 0.0
      %v8802 = vand.u32 %v8547, 4294901760
      %8803 = vmatmul.mubr.f32.gmra.mrb[0].mxu0 %v8802
      %v8804 = vpop.f32.mrb[0].mxu0
      %v8805 = vadd.f32 %v8648, %v8804
      %v8806 = vpop.f32.mrb[0].mxu0
      %8807 = vdwg.mxu0
      %8808 = vmatprep.subr.mxu0 0.0
      %v8809 = vand.u32 %v8519, 4294901760
      %v8810 = vsub.f32 %v8519, %v8809
      %8811 = vmatpush1.msra.mxu0 %v8810
      %8812 = vmatprep.subr.mxu0 0.0
      %v8813 = vand.u32 %v8520, 4294901760
      %v8814 = vsub.f32 %v8520, %v8813
      %8815 = vmatpush1.msra.mxu0 %v8814
      %8816 = vmatprep.subr.mxu0 0.0
      %v8817 = vand.u32 %v8521, 4294901760
      %v8818 = vsub.f32 %v8521, %v8817
      %8819 = vmatpush1.msra.mxu0 %v8818
      %8820 = vmatprep.subr.mxu0 0.0
      %v8821 = vand.u32 %v8522, 4294901760
      %v8822 = vsub.f32 %v8522, %v8821
      %8823 = vmatpush1.msra.mxu0 %v8822
      %8824 = vmatprep.subr.mxu0 0.0
      %v8825 = vand.u32 %v8523, 4294901760
      %v8826 = vsub.f32 %v8523, %v8825
      %8827 = vmatpush1.msra.mxu0 %v8826
      %8828 = vmatprep.subr.mxu0 0.0
      %v8829 = vand.u32 %v8524, 4294901760
      %v8830 = vsub.f32 %v8524, %v8829
      %8831 = vmatpush1.msra.mxu0 %v8830
      %8832 = vmatprep.subr.mxu0 0.0
      %v8833 = vand.u32 %v8525, 4294901760
      %v8834 = vsub.f32 %v8525, %v8833
      %8835 = vmatpush1.msra.mxu0 %v8834
      %8836 = vmatprep.subr.mxu0 0.0
      %v8837 = vand.u32 %v8526, 4294901760
      %v8838 = vsub.f32 %v8526, %v8837
      %8839 = vmatpush1.msra.mxu0 %v8838
      %8840 = vmatprep.subr.mxu0 0.0
      %v8841 = vand.u32 %v8527, 4294901760
      %v8842 = vsub.f32 %v8527, %v8841
      %8843 = vmatpush1.msra.mxu0 %v8842
      %8844 = vmatprep.subr.mxu0 0.0
      %v8845 = vand.u32 %v8528, 4294901760
      %v8846 = vsub.f32 %v8528, %v8845
      %8847 = vmatpush1.msra.mxu0 %v8846
      %8848 = vmatprep.subr.mxu0 0.0
      %v8849 = vand.u32 %v8529, 4294901760
      %v8850 = vsub.f32 %v8529, %v8849
      %8851 = vmatpush1.msra.mxu0 %v8850
      %8852 = vmatprep.subr.mxu0 0.0
      %v8853 = vand.u32 %v8530, 4294901760
      %v8854 = vsub.f32 %v8530, %v8853
      %8855 = vmatpush1.msra.mxu0 %v8854
      %8856 = vmatprep.subr.mxu0 0.0
      %v8857 = vand.u32 %v8531, 4294901760
      %v8858 = vsub.f32 %v8531, %v8857
      %8859 = vmatpush1.msra.mxu0 %v8858
      %8860 = vmatprep.subr.mxu0 0.0
      %v8861 = vand.u32 %v8532, 4294901760
      %v8862 = vsub.f32 %v8532, %v8861
      %8863 = vmatpush1.msra.mxu0 %v8862
      %8864 = vmatprep.subr.mxu0 0.0
      %v8865 = vand.u32 %v8533, 4294901760
      %v8866 = vsub.f32 %v8533, %v8865
      %8867 = vmatpush1.msra.mxu0 %v8866
      %8868 = vmatprep.subr.mxu0 0.0
      %v8869 = vand.u32 %v8534, 4294901760
      %v8870 = vsub.f32 %v8534, %v8869
      %8871 = vmatpush1.msra.mxu0 %v8870
      %8872 = vmatprep.subr.mxu0 0.0
      %8873 = vmatpush1.msra.mxu0 0.0
      %8874 = vmatprep.subr.mxu0 0.0
      %8875 = vmatpush1.msra.mxu0 0.0
      %8876 = vmatprep.subr.mxu0 0.0
      %8877 = vmatpush1.msra.mxu0 0.0
      %8878 = vmatprep.subr.mxu0 0.0
      %8879 = vmatpush1.msra.mxu0 0.0
      %8880 = vmatprep.subr.mxu0 0.0
      %8881 = vmatpush1.msra.mxu0 0.0
      %8882 = vmatprep.subr.mxu0 0.0
      %8883 = vmatpush1.msra.mxu0 0.0
      %8884 = vmatprep.subr.mxu0 0.0
      %8885 = vmatpush1.msra.mxu0 0.0
      %8886 = vmatprep.subr.mxu0 0.0
      %8887 = vmatpush1.msra.mxu0 0.0
      %8888 = vmatprep.subr.mxu0 0.0
      %8889 = vmatpush1.msra.mxu0 0.0
      %8890 = vmatprep.subr.mxu0 0.0
      %8891 = vmatpush1.msra.mxu0 0.0
      %8892 = vmatprep.subr.mxu0 0.0
      %8893 = vmatpush1.msra.mxu0 0.0
      %8894 = vmatprep.subr.mxu0 0.0
      %8895 = vmatpush1.msra.mxu0 0.0
      %8896 = vmatprep.subr.mxu0 0.0
      %8897 = vmatpush1.msra.mxu0 0.0
      %8898 = vmatprep.subr.mxu0 0.0
      %8899 = vmatpush1.msra.mxu0 0.0
      %8900 = vmatprep.subr.mxu0 0.0
      %8901 = vmatpush1.msra.mxu0 0.0
      %8902 = vmatprep.subr.mxu0 0.0
      %8903 = vmatpush1.msra.mxu0 0.0
      %8904 = vmatprep.mubr.f32.mxu0 0.0
      %v8905 = vand.u32 %v8546, 4294901760
      %v8906 = vsub.f32 %v8546, %v8905
      %8907 = vmatmul.mubr.f32.gmra.mrb[0].mxu0 %v8906
      %v8908 = vpop.f32.mrb[0].mxu0
      %v8909 = vadd.f32 %v8799, %v8908
      %v8910 = vpop.f32.mrb[0].mxu0
      %8911 = vmatprep.mubr.f32.mxu0 0.0
      %v8912 = vand.u32 %v8547, 4294901760
      %v8913 = vsub.f32 %v8547, %v8912
      %8914 = vmatmul.mubr.f32.gmra.mrb[0].mxu0 %v8913
      %v8915 = vpop.f32.mrb[0].mxu0
      %v8916 = vadd.f32 %v8805, %v8915
      %v8917 = vpop.f32.mrb[0].mxu0
      %8918 = vdwg.mxu0
      %8919 = vmatprep.subr.mxu0 0.0
      %v8920 = vand.u32 %v8519, 4294901760
      %8921 = vmatpush1.msra.mxu0 %v8920
      %8922 = vmatprep.subr.mxu0 0.0
      %v8923 = vand.u32 %v8520, 4294901760
      %8924 = vmatpush1.msra.mxu0 %v8923
      %8925 = vmatprep.subr.mxu0 0.0
      %v8926 = vand.u32 %v8521, 4294901760
      %8927 = vmatpush1.msra.mxu0 %v8926
      %8928 = vmatprep.subr.mxu0 0.0
      %v8929 = vand.u32 %v8522, 4294901760
      %8930 = vmatpush1.msra.mxu0 %v8929
      %8931 = vmatprep.subr.mxu0 0.0
      %v8932 = vand.u32 %v8523, 4294901760
      %8933 = vmatpush1.msra.mxu0 %v8932
      %8934 = vmatprep.subr.mxu0 0.0
      %v8935 = vand.u32 %v8524, 4294901760
      %8936 = vmatpush1.msra.mxu0 %v8935
      %8937 = vmatprep.subr.mxu0 0.0
      %v8938 = vand.u32 %v8525, 4294901760
      %8939 = vmatpush1.msra.mxu0 %v8938
      %8940 = vmatprep.subr.mxu0 0.0
      %v8941 = vand.u32 %v8526, 4294901760
      %8942 = vmatpush1.msra.mxu0 %v8941
      %8943 = vmatprep.subr.mxu0 0.0
      %v8944 = vand.u32 %v8527, 4294901760
      %8945 = vmatpush1.msra.mxu0 %v8944
      %8946 = vmatprep.subr.mxu0 0.0
      %v8947 = vand.u32 %v8528, 4294901760
      %8948 = vmatpush1.msra.mxu0 %v8947
      %8949 = vmatprep.subr.mxu0 0.0
      %v8950 = vand.u32 %v8529, 4294901760
      %8951 = vmatpush1.msra.mxu0 %v8950
      %8952 = vmatprep.subr.mxu0 0.0
      %v8953 = vand.u32 %v8530, 4294901760
      %8954 = vmatpush1.msra.mxu0 %v8953
      %8955 = vmatprep.subr.mxu0 0.0
      %v8956 = vand.u32 %v8531, 4294901760
      %8957 = vmatpush1.msra.mxu0 %v8956
      %8958 = vmatprep.subr.mxu0 0.0
      %v8959 = vand.u32 %v8532, 4294901760
      %8960 = vmatpush1.msra.mxu0 %v8959
      %8961 = vmatprep.subr.mxu0 0.0
      %v8962 = vand.u32 %v8533, 4294901760
      %8963 = vmatpush1.msra.mxu0 %v8962
      %8964 = vmatprep.subr.mxu0 0.0
      %v8965 = vand.u32 %v8534, 4294901760
      %8966 = vmatpush1.msra.mxu0 %v8965
      %8967 = vmatprep.subr.mxu0 0.0
      %8968 = vmatpush1.msra.mxu0 0.0
      %8969 = vmatprep.subr.mxu0 0.0
      %8970 = vmatpush1.msra.mxu0 0.0
      %8971 = vmatprep.subr.mxu0 0.0
      %8972 = vmatpush1.msra.mxu0 0.0
      %8973 = vmatprep.subr.mxu0 0.0
      %8974 = vmatpush1.msra.mxu0 0.0
      %8975 = vmatprep.subr.mxu0 0.0
      %8976 = vmatpush1.msra.mxu0 0.0
      %8977 = vmatprep.subr.mxu0 0.0
      %8978 = vmatpush1.msra.mxu0 0.0
      %8979 = vmatprep.subr.mxu0 0.0
      %8980 = vmatpush1.msra.mxu0 0.0
      %8981 = vmatprep.subr.mxu0 0.0
      %8982 = vmatpush1.msra.mxu0 0.0
      %8983 = vmatprep.subr.mxu0 0.0
      %8984 = vmatpush1.msra.mxu0 0.0
      %8985 = vmatprep.subr.mxu0 0.0
      %8986 = vmatpush1.msra.mxu0 0.0
      %8987 = vmatprep.subr.mxu0 0.0
      %8988 = vmatpush1.msra.mxu0 0.0
      %8989 = vmatprep.subr.mxu0 0.0
      %8990 = vmatpush1.msra.mxu0 0.0
      %8991 = vmatprep.subr.mxu0 0.0
      %8992 = vmatpush1.msra.mxu0 0.0
      %8993 = vmatprep.subr.mxu0 0.0
      %8994 = vmatpush1.msra.mxu0 0.0
      %8995 = vmatprep.subr.mxu0 0.0
      %8996 = vmatpush1.msra.mxu0 0.0
      %8997 = vmatprep.subr.mxu0 0.0
      %8998 = vmatpush1.msra.mxu0 0.0
      %8999 = vmatprep.mubr.f32.mxu0 0.0
      %v9000 = vand.u32 %v8546, 4294901760
      %v9001 = vsub.f32 %v8546, %v9000
      %v9002 = vand.u32 %v9001, 4294901760
      %9003 = vmatmul.mubr.f32.gmra.mrb[0].mxu0 %v9002
      %v9004 = vpop.f32.mrb[0].mxu0
      %v9005 = vadd.f32 %v8909, %v9004
      %v9006 = vpop.f32.mrb[0].mxu0
      %9007 = vmatprep.mubr.f32.mxu0 0.0
      %v9008 = vand.u32 %v8547, 4294901760
      %v9009 = vsub.f32 %v8547, %v9008
      %v9010 = vand.u32 %v9009, 4294901760
      %9011 = vmatmul.mubr.f32.gmra.mrb[0].mxu0 %v9010
      %v9012 = vpop.f32.mrb[0].mxu0
      %v9013 = vadd.f32 %v8916, %v9012
      %v9014 = vpop.f32.mrb[0].mxu0
      %9015 = vdwg.mxu0
      %9016 = vmatprep.subr.mxu0 0.0
      %v9017 = vand.u32 %v8519, 4294901760
      %v9018 = vsub.f32 %v8519, %v9017
      %v9019 = vand.u32 %v9018, 4294901760
      %9020 = vmatpush1.msra.mxu0 %v9019
      %9021 = vmatprep.subr.mxu0 0.0
      %v9022 = vand.u32 %v8520, 4294901760
      %v9023 = vsub.f32 %v8520, %v9022
      %v9024 = vand.u32 %v9023, 4294901760
      %9025 = vmatpush1.msra.mxu0 %v9024
      %9026 = vmatprep.subr.mxu0 0.0
      %v9027 = vand.u32 %v8521, 4294901760
      %v9028 = vsub.f32 %v8521, %v9027
      %v9029 = vand.u32 %v9028, 4294901760
      %9030 = vmatpush1.msra.mxu0 %v9029
      %9031 = vmatprep.subr.mxu0 0.0
      %v9032 = vand.u32 %v8522, 4294901760
      %v9033 = vsub.f32 %v8522, %v9032
      %v9034 = vand.u32 %v9033, 4294901760
      %9035 = vmatpush1.msra.mxu0 %v9034
      %9036 = vmatprep.subr.mxu0 0.0
      %v9037 = vand.u32 %v8523, 4294901760
      %v9038 = vsub.f32 %v8523, %v9037
      %v9039 = vand.u32 %v9038, 4294901760
      %9040 = vmatpush1.msra.mxu0 %v9039
      %9041 = vmatprep.subr.mxu0 0.0
      %v9042 = vand.u32 %v8524, 4294901760
      %v9043 = vsub.f32 %v8524, %v9042
      %v9044 = vand.u32 %v9043, 4294901760
      %9045 = vmatpush1.msra.mxu0 %v9044
      %9046 = vmatprep.subr.mxu0 0.0
      %v9047 = vand.u32 %v8525, 4294901760
      %v9048 = vsub.f32 %v8525, %v9047
      %v9049 = vand.u32 %v9048, 4294901760
      %9050 = vmatpush1.msra.mxu0 %v9049
      %9051 = vmatprep.subr.mxu0 0.0
      %v9052 = vand.u32 %v8526, 4294901760
      %v9053 = vsub.f32 %v8526, %v9052
      %v9054 = vand.u32 %v9053, 4294901760
      %9055 = vmatpush1.msra.mxu0 %v9054
      %9056 = vmatprep.subr.mxu0 0.0
      %v9057 = vand.u32 %v8527, 4294901760
      %v9058 = vsub.f32 %v8527, %v9057
      %v9059 = vand.u32 %v9058, 4294901760
      %9060 = vmatpush1.msra.mxu0 %v9059
      %9061 = vmatprep.subr.mxu0 0.0
      %v9062 = vand.u32 %v8528, 4294901760
      %v9063 = vsub.f32 %v8528, %v9062
      %v9064 = vand.u32 %v9063, 4294901760
      %9065 = vmatpush1.msra.mxu0 %v9064
      %9066 = vmatprep.subr.mxu0 0.0
      %v9067 = vand.u32 %v8529, 4294901760
      %v9068 = vsub.f32 %v8529, %v9067
      %v9069 = vand.u32 %v9068, 4294901760
      %9070 = vmatpush1.msra.mxu0 %v9069
      %9071 = vmatprep.subr.mxu0 0.0
      %v9072 = vand.u32 %v8530, 4294901760
      %v9073 = vsub.f32 %v8530, %v9072
      %v9074 = vand.u32 %v9073, 4294901760
      %9075 = vmatpush1.msra.mxu0 %v9074
      %9076 = vmatprep.subr.mxu0 0.0
      %v9077 = vand.u32 %v8531, 4294901760
      %v9078 = vsub.f32 %v8531, %v9077
      %v9079 = vand.u32 %v9078, 4294901760
      %9080 = vmatpush1.msra.mxu0 %v9079
      %9081 = vmatprep.subr.mxu0 0.0
      %v9082 = vand.u32 %v8532, 4294901760
      %v9083 = vsub.f32 %v8532, %v9082
      %v9084 = vand.u32 %v9083, 4294901760
      %9085 = vmatpush1.msra.mxu0 %v9084
      %9086 = vmatprep.subr.mxu0 0.0
      %v9087 = vand.u32 %v8533, 4294901760
      %v9088 = vsub.f32 %v8533, %v9087
      %v9089 = vand.u32 %v9088, 4294901760
      %9090 = vmatpush1.msra.mxu0 %v9089
      %9091 = vmatprep.subr.mxu0 0.0
      %v9092 = vand.u32 %v8534, 4294901760
      %v9093 = vsub.f32 %v8534, %v9092
      %v9094 = vand.u32 %v9093, 4294901760
      %9095 = vmatpush1.msra.mxu0 %v9094
      %9096 = vmatprep.subr.mxu0 0.0
      %9097 = vmatpush1.msra.mxu0 0.0
      %9098 = vmatprep.subr.mxu0 0.0
      %9099 = vmatpush1.msra.mxu0 0.0
      %9100 = vmatprep.subr.mxu0 0.0
      %9101 = vmatpush1.msra.mxu0 0.0
      %9102 = vmatprep.subr.mxu0 0.0
      %9103 = vmatpush1.msra.mxu0 0.0
      %9104 = vmatprep.subr.mxu0 0.0
      %9105 = vmatpush1.msra.mxu0 0.0
      %9106 = vmatprep.subr.mxu0 0.0
      %9107 = vmatpush1.msra.mxu0 0.0
      %9108 = vmatprep.subr.mxu0 0.0
      %9109 = vmatpush1.msra.mxu0 0.0
      %9110 = vmatprep.subr.mxu0 0.0
      %9111 = vmatpush1.msra.mxu0 0.0
      %9112 = vmatprep.subr.mxu0 0.0
      %9113 = vmatpush1.msra.mxu0 0.0
      %9114 = vmatprep.subr.mxu0 0.0
      %9115 = vmatpush1.msra.mxu0 0.0
      %9116 = vmatprep.subr.mxu0 0.0
      %9117 = vmatpush1.msra.mxu0 0.0
      %9118 = vmatprep.subr.mxu0 0.0
      %9119 = vmatpush1.msra.mxu0 0.0
      %9120 = vmatprep.subr.mxu0 0.0
      %9121 = vmatpush1.msra.mxu0 0.0
      %9122 = vmatprep.subr.mxu0 0.0
      %9123 = vmatpush1.msra.mxu0 0.0
      %9124 = vmatprep.subr.mxu0 0.0
      %9125 = vmatpush1.msra.mxu0 0.0
      %9126 = vmatprep.subr.mxu0 0.0
      %9127 = vmatpush1.msra.mxu0 0.0
      %9128 = vmatprep.mubr.f32.mxu0 0.0
      %v9129 = vand.u32 %v8546, 4294901760
      %9130 = vmatmul.mubr.f32.gmra.mrb[0].mxu0 %v9129
      %v9131 = vpop.f32.mrb[0].mxu0
      %v9132 = vadd.f32 %v9005, %v9131
      %v9133 = vpop.f32.mrb[0].mxu0
      %9134 = vmatprep.mubr.f32.mxu0 0.0
      %v9135 = vand.u32 %v8547, 4294901760
      %9136 = vmatmul.mubr.f32.gmra.mrb[0].mxu0 %v9135
      %v9137 = vpop.f32.mrb[0].mxu0
      %v9138 = vadd.f32 %v9013, %v9137
      %v9139 = vpop.f32.mrb[0].mxu0
      %9140 = vdwg.mxu0
      %9141 = vmatprep.subr.mxu0 0.0
      %v9142 = vand.u32 %v8519, 4294901760
      %9143 = vmatpush1.msra.mxu0 %v9142
      %9144 = vmatprep.subr.mxu0 0.0
      %v9145 = vand.u32 %v8520, 4294901760
      %9146 = vmatpush1.msra.mxu0 %v9145
      %9147 = vmatprep.subr.mxu0 0.0
      %v9148 = vand.u32 %v8521, 4294901760
      %9149 = vmatpush1.msra.mxu0 %v9148
      %9150 = vmatprep.subr.mxu0 0.0
      %v9151 = vand.u32 %v8522, 4294901760
      %9152 = vmatpush1.msra.mxu0 %v9151
      %9153 = vmatprep.subr.mxu0 0.0
      %v9154 = vand.u32 %v8523, 4294901760
      %9155 = vmatpush1.msra.mxu0 %v9154
      %9156 = vmatprep.subr.mxu0 0.0
      %v9157 = vand.u32 %v8524, 4294901760
      %9158 = vmatpush1.msra.mxu0 %v9157
      %9159 = vmatprep.subr.mxu0 0.0
      %v9160 = vand.u32 %v8525, 4294901760
      %9161 = vmatpush1.msra.mxu0 %v9160
      %9162 = vmatprep.subr.mxu0 0.0
      %v9163 = vand.u32 %v8526, 4294901760
      %9164 = vmatpush1.msra.mxu0 %v9163
      %9165 = vmatprep.subr.mxu0 0.0
      %v9166 = vand.u32 %v8527, 4294901760
      %9167 = vmatpush1.msra.mxu0 %v9166
      %9168 = vmatprep.subr.mxu0 0.0
      %v9169 = vand.u32 %v8528, 4294901760
      %9170 = vmatpush1.msra.mxu0 %v9169
      %9171 = vmatprep.subr.mxu0 0.0
      %v9172 = vand.u32 %v8529, 4294901760
      %9173 = vmatpush1.msra.mxu0 %v9172
      %9174 = vmatprep.subr.mxu0 0.0
      %v9175 = vand.u32 %v8530, 4294901760
      %9176 = vmatpush1.msra.mxu0 %v9175
      %9177 = vmatprep.subr.mxu0 0.0
      %v9178 = vand.u32 %v8531, 4294901760
      %9179 = vmatpush1.msra.mxu0 %v9178
      %9180 = vmatprep.subr.mxu0 0.0
      %v9181 = vand.u32 %v8532, 4294901760
      %9182 = vmatpush1.msra.mxu0 %v9181
      %9183 = vmatprep.subr.mxu0 0.0
      %v9184 = vand.u32 %v8533, 4294901760
      %9185 = vmatpush1.msra.mxu0 %v9184
      %9186 = vmatprep.subr.mxu0 0.0
      %v9187 = vand.u32 %v8534, 4294901760
      %9188 = vmatpush1.msra.mxu0 %v9187
      %9189 = vmatprep.subr.mxu0 0.0
      %9190 = vmatpush1.msra.mxu0 0.0
      %9191 = vmatprep.subr.mxu0 0.0
      %9192 = vmatpush1.msra.mxu0 0.0
      %9193 = vmatprep.subr.mxu0 0.0
      %9194 = vmatpush1.msra.mxu0 0.0
      %9195 = vmatprep.subr.mxu0 0.0
      %9196 = vmatpush1.msra.mxu0 0.0
      %9197 = vmatprep.subr.mxu0 0.0
      %9198 = vmatpush1.msra.mxu0 0.0
      %9199 = vmatprep.subr.mxu0 0.0
      %9200 = vmatpush1.msra.mxu0 0.0
      %9201 = vmatprep.subr.mxu0 0.0
      %9202 = vmatpush1.msra.mxu0 0.0
      %9203 = vmatprep.subr.mxu0 0.0
      %9204 = vmatpush1.msra.mxu0 0.0
      %9205 = vmatprep.subr.mxu0 0.0
      %9206 = vmatpush1.msra.mxu0 0.0
      %9207 = vmatprep.subr.mxu0 0.0
      %9208 = vmatpush1.msra.mxu0 0.0
      %9209 = vmatprep.subr.mxu0 0.0
      %9210 = vmatpush1.msra.mxu0 0.0
      %9211 = vmatprep.subr.mxu0 0.0
      %9212 = vmatpush1.msra.mxu0 0.0
      %9213 = vmatprep.subr.mxu0 0.0
      %9214 = vmatpush1.msra.mxu0 0.0
      %9215 = vmatprep.subr.mxu0 0.0
      %9216 = vmatpush1.msra.mxu0 0.0
      %9217 = vmatprep.subr.mxu0 0.0
      %9218 = vmatpush1.msra.mxu0 0.0
      %9219 = vmatprep.subr.mxu0 0.0
      %9220 = vmatpush1.msra.mxu0 0.0
      %9221 = vmatprep.mubr.f32.mxu0 0.0
      %v9222 = vand.u32 %v8546, 4294901760
      %9223 = vmatmul.mubr.f32.gmra.mrb[0].mxu0 %v9222
      %v9224 = vpop.f32.mrb[0].mxu0
      %v9225 = vadd.f32 %v9132, %v9224
      %v9226 = vpop.f32.mrb[0].mxu0
      %9227 = vmatprep.mubr.f32.mxu0 0.0
      %v9228 = vand.u32 %v8547, 4294901760
      %9229 = vmatmul.mubr.f32.gmra.mrb[0].mxu0 %v9228
      %v9230 = vpop.f32.mrb[0].mxu0
      %v9231 = vadd.f32 %v9138, %v9230
      %v9232 = vpop.f32.mrb[0].mxu0
      %9233 = vdwg.mxu0
      %v9234 = vadd.f32 %v8548, %v9225
      %v9235 = vadd.f32 %v8549, %v9231
      %vm9236 = vcmask 23552
      %9237 = vst.msk [vmem:[%s544] sm:$0xff] %vm9236, %v9234
      %9238 = vst.msk [vmem:[%s544 + $0x8] sm:$0xff] %vm9236, %v9235
      %p9239 = scmp.lt.s32.totalorder %s27, 0
      %s9240 = scalar_select %p9239, %s27, 0
      %s9241 = smul.addr %s9240, 2
      %s9242 = smul.addr %s9241, 8
      %s9243 = scalar_lea.vmem %s12, %s9242
      // Predicated region
      $region73: #{tpu_custom_call.1} parent=67 // pred_check
        %p9244 = pneg %p341
      $region74: #{tpu_custom_call.1} parent=67 // pred_check_branch
        %9246 = sbr.rel (%p9244) target = $region76
      $region75: #{tpu_custom_call.1} parent=67 // pred_region
        _
      $region76: #{tpu_custom_call.1} parent=67 // pred_fallthru
        _
      // Predicated region
      $region77: #{tpu_custom_call.1} parent=67 // pred_check
        %p9247 = pneg %p341
      $region78: #{tpu_custom_call.1} parent=67 // pred_check_branch
        %9249 = sbr.rel (%p9247) target = $region80
      $region79: #{tpu_custom_call.1} parent=67 // pred_region
        %p9250 = scmp.lt.s32.totalorder %s27, 0
        %s9251 = scalar_select %p9250, %s27, 0
        %s9252 = smul.addr %s9251, 2
        %s9253 = smul.addr %s9252, 8
        %s9254 = scalar_lea.vmem %s12, %s9253
      $region80: #{tpu_custom_call.1} parent=67 // pred_fallthru
        _
    $region68: #{tpu_custom_call.1} parent=5 // pred_fallthru
      _
    %p9255 = scmp.le.s32.totalorder 2, %s18
    // Predicated region
    $region81: #{tpu_custom_call.1} parent=5 // pred_check
      %p9256 = pneg %p9255
    $region82: #{tpu_custom_call.1} parent=5 // pred_check_branch
      %9258 = sbr.rel (%p9256) target = $region84
    $region83: #{tpu_custom_call.1} parent=5 // pred_region
      %s9259 = ssub.s32 %s18, 2
    $region84: #{tpu_custom_call.1} parent=5 // pred_fallthru
      _
  $region6: #{tpu_custom_call.1} parent=0 // loop_footer
    %s22 = sadd.s32 1, %s18
  $region7: #{tpu_custom_call.1} parent=0 // loop_footer_branch
    %17 = sbr.rel target = $region3
  $region8: #{tpu_custom_call.1} parent=0 // loop_exit
    _

</llo_original>
